<compile_context>
chip_gen: v6e
topology: v6e:2x2x1
jax: 0.10.0
libtpu: 0.0.40
codegen_flags: <defaults>
</compile_context>

<pallas_src>
import functools

import jax
import jax.numpy as jnp
from jax import lax
from jax.experimental import pallas as pl
from jax.experimental.pallas import tpu as pltpu

LANES = 128
VMEM_LIMIT = 32 * 1024 * 1024


# ----------------------------- Pallas kernels ------------------------------

def _conv_pool_kernel(a_ref, w_ref, s_ref, t_ref, o_ref):
    """Fused Conv(+BN)+ReLU+MaxPool2x2.

    a_ref: (4, bt, K) bf16  im2col rows of the four 2x2 pool-window candidates
    w_ref: (K, 128)  bf16   conv weight, Cout zero-padded to 128 lanes
    s_ref, t_ref: (1, 128) f32   folded scale / shift (bias + BN)
    o_ref: (bt, 128) f32    pooled, ReLU'd output (lane-dense)
    """
    w = w_ref[...]
    scale = s_ref[...]
    shift = t_ref[...]
    z = jnp.dot(a_ref[0], w, preferred_element_type=jnp.float32) * scale + shift
    for s in range(1, 4):
        zs = jnp.dot(a_ref[s], w, preferred_element_type=jnp.float32) * scale + shift
        z = jnp.maximum(z, zs)              # MaxPool over the 2x2 window
    o_ref[...] = jnp.maximum(z, 0.0)        # ReLU (ReLU and max commute)


def _mlp_kernel(x_ref, w1_ref, b1_ref, w2_ref, b2_ref, w3_ref, b3_ref, o_ref):
    """Fused classifier: Linear+ReLU, Linear+ReLU, Linear. Dropout = identity (eval)."""
    h = jnp.dot(x_ref[...], w1_ref[...], preferred_element_type=jnp.float32) + b1_ref[...]
    h = jnp.maximum(h, 0.0).astype(jnp.bfloat16)
    h = jnp.dot(h, w2_ref[...], preferred_element_type=jnp.float32) + b2_ref[...]
    h = jnp.maximum(h, 0.0).astype(jnp.bfloat16)
    o_ref[...] = jnp.dot(h, w3_ref[...], preferred_element_type=jnp.float32) + b3_ref[...]


# ----------------------------- Pallas wrappers ------------------------------

def _row_block(m, cap=512):
    """Fixed row-tile: multiple of 8 (or the full extent), >=2 grid steps if possible."""
    if m <= cap:
        if m >= 16:
            half = ((m + 15) // 16) * 8       # ~ceil(m/2), rounded up to a multiple of 8
            return min(half, m)
        return m
    return cap


def conv_bn_relu_pool(a4, wmat, scale, shift):
    """a4: (4, M2, K) bf16 candidate-major patches; wmat: (K,128) bf16;
    scale/shift: (1,128) f32.  Returns (M2, 128) f32 pooled+ReLU'd activations."""
    _, m2, k = a4.shape
    bt = _row_block(m2, cap=512)
    grid = (pl.cdiv(m2, bt),)
    return pl.pallas_call(
        _conv_pool_kernel,
        out_shape=jax.ShapeDtypeStruct((m2, LANES), jnp.float32),
        grid=grid,
        in_specs=[
            pl.BlockSpec((4, bt, k), lambda i: (0, i, 0)),
            pl.BlockSpec((k, LANES), lambda i: (0, 0)),      # resident weights
            pl.BlockSpec((1, LANES), lambda i: (0, 0)),
            pl.BlockSpec((1, LANES), lambda i: (0, 0)),
        ],
        out_specs=pl.BlockSpec((bt, LANES), lambda i: (i, 0)),
        compiler_params=pltpu.CompilerParams(
            dimension_semantics=("parallel",), vmem_limit_bytes=VMEM_LIMIT),
    )(a4, wmat, scale, shift)


def mlp(x, w1, b1, w2, b2, w3, b3):
    n, d = x.shape
    out_f = w3.shape[1]
    bn = _row_block(n, cap=256)
    grid = (pl.cdiv(n, bn),)

    def full_spec(shape):
        nd = len(shape)
        return pl.BlockSpec(shape, lambda i, _nd=nd: (0,) * _nd)

    return pl.pallas_call(
        _mlp_kernel,
        out_shape=jax.ShapeDtypeStruct((n, out_f), jnp.float32),
        grid=grid,
        in_specs=[pl.BlockSpec((bn, d), lambda i: (i, 0)),
                  full_spec(w1.shape), full_spec(b1.shape),
                  full_spec(w2.shape), full_spec(b2.shape),
                  full_spec(w3.shape), full_spec(b3.shape)],
        out_specs=pl.BlockSpec((bn, out_f), lambda i: (i, 0)),
        compiler_params=pltpu.CompilerParams(
            dimension_semantics=("parallel",), vmem_limit_bytes=VMEM_LIMIT),
    )(x, w1, b1, w2, b2, w3, b3)


# ------------------------------- JAX glue -----------------------------------

def _pad_cols(a, n=LANES):
    return jnp.pad(a, ((0, 0), (0, n - a.shape[-1])))


def _pool_candidate_patches(x_nhwc, ksize):
    """NHWC input -> (4, N*Hp*Wp, Cin*kh*kw) bf16 patches grouped by 2x2 pool window.

    Feature order is (Cin, kh, kw), matching PyTorch weight.view(Cout, -1)."""
    n = x_nhwc.shape[0]
    p = lax.conv_general_dilated_patches(
        x_nhwc, (ksize, ksize), (1, 1), "VALID",
        dimension_numbers=("NHWC", "HWIO", "NHWC"))          # (N, Ho, Wo, K)
    _, ho, wo, k = p.shape
    hp, wp = ho // 2, wo // 2
    p = p.reshape(n, hp, 2, wp, 2, k)
    p = jnp.transpose(p, (2, 4, 0, 1, 3, 5))                 # (2, 2, N, Hp, Wp, K)
    return p.reshape(4, n * hp * wp, k)


def net6_forward(x, p):
    """x: (N, 1, 64, 64) float32 -> (N, 8) float32."""
    n = x.shape[0]
    eps = 1e-5
    bf16 = jnp.bfloat16

    # ---- stage 1: Conv2d(1,10,5) + ReLU + MaxPool(2,2), fused ----
    x_nhwc = jnp.transpose(x, (0, 2, 3, 1)).astype(bf16)                # (N,64,64,1)
    a1 = _pool_candidate_patches(x_nhwc, 5)                             # (4, N*900, 25)
    w1 = _pad_cols(p["conv1_w"].reshape(10, 25).T).astype(bf16)         # (25,128)
    s1 = _pad_cols(jnp.ones((1, 10), jnp.float32))
    t1 = _pad_cols(p["conv1_b"].reshape(1, 10))
    y1 = conv_bn_relu_pool(a1, w1, s1, t1)                              # (N*900,128) f32

    # ---- stage 2: Conv2d(10,20,3) + BN(20) + ReLU + MaxPool(2,2), fused ----
    x1 = y1.reshape(n, 30, 30, LANES)[..., :10].astype(bf16)            # (N,30,30,10)
    a2 = _pool_candidate_patches(x1, 3)                                 # (4, N*196, 90)
    w2 = _pad_cols(p["conv2_w"].reshape(20, 90).T).astype(bf16)         # (90,128)
    bn_s = p["bn_gamma"] / jnp.sqrt(p["bn_var"] + eps)
    s2 = _pad_cols(bn_s.reshape(1, 20))
    t2 = _pad_cols(((p["conv2_b"] - p["bn_mean"]) * bn_s + p["bn_beta"]).reshape(1, 20))
    y2 = conv_bn_relu_pool(a2, w2, s2, t2)                              # (N*196,128) f32

    # ---- classifier: Linear(3920,200)+ReLU, Linear(200,80)+ReLU, Linear(80,8) ----
    feat = y2.reshape(n, 14, 14, LANES)[..., :20]                       # (N,14,14,20)
    feat = jnp.transpose(feat, (0, 3, 1, 2)).reshape(n, 3920)           # PyTorch (c,h,w) flatten
    out = mlp(feat.astype(bf16),
              p["fc1_w"].astype(bf16), p["fc1_b"],
              p["fc2_w"].astype(bf16), p["fc2_b"],
              p["fc3_w"].astype(bf16), p["fc3_b"])
    return out


def init_params(key):
    ks = jax.random.split(key, 10)
    f32 = jnp.float32
    params = {
        "conv1_w": 0.1 * jax.random.normal(ks[0], (10, 1, 5, 5), f32),
        "conv1_b": 0.1 * jax.random.normal(ks[1], (10,), f32),
        "conv2_w": 0.05 * jax.random.normal(ks[2], (20, 10, 3, 3), f32),
        "conv2_b": 0.1 * jax.random.normal(ks[3], (20,), f32),
        "bn_gamma": 1.0 + 0.1 * jax.random.normal(ks[4], (20,), f32),
        "bn_beta": 0.1 * jax.random.normal(ks[5], (20,), f32),
        "bn_mean": jnp.zeros((20,), f32),
        "bn_var": jnp.ones((20,), f32),
        # Linear weights stored as (in, out) == PyTorch weight.T
        "fc1_w": 0.02 * jax.random.normal(ks[6], (3920, 200), f32),
        "fc1_b": jnp.zeros((1, 200), f32),
        "fc2_w": 0.05 * jax.random.normal(ks[7], (200, 80), f32),
        "fc2_b": jnp.zeros((1, 80), f32),
        "fc3_w": 0.1 * jax.random.normal(ks[8], (80, 8), f32),
        "fc3_b": jnp.zeros((1, 8), f32),
    }
    return params


if __name__ == "__main__":
    key = jax.random.PRNGKey(0)
    k_x, k_p = jax.random.split(key)
    params = init_params(k_p)
    x = jax.random.normal(k_x, (2, 1, 64, 64), jnp.float32)

    fwd = jax.jit(functools.partial(net6_forward, p=params))
    out = jax.block_until_ready(fwd(x))

    assert out.shape == (2, 8), out.shape
    assert bool(jnp.all(jnp.isfinite(out)))
    print("KERNEL_OK")
</pallas_src>

<mosaic_0001>
module attributes {stable_mosaic.version = 11 : i64} {
  func.func @_conv_pool_kernel(%arg0: i32, %arg1: memref<4x512x25xbf16, #tpu.memory_space<vmem>>, %arg2: memref<25x128xbf16, #tpu.memory_space<vmem>>, %arg3: memref<1x128xf32, #tpu.memory_space<vmem>>, %arg4: memref<1x128xf32, #tpu.memory_space<vmem>>, %arg5: memref<512x128xf32, #tpu.memory_space<vmem>>) attributes {dimension_semantics = [#tpu.dimension_semantics<parallel>], iteration_bounds = array<i64: 4>, scalar_prefetch = 0 : i64, scratch_operands = 0 : i64, tpu.core_type = #tpu.core_type<tc>, window_params = [{transform_indices = @transform_0, window_bounds = array<i64: 4, 512, 25>}, {pipeline_mode = #tpu.pipeline_mode<synchronous>, transform_indices = @transform_1, window_bounds = array<i64: 25, 128>}, {pipeline_mode = #tpu.pipeline_mode<synchronous>, transform_indices = @transform_2, window_bounds = array<i64: 1, 128>}, {pipeline_mode = #tpu.pipeline_mode<synchronous>, transform_indices = @transform_3, window_bounds = array<i64: 1, 128>}, {transform_indices = @transform_4, window_bounds = array<i64: 512, 128>}]} {
    %c0 = arith.constant 0 : index
    %c0_0 = arith.constant 0 : index
    %0 = vector.load %arg2[%c0, %c0_0] : memref<25x128xbf16, #tpu.memory_space<vmem>>, vector<25x128xbf16>
    %c0_1 = arith.constant 0 : index
    %c0_2 = arith.constant 0 : index
    %1 = vector.load %arg3[%c0_1, %c0_2] : memref<1x128xf32, #tpu.memory_space<vmem>>, vector<1x128xf32>
    %c0_3 = arith.constant 0 : index
    %c0_4 = arith.constant 0 : index
    %2 = vector.load %arg4[%c0_3, %c0_4] : memref<1x128xf32, #tpu.memory_space<vmem>>, vector<1x128xf32>
    %c0_5 = arith.constant 0 : index
    %c0_6 = arith.constant 0 : index
    %c0_7 = arith.constant 0 : index
    %3 = vector.load %arg1[%c0_5, %c0_6, %c0_7] : memref<4x512x25xbf16, #tpu.memory_space<vmem>>, vector<1x512x25xbf16>
    %4 = vector.shape_cast %3 : vector<1x512x25xbf16> to vector<512x25xbf16>
    %cst = arith.constant dense<0.000000e+00> : vector<512x128xf32>
    %5 = tpu.matmul %4, %0, %cst {dimension_numbers = #tpu.dot_dimension_numbers<[1], [0], [0], [1], [0, 0, 1, 1], [], []>} : vector<512x25xbf16>, vector<25x128xbf16>, vector<512x128xf32> -> vector<512x128xf32>
    %6 = vector.broadcast %1 : vector<1x128xf32> to vector<512x128xf32>
    %7 = arith.mulf %5, %6 : vector<512x128xf32>
    %8 = vector.broadcast %2 : vector<1x128xf32> to vector<512x128xf32>
    %9 = arith.addf %7, %8 : vector<512x128xf32>
    %c1 = arith.constant 1 : index
    %c0_8 = arith.constant 0 : index
    %c0_9 = arith.constant 0 : index
    %10 = vector.load %arg1[%c1, %c0_8, %c0_9] : memref<4x512x25xbf16, #tpu.memory_space<vmem>>, vector<1x512x25xbf16>
    %11 = vector.shape_cast %10 : vector<1x512x25xbf16> to vector<512x25xbf16>
    %cst_10 = arith.constant dense<0.000000e+00> : vector<512x128xf32>
    %12 = tpu.matmul %11, %0, %cst_10 {dimension_numbers = #tpu.dot_dimension_numbers<[1], [0], [0], [1], [0, 0, 1, 1], [], []>} : vector<512x25xbf16>, vector<25x128xbf16>, vector<512x128xf32> -> vector<512x128xf32>
    %13 = vector.broadcast %1 : vector<1x128xf32> to vector<512x128xf32>
    %14 = arith.mulf %12, %13 : vector<512x128xf32>
    %15 = vector.broadcast %2 : vector<1x128xf32> to vector<512x128xf32>
    %16 = arith.addf %14, %15 : vector<512x128xf32>
    %17 = arith.maximumf %9, %16 : vector<512x128xf32>
    %c2 = arith.constant 2 : index
    %c0_11 = arith.constant 0 : index
    %c0_12 = arith.constant 0 : index
    %18 = vector.load %arg1[%c2, %c0_11, %c0_12] : memref<4x512x25xbf16, #tpu.memory_space<vmem>>, vector<1x512x25xbf16>
    %19 = vector.shape_cast %18 : vector<1x512x25xbf16> to vector<512x25xbf16>
    %cst_13 = arith.constant dense<0.000000e+00> : vector<512x128xf32>
    %20 = tpu.matmul %19, %0, %cst_13 {dimension_numbers = #tpu.dot_dimension_numbers<[1], [0], [0], [1], [0, 0, 1, 1], [], []>} : vector<512x25xbf16>, vector<25x128xbf16>, vector<512x128xf32> -> vector<512x128xf32>
    %21 = vector.broadcast %1 : vector<1x128xf32> to vector<512x128xf32>
    %22 = arith.mulf %20, %21 : vector<512x128xf32>
    %23 = vector.broadcast %2 : vector<1x128xf32> to vector<512x128xf32>
    %24 = arith.addf %22, %23 : vector<512x128xf32>
    %25 = arith.maximumf %17, %24 : vector<512x128xf32>
    %c3 = arith.constant 3 : index
    %c0_14 = arith.constant 0 : index
    %c0_15 = arith.constant 0 : index
    %26 = vector.load %arg1[%c3, %c0_14, %c0_15] : memref<4x512x25xbf16, #tpu.memory_space<vmem>>, vector<1x512x25xbf16>
    %27 = vector.shape_cast %26 : vector<1x512x25xbf16> to vector<512x25xbf16>
    %cst_16 = arith.constant dense<0.000000e+00> : vector<512x128xf32>
    %28 = tpu.matmul %27, %0, %cst_16 {dimension_numbers = #tpu.dot_dimension_numbers<[1], [0], [0], [1], [0, 0, 1, 1], [], []>} : vector<512x25xbf16>, vector<25x128xbf16>, vector<512x128xf32> -> vector<512x128xf32>
    %29 = vector.broadcast %1 : vector<1x128xf32> to vector<512x128xf32>
    %30 = arith.mulf %28, %29 : vector<512x128xf32>
    %31 = vector.broadcast %2 : vector<1x128xf32> to vector<512x128xf32>
    %32 = arith.addf %30, %31 : vector<512x128xf32>
    %33 = arith.maximumf %25, %32 : vector<512x128xf32>
    %cst_17 = arith.constant 0.000000e+00 : f32
    %34 = vector.broadcast %cst_17 : f32 to vector<512x128xf32>
    %35 = arith.maximumf %33, %34 : vector<512x128xf32>
    %c0_18 = arith.constant 0 : index
    %c0_19 = arith.constant 0 : index
    %36 = vector.load %arg5[%c0_18, %c0_19] : memref<512x128xf32, #tpu.memory_space<vmem>>, vector<512x128xf32>
    tpu.vector_store %arg5[%c0_18, %c0_19], %35 {strides = array<i32>} : memref<512x128xf32, #tpu.memory_space<vmem>>, vector<512x128xf32>,
    return
  }
  func.func @transform_0(%arg0: i32) -> (i32, i32, i32) {
    %c0_i32 = arith.constant 0 : i32
    %c0_i32_0 = arith.constant 0 : i32
    %c0_i32_1 = arith.constant 0 : i32
    return %c0_i32, %arg0, %c0_i32_0 : i32, i32, i32
  }
  func.func @transform_1(%arg0: i32) -> (i32, i32) {
    %c0_i32 = arith.constant 0 : i32
    %c0_i32_0 = arith.constant 0 : i32
    %c0_i32_1 = arith.constant 0 : i32
    return %c0_i32, %c0_i32_0 : i32, i32
  }
  func.func @transform_2(%arg0: i32) -> (i32, i32) {
    %c0_i32 = arith.constant 0 : i32
    %c0_i32_0 = arith.constant 0 : i32
    %c0_i32_1 = arith.constant 0 : i32
    return %c0_i32, %c0_i32_0 : i32, i32
  }
  func.func @transform_3(%arg0: i32) -> (i32, i32) {
    %c0_i32 = arith.constant 0 : i32
    %c0_i32_0 = arith.constant 0 : i32
    %c0_i32_1 = arith.constant 0 : i32
    return %c0_i32, %c0_i32_0 : i32, i32
  }
  func.func @transform_4(%arg0: i32) -> (i32, i32) {
    %c0_i32 = arith.constant 0 : i32
    %c0_i32_0 = arith.constant 0 : i32
    return %arg0, %c0_i32 : i32, i32
  }
}

module attributes {stable_mosaic.version = 11 : i64} {
  func.func @_conv_pool_kernel(%arg0: i32, %arg1: memref<4x200x90xbf16, #tpu.memory_space<vmem>>, %arg2: memref<90x128xbf16, #tpu.memory_space<vmem>>, %arg3: memref<1x128xf32, #tpu.memory_space<vmem>>, %arg4: memref<1x128xf32, #tpu.memory_space<vmem>>, %arg5: memref<200x128xf32, #tpu.memory_space<vmem>>) attributes {dimension_semantics = [#tpu.dimension_semantics<parallel>], iteration_bounds = array<i64: 2>, scalar_prefetch = 0 : i64, scratch_operands = 0 : i64, tpu.core_type = #tpu.core_type<tc>, window_params = [{transform_indices = @transform_0, window_bounds = array<i64: 4, 200, 90>}, {pipeline_mode = #tpu.pipeline_mode<synchronous>, transform_indices = @transform_1, window_bounds = array<i64: 90, 128>}, {pipeline_mode = #tpu.pipeline_mode<synchronous>, transform_indices = @transform_2, window_bounds = array<i64: 1, 128>}, {pipeline_mode = #tpu.pipeline_mode<synchronous>, transform_indices = @transform_3, window_bounds = array<i64: 1, 128>}, {transform_indices = @transform_4, window_bounds = array<i64: 200, 128>}]} {
    %c0 = arith.constant 0 : index
    %c0_0 = arith.constant 0 : index
    %0 = vector.load %arg2[%c0, %c0_0] : memref<90x128xbf16, #tpu.memory_space<vmem>>, vector<90x128xbf16>
    %c0_1 = arith.constant 0 : index
    %c0_2 = arith.constant 0 : index
    %1 = vector.load %arg3[%c0_1, %c0_2] : memref<1x128xf32, #tpu.memory_space<vmem>>, vector<1x128xf32>
    %c0_3 = arith.constant 0 : index
    %c0_4 = arith.constant 0 : index
    %2 = vector.load %arg4[%c0_3, %c0_4] : memref<1x128xf32, #tpu.memory_space<vmem>>, vector<1x128xf32>
    %c0_5 = arith.constant 0 : index
    %c0_6 = arith.constant 0 : index
    %c0_7 = arith.constant 0 : index
    %3 = vector.load %arg1[%c0_5, %c0_6, %c0_7] : memref<4x200x90xbf16, #tpu.memory_space<vmem>>, vector<1x200x90xbf16>
    %4 = vector.shape_cast %3 : vector<1x200x90xbf16> to vector<200x90xbf16>
    %cst = arith.constant dense<0.000000e+00> : vector<200x128xf32>
    %5 = tpu.matmul %4, %0, %cst {dimension_numbers = #tpu.dot_dimension_numbers<[1], [0], [0], [1], [0, 0, 1, 1], [], []>} : vector<200x90xbf16>, vector<90x128xbf16>, vector<200x128xf32> -> vector<200x128xf32>
    %6 = vector.broadcast %1 : vector<1x128xf32> to vector<200x128xf32>
    %7 = arith.mulf %5, %6 : vector<200x128xf32>
    %8 = vector.broadcast %2 : vector<1x128xf32> to vector<200x128xf32>
    %9 = arith.addf %7, %8 : vector<200x128xf32>
    %c1 = arith.constant 1 : index
    %c0_8 = arith.constant 0 : index
    %c0_9 = arith.constant 0 : index
    %10 = vector.load %arg1[%c1, %c0_8, %c0_9] : memref<4x200x90xbf16, #tpu.memory_space<vmem>>, vector<1x200x90xbf16>
    %11 = vector.shape_cast %10 : vector<1x200x90xbf16> to vector<200x90xbf16>
    %cst_10 = arith.constant dense<0.000000e+00> : vector<200x128xf32>
    %12 = tpu.matmul %11, %0, %cst_10 {dimension_numbers = #tpu.dot_dimension_numbers<[1], [0], [0], [1], [0, 0, 1, 1], [], []>} : vector<200x90xbf16>, vector<90x128xbf16>, vector<200x128xf32> -> vector<200x128xf32>
    %13 = vector.broadcast %1 : vector<1x128xf32> to vector<200x128xf32>
    %14 = arith.mulf %12, %13 : vector<200x128xf32>
    %15 = vector.broadcast %2 : vector<1x128xf32> to vector<200x128xf32>
    %16 = arith.addf %14, %15 : vector<200x128xf32>
    %17 = arith.maximumf %9, %16 : vector<200x128xf32>
    %c2 = arith.constant 2 : index
    %c0_11 = arith.constant 0 : index
    %c0_12 = arith.constant 0 : index
    %18 = vector.load %arg1[%c2, %c0_11, %c0_12] : memref<4x200x90xbf16, #tpu.memory_space<vmem>>, vector<1x200x90xbf16>
    %19 = vector.shape_cast %18 : vector<1x200x90xbf16> to vector<200x90xbf16>
    %cst_13 = arith.constant dense<0.000000e+00> : vector<200x128xf32>
    %20 = tpu.matmul %19, %0, %cst_13 {dimension_numbers = #tpu.dot_dimension_numbers<[1], [0], [0], [1], [0, 0, 1, 1], [], []>} : vector<200x90xbf16>, vector<90x128xbf16>, vector<200x128xf32> -> vector<200x128xf32>
    %21 = vector.broadcast %1 : vector<1x128xf32> to vector<200x128xf32>
    %22 = arith.mulf %20, %21 : vector<200x128xf32>
    %23 = vector.broadcast %2 : vector<1x128xf32> to vector<200x128xf32>
    %24 = arith.addf %22, %23 : vector<200x128xf32>
    %25 = arith.maximumf %17, %24 : vector<200x128xf32>
    %c3 = arith.constant 3 : index
    %c0_14 = arith.constant 0 : index
    %c0_15 = arith.constant 0 : index
    %26 = vector.load %arg1[%c3, %c0_14, %c0_15] : memref<4x200x90xbf16, #tpu.memory_space<vmem>>, vector<1x200x90xbf16>
    %27 = vector.shape_cast %26 : vector<1x200x90xbf16> to vector<200x90xbf16>
    %cst_16 = arith.constant dense<0.000000e+00> : vector<200x128xf32>
    %28 = tpu.matmul %27, %0, %cst_16 {dimension_numbers = #tpu.dot_dimension_numbers<[1], [0], [0], [1], [0, 0, 1, 1], [], []>} : vector<200x90xbf16>, vector<90x128xbf16>, vector<200x128xf32> -> vector<200x128xf32>
    %29 = vector.broadcast %1 : vector<1x128xf32> to vector<200x128xf32>
    %30 = arith.mulf %28, %29 : vector<200x128xf32>
    %31 = vector.broadcast %2 : vector<1x128xf32> to vector<200x128xf32>
    %32 = arith.addf %30, %31 : vector<200x128xf32>
    %33 = arith.maximumf %25, %32 : vector<200x128xf32>
    %cst_17 = arith.constant 0.000000e+00 : f32
    %34 = vector.broadcast %cst_17 : f32 to vector<200x128xf32>
    %35 = arith.maximumf %33, %34 : vector<200x128xf32>
    %c0_18 = arith.constant 0 : index
    %c0_19 = arith.constant 0 : index
    %36 = vector.load %arg5[%c0_18, %c0_19] : memref<200x128xf32, #tpu.memory_space<vmem>>, vector<200x128xf32>
    tpu.vector_store %arg5[%c0_18, %c0_19], %35 {strides = array<i32>} : memref<200x128xf32, #tpu.memory_space<vmem>>, vector<200x128xf32>,
    return
  }
  func.func @transform_0(%arg0: i32) -> (i32, i32, i32) {
    %c0_i32 = arith.constant 0 : i32
    %c0_i32_0 = arith.constant 0 : i32
    %c0_i32_1 = arith.constant 0 : i32
    return %c0_i32, %arg0, %c0_i32_0 : i32, i32, i32
  }
  func.func @transform_1(%arg0: i32) -> (i32, i32) {
    %c0_i32 = arith.constant 0 : i32
    %c0_i32_0 = arith.constant 0 : i32
    %c0_i32_1 = arith.constant 0 : i32
    return %c0_i32, %c0_i32_0 : i32, i32
  }
  func.func @transform_2(%arg0: i32) -> (i32, i32) {
    %c0_i32 = arith.constant 0 : i32
    %c0_i32_0 = arith.constant 0 : i32
    %c0_i32_1 = arith.constant 0 : i32
    return %c0_i32, %c0_i32_0 : i32, i32
  }
  func.func @transform_3(%arg0: i32) -> (i32, i32) {
    %c0_i32 = arith.constant 0 : i32
    %c0_i32_0 = arith.constant 0 : i32
    %c0_i32_1 = arith.constant 0 : i32
    return %c0_i32, %c0_i32_0 : i32, i32
  }
  func.func @transform_4(%arg0: i32) -> (i32, i32) {
    %c0_i32 = arith.constant 0 : i32
    %c0_i32_0 = arith.constant 0 : i32
    return %arg0, %c0_i32 : i32, i32
  }
}

module attributes {stable_mosaic.version = 11 : i64} {
  func.func @_mlp_kernel(%arg0: i32, %arg1: memref<2x3920xbf16, #tpu.memory_space<vmem>>, %arg2: memref<3920x200xbf16, #tpu.memory_space<vmem>>, %arg3: memref<1x200xf32, #tpu.memory_space<vmem>>, %arg4: memref<200x80xbf16, #tpu.memory_space<vmem>>, %arg5: memref<1x80xf32, #tpu.memory_space<vmem>>, %arg6: memref<80x8xbf16, #tpu.memory_space<vmem>>, %arg7: memref<1x8xf32, #tpu.memory_space<vmem>>, %arg8: memref<2x8xf32, #tpu.memory_space<vmem>>) attributes {dimension_semantics = [#tpu.dimension_semantics<parallel>], iteration_bounds = array<i64: 1>, scalar_prefetch = 0 : i64, scratch_operands = 0 : i64, tpu.core_type = #tpu.core_type<tc>, window_params = [{transform_indices = @transform_0, window_bounds = array<i64: 2, 3920>}, {pipeline_mode = #tpu.pipeline_mode<synchronous>, transform_indices = @transform_1, window_bounds = array<i64: 3920, 200>}, {pipeline_mode = #tpu.pipeline_mode<synchronous>, transform_indices = @transform_2, window_bounds = array<i64: 1, 200>}, {pipeline_mode = #tpu.pipeline_mode<synchronous>, transform_indices = @transform_3, window_bounds = array<i64: 200, 80>}, {pipeline_mode = #tpu.pipeline_mode<synchronous>, transform_indices = @transform_4, window_bounds = array<i64: 1, 80>}, {pipeline_mode = #tpu.pipeline_mode<synchronous>, transform_indices = @transform_5, window_bounds = array<i64: 80, 8>}, {pipeline_mode = #tpu.pipeline_mode<synchronous>, transform_indices = @transform_6, window_bounds = array<i64: 1, 8>}, {transform_indices = @transform_7, window_bounds = array<i64: 2, 8>}]} {
    %c0 = arith.constant 0 : index
    %c0_0 = arith.constant 0 : index
    %0 = vector.load %arg1[%c0, %c0_0] : memref<2x3920xbf16, #tpu.memory_space<vmem>>, vector<2x3920xbf16>
    %c0_1 = arith.constant 0 : index
    %c0_2 = arith.constant 0 : index
    %1 = vector.load %arg2[%c0_1, %c0_2] : memref<3920x200xbf16, #tpu.memory_space<vmem>>, vector<3920x200xbf16>
    %cst = arith.constant dense<0.000000e+00> : vector<2x200xf32>
    %2 = tpu.matmul %0, %1, %cst {dimension_numbers = #tpu.dot_dimension_numbers<[1], [0], [0], [1], [0, 0, 1, 1], [], []>} : vector<2x3920xbf16>, vector<3920x200xbf16>, vector<2x200xf32> -> vector<2x200xf32>
    %c0_3 = arith.constant 0 : index
    %c0_4 = arith.constant 0 : index
    %3 = vector.load %arg3[%c0_3, %c0_4] : memref<1x200xf32, #tpu.memory_space<vmem>>, vector<1x200xf32>
    %4 = vector.broadcast %3 : vector<1x200xf32> to vector<2x200xf32>
    %5 = arith.addf %2, %4 : vector<2x200xf32>
    %cst_5 = arith.constant 0.000000e+00 : f32
    %6 = vector.broadcast %cst_5 : f32 to vector<2x200xf32>
    %7 = arith.maximumf %5, %6 : vector<2x200xf32>
    %8 = arith.truncf %7 : vector<2x200xf32> to vector<2x200xbf16>
    %c0_6 = arith.constant 0 : index
    %c0_7 = arith.constant 0 : index
    %9 = vector.load %arg4[%c0_6, %c0_7] : memref<200x80xbf16, #tpu.memory_space<vmem>>, vector<200x80xbf16>
    %cst_8 = arith.constant dense<0.000000e+00> : vector<2x80xf32>
    %10 = tpu.matmul %8, %9, %cst_8 {dimension_numbers = #tpu.dot_dimension_numbers<[1], [0], [0], [1], [0, 0, 1, 1], [], []>} : vector<2x200xbf16>, vector<200x80xbf16>, vector<2x80xf32> -> vector<2x80xf32>
    %c0_9 = arith.constant 0 : index
    %c0_10 = arith.constant 0 : index
    %11 = vector.load %arg5[%c0_9, %c0_10] : memref<1x80xf32, #tpu.memory_space<vmem>>, vector<1x80xf32>
    %12 = vector.broadcast %11 : vector<1x80xf32> to vector<2x80xf32>
    %13 = arith.addf %10, %12 : vector<2x80xf32>
    %cst_11 = arith.constant 0.000000e+00 : f32
    %14 = vector.broadcast %cst_11 : f32 to vector<2x80xf32>
    %15 = arith.maximumf %13, %14 : vector<2x80xf32>
    %16 = arith.truncf %15 : vector<2x80xf32> to vector<2x80xbf16>
    %c0_12 = arith.constant 0 : index
    %c0_13 = arith.constant 0 : index
    %17 = vector.load %arg6[%c0_12, %c0_13] : memref<80x8xbf16, #tpu.memory_space<vmem>>, vector<80x8xbf16>
    %cst_14 = arith.constant dense<0.000000e+00> : vector<2x8xf32>
    %18 = tpu.matmul %16, %17, %cst_14 {dimension_numbers = #tpu.dot_dimension_numbers<[1], [0], [0], [1], [0, 0, 1, 1], [], []>} : vector<2x80xbf16>, vector<80x8xbf16>, vector<2x8xf32> -> vector<2x8xf32>
    %c0_15 = arith.constant 0 : index
    %c0_16 = arith.constant 0 : index
    %19 = vector.load %arg7[%c0_15, %c0_16] : memref<1x8xf32, #tpu.memory_space<vmem>>, vector<1x8xf32>
    %20 = vector.broadcast %19 : vector<1x8xf32> to vector<2x8xf32>
    %21 = arith.addf %18, %20 : vector<2x8xf32>
    %c0_17 = arith.constant 0 : index
    %c0_18 = arith.constant 0 : index
    %22 = vector.load %arg8[%c0_17, %c0_18] : memref<2x8xf32, #tpu.memory_space<vmem>>, vector<2x8xf32>
    tpu.vector_store %arg8[%c0_17, %c0_18], %21 {strides = array<i32>} : memref<2x8xf32, #tpu.memory_space<vmem>>, vector<2x8xf32>,
    return
  }
  func.func @transform_0(%arg0: i32) -> (i32, i32) {
    %c0_i32 = arith.constant 0 : i32
    %c0_i32_0 = arith.constant 0 : i32
    return %arg0, %c0_i32 : i32, i32
  }
  func.func @transform_1(%arg0: i32) -> (i32, i32) {
    %c0_i32 = arith.constant 0 : i32
    %c0_i32_0 = arith.constant 0 : i32
    %c0_i32_1 = arith.constant 0 : i32
    return %c0_i32, %c0_i32_0 : i32, i32
  }
  func.func @transform_2(%arg0: i32) -> (i32, i32) {
    %c0_i32 = arith.constant 0 : i32
    %c0_i32_0 = arith.constant 0 : i32
    %c0_i32_1 = arith.constant 0 : i32
    return %c0_i32, %c0_i32_0 : i32, i32
  }
  func.func @transform_3(%arg0: i32) -> (i32, i32) {
    %c0_i32 = arith.constant 0 : i32
    %c0_i32_0 = arith.constant 0 : i32
    %c0_i32_1 = arith.constant 0 : i32
    return %c0_i32, %c0_i32_0 : i32, i32
  }
  func.func @transform_4(%arg0: i32) -> (i32, i32) {
    %c0_i32 = arith.constant 0 : i32
    %c0_i32_0 = arith.constant 0 : i32
    %c0_i32_1 = arith.constant 0 : i32
    return %c0_i32, %c0_i32_0 : i32, i32
  }
  func.func @transform_5(%arg0: i32) -> (i32, i32) {
    %c0_i32 = arith.constant 0 : i32
    %c0_i32_0 = arith.constant 0 : i32
    %c0_i32_1 = arith.constant 0 : i32
    return %c0_i32, %c0_i32_0 : i32, i32
  }
  func.func @transform_6(%arg0: i32) -> (i32, i32) {
    %c0_i32 = arith.constant 0 : i32
    %c0_i32_0 = arith.constant 0 : i32
    %c0_i32_1 = arith.constant 0 : i32
    return %c0_i32, %c0_i32_0 : i32, i32
  }
  func.func @transform_7(%arg0: i32) -> (i32, i32) {
    %c0_i32 = arith.constant 0 : i32
    %c0_i32_0 = arith.constant 0 : i32
    return %arg0, %c0_i32 : i32, i32
  }
}

</mosaic_0001>

<llo_original>
// kernel: net6_forward.3
$region0: #{net6_forward.3}
  #allocation0 [shape = 'u32[]', space=smem, size = 0x4, offset = 0x4, fixed_abs, tag = 'smem constant byte address 0x4 - core index']
  #allocation1 [shape = 'u32[144,128]{1,0:T(1,128)}', space=vmem, size = 0x12000, scoped, tag = 'internal scratch']
  %s0 = inlined_call_operand.vmem [shape: bf16[4,1800,25], index: 0, kind: input, shape index: {}]
  %s1 = inlined_call_operand.vmem [shape: bf16[25,128], index: 1, kind: input, shape index: {}]
  %s2 = inlined_call_operand.vmem [shape: f32[1,128], index: 2, kind: input, shape index: {}]
  %s3 = inlined_call_operand.vmem [shape: f32[1,128], index: 3, kind: input, shape index: {}]
  %s4 = inlined_call_operand.vmem [shape: f32[1800,128], index: 4, kind: output, shape index: {}]
  %s5 = sld [smem:[#allocation0]]
  $region159: #{net6_forward.3} parent=0
    _
  %s7 = ssub.s32 1, %s5
  %s8 = scalar_select 0, %s7, %s5
  $region1: #{net6_forward.3} parent=0
    #allocation2 [shape = 'u8[1048576]{0}', space=vmem, size = 0x100000, scoped, tag = 'input window, operand 0']
    #allocation3 [shape = 'u8[524288]{0}', space=vmem, size = 0x80000, scoped, tag = 'output window, operand 0']
    loop: start=0, step=1, limit=6
    $region2: #{net6_forward.3} parent=1 // loop_pre_header
      _
    $region3: #{net6_forward.3} parent=1 // loop_header
      %s10 = sphi 0, %s14
      %p11 = scmp.ge.s32.totalorder %s10, 6
      %s20 = sphi 0, %s22
      %s23 = sphi 0, %s20
      %s24 = sphi 0, %s23
      %s40 = sphi 0, %s24
      %s44 = sphi 0, %s44
      %s46 = sphi 0, %s44
      %s47 = sphi 0, %s46
      %s61 = sphi 0, %s47
      %s65 = sphi 0, %s65
      %s67 = sphi 0, %s65
      %s68 = sphi 0, %s67
      %s82 = sphi 0, %s68
      %s86 = sphi 0, %s86
      %s88 = sphi 0, %s86
      %s89 = sphi 0, %s88
      %s103 = sphi 0, %s89
      %s109 = sphi 0, %s111
      %s112 = sphi 0, %s109
      %s113 = sphi 0, %s112
      %s129 = sphi 0, %s113
    $region4: #{net6_forward.3} parent=1 // loop_header_branch
      %13 = sbr.rel (%p11) target = $region8
    $region5: #{net6_forward.3} parent=1 // loop_body
      %s15 = ssub.s32 %s10, 1
      %s16 = ssub.s32 %s10, 2
      %s17 = sadd.s32 %s10, 1
      %s18 = ssub.s32 %s10, %s17
      %p19 = scmp.eq.s32.totalorder %s18, 0
      %s21 = sadd.s32 %s20, 1
      %s22 = scalar_select %p19, %s20, %s21
      %p25 = pneg %p19
      %p26 = scmp.eq.s32.totalorder %s10, 3
      %p27 = por %p25, %p26
      %p28 = scmp.ne.s32.totalorder %s20, %s23
      %p29 = scmp.eq.s32.totalorder %s10, 0
      %p30 = por %p28, %p29
      %p31 = scmp.ne.s32.totalorder %s20, %s23
      %p32 = scmp.eq.s32.totalorder %s15, 3
      %p33 = por %p31, %p32
      %p34 = scmp.ne.s32.totalorder %s23, %s24
      %p35 = scmp.eq.s32.totalorder %s15, 0
      %p36 = por %p34, %p35
      %p37 = scmp.ne.s32.totalorder %s23, %s24
      %p38 = scmp.eq.s32.totalorder %s16, 3
      %p39 = por %p37, %p38
      %p41 = scmp.ne.s32.totalorder %s24, %s40
      %p42 = scmp.eq.s32.totalorder %s16, 0
      %p43 = por %p41, %p42
      %s45 = sadd.s32 %s44, 1
      %p48 = scmp.eq.s32.totalorder %s10, 3
      %p49 = scmp.ne.s32.totalorder %s44, %s46
      %p50 = scmp.eq.s32.totalorder %s10, 0
      %p51 = por %p49, %p50
      %p52 = scmp.ne.s32.totalorder %s44, %s46
      %p53 = scmp.eq.s32.totalorder %s15, 3
      %p54 = por %p52, %p53
      %p55 = scmp.ne.s32.totalorder %s46, %s47
      %p56 = scmp.eq.s32.totalorder %s15, 0
      %p57 = por %p55, %p56
      %p58 = scmp.ne.s32.totalorder %s46, %s47
      %p59 = scmp.eq.s32.totalorder %s16, 3
      %p60 = por %p58, %p59
      %p62 = scmp.ne.s32.totalorder %s47, %s61
      %p63 = scmp.eq.s32.totalorder %s16, 0
      %p64 = por %p62, %p63
      %s66 = sadd.s32 %s65, 1
      %p69 = scmp.eq.s32.totalorder %s10, 3
      %p70 = scmp.ne.s32.totalorder %s65, %s67
      %p71 = scmp.eq.s32.totalorder %s10, 0
      %p72 = por %p70, %p71
      %p73 = scmp.ne.s32.totalorder %s65, %s67
      %p74 = scmp.eq.s32.totalorder %s15, 3
      %p75 = por %p73, %p74
      %p76 = scmp.ne.s32.totalorder %s67, %s68
      %p77 = scmp.eq.s32.totalorder %s15, 0
      %p78 = por %p76, %p77
      %p79 = scmp.ne.s32.totalorder %s67, %s68
      %p80 = scmp.eq.s32.totalorder %s16, 3
      %p81 = por %p79, %p80
      %p83 = scmp.ne.s32.totalorder %s68, %s82
      %p84 = scmp.eq.s32.totalorder %s16, 0
      %p85 = por %p83, %p84
      %s87 = sadd.s32 %s86, 1
      %p90 = scmp.eq.s32.totalorder %s10, 3
      %p91 = scmp.ne.s32.totalorder %s86, %s88
      %p92 = scmp.eq.s32.totalorder %s10, 0
      %p93 = por %p91, %p92
      %p94 = scmp.ne.s32.totalorder %s86, %s88
      %p95 = scmp.eq.s32.totalorder %s15, 3
      %p96 = por %p94, %p95
      %p97 = scmp.ne.s32.totalorder %s88, %s89
      %p98 = scmp.eq.s32.totalorder %s15, 0
      %p99 = por %p97, %p98
      %p100 = scmp.ne.s32.totalorder %s88, %s89
      %p101 = scmp.eq.s32.totalorder %s16, 3
      %p102 = por %p100, %p101
      %p104 = scmp.ne.s32.totalorder %s89, %s103
      %p105 = scmp.eq.s32.totalorder %s16, 0
      %p106 = por %p104, %p105
      %s107 = ssub.s32 %s10, %s17
      %p108 = scmp.eq.s32.totalorder %s107, 0
      %s110 = sadd.s32 %s109, 1
      %s111 = scalar_select %p108, %s109, %s110
      %p114 = pneg %p108
      %p115 = scmp.eq.s32.totalorder %s10, 3
      %p116 = por %p114, %p115
      %p117 = scmp.ne.s32.totalorder %s109, %s112
      %p118 = scmp.eq.s32.totalorder %s10, 0
      %p119 = por %p117, %p118
      %p120 = scmp.ne.s32.totalorder %s109, %s112
      %p121 = scmp.eq.s32.totalorder %s15, 3
      %p122 = por %p120, %p121
      %p123 = scmp.ne.s32.totalorder %s112, %s113
      %p124 = scmp.eq.s32.totalorder %s15, 0
      %p125 = por %p123, %p124
      %p126 = scmp.ne.s32.totalorder %s112, %s113
      %p127 = scmp.eq.s32.totalorder %s16, 3
      %p128 = por %p126, %p127
      %p130 = scmp.ne.s32.totalorder %s113, %s129
      %p131 = scmp.eq.s32.totalorder %s16, 0
      %p132 = por %p130, %p131
      %p133 = scmp.le.s32.totalorder 1, %s10
      %p134 = scmp.lt.s32.totalorder %s10, 5
      %p135 = pnand %p133, %p134
      %p136 = pneg %p135
      // Predicated region
      $region9: #{net6_forward.3} parent=5 // pred_check
        _
      $region10: #{net6_forward.3} parent=5 // pred_check_branch
        %138 = sbr.rel (%p135) target = $region12
      $region11: #{net6_forward.3} parent=5 // pred_region
        %s139 = ssub.s32 %s10, 1
        // Predicated region
        $region13: #{net6_forward.3} parent=11 // pred_check
          %p140 = pneg %p57
        $region14: #{net6_forward.3} parent=11 // pred_check_branch
          %142 = sbr.rel (%p140) target = $region16
        $region15: #{net6_forward.3} parent=11 // pred_region
          _
        $region16: #{net6_forward.3} parent=11 // pred_fallthru
          _
        // Predicated region
        $region17: #{net6_forward.3} parent=11 // pred_check
          %p143 = pneg %p78
        $region18: #{net6_forward.3} parent=11 // pred_check_branch
          %145 = sbr.rel (%p143) target = $region20
        $region19: #{net6_forward.3} parent=11 // pred_region
          _
        $region20: #{net6_forward.3} parent=11 // pred_fallthru
          _
        // Predicated region
        $region21: #{net6_forward.3} parent=11 // pred_check
          %p146 = pneg %p99
        $region22: #{net6_forward.3} parent=11 // pred_check_branch
          %148 = sbr.rel (%p146) target = $region24
        $region23: #{net6_forward.3} parent=11 // pred_region
          _
        $region24: #{net6_forward.3} parent=11 // pred_fallthru
          _
      $region12: #{net6_forward.3} parent=5 // pred_fallthru
        _
      %p149 = scmp.lt.s32.totalorder %s10, 4
      // Predicated region
      $region25: #{net6_forward.3} parent=5 // pred_check
        %p150 = pneg %p149
      $region26: #{net6_forward.3} parent=5 // pred_check_branch
        %152 = sbr.rel (%p150) target = $region28
      $region27: #{net6_forward.3} parent=5 // pred_region
        // Predicated region
        $region29: #{net6_forward.3} parent=27 // pred_check
          %p153 = pneg %p30
        $region30: #{net6_forward.3} parent=27 // pred_check_branch
          %155 = sbr.rel (%p153) target = $region32
        $region31: #{net6_forward.3} parent=27 // pred_region
          %s156 = sand.u32 %s20, 1
          %s157 = sand.u32 %s20, 1
          %s158 = smul.addr %s157, 1024
          %s159 = scalar_lea.vmem [#allocation2], %s158
          %s160 = smul.u32 64, %s10
          %s161 = ssub.s32 225, %s160
          %p162 = scmp.lt.s32.totalorder %s161, 64
          %s163 = scalar_select %p162, %s161, 64
          %s164 = smul.u32 256, %s163
          %p165 = scmp.ne.s32.totalorder 0, %s164
          %s166 = smul.addr %s160, 4
          %s167 = scalar_lea.vmem %s0, %s166
          // Predicated region
          $region33: #{net6_forward.3} parent=31 // pred_check
            %p168 = pneg %p165
          $region34: #{net6_forward.3} parent=31 // pred_check_branch
            %170 = sbr.rel (%p168) target = $region36
          $region35: #{net6_forward.3} parent=31 // pred_region
            // Predicated region
            $region37: #{net6_forward.3} parent=35 // pred_check
              _
            $region38: #{net6_forward.3} parent=35 // pred_check_branch
              %172 = sbr.rel target = $region40
            $region39: #{net6_forward.3} parent=35 // pred_region
              // Predicated region
              $region59: #{net6_forward.3} parent=39 // pred_check
                _
              $region60: #{net6_forward.3} parent=39 // pred_check_branch
                %354 = sbr.rel (0) target = $region62
              $region61: #{net6_forward.3} parent=39 // pred_region
                %s355 = sshrl.u32 %s163, 5
                // While loop
                $region63: #{net6_forward.3} parent=61 // loop_pre_header
                  _
                $region64: #{net6_forward.3} parent=61 // loop_header
                  %s357 = sphi 0, %s359
                  %p358 = scmp.ge.s32.totalorder %s357, %s355
                  %s362 = sphi 0, %s367
                  %s363 = sphi %s167, %s370
                  %s364 = sphi %s159, %s371
                $region65: #{net6_forward.3} parent=61 // loop_header_branch
                  %361 = sbr.rel (%p358) target = $region69
                $region66: #{net6_forward.3} parent=61 // loop_body
                  %s365 = sadd.s32 1, %s362
                  %p366 = scmp.ge.s32.totalorder %s365, %s355
                  %s367 = scalar_select %p366, 0, %s365
                  %s368 = smul.u32 %s367, 128
                  %s369 = smul.u32 %s367, 128
                  %s370 = scalar_lea.vmem %s167, %s368
                  %s371 = scalar_lea.vmem %s159, %s369 [#allocation2]
                $region67: #{net6_forward.3} parent=61 // loop_footer
                  %s359 = sadd.s32 %s357, 1
                $region68: #{net6_forward.3} parent=61 // loop_footer_branch
                  %356 = sbr.rel target = $region64
                $region69: #{net6_forward.3} parent=61 // loop_exit
                  _
                %s372 = sshrl.u32 %s163, 5
                %s373 = sand.u32 %s163, 31
                %s374 = smul.u32 %s372, 32
                %s375 = smul.u32 4, %s374
                %s376 = scalar_lea.vmem %s167, %s375
                %s377 = smul.u32 4, %s374
                %s378 = scalar_lea.vmem %s159, %s377 [#allocation2]
                // While loop
                $region70: #{net6_forward.3} parent=61 // loop_pre_header
                  _
                $region71: #{net6_forward.3} parent=61 // loop_header
                  %s380 = sphi 0, %s382
                  %p381 = scmp.ge.s32.totalorder %s380, %s373
                  %s385 = sphi 0, %s390
                  %s386 = sphi %s376, %s393
                  %s387 = sphi %s378, %s394
                $region72: #{net6_forward.3} parent=61 // loop_header_branch
                  %384 = sbr.rel (%p381) target = $region76
                $region73: #{net6_forward.3} parent=61 // loop_body
                  %s388 = sadd.s32 1, %s385
                  %p389 = scmp.ge.s32.totalorder %s388, %s373
                  %s390 = scalar_select %p389, 0, %s388
                  %s391 = smul.u32 %s390, 4
                  %s392 = smul.u32 %s390, 4
                  %s393 = scalar_lea.vmem %s376, %s391
                  %s394 = scalar_lea.vmem %s378, %s392 [#allocation2]
                $region74: #{net6_forward.3} parent=61 // loop_footer
                  %s382 = sadd.s32 %s380, 1
                $region75: #{net6_forward.3} parent=61 // loop_footer_branch
                  %379 = sbr.rel target = $region71
                $region76: #{net6_forward.3} parent=61 // loop_exit
                  _
                %s396 = ssub.s32 16, 1
                %s397 = sshrl.u32 %s163, 4
                // While loop
                $region77: #{net6_forward.3} parent=61 // loop_pre_header
                  _
                $region78: #{net6_forward.3} parent=61 // loop_header
                  %s399 = sphi 0, %s401
                  %p400 = scmp.ge.s32.totalorder %s399, %s397
                  %s404 = sphi 0, %s537
                  %s405 = sphi %s167, %s540
                  %s406 = sphi %s159, %s541
                $region79: #{net6_forward.3} parent=61 // loop_header_branch
                  %403 = sbr.rel (%p400) target = $region83
                $region80: #{net6_forward.3} parent=61 // loop_body
                  %v407 = vld [vmem:[%s405] sm:%s396]
                  %408 = vst [vmem:[%s406] sm:%s396] %v407
                  %v409 = vld [vmem:[%s405 + $0x4] sm:%s396]
                  %410 = vst [vmem:[%s406 + $0x4] sm:%s396] %v409
                  %v411 = vld [vmem:[%s405 + $0x8] sm:%s396]
                  %412 = vst [vmem:[%s406 + $0x8] sm:%s396] %v411
                  %v413 = vld [vmem:[%s405 + $0xc] sm:%s396]
                  %414 = vst [vmem:[%s406 + $0xc] sm:%s396] %v413
                  %v415 = vld [vmem:[%s405 + $0x10] sm:%s396]
                  %416 = vst [vmem:[%s406 + $0x10] sm:%s396] %v415
                  %v417 = vld [vmem:[%s405 + $0x14] sm:%s396]
                  %418 = vst [vmem:[%s406 + $0x14] sm:%s396] %v417
                  %v419 = vld [vmem:[%s405 + $0x18] sm:%s396]
                  %420 = vst [vmem:[%s406 + $0x18] sm:%s396] %v419
                  %v421 = vld [vmem:[%s405 + $0x1c] sm:%s396]
                  %422 = vst [vmem:[%s406 + $0x1c] sm:%s396] %v421
                  %v423 = vld [vmem:[%s405 + $0x20] sm:%s396]
                  %424 = vst [vmem:[%s406 + $0x20] sm:%s396] %v423
                  %v425 = vld [vmem:[%s405 + $0x24] sm:%s396]
                  %426 = vst [vmem:[%s406 + $0x24] sm:%s396] %v425
                  %v427 = vld [vmem:[%s405 + $0x28] sm:%s396]
                  %428 = vst [vmem:[%s406 + $0x28] sm:%s396] %v427
                  %v429 = vld [vmem:[%s405 + $0x2c] sm:%s396]
                  %430 = vst [vmem:[%s406 + $0x2c] sm:%s396] %v429
                  %v431 = vld [vmem:[%s405 + $0x30] sm:%s396]
                  %432 = vst [vmem:[%s406 + $0x30] sm:%s396] %v431
                  %v433 = vld [vmem:[%s405 + $0x34] sm:%s396]
                  %434 = vst [vmem:[%s406 + $0x34] sm:%s396] %v433
                  %v435 = vld [vmem:[%s405 + $0x38] sm:%s396]
                  %436 = vst [vmem:[%s406 + $0x38] sm:%s396] %v435
                  %v437 = vld [vmem:[%s405 + $0x3c] sm:%s396]
                  %438 = vst [vmem:[%s406 + $0x3c] sm:%s396] %v437
                  %v439 = vld [vmem:[%s405 + $0x384] sm:%s396]
                  %440 = vst [vmem:[%s406 + $0x100] sm:%s396] %v439
                  %v441 = vld [vmem:[%s405 + $0x388] sm:%s396]
                  %442 = vst [vmem:[%s406 + $0x104] sm:%s396] %v441
                  %v443 = vld [vmem:[%s405 + $0x38c] sm:%s396]
                  %444 = vst [vmem:[%s406 + $0x108] sm:%s396] %v443
                  %v445 = vld [vmem:[%s405 + $0x390] sm:%s396]
                  %446 = vst [vmem:[%s406 + $0x10c] sm:%s396] %v445
                  %v447 = vld [vmem:[%s405 + $0x394] sm:%s396]
                  %448 = vst [vmem:[%s406 + $0x110] sm:%s396] %v447
                  %v449 = vld [vmem:[%s405 + $0x398] sm:%s396]
                  %450 = vst [vmem:[%s406 + $0x114] sm:%s396] %v449
                  %v451 = vld [vmem:[%s405 + $0x39c] sm:%s396]
                  %452 = vst [vmem:[%s406 + $0x118] sm:%s396] %v451
                  %v453 = vld [vmem:[%s405 + $0x3a0] sm:%s396]
                  %454 = vst [vmem:[%s406 + $0x11c] sm:%s396] %v453
                  %v455 = vld [vmem:[%s405 + $0x3a4] sm:%s396]
                  %456 = vst [vmem:[%s406 + $0x120] sm:%s396] %v455
                  %v457 = vld [vmem:[%s405 + $0x3a8] sm:%s396]
                  %458 = vst [vmem:[%s406 + $0x124] sm:%s396] %v457
                  %v459 = vld [vmem:[%s405 + $0x3ac] sm:%s396]
                  %460 = vst [vmem:[%s406 + $0x128] sm:%s396] %v459
                  %v461 = vld [vmem:[%s405 + $0x3b0] sm:%s396]
                  %462 = vst [vmem:[%s406 + $0x12c] sm:%s396] %v461
                  %v463 = vld [vmem:[%s405 + $0x3b4] sm:%s396]
                  %464 = vst [vmem:[%s406 + $0x130] sm:%s396] %v463
                  %v465 = vld [vmem:[%s405 + $0x3b8] sm:%s396]
                  %466 = vst [vmem:[%s406 + $0x134] sm:%s396] %v465
                  %v467 = vld [vmem:[%s405 + $0x3bc] sm:%s396]
                  %468 = vst [vmem:[%s406 + $0x138] sm:%s396] %v467
                  %v469 = vld [vmem:[%s405 + $0x3c0] sm:%s396]
                  %470 = vst [vmem:[%s406 + $0x13c] sm:%s396] %v469
                  %v471 = vld [vmem:[%s405 + $0x708] sm:%s396]
                  %472 = vst [vmem:[%s406 + $0x200] sm:%s396] %v471
                  %v473 = vld [vmem:[%s405 + $0x70c] sm:%s396]
                  %474 = vst [vmem:[%s406 + $0x204] sm:%s396] %v473
                  %v475 = vld [vmem:[%s405 + $0x710] sm:%s396]
                  %476 = vst [vmem:[%s406 + $0x208] sm:%s396] %v475
                  %v477 = vld [vmem:[%s405 + $0x714] sm:%s396]
                  %478 = vst [vmem:[%s406 + $0x20c] sm:%s396] %v477
                  %v479 = vld [vmem:[%s405 + $0x718] sm:%s396]
                  %480 = vst [vmem:[%s406 + $0x210] sm:%s396] %v479
                  %v481 = vld [vmem:[%s405 + $0x71c] sm:%s396]
                  %482 = vst [vmem:[%s406 + $0x214] sm:%s396] %v481
                  %v483 = vld [vmem:[%s405 + $0x720] sm:%s396]
                  %484 = vst [vmem:[%s406 + $0x218] sm:%s396] %v483
                  %v485 = vld [vmem:[%s405 + $0x724] sm:%s396]
                  %486 = vst [vmem:[%s406 + $0x21c] sm:%s396] %v485
                  %v487 = vld [vmem:[%s405 + $0x728] sm:%s396]
                  %488 = vst [vmem:[%s406 + $0x220] sm:%s396] %v487
                  %v489 = vld [vmem:[%s405 + $0x72c] sm:%s396]
                  %490 = vst [vmem:[%s406 + $0x224] sm:%s396] %v489
                  %v491 = vld [vmem:[%s405 + $0x730] sm:%s396]
                  %492 = vst [vmem:[%s406 + $0x228] sm:%s396] %v491
                  %v493 = vld [vmem:[%s405 + $0x734] sm:%s396]
                  %494 = vst [vmem:[%s406 + $0x22c] sm:%s396] %v493
                  %v495 = vld [vmem:[%s405 + $0x738] sm:%s396]
                  %496 = vst [vmem:[%s406 + $0x230] sm:%s396] %v495
                  %v497 = vld [vmem:[%s405 + $0x73c] sm:%s396]
                  %498 = vst [vmem:[%s406 + $0x234] sm:%s396] %v497
                  %v499 = vld [vmem:[%s405 + $0x740] sm:%s396]
                  %500 = vst [vmem:[%s406 + $0x238] sm:%s396] %v499
                  %v501 = vld [vmem:[%s405 + $0x744] sm:%s396]
                  %502 = vst [vmem:[%s406 + $0x23c] sm:%s396] %v501
                  %v503 = vld [vmem:[%s405 + $0xa8c] sm:%s396]
                  %504 = vst [vmem:[%s406 + $0x300] sm:%s396] %v503
                  %v505 = vld [vmem:[%s405 + $0xa90] sm:%s396]
                  %506 = vst [vmem:[%s406 + $0x304] sm:%s396] %v505
                  %v507 = vld [vmem:[%s405 + $0xa94] sm:%s396]
                  %508 = vst [vmem:[%s406 + $0x308] sm:%s396] %v507
                  %v509 = vld [vmem:[%s405 + $0xa98] sm:%s396]
                  %510 = vst [vmem:[%s406 + $0x30c] sm:%s396] %v509
                  %v511 = vld [vmem:[%s405 + $0xa9c] sm:%s396]
                  %512 = vst [vmem:[%s406 + $0x310] sm:%s396] %v511
                  %v513 = vld [vmem:[%s405 + $0xaa0] sm:%s396]
                  %514 = vst [vmem:[%s406 + $0x314] sm:%s396] %v513
                  %v515 = vld [vmem:[%s405 + $0xaa4] sm:%s396]
                  %516 = vst [vmem:[%s406 + $0x318] sm:%s396] %v515
                  %v517 = vld [vmem:[%s405 + $0xaa8] sm:%s396]
                  %518 = vst [vmem:[%s406 + $0x31c] sm:%s396] %v517
                  %v519 = vld [vmem:[%s405 + $0xaac] sm:%s396]
                  %520 = vst [vmem:[%s406 + $0x320] sm:%s396] %v519
                  %v521 = vld [vmem:[%s405 + $0xab0] sm:%s396]
                  %522 = vst [vmem:[%s406 + $0x324] sm:%s396] %v521
                  %v523 = vld [vmem:[%s405 + $0xab4] sm:%s396]
                  %524 = vst [vmem:[%s406 + $0x328] sm:%s396] %v523
                  %v525 = vld [vmem:[%s405 + $0xab8] sm:%s396]
                  %526 = vst [vmem:[%s406 + $0x32c] sm:%s396] %v525
                  %v527 = vld [vmem:[%s405 + $0xabc] sm:%s396]
                  %528 = vst [vmem:[%s406 + $0x330] sm:%s396] %v527
                  %v529 = vld [vmem:[%s405 + $0xac0] sm:%s396]
                  %530 = vst [vmem:[%s406 + $0x334] sm:%s396] %v529
                  %v531 = vld [vmem:[%s405 + $0xac4] sm:%s396]
                  %532 = vst [vmem:[%s406 + $0x338] sm:%s396] %v531
                  %v533 = vld [vmem:[%s405 + $0xac8] sm:%s396]
                  %534 = vst [vmem:[%s406 + $0x33c] sm:%s396] %v533
                  %s535 = sadd.s32 1, %s404
                  %p536 = scmp.ge.s32.totalorder %s535, %s397
                  %s537 = scalar_select %p536, 0, %s535
                  %s538 = smul.u32 %s537, 64
                  %s539 = smul.u32 %s537, 64
                  %s540 = scalar_lea.vmem %s167, %s538
                  %s541 = scalar_lea.vmem %s159, %s539 [#allocation2]
                $region81: #{net6_forward.3} parent=61 // loop_footer
                  %s401 = sadd.s32 %s399, 1
                $region82: #{net6_forward.3} parent=61 // loop_footer_branch
                  %398 = sbr.rel target = $region78
                $region83: #{net6_forward.3} parent=61 // loop_exit
                  _
                %s542 = sshrl.u32 %s163, 4
                %s543 = sand.u32 %s163, 15
                %s544 = smul.u32 %s542, 16
                %s545 = smul.u32 4, %s544
                %s546 = scalar_lea.vmem %s167, %s545
                %s547 = smul.u32 4, %s544
                %s548 = scalar_lea.vmem %s159, %s547 [#allocation2]
                // While loop
                $region84: #{net6_forward.3} parent=61 // loop_pre_header
                  _
                $region85: #{net6_forward.3} parent=61 // loop_header
                  %s550 = sphi 0, %s552
                  %p551 = scmp.ge.s32.totalorder %s550, %s543
                  %s555 = sphi 0, %s568
                  %s556 = sphi %s546, %s571
                  %s557 = sphi %s548, %s572
                $region86: #{net6_forward.3} parent=61 // loop_header_branch
                  %554 = sbr.rel (%p551) target = $region90
                $region87: #{net6_forward.3} parent=61 // loop_body
                  %v558 = vld [vmem:[%s556] sm:%s396]
                  %559 = vst [vmem:[%s557] sm:%s396] %v558
                  %v560 = vld [vmem:[%s556 + $0x384] sm:%s396]
                  %561 = vst [vmem:[%s557 + $0x100] sm:%s396] %v560
                  %v562 = vld [vmem:[%s556 + $0x708] sm:%s396]
                  %563 = vst [vmem:[%s557 + $0x200] sm:%s396] %v562
                  %v564 = vld [vmem:[%s556 + $0xa8c] sm:%s396]
                  %565 = vst [vmem:[%s557 + $0x300] sm:%s396] %v564
                  %s566 = sadd.s32 1, %s555
                  %p567 = scmp.ge.s32.totalorder %s566, %s543
                  %s568 = scalar_select %p567, 0, %s566
                  %s569 = smul.u32 %s568, 4
                  %s570 = smul.u32 %s568, 4
                  %s571 = scalar_lea.vmem %s546, %s569
                  %s572 = scalar_lea.vmem %s548, %s570 [#allocation2]
                $region88: #{net6_forward.3} parent=61 // loop_footer
                  %s552 = sadd.s32 %s550, 1
                $region89: #{net6_forward.3} parent=61 // loop_footer_branch
                  %549 = sbr.rel target = $region85
                $region90: #{net6_forward.3} parent=61 // loop_exit
                  _
              $region62: #{net6_forward.3} parent=39 // pred_fallthru
                _
            $region40: #{net6_forward.3} parent=35 // pred_fallthru
              _
            // Predicated region
            $region41: #{net6_forward.3} parent=35 // pred_check
              _
            $region42: #{net6_forward.3} parent=35 // pred_check_branch
              %174 = sbr.rel (0) target = $region44
            $region43: #{net6_forward.3} parent=35 // pred_region
              %s176 = ssub.s32 16, 1
              %s177 = sshrl.u32 %s163, 4
              // While loop
              $region45: #{net6_forward.3} parent=43 // loop_pre_header
                _
              $region46: #{net6_forward.3} parent=43 // loop_header
                %s179 = sphi 0, %s181
                %p180 = scmp.ge.s32.totalorder %s179, %s177
                %s184 = sphi 0, %s317
                %s185 = sphi %s167, %s320
                %s186 = sphi %s159, %s321
              $region47: #{net6_forward.3} parent=43 // loop_header_branch
                %183 = sbr.rel (%p180) target = $region51
              $region48: #{net6_forward.3} parent=43 // loop_body
                %v187 = vld [vmem:[%s185] sm:%s176]
                %188 = vst [vmem:[%s186] sm:%s176] %v187
                %v189 = vld [vmem:[%s185 + $0x4] sm:%s176]
                %190 = vst [vmem:[%s186 + $0x4] sm:%s176] %v189
                %v191 = vld [vmem:[%s185 + $0x8] sm:%s176]
                %192 = vst [vmem:[%s186 + $0x8] sm:%s176] %v191
                %v193 = vld [vmem:[%s185 + $0xc] sm:%s176]
                %194 = vst [vmem:[%s186 + $0xc] sm:%s176] %v193
                %v195 = vld [vmem:[%s185 + $0x10] sm:%s176]
                %196 = vst [vmem:[%s186 + $0x10] sm:%s176] %v195
                %v197 = vld [vmem:[%s185 + $0x14] sm:%s176]
                %198 = vst [vmem:[%s186 + $0x14] sm:%s176] %v197
                %v199 = vld [vmem:[%s185 + $0x18] sm:%s176]
                %200 = vst [vmem:[%s186 + $0x18] sm:%s176] %v199
                %v201 = vld [vmem:[%s185 + $0x1c] sm:%s176]
                %202 = vst [vmem:[%s186 + $0x1c] sm:%s176] %v201
                %v203 = vld [vmem:[%s185 + $0x20] sm:%s176]
                %204 = vst [vmem:[%s186 + $0x20] sm:%s176] %v203
                %v205 = vld [vmem:[%s185 + $0x24] sm:%s176]
                %206 = vst [vmem:[%s186 + $0x24] sm:%s176] %v205
                %v207 = vld [vmem:[%s185 + $0x28] sm:%s176]
                %208 = vst [vmem:[%s186 + $0x28] sm:%s176] %v207
                %v209 = vld [vmem:[%s185 + $0x2c] sm:%s176]
                %210 = vst [vmem:[%s186 + $0x2c] sm:%s176] %v209
                %v211 = vld [vmem:[%s185 + $0x30] sm:%s176]
                %212 = vst [vmem:[%s186 + $0x30] sm:%s176] %v211
                %v213 = vld [vmem:[%s185 + $0x34] sm:%s176]
                %214 = vst [vmem:[%s186 + $0x34] sm:%s176] %v213
                %v215 = vld [vmem:[%s185 + $0x38] sm:%s176]
                %216 = vst [vmem:[%s186 + $0x38] sm:%s176] %v215
                %v217 = vld [vmem:[%s185 + $0x3c] sm:%s176]
                %218 = vst [vmem:[%s186 + $0x3c] sm:%s176] %v217
                %v219 = vld [vmem:[%s185 + $0x384] sm:%s176]
                %220 = vst [vmem:[%s186 + $0x100] sm:%s176] %v219
                %v221 = vld [vmem:[%s185 + $0x388] sm:%s176]
                %222 = vst [vmem:[%s186 + $0x104] sm:%s176] %v221
                %v223 = vld [vmem:[%s185 + $0x38c] sm:%s176]
                %224 = vst [vmem:[%s186 + $0x108] sm:%s176] %v223
                %v225 = vld [vmem:[%s185 + $0x390] sm:%s176]
                %226 = vst [vmem:[%s186 + $0x10c] sm:%s176] %v225
                %v227 = vld [vmem:[%s185 + $0x394] sm:%s176]
                %228 = vst [vmem:[%s186 + $0x110] sm:%s176] %v227
                %v229 = vld [vmem:[%s185 + $0x398] sm:%s176]
                %230 = vst [vmem:[%s186 + $0x114] sm:%s176] %v229
                %v231 = vld [vmem:[%s185 + $0x39c] sm:%s176]
                %232 = vst [vmem:[%s186 + $0x118] sm:%s176] %v231
                %v233 = vld [vmem:[%s185 + $0x3a0] sm:%s176]
                %234 = vst [vmem:[%s186 + $0x11c] sm:%s176] %v233
                %v235 = vld [vmem:[%s185 + $0x3a4] sm:%s176]
                %236 = vst [vmem:[%s186 + $0x120] sm:%s176] %v235
                %v237 = vld [vmem:[%s185 + $0x3a8] sm:%s176]
                %238 = vst [vmem:[%s186 + $0x124] sm:%s176] %v237
                %v239 = vld [vmem:[%s185 + $0x3ac] sm:%s176]
                %240 = vst [vmem:[%s186 + $0x128] sm:%s176] %v239
                %v241 = vld [vmem:[%s185 + $0x3b0] sm:%s176]
                %242 = vst [vmem:[%s186 + $0x12c] sm:%s176] %v241
                %v243 = vld [vmem:[%s185 + $0x3b4] sm:%s176]
                %244 = vst [vmem:[%s186 + $0x130] sm:%s176] %v243
                %v245 = vld [vmem:[%s185 + $0x3b8] sm:%s176]
                %246 = vst [vmem:[%s186 + $0x134] sm:%s176] %v245
                %v247 = vld [vmem:[%s185 + $0x3bc] sm:%s176]
                %248 = vst [vmem:[%s186 + $0x138] sm:%s176] %v247
                %v249 = vld [vmem:[%s185 + $0x3c0] sm:%s176]
                %250 = vst [vmem:[%s186 + $0x13c] sm:%s176] %v249
                %v251 = vld [vmem:[%s185 + $0x708] sm:%s176]
                %252 = vst [vmem:[%s186 + $0x200] sm:%s176] %v251
                %v253 = vld [vmem:[%s185 + $0x70c] sm:%s176]
                %254 = vst [vmem:[%s186 + $0x204] sm:%s176] %v253
                %v255 = vld [vmem:[%s185 + $0x710] sm:%s176]
                %256 = vst [vmem:[%s186 + $0x208] sm:%s176] %v255
                %v257 = vld [vmem:[%s185 + $0x714] sm:%s176]
                %258 = vst [vmem:[%s186 + $0x20c] sm:%s176] %v257
                %v259 = vld [vmem:[%s185 + $0x718] sm:%s176]
                %260 = vst [vmem:[%s186 + $0x210] sm:%s176] %v259
                %v261 = vld [vmem:[%s185 + $0x71c] sm:%s176]
                %262 = vst [vmem:[%s186 + $0x214] sm:%s176] %v261
                %v263 = vld [vmem:[%s185 + $0x720] sm:%s176]
                %264 = vst [vmem:[%s186 + $0x218] sm:%s176] %v263
                %v265 = vld [vmem:[%s185 + $0x724] sm:%s176]
                %266 = vst [vmem:[%s186 + $0x21c] sm:%s176] %v265
                %v267 = vld [vmem:[%s185 + $0x728] sm:%s176]
                %268 = vst [vmem:[%s186 + $0x220] sm:%s176] %v267
                %v269 = vld [vmem:[%s185 + $0x72c] sm:%s176]
                %270 = vst [vmem:[%s186 + $0x224] sm:%s176] %v269
                %v271 = vld [vmem:[%s185 + $0x730] sm:%s176]
                %272 = vst [vmem:[%s186 + $0x228] sm:%s176] %v271
                %v273 = vld [vmem:[%s185 + $0x734] sm:%s176]
                %274 = vst [vmem:[%s186 + $0x22c] sm:%s176] %v273
                %v275 = vld [vmem:[%s185 + $0x738] sm:%s176]
                %276 = vst [vmem:[%s186 + $0x230] sm:%s176] %v275
                %v277 = vld [vmem:[%s185 + $0x73c] sm:%s176]
                %278 = vst [vmem:[%s186 + $0x234] sm:%s176] %v277
                %v279 = vld [vmem:[%s185 + $0x740] sm:%s176]
                %280 = vst [vmem:[%s186 + $0x238] sm:%s176] %v279
                %v281 = vld [vmem:[%s185 + $0x744] sm:%s176]
                %282 = vst [vmem:[%s186 + $0x23c] sm:%s176] %v281
                %v283 = vld [vmem:[%s185 + $0xa8c] sm:%s176]
                %284 = vst [vmem:[%s186 + $0x300] sm:%s176] %v283
                %v285 = vld [vmem:[%s185 + $0xa90] sm:%s176]
                %286 = vst [vmem:[%s186 + $0x304] sm:%s176] %v285
                %v287 = vld [vmem:[%s185 + $0xa94] sm:%s176]
                %288 = vst [vmem:[%s186 + $0x308] sm:%s176] %v287
                %v289 = vld [vmem:[%s185 + $0xa98] sm:%s176]
                %290 = vst [vmem:[%s186 + $0x30c] sm:%s176] %v289
                %v291 = vld [vmem:[%s185 + $0xa9c] sm:%s176]
                %292 = vst [vmem:[%s186 + $0x310] sm:%s176] %v291
                %v293 = vld [vmem:[%s185 + $0xaa0] sm:%s176]
                %294 = vst [vmem:[%s186 + $0x314] sm:%s176] %v293
                %v295 = vld [vmem:[%s185 + $0xaa4] sm:%s176]
                %296 = vst [vmem:[%s186 + $0x318] sm:%s176] %v295
                %v297 = vld [vmem:[%s185 + $0xaa8] sm:%s176]
                %298 = vst [vmem:[%s186 + $0x31c] sm:%s176] %v297
                %v299 = vld [vmem:[%s185 + $0xaac] sm:%s176]
                %300 = vst [vmem:[%s186 + $0x320] sm:%s176] %v299
                %v301 = vld [vmem:[%s185 + $0xab0] sm:%s176]
                %302 = vst [vmem:[%s186 + $0x324] sm:%s176] %v301
                %v303 = vld [vmem:[%s185 + $0xab4] sm:%s176]
                %304 = vst [vmem:[%s186 + $0x328] sm:%s176] %v303
                %v305 = vld [vmem:[%s185 + $0xab8] sm:%s176]
                %306 = vst [vmem:[%s186 + $0x32c] sm:%s176] %v305
                %v307 = vld [vmem:[%s185 + $0xabc] sm:%s176]
                %308 = vst [vmem:[%s186 + $0x330] sm:%s176] %v307
                %v309 = vld [vmem:[%s185 + $0xac0] sm:%s176]
                %310 = vst [vmem:[%s186 + $0x334] sm:%s176] %v309
                %v311 = vld [vmem:[%s185 + $0xac4] sm:%s176]
                %312 = vst [vmem:[%s186 + $0x338] sm:%s176] %v311
                %v313 = vld [vmem:[%s185 + $0xac8] sm:%s176]
                %314 = vst [vmem:[%s186 + $0x33c] sm:%s176] %v313
                %s315 = sadd.s32 1, %s184
                %p316 = scmp.ge.s32.totalorder %s315, %s177
                %s317 = scalar_select %p316, 0, %s315
                %s318 = smul.u32 %s317, 64
                %s319 = smul.u32 %s317, 64
                %s320 = scalar_lea.vmem %s167, %s318
                %s321 = scalar_lea.vmem %s159, %s319 [#allocation2]
              $region49: #{net6_forward.3} parent=43 // loop_footer
                %s181 = sadd.s32 %s179, 1
              $region50: #{net6_forward.3} parent=43 // loop_footer_branch
                %178 = sbr.rel target = $region46
              $region51: #{net6_forward.3} parent=43 // loop_exit
                _
              %s322 = sshrl.u32 %s163, 4
              %s323 = sand.u32 %s163, 15
              %s324 = smul.u32 %s322, 16
              %s325 = smul.u32 4, %s324
              %s326 = scalar_lea.vmem %s167, %s325
              %s327 = smul.u32 4, %s324
              %s328 = scalar_lea.vmem %s159, %s327 [#allocation2]
              // While loop
              $region52: #{net6_forward.3} parent=43 // loop_pre_header
                _
              $region53: #{net6_forward.3} parent=43 // loop_header
                %s330 = sphi 0, %s332
                %p331 = scmp.ge.s32.totalorder %s330, %s323
                %s335 = sphi 0, %s348
                %s336 = sphi %s326, %s351
                %s337 = sphi %s328, %s352
              $region54: #{net6_forward.3} parent=43 // loop_header_branch
                %334 = sbr.rel (%p331) target = $region58
              $region55: #{net6_forward.3} parent=43 // loop_body
                %v338 = vld [vmem:[%s336] sm:%s176]
                %339 = vst [vmem:[%s337] sm:%s176] %v338
                %v340 = vld [vmem:[%s336 + $0x384] sm:%s176]
                %341 = vst [vmem:[%s337 + $0x100] sm:%s176] %v340
                %v342 = vld [vmem:[%s336 + $0x708] sm:%s176]
                %343 = vst [vmem:[%s337 + $0x200] sm:%s176] %v342
                %v344 = vld [vmem:[%s336 + $0xa8c] sm:%s176]
                %345 = vst [vmem:[%s337 + $0x300] sm:%s176] %v344
                %s346 = sadd.s32 1, %s335
                %p347 = scmp.ge.s32.totalorder %s346, %s323
                %s348 = scalar_select %p347, 0, %s346
                %s349 = smul.u32 %s348, 4
                %s350 = smul.u32 %s348, 4
                %s351 = scalar_lea.vmem %s326, %s349
                %s352 = scalar_lea.vmem %s328, %s350 [#allocation2]
              $region56: #{net6_forward.3} parent=43 // loop_footer
                %s332 = sadd.s32 %s330, 1
              $region57: #{net6_forward.3} parent=43 // loop_footer_branch
                %329 = sbr.rel target = $region53
              $region58: #{net6_forward.3} parent=43 // loop_exit
                _
            $region44: #{net6_forward.3} parent=35 // pred_fallthru
              _
          $region36: #{net6_forward.3} parent=31 // pred_fallthru
            _
          %573 = vnop
        $region32: #{net6_forward.3} parent=27 // pred_fallthru
          _
      $region28: #{net6_forward.3} parent=5 // pred_fallthru
        _
      %p574 = scmp.le.s32.totalorder 1, %s10
      %p575 = scmp.lt.s32.totalorder %s10, 5
      %p576 = pnand %p574, %p575
      %p577 = pneg %p576
      // Predicated region
      $region91: #{net6_forward.3} parent=5 // pred_check
        _
      $region92: #{net6_forward.3} parent=5 // pred_check_branch
        %579 = sbr.rel (%p576) target = $region94
      $region93: #{net6_forward.3} parent=5 // pred_region
        %s580 = ssub.s32 %s10, 1
        %s581 = sand.u32 %s23, 1
        %s582 = sand.u32 %s23, 1
        %s583 = smul.addr %s582, 1024
        %s584 = scalar_lea.vmem [#allocation2], %s583
        // Predicated region
        $region95: #{net6_forward.3} parent=93 // pred_check
          %p585 = pneg %p36
        $region96: #{net6_forward.3} parent=93 // pred_check_branch
          %587 = sbr.rel (%p585) target = $region98
        $region97: #{net6_forward.3} parent=93 // pred_region
          _
        $region98: #{net6_forward.3} parent=93 // pred_fallthru
          _
        %s588 = sand.u32 %s23, 1
        %s589 = sand.u32 %s23, 1
        %s590 = smul.addr %s589, 1024
        %s591 = scalar_lea.vmem [#allocation2], %s590
        %p592 = pneg %p36
        %p593 = pneg %p33
        %p594 = pneg %p57
        %p595 = pneg %p54
        %p596 = pneg %p78
        %p597 = pneg %p75
        %p598 = pneg %p99
        %p599 = pneg %p96
        %p600 = pneg %p125
        %p601 = pneg %p122
        %s602 = sand.u32 %s112, 1
        %s603 = sand.u32 %s112, 1
        %s604 = smul.addr %s603, 512
        %s605 = scalar_lea.vmem [#allocation3], %s604
        %s606 = smul.u32 64, %s15
        %s607 = ssub.s32 225, %s606
        %p608 = scmp.lt.s32.totalorder %s607, 64
        %s609 = scalar_select %p608, %s607, 64
        %s610 = smul.u32 256, %s609
        %s611 = smul.u32 64, %s15
        %s612 = ssub.s32 225, %s611
        %p613 = scmp.lt.s32.totalorder %s612, 64
        %s614 = scalar_select %p613, %s612, 64
        %s615 = smul.u32 128, %s614
        %v617 = vld [vmem:[%s1] sm:$0xf]
        %v618 = vld [vmem:[%s1 + $0x4] sm:$0xf]
        %v619 = vld [vmem:[%s1 + $0x8] sm:$0xf]
        %v620 = vld [vmem:[%s1 + $0xc] sm:$0x1]
        %v621 = vld [vmem:[%s2] sm:$0x1]
        %v622 = vld [vmem:[%s3] sm:$0x1]
        %v623 = vld [vmem:[%s584] sm:$0xf]
        %v624 = vld [vmem:[%s584 + $0x4] sm:$0xf]
        %v625 = vld [vmem:[%s584 + $0x8] sm:$0xf]
        %v626 = vld [vmem:[%s584 + $0xc] sm:$0xf]
        %v627 = vld [vmem:[%s584 + $0x10] sm:$0xf]
        %v628 = vld [vmem:[%s584 + $0x14] sm:$0xf]
        %v629 = vld [vmem:[%s584 + $0x18] sm:$0xf]
        %v630 = vld [vmem:[%s584 + $0x1c] sm:$0xf]
        %v631 = vld [vmem:[%s584 + $0x20] sm:$0xf]
        %v632 = vld [vmem:[%s584 + $0x24] sm:$0xf]
        %v633 = vld [vmem:[%s584 + $0x28] sm:$0xf]
        %v634 = vld [vmem:[%s584 + $0x2c] sm:$0xf]
        %v635 = vld [vmem:[%s584 + $0x30] sm:$0xf]
        %v636 = vld [vmem:[%s584 + $0x34] sm:$0xf]
        %v637 = vld [vmem:[%s584 + $0x38] sm:$0xf]
        %v638 = vld [vmem:[%s584 + $0x3c] sm:$0xf]
        %v639 = vld [vmem:[%s584 + $0x40] sm:$0xf]
        %v640 = vld [vmem:[%s584 + $0x44] sm:$0xf]
        %v641 = vld [vmem:[%s584 + $0x48] sm:$0xf]
        %v642 = vld [vmem:[%s584 + $0x4c] sm:$0xf]
        %v643 = vld [vmem:[%s584 + $0x50] sm:$0xf]
        %v644 = vld [vmem:[%s584 + $0x54] sm:$0xf]
        %v645 = vld [vmem:[%s584 + $0x58] sm:$0xf]
        %v646 = vld [vmem:[%s584 + $0x5c] sm:$0xf]
        %v647 = vld [vmem:[%s584 + $0x60] sm:$0xf]
        %v648 = vld [vmem:[%s584 + $0x64] sm:$0xf]
        %v649 = vld [vmem:[%s584 + $0x68] sm:$0xf]
        %v650 = vld [vmem:[%s584 + $0x6c] sm:$0xf]
        %v651 = vld [vmem:[%s584 + $0x70] sm:$0xf]
        %v652 = vld [vmem:[%s584 + $0x74] sm:$0xf]
        %v653 = vld [vmem:[%s584 + $0x78] sm:$0xf]
        %v654 = vld [vmem:[%s584 + $0x7c] sm:$0xf]
        %v655 = vld [vmem:[%s584 + $0x80] sm:$0xf]
        %v656 = vld [vmem:[%s584 + $0x84] sm:$0xf]
        %v657 = vld [vmem:[%s584 + $0x88] sm:$0xf]
        %v658 = vld [vmem:[%s584 + $0x8c] sm:$0xf]
        %v659 = vld [vmem:[%s584 + $0x90] sm:$0xf]
        %v660 = vld [vmem:[%s584 + $0x94] sm:$0xf]
        %v661 = vld [vmem:[%s584 + $0x98] sm:$0xf]
        %v662 = vld [vmem:[%s584 + $0x9c] sm:$0xf]
        %v663 = vld [vmem:[%s584 + $0xa0] sm:$0xf]
        %v664 = vld [vmem:[%s584 + $0xa4] sm:$0xf]
        %v665 = vld [vmem:[%s584 + $0xa8] sm:$0xf]
        %v666 = vld [vmem:[%s584 + $0xac] sm:$0xf]
        %v667 = vld [vmem:[%s584 + $0xb0] sm:$0xf]
        %v668 = vld [vmem:[%s584 + $0xb4] sm:$0xf]
        %v669 = vld [vmem:[%s584 + $0xb8] sm:$0xf]
        %v670 = vld [vmem:[%s584 + $0xbc] sm:$0xf]
        %v671 = vld [vmem:[%s584 + $0xc0] sm:$0xf]
        %v672 = vld [vmem:[%s584 + $0xc4] sm:$0xf]
        %v673 = vld [vmem:[%s584 + $0xc8] sm:$0xf]
        %v674 = vld [vmem:[%s584 + $0xcc] sm:$0xf]
        %v675 = vld [vmem:[%s584 + $0xd0] sm:$0xf]
        %v676 = vld [vmem:[%s584 + $0xd4] sm:$0xf]
        %v677 = vld [vmem:[%s584 + $0xd8] sm:$0xf]
        %v678 = vld [vmem:[%s584 + $0xdc] sm:$0xf]
        %v679 = vld [vmem:[%s584 + $0xe0] sm:$0xf]
        %v680 = vld [vmem:[%s584 + $0xe4] sm:$0xf]
        %v681 = vld [vmem:[%s584 + $0xe8] sm:$0xf]
        %v682 = vld [vmem:[%s584 + $0xec] sm:$0xf]
        %v683 = vld [vmem:[%s584 + $0xf0] sm:$0xf]
        %v684 = vld [vmem:[%s584 + $0xf4] sm:$0xf]
        %v685 = vld [vmem:[%s584 + $0xf8] sm:$0xf]
        %v686 = vld [vmem:[%s584 + $0xfc] sm:$0xf]
        %v751 = vunpack.c.l.b16 %v623
        %v752 = vunpack.c.l.b16 %v624
        %v753 = vunpack.c.l.b16 %v625
        %v754 = vunpack.c.l.b16 %v626
        %v755 = vunpack.c.l.b16 %v627
        %v756 = vunpack.c.l.b16 %v628
        %v757 = vunpack.c.l.b16 %v629
        %v758 = vunpack.c.l.b16 %v630
        %v759 = vunpack.c.l.b16 %v631
        %v760 = vunpack.c.l.b16 %v632
        %v761 = vunpack.c.l.b16 %v633
        %v762 = vunpack.c.l.b16 %v634
        %v763 = vunpack.c.l.b16 %v635
        %v764 = vunpack.c.l.b16 %v636
        %v765 = vunpack.c.l.b16 %v637
        %v766 = vunpack.c.l.b16 %v638
        %v767 = vunpack.c.l.b16 %v639
        %v768 = vunpack.c.l.b16 %v640
        %v769 = vunpack.c.l.b16 %v641
        %v770 = vunpack.c.l.b16 %v642
        %v771 = vunpack.c.l.b16 %v643
        %v772 = vunpack.c.l.b16 %v644
        %v773 = vunpack.c.l.b16 %v645
        %v774 = vunpack.c.l.b16 %v646
        %v775 = vunpack.c.l.b16 %v647
        %v776 = vunpack.c.l.b16 %v648
        %v777 = vunpack.c.l.b16 %v649
        %v778 = vunpack.c.l.b16 %v650
        %v779 = vunpack.c.l.b16 %v651
        %v780 = vunpack.c.l.b16 %v652
        %v781 = vunpack.c.l.b16 %v653
        %v782 = vunpack.c.l.b16 %v654
        %v783 = vunpack.c.l.b16 %v655
        %v784 = vunpack.c.l.b16 %v656
        %v785 = vunpack.c.l.b16 %v657
        %v786 = vunpack.c.l.b16 %v658
        %v787 = vunpack.c.l.b16 %v659
        %v788 = vunpack.c.l.b16 %v660
        %v789 = vunpack.c.l.b16 %v661
        %v790 = vunpack.c.l.b16 %v662
        %v791 = vunpack.c.l.b16 %v663
        %v792 = vunpack.c.l.b16 %v664
        %v793 = vunpack.c.l.b16 %v665
        %v794 = vunpack.c.l.b16 %v666
        %v795 = vunpack.c.l.b16 %v667
        %v796 = vunpack.c.l.b16 %v668
        %v797 = vunpack.c.l.b16 %v669
        %v798 = vunpack.c.l.b16 %v670
        %v799 = vunpack.c.l.b16 %v671
        %v800 = vunpack.c.l.b16 %v672
        %v801 = vunpack.c.l.b16 %v673
        %v802 = vunpack.c.l.b16 %v674
        %v803 = vunpack.c.l.b16 %v675
        %v804 = vunpack.c.l.b16 %v676
        %v805 = vunpack.c.l.b16 %v677
        %v806 = vunpack.c.l.b16 %v678
        %v807 = vunpack.c.l.b16 %v679
        %v808 = vunpack.c.l.b16 %v680
        %v809 = vunpack.c.l.b16 %v681
        %v810 = vunpack.c.l.b16 %v682
        %v811 = vunpack.c.l.b16 %v683
        %v812 = vunpack.c.l.b16 %v684
        %v813 = vunpack.c.l.b16 %v685
        %v814 = vunpack.c.l.b16 %v686
        %v815 = vpack.c.b16 %v752, %v751
        %v816 = vpack.c.b16 %v754, %v753
        %v817 = vpack.c.b16 %v756, %v755
        %v818 = vpack.c.b16 %v758, %v757
        %v819 = vpack.c.b16 %v760, %v759
        %v820 = vpack.c.b16 %v762, %v761
        %v821 = vpack.c.b16 %v764, %v763
        %v822 = vpack.c.b16 %v766, %v765
        %v823 = vpack.c.b16 %v768, %v767
        %v824 = vpack.c.b16 %v770, %v769
        %v825 = vpack.c.b16 %v772, %v771
        %v826 = vpack.c.b16 %v774, %v773
        %v827 = vpack.c.b16 %v776, %v775
        %v828 = vpack.c.b16 %v778, %v777
        %v829 = vpack.c.b16 %v780, %v779
        %v830 = vpack.c.b16 %v782, %v781
        %v831 = vpack.c.b16 %v784, %v783
        %v832 = vpack.c.b16 %v786, %v785
        %v833 = vpack.c.b16 %v788, %v787
        %v834 = vpack.c.b16 %v790, %v789
        %v835 = vpack.c.b16 %v792, %v791
        %v836 = vpack.c.b16 %v794, %v793
        %v837 = vpack.c.b16 %v796, %v795
        %v838 = vpack.c.b16 %v798, %v797
        %v839 = vpack.c.b16 %v800, %v799
        %v840 = vpack.c.b16 %v802, %v801
        %v841 = vpack.c.b16 %v804, %v803
        %v842 = vpack.c.b16 %v806, %v805
        %v843 = vpack.c.b16 %v808, %v807
        %v844 = vpack.c.b16 %v810, %v809
        %v845 = vpack.c.b16 %v812, %v811
        %v846 = vpack.c.b16 %v814, %v813
        %v851 = vunpack.c.l.b16 %v617
        %v852 = vunpack.c.l.b16 %v618
        %v853 = vunpack.c.l.b16 %v619
        %v854 = vunpack.c.l.b16 %v620
        %v855 = vpack.c.b16 %v852, %v851
        %v856 = vpack.c.b16 %v854, %v853
        %vm858 = vcmask 203776
        %v860 = vsel %vm858, %v815, 0
        %v863 = vsel %vm858, %v816, 0
        %v866 = vsel %vm858, %v817, 0
        %v869 = vsel %vm858, %v818, 0
        %v872 = vsel %vm858, %v819, 0
        %v875 = vsel %vm858, %v820, 0
        %v878 = vsel %vm858, %v821, 0
        %v881 = vsel %vm858, %v822, 0
        %v884 = vsel %vm858, %v823, 0
        %v887 = vsel %vm858, %v824, 0
        %v890 = vsel %vm858, %v825, 0
        %v893 = vsel %vm858, %v826, 0
        %v896 = vsel %vm858, %v827, 0
        %v899 = vsel %vm858, %v828, 0
        %v902 = vsel %vm858, %v829, 0
        %v905 = vsel %vm858, %v830, 0
        %v908 = vsel %vm858, %v831, 0
        %v911 = vsel %vm858, %v832, 0
        %v914 = vsel %vm858, %v833, 0
        %v917 = vsel %vm858, %v834, 0
        %v920 = vsel %vm858, %v835, 0
        %v923 = vsel %vm858, %v836, 0
        %v926 = vsel %vm858, %v837, 0
        %v929 = vsel %vm858, %v838, 0
        %v932 = vsel %vm858, %v839, 0
        %v935 = vsel %vm858, %v840, 0
        %v938 = vsel %vm858, %v841, 0
        %v941 = vsel %vm858, %v842, 0
        %v944 = vsel %vm858, %v843, 0
        %v947 = vsel %vm858, %v844, 0
        %v950 = vsel %vm858, %v845, 0
        %v953 = vsel %vm858, %v846, 0
        %vm955 = vcmask 1043456
        %vm956 = vcmask 1044480
        %v957 = vsel %vm955, 4294967295, 65535
        %v958 = vsel %vm956, %v957, 0
        %v960 = vand.u32 %v856, %v958
        %962 = vmatprep.subr.bf16.mxu0 0
        %963 = vmatpush1.bf16.msra.mxu0 0
        %964 = vmatprep.subr.bf16.mxu0 0
        %965 = vmatpush1.bf16.msra.mxu0 0
        %966 = vmatprep.subr.bf16.mxu0 0
        %967 = vmatpush1.bf16.msra.mxu0 0
        %968 = vmatprep.subr.bf16.mxu0 0
        %969 = vmatpush1.bf16.msra.mxu0 0
        %970 = vmatprep.subr.bf16.mxu0 0
        %971 = vmatpush1.bf16.msra.mxu0 0
        %972 = vmatprep.subr.bf16.mxu0 0
        %973 = vmatpush1.bf16.msra.mxu0 0
        %974 = vmatprep.subr.bf16.mxu0 0
        %975 = vmatpush1.bf16.msra.mxu0 %v960
        %976 = vmatprep.subr.bf16.mxu0 0
        %977 = vmatpush1.bf16.msra.mxu0 %v855
        %978 = vmatprep.subr.bf16.mxu0 0
        %979 = vmatpush2.bf16.msra.mxu0 0
        %980 = vmatprep.subr.bf16.mxu0 0
        %981 = vmatpush2.bf16.msra.mxu0 0
        %982 = vmatprep.subr.bf16.mxu0 0
        %983 = vmatpush2.bf16.msra.mxu0 0
        %984 = vmatprep.subr.bf16.mxu0 0
        %985 = vmatpush2.bf16.msra.mxu0 0
        %986 = vmatprep.subr.bf16.mxu0 0
        %987 = vmatpush2.bf16.msra.mxu0 0
        %988 = vmatprep.subr.bf16.mxu0 0
        %989 = vmatpush2.bf16.msra.mxu0 0
        %990 = vmatprep.subr.bf16.mxu0 0
        %991 = vmatpush2.bf16.msra.mxu0 0
        %992 = vmatprep.subr.bf16.mxu0 0
        %993 = vmatpush2.bf16.msra.mxu0 0
        %994 = vmatprep.mubr.bf16.mxu0 0
        %995 = vmatmul.mubr.bf16.gmra.mxu0 %v860
        %v996 = vpop.f32.mrf.mxu0
        %v997 = vadd.f32 0.0, %v996
        %v998 = vpop.f32.mrf.mxu0
        %v999 = vpop.f32.mrf.mxu0
        %v1000 = vadd.f32 0.0, %v999
        %v1001 = vpop.f32.mrf.mxu0
        %1002 = vmatprep.mubr.bf16.mxu0 0
        %1003 = vmatmul.mubr.bf16.gmra.mxu0 %v863
        %v1004 = vpop.f32.mrf.mxu0
        %v1005 = vadd.f32 0.0, %v1004
        %v1006 = vpop.f32.mrf.mxu0
        %v1007 = vpop.f32.mrf.mxu0
        %v1008 = vadd.f32 0.0, %v1007
        %v1009 = vpop.f32.mrf.mxu0
        %1010 = vmatprep.mubr.bf16.mxu0 0
        %1011 = vmatmul.mubr.bf16.gmra.mxu0 %v866
        %v1012 = vpop.f32.mrf.mxu0
        %v1013 = vadd.f32 0.0, %v1012
        %v1014 = vpop.f32.mrf.mxu0
        %v1015 = vpop.f32.mrf.mxu0
        %v1016 = vadd.f32 0.0, %v1015
        %v1017 = vpop.f32.mrf.mxu0
        %1018 = vmatprep.mubr.bf16.mxu0 0
        %1019 = vmatmul.mubr.bf16.gmra.mxu0 %v869
        %v1020 = vpop.f32.mrf.mxu0
        %v1021 = vadd.f32 0.0, %v1020
        %v1022 = vpop.f32.mrf.mxu0
        %v1023 = vpop.f32.mrf.mxu0
        %v1024 = vadd.f32 0.0, %v1023
        %v1025 = vpop.f32.mrf.mxu0
        %1026 = vmatprep.mubr.bf16.mxu0 0
        %1027 = vmatmul.mubr.bf16.gmra.mxu0 %v872
        %v1028 = vpop.f32.mrf.mxu0
        %v1029 = vadd.f32 0.0, %v1028
        %v1030 = vpop.f32.mrf.mxu0
        %v1031 = vpop.f32.mrf.mxu0
        %v1032 = vadd.f32 0.0, %v1031
        %v1033 = vpop.f32.mrf.mxu0
        %1034 = vmatprep.mubr.bf16.mxu0 0
        %1035 = vmatmul.mubr.bf16.gmra.mxu0 %v875
        %v1036 = vpop.f32.mrf.mxu0
        %v1037 = vadd.f32 0.0, %v1036
        %v1038 = vpop.f32.mrf.mxu0
        %v1039 = vpop.f32.mrf.mxu0
        %v1040 = vadd.f32 0.0, %v1039
        %v1041 = vpop.f32.mrf.mxu0
        %1042 = vmatprep.mubr.bf16.mxu0 0
        %1043 = vmatmul.mubr.bf16.gmra.mxu0 %v878
        %v1044 = vpop.f32.mrf.mxu0
        %v1045 = vadd.f32 0.0, %v1044
        %v1046 = vpop.f32.mrf.mxu0
        %v1047 = vpop.f32.mrf.mxu0
        %v1048 = vadd.f32 0.0, %v1047
        %v1049 = vpop.f32.mrf.mxu0
        %1050 = vmatprep.mubr.bf16.mxu0 0
        %1051 = vmatmul.mubr.bf16.gmra.mxu0 %v881
        %v1052 = vpop.f32.mrf.mxu0
        %v1053 = vadd.f32 0.0, %v1052
        %v1054 = vpop.f32.mrf.mxu0
        %v1055 = vpop.f32.mrf.mxu0
        %v1056 = vadd.f32 0.0, %v1055
        %v1057 = vpop.f32.mrf.mxu0
        %1058 = vmatprep.mubr.bf16.mxu0 0
        %1059 = vmatmul.mubr.bf16.gmra.mxu0 %v884
        %v1060 = vpop.f32.mrf.mxu0
        %v1061 = vadd.f32 0.0, %v1060
        %v1062 = vpop.f32.mrf.mxu0
        %v1063 = vpop.f32.mrf.mxu0
        %v1064 = vadd.f32 0.0, %v1063
        %v1065 = vpop.f32.mrf.mxu0
        %1066 = vmatprep.mubr.bf16.mxu0 0
        %1067 = vmatmul.mubr.bf16.gmra.mxu0 %v887
        %v1068 = vpop.f32.mrf.mxu0
        %v1069 = vadd.f32 0.0, %v1068
        %v1070 = vpop.f32.mrf.mxu0
        %v1071 = vpop.f32.mrf.mxu0
        %v1072 = vadd.f32 0.0, %v1071
        %v1073 = vpop.f32.mrf.mxu0
        %1074 = vmatprep.mubr.bf16.mxu0 0
        %1075 = vmatmul.mubr.bf16.gmra.mxu0 %v890
        %v1076 = vpop.f32.mrf.mxu0
        %v1077 = vadd.f32 0.0, %v1076
        %v1078 = vpop.f32.mrf.mxu0
        %v1079 = vpop.f32.mrf.mxu0
        %v1080 = vadd.f32 0.0, %v1079
        %v1081 = vpop.f32.mrf.mxu0
        %1082 = vmatprep.mubr.bf16.mxu0 0
        %1083 = vmatmul.mubr.bf16.gmra.mxu0 %v893
        %v1084 = vpop.f32.mrf.mxu0
        %v1085 = vadd.f32 0.0, %v1084
        %v1086 = vpop.f32.mrf.mxu0
        %v1087 = vpop.f32.mrf.mxu0
        %v1088 = vadd.f32 0.0, %v1087
        %v1089 = vpop.f32.mrf.mxu0
        %1090 = vmatprep.mubr.bf16.mxu0 0
        %1091 = vmatmul.mubr.bf16.gmra.mxu0 %v896
        %v1092 = vpop.f32.mrf.mxu0
        %v1093 = vadd.f32 0.0, %v1092
        %v1094 = vpop.f32.mrf.mxu0
        %v1095 = vpop.f32.mrf.mxu0
        %v1096 = vadd.f32 0.0, %v1095
        %v1097 = vpop.f32.mrf.mxu0
        %1098 = vmatprep.mubr.bf16.mxu0 0
        %1099 = vmatmul.mubr.bf16.gmra.mxu0 %v899
        %v1100 = vpop.f32.mrf.mxu0
        %v1101 = vadd.f32 0.0, %v1100
        %v1102 = vpop.f32.mrf.mxu0
        %v1103 = vpop.f32.mrf.mxu0
        %v1104 = vadd.f32 0.0, %v1103
        %v1105 = vpop.f32.mrf.mxu0
        %1106 = vmatprep.mubr.bf16.mxu0 0
        %1107 = vmatmul.mubr.bf16.gmra.mxu0 %v902
        %v1108 = vpop.f32.mrf.mxu0
        %v1109 = vadd.f32 0.0, %v1108
        %v1110 = vpop.f32.mrf.mxu0
        %v1111 = vpop.f32.mrf.mxu0
        %v1112 = vadd.f32 0.0, %v1111
        %v1113 = vpop.f32.mrf.mxu0
        %1114 = vmatprep.mubr.bf16.mxu0 0
        %1115 = vmatmul.mubr.bf16.gmra.mxu0 %v905
        %v1116 = vpop.f32.mrf.mxu0
        %v1117 = vadd.f32 0.0, %v1116
        %v1118 = vpop.f32.mrf.mxu0
        %v1119 = vpop.f32.mrf.mxu0
        %v1120 = vadd.f32 0.0, %v1119
        %v1121 = vpop.f32.mrf.mxu0
        %1122 = vmatprep.mubr.bf16.mxu0 0
        %1123 = vmatmul.mubr.bf16.gmra.mxu0 %v908
        %v1124 = vpop.f32.mrf.mxu0
        %v1125 = vadd.f32 0.0, %v1124
        %v1126 = vpop.f32.mrf.mxu0
        %v1127 = vpop.f32.mrf.mxu0
        %v1128 = vadd.f32 0.0, %v1127
        %v1129 = vpop.f32.mrf.mxu0
        %1130 = vmatprep.mubr.bf16.mxu0 0
        %1131 = vmatmul.mubr.bf16.gmra.mxu0 %v911
        %v1132 = vpop.f32.mrf.mxu0
        %v1133 = vadd.f32 0.0, %v1132
        %v1134 = vpop.f32.mrf.mxu0
        %v1135 = vpop.f32.mrf.mxu0
        %v1136 = vadd.f32 0.0, %v1135
        %v1137 = vpop.f32.mrf.mxu0
        %1138 = vmatprep.mubr.bf16.mxu0 0
        %1139 = vmatmul.mubr.bf16.gmra.mxu0 %v914
        %v1140 = vpop.f32.mrf.mxu0
        %v1141 = vadd.f32 0.0, %v1140
        %v1142 = vpop.f32.mrf.mxu0
        %v1143 = vpop.f32.mrf.mxu0
        %v1144 = vadd.f32 0.0, %v1143
        %v1145 = vpop.f32.mrf.mxu0
        %1146 = vmatprep.mubr.bf16.mxu0 0
        %1147 = vmatmul.mubr.bf16.gmra.mxu0 %v917
        %v1148 = vpop.f32.mrf.mxu0
        %v1149 = vadd.f32 0.0, %v1148
        %v1150 = vpop.f32.mrf.mxu0
        %v1151 = vpop.f32.mrf.mxu0
        %v1152 = vadd.f32 0.0, %v1151
        %v1153 = vpop.f32.mrf.mxu0
        %1154 = vmatprep.mubr.bf16.mxu0 0
        %1155 = vmatmul.mubr.bf16.gmra.mxu0 %v920
        %v1156 = vpop.f32.mrf.mxu0
        %v1157 = vadd.f32 0.0, %v1156
        %v1158 = vpop.f32.mrf.mxu0
        %v1159 = vpop.f32.mrf.mxu0
        %v1160 = vadd.f32 0.0, %v1159
        %v1161 = vpop.f32.mrf.mxu0
        %1162 = vmatprep.mubr.bf16.mxu0 0
        %1163 = vmatmul.mubr.bf16.gmra.mxu0 %v923
        %v1164 = vpop.f32.mrf.mxu0
        %v1165 = vadd.f32 0.0, %v1164
        %v1166 = vpop.f32.mrf.mxu0
        %v1167 = vpop.f32.mrf.mxu0
        %v1168 = vadd.f32 0.0, %v1167
        %v1169 = vpop.f32.mrf.mxu0
        %1170 = vmatprep.mubr.bf16.mxu0 0
        %1171 = vmatmul.mubr.bf16.gmra.mxu0 %v926
        %v1172 = vpop.f32.mrf.mxu0
        %v1173 = vadd.f32 0.0, %v1172
        %v1174 = vpop.f32.mrf.mxu0
        %v1175 = vpop.f32.mrf.mxu0
        %v1176 = vadd.f32 0.0, %v1175
        %v1177 = vpop.f32.mrf.mxu0
        %1178 = vmatprep.mubr.bf16.mxu0 0
        %1179 = vmatmul.mubr.bf16.gmra.mxu0 %v929
        %v1180 = vpop.f32.mrf.mxu0
        %v1181 = vadd.f32 0.0, %v1180
        %v1182 = vpop.f32.mrf.mxu0
        %v1183 = vpop.f32.mrf.mxu0
        %v1184 = vadd.f32 0.0, %v1183
        %v1185 = vpop.f32.mrf.mxu0
        %1186 = vmatprep.mubr.bf16.mxu0 0
        %1187 = vmatmul.mubr.bf16.gmra.mxu0 %v932
        %v1188 = vpop.f32.mrf.mxu0
        %v1189 = vadd.f32 0.0, %v1188
        %v1190 = vpop.f32.mrf.mxu0
        %v1191 = vpop.f32.mrf.mxu0
        %v1192 = vadd.f32 0.0, %v1191
        %v1193 = vpop.f32.mrf.mxu0
        %1194 = vmatprep.mubr.bf16.mxu0 0
        %1195 = vmatmul.mubr.bf16.gmra.mxu0 %v935
        %v1196 = vpop.f32.mrf.mxu0
        %v1197 = vadd.f32 0.0, %v1196
        %v1198 = vpop.f32.mrf.mxu0
        %v1199 = vpop.f32.mrf.mxu0
        %v1200 = vadd.f32 0.0, %v1199
        %v1201 = vpop.f32.mrf.mxu0
        %1202 = vmatprep.mubr.bf16.mxu0 0
        %1203 = vmatmul.mubr.bf16.gmra.mxu0 %v938
        %v1204 = vpop.f32.mrf.mxu0
        %v1205 = vadd.f32 0.0, %v1204
        %v1206 = vpop.f32.mrf.mxu0
        %v1207 = vpop.f32.mrf.mxu0
        %v1208 = vadd.f32 0.0, %v1207
        %v1209 = vpop.f32.mrf.mxu0
        %1210 = vmatprep.mubr.bf16.mxu0 0
        %1211 = vmatmul.mubr.bf16.gmra.mxu0 %v941
        %v1212 = vpop.f32.mrf.mxu0
        %v1213 = vadd.f32 0.0, %v1212
        %v1214 = vpop.f32.mrf.mxu0
        %v1215 = vpop.f32.mrf.mxu0
        %v1216 = vadd.f32 0.0, %v1215
        %v1217 = vpop.f32.mrf.mxu0
        %1218 = vmatprep.mubr.bf16.mxu0 0
        %1219 = vmatmul.mubr.bf16.gmra.mxu0 %v944
        %v1220 = vpop.f32.mrf.mxu0
        %v1221 = vadd.f32 0.0, %v1220
        %v1222 = vpop.f32.mrf.mxu0
        %v1223 = vpop.f32.mrf.mxu0
        %v1224 = vadd.f32 0.0, %v1223
        %v1225 = vpop.f32.mrf.mxu0
        %1226 = vmatprep.mubr.bf16.mxu0 0
        %1227 = vmatmul.mubr.bf16.gmra.mxu0 %v947
        %v1228 = vpop.f32.mrf.mxu0
        %v1229 = vadd.f32 0.0, %v1228
        %v1230 = vpop.f32.mrf.mxu0
        %v1231 = vpop.f32.mrf.mxu0
        %v1232 = vadd.f32 0.0, %v1231
        %v1233 = vpop.f32.mrf.mxu0
        %1234 = vmatprep.mubr.bf16.mxu0 0
        %1235 = vmatmul.mubr.bf16.gmra.mxu0 %v950
        %v1236 = vpop.f32.mrf.mxu0
        %v1237 = vadd.f32 0.0, %v1236
        %v1238 = vpop.f32.mrf.mxu0
        %v1239 = vpop.f32.mrf.mxu0
        %v1240 = vadd.f32 0.0, %v1239
        %v1241 = vpop.f32.mrf.mxu0
        %1242 = vmatprep.mubr.bf16.mxu0 0
        %1243 = vmatmul.mubr.bf16.gmra.mxu0 %v953
        %v1244 = vpop.f32.mrf.mxu0
        %v1245 = vadd.f32 0.0, %v1244
        %v1246 = vpop.f32.mrf.mxu0
        %v1247 = vpop.f32.mrf.mxu0
        %v1248 = vadd.f32 0.0, %v1247
        %v1249 = vpop.f32.mrf.mxu0
        %1250 = vdwg.mxu0
        %v1252 = vlaneseq
        %v1253 = vshrl.u32 %v1252, 7
        %v1254 = vsub.s32 0, %v1253
        %v1255 = vrot.slane %v621, %v1254
        %v1257 = vmul.f32 %v997, %v1255
        %v1258 = vmul.f32 %v1000, %v1255
        %v1259 = vmul.f32 %v1005, %v1255
        %v1260 = vmul.f32 %v1008, %v1255
        %v1261 = vmul.f32 %v1013, %v1255
        %v1262 = vmul.f32 %v1016, %v1255
        %v1263 = vmul.f32 %v1021, %v1255
        %v1264 = vmul.f32 %v1024, %v1255
        %v1265 = vmul.f32 %v1029, %v1255
        %v1266 = vmul.f32 %v1032, %v1255
        %v1267 = vmul.f32 %v1037, %v1255
        %v1268 = vmul.f32 %v1040, %v1255
        %v1269 = vmul.f32 %v1045, %v1255
        %v1270 = vmul.f32 %v1048, %v1255
        %v1271 = vmul.f32 %v1053, %v1255
        %v1272 = vmul.f32 %v1056, %v1255
        %v1273 = vmul.f32 %v1061, %v1255
        %v1274 = vmul.f32 %v1064, %v1255
        %v1275 = vmul.f32 %v1069, %v1255
        %v1276 = vmul.f32 %v1072, %v1255
        %v1277 = vmul.f32 %v1077, %v1255
        %v1278 = vmul.f32 %v1080, %v1255
        %v1279 = vmul.f32 %v1085, %v1255
        %v1280 = vmul.f32 %v1088, %v1255
        %v1281 = vmul.f32 %v1093, %v1255
        %v1282 = vmul.f32 %v1096, %v1255
        %v1283 = vmul.f32 %v1101, %v1255
        %v1284 = vmul.f32 %v1104, %v1255
        %v1285 = vmul.f32 %v1109, %v1255
        %v1286 = vmul.f32 %v1112, %v1255
        %v1287 = vmul.f32 %v1117, %v1255
        %v1288 = vmul.f32 %v1120, %v1255
        %v1289 = vmul.f32 %v1125, %v1255
        %v1290 = vmul.f32 %v1128, %v1255
        %v1291 = vmul.f32 %v1133, %v1255
        %v1292 = vmul.f32 %v1136, %v1255
        %v1293 = vmul.f32 %v1141, %v1255
        %v1294 = vmul.f32 %v1144, %v1255
        %v1295 = vmul.f32 %v1149, %v1255
        %v1296 = vmul.f32 %v1152, %v1255
        %v1297 = vmul.f32 %v1157, %v1255
        %v1298 = vmul.f32 %v1160, %v1255
        %v1299 = vmul.f32 %v1165, %v1255
        %v1300 = vmul.f32 %v1168, %v1255
        %v1301 = vmul.f32 %v1173, %v1255
        %v1302 = vmul.f32 %v1176, %v1255
        %v1303 = vmul.f32 %v1181, %v1255
        %v1304 = vmul.f32 %v1184, %v1255
        %v1305 = vmul.f32 %v1189, %v1255
        %v1306 = vmul.f32 %v1192, %v1255
        %v1307 = vmul.f32 %v1197, %v1255
        %v1308 = vmul.f32 %v1200, %v1255
        %v1309 = vmul.f32 %v1205, %v1255
        %v1310 = vmul.f32 %v1208, %v1255
        %v1311 = vmul.f32 %v1213, %v1255
        %v1312 = vmul.f32 %v1216, %v1255
        %v1313 = vmul.f32 %v1221, %v1255
        %v1314 = vmul.f32 %v1224, %v1255
        %v1315 = vmul.f32 %v1229, %v1255
        %v1316 = vmul.f32 %v1232, %v1255
        %v1317 = vmul.f32 %v1237, %v1255
        %v1318 = vmul.f32 %v1240, %v1255
        %v1319 = vmul.f32 %v1245, %v1255
        %v1320 = vmul.f32 %v1248, %v1255
        %v1322 = vlaneseq
        %v1323 = vshrl.u32 %v1322, 7
        %v1324 = vsub.s32 0, %v1323
        %v1325 = vrot.slane %v622, %v1324
        %v1327 = vadd.f32 %v1257, %v1325
        %v1328 = vadd.f32 %v1258, %v1325
        %v1329 = vadd.f32 %v1259, %v1325
        %v1330 = vadd.f32 %v1260, %v1325
        %v1331 = vadd.f32 %v1261, %v1325
        %v1332 = vadd.f32 %v1262, %v1325
        %v1333 = vadd.f32 %v1263, %v1325
        %v1334 = vadd.f32 %v1264, %v1325
        %v1335 = vadd.f32 %v1265, %v1325
        %v1336 = vadd.f32 %v1266, %v1325
        %v1337 = vadd.f32 %v1267, %v1325
        %v1338 = vadd.f32 %v1268, %v1325
        %v1339 = vadd.f32 %v1269, %v1325
        %v1340 = vadd.f32 %v1270, %v1325
        %v1341 = vadd.f32 %v1271, %v1325
        %v1342 = vadd.f32 %v1272, %v1325
        %v1343 = vadd.f32 %v1273, %v1325
        %v1344 = vadd.f32 %v1274, %v1325
        %v1345 = vadd.f32 %v1275, %v1325
        %v1346 = vadd.f32 %v1276, %v1325
        %v1347 = vadd.f32 %v1277, %v1325
        %v1348 = vadd.f32 %v1278, %v1325
        %v1349 = vadd.f32 %v1279, %v1325
        %v1350 = vadd.f32 %v1280, %v1325
        %v1351 = vadd.f32 %v1281, %v1325
        %v1352 = vadd.f32 %v1282, %v1325
        %v1353 = vadd.f32 %v1283, %v1325
        %v1354 = vadd.f32 %v1284, %v1325
        %v1355 = vadd.f32 %v1285, %v1325
        %v1356 = vadd.f32 %v1286, %v1325
        %v1357 = vadd.f32 %v1287, %v1325
        %v1358 = vadd.f32 %v1288, %v1325
        %v1359 = vadd.f32 %v1289, %v1325
        %v1360 = vadd.f32 %v1290, %v1325
        %v1361 = vadd.f32 %v1291, %v1325
        %v1362 = vadd.f32 %v1292, %v1325
        %v1363 = vadd.f32 %v1293, %v1325
        %v1364 = vadd.f32 %v1294, %v1325
        %v1365 = vadd.f32 %v1295, %v1325
        %v1366 = vadd.f32 %v1296, %v1325
        %v1367 = vadd.f32 %v1297, %v1325
        %v1368 = vadd.f32 %v1298, %v1325
        %v1369 = vadd.f32 %v1299, %v1325
        %v1370 = vadd.f32 %v1300, %v1325
        %v1371 = vadd.f32 %v1301, %v1325
        %v1372 = vadd.f32 %v1302, %v1325
        %v1373 = vadd.f32 %v1303, %v1325
        %v1374 = vadd.f32 %v1304, %v1325
        %v1375 = vadd.f32 %v1305, %v1325
        %v1376 = vadd.f32 %v1306, %v1325
        %v1377 = vadd.f32 %v1307, %v1325
        %v1378 = vadd.f32 %v1308, %v1325
        %v1379 = vadd.f32 %v1309, %v1325
        %v1380 = vadd.f32 %v1310, %v1325
        %v1381 = vadd.f32 %v1311, %v1325
        %v1382 = vadd.f32 %v1312, %v1325
        %v1383 = vadd.f32 %v1313, %v1325
        %v1384 = vadd.f32 %v1314, %v1325
        %v1385 = vadd.f32 %v1315, %v1325
        %v1386 = vadd.f32 %v1316, %v1325
        %v1387 = vadd.f32 %v1317, %v1325
        %v1388 = vadd.f32 %v1318, %v1325
        %v1389 = vadd.f32 %v1319, %v1325
        %v1390 = vadd.f32 %v1320, %v1325
        %s1391 = scalar_lea.vmem %s584, 256 [#allocation2]
        %v1392 = vld [vmem:[%s1391] sm:$0xf]
        %v1393 = vld [vmem:[%s1391 + $0x4] sm:$0xf]
        %v1394 = vld [vmem:[%s1391 + $0x8] sm:$0xf]
        %v1395 = vld [vmem:[%s1391 + $0xc] sm:$0xf]
        %v1396 = vld [vmem:[%s1391 + $0x10] sm:$0xf]
        %v1397 = vld [vmem:[%s1391 + $0x14] sm:$0xf]
        %v1398 = vld [vmem:[%s1391 + $0x18] sm:$0xf]
        %v1399 = vld [vmem:[%s1391 + $0x1c] sm:$0xf]
        %v1400 = vld [vmem:[%s1391 + $0x20] sm:$0xf]
        %v1401 = vld [vmem:[%s1391 + $0x24] sm:$0xf]
        %v1402 = vld [vmem:[%s1391 + $0x28] sm:$0xf]
        %v1403 = vld [vmem:[%s1391 + $0x2c] sm:$0xf]
        %v1404 = vld [vmem:[%s1391 + $0x30] sm:$0xf]
        %v1405 = vld [vmem:[%s1391 + $0x34] sm:$0xf]
        %v1406 = vld [vmem:[%s1391 + $0x38] sm:$0xf]
        %v1407 = vld [vmem:[%s1391 + $0x3c] sm:$0xf]
        %v1408 = vld [vmem:[%s1391 + $0x40] sm:$0xf]
        %v1409 = vld [vmem:[%s1391 + $0x44] sm:$0xf]
        %v1410 = vld [vmem:[%s1391 + $0x48] sm:$0xf]
        %v1411 = vld [vmem:[%s1391 + $0x4c] sm:$0xf]
        %v1412 = vld [vmem:[%s1391 + $0x50] sm:$0xf]
        %v1413 = vld [vmem:[%s1391 + $0x54] sm:$0xf]
        %v1414 = vld [vmem:[%s1391 + $0x58] sm:$0xf]
        %v1415 = vld [vmem:[%s1391 + $0x5c] sm:$0xf]
        %v1416 = vld [vmem:[%s1391 + $0x60] sm:$0xf]
        %v1417 = vld [vmem:[%s1391 + $0x64] sm:$0xf]
        %v1418 = vld [vmem:[%s1391 + $0x68] sm:$0xf]
        %v1419 = vld [vmem:[%s1391 + $0x6c] sm:$0xf]
        %v1420 = vld [vmem:[%s1391 + $0x70] sm:$0xf]
        %v1421 = vld [vmem:[%s1391 + $0x74] sm:$0xf]
        %v1422 = vld [vmem:[%s1391 + $0x78] sm:$0xf]
        %v1423 = vld [vmem:[%s1391 + $0x7c] sm:$0xf]
        %v1424 = vld [vmem:[%s1391 + $0x80] sm:$0xf]
        %v1425 = vld [vmem:[%s1391 + $0x84] sm:$0xf]
        %v1426 = vld [vmem:[%s1391 + $0x88] sm:$0xf]
        %v1427 = vld [vmem:[%s1391 + $0x8c] sm:$0xf]
        %v1428 = vld [vmem:[%s1391 + $0x90] sm:$0xf]
        %v1429 = vld [vmem:[%s1391 + $0x94] sm:$0xf]
        %v1430 = vld [vmem:[%s1391 + $0x98] sm:$0xf]
        %v1431 = vld [vmem:[%s1391 + $0x9c] sm:$0xf]
        %v1432 = vld [vmem:[%s1391 + $0xa0] sm:$0xf]
        %v1433 = vld [vmem:[%s1391 + $0xa4] sm:$0xf]
        %v1434 = vld [vmem:[%s1391 + $0xa8] sm:$0xf]
        %v1435 = vld [vmem:[%s1391 + $0xac] sm:$0xf]
        %v1436 = vld [vmem:[%s1391 + $0xb0] sm:$0xf]
        %v1437 = vld [vmem:[%s1391 + $0xb4] sm:$0xf]
        %v1438 = vld [vmem:[%s1391 + $0xb8] sm:$0xf]
        %v1439 = vld [vmem:[%s1391 + $0xbc] sm:$0xf]
        %v1440 = vld [vmem:[%s1391 + $0xc0] sm:$0xf]
        %v1441 = vld [vmem:[%s1391 + $0xc4] sm:$0xf]
        %v1442 = vld [vmem:[%s1391 + $0xc8] sm:$0xf]
        %v1443 = vld [vmem:[%s1391 + $0xcc] sm:$0xf]
        %v1444 = vld [vmem:[%s1391 + $0xd0] sm:$0xf]
        %v1445 = vld [vmem:[%s1391 + $0xd4] sm:$0xf]
        %v1446 = vld [vmem:[%s1391 + $0xd8] sm:$0xf]
        %v1447 = vld [vmem:[%s1391 + $0xdc] sm:$0xf]
        %v1448 = vld [vmem:[%s1391 + $0xe0] sm:$0xf]
        %v1449 = vld [vmem:[%s1391 + $0xe4] sm:$0xf]
        %v1450 = vld [vmem:[%s1391 + $0xe8] sm:$0xf]
        %v1451 = vld [vmem:[%s1391 + $0xec] sm:$0xf]
        %v1452 = vld [vmem:[%s1391 + $0xf0] sm:$0xf]
        %v1453 = vld [vmem:[%s1391 + $0xf4] sm:$0xf]
        %v1454 = vld [vmem:[%s1391 + $0xf8] sm:$0xf]
        %v1455 = vld [vmem:[%s1391 + $0xfc] sm:$0xf]
        %v1520 = vunpack.c.l.b16 %v1392
        %v1521 = vunpack.c.l.b16 %v1393
        %v1522 = vunpack.c.l.b16 %v1394
        %v1523 = vunpack.c.l.b16 %v1395
        %v1524 = vunpack.c.l.b16 %v1396
        %v1525 = vunpack.c.l.b16 %v1397
        %v1526 = vunpack.c.l.b16 %v1398
        %v1527 = vunpack.c.l.b16 %v1399
        %v1528 = vunpack.c.l.b16 %v1400
        %v1529 = vunpack.c.l.b16 %v1401
        %v1530 = vunpack.c.l.b16 %v1402
        %v1531 = vunpack.c.l.b16 %v1403
        %v1532 = vunpack.c.l.b16 %v1404
        %v1533 = vunpack.c.l.b16 %v1405
        %v1534 = vunpack.c.l.b16 %v1406
        %v1535 = vunpack.c.l.b16 %v1407
        %v1536 = vunpack.c.l.b16 %v1408
        %v1537 = vunpack.c.l.b16 %v1409
        %v1538 = vunpack.c.l.b16 %v1410
        %v1539 = vunpack.c.l.b16 %v1411
        %v1540 = vunpack.c.l.b16 %v1412
        %v1541 = vunpack.c.l.b16 %v1413
        %v1542 = vunpack.c.l.b16 %v1414
        %v1543 = vunpack.c.l.b16 %v1415
        %v1544 = vunpack.c.l.b16 %v1416
        %v1545 = vunpack.c.l.b16 %v1417
        %v1546 = vunpack.c.l.b16 %v1418
        %v1547 = vunpack.c.l.b16 %v1419
        %v1548 = vunpack.c.l.b16 %v1420
        %v1549 = vunpack.c.l.b16 %v1421
        %v1550 = vunpack.c.l.b16 %v1422
        %v1551 = vunpack.c.l.b16 %v1423
        %v1552 = vunpack.c.l.b16 %v1424
        %v1553 = vunpack.c.l.b16 %v1425
        %v1554 = vunpack.c.l.b16 %v1426
        %v1555 = vunpack.c.l.b16 %v1427
        %v1556 = vunpack.c.l.b16 %v1428
        %v1557 = vunpack.c.l.b16 %v1429
        %v1558 = vunpack.c.l.b16 %v1430
        %v1559 = vunpack.c.l.b16 %v1431
        %v1560 = vunpack.c.l.b16 %v1432
        %v1561 = vunpack.c.l.b16 %v1433
        %v1562 = vunpack.c.l.b16 %v1434
        %v1563 = vunpack.c.l.b16 %v1435
        %v1564 = vunpack.c.l.b16 %v1436
        %v1565 = vunpack.c.l.b16 %v1437
        %v1566 = vunpack.c.l.b16 %v1438
        %v1567 = vunpack.c.l.b16 %v1439
        %v1568 = vunpack.c.l.b16 %v1440
        %v1569 = vunpack.c.l.b16 %v1441
        %v1570 = vunpack.c.l.b16 %v1442
        %v1571 = vunpack.c.l.b16 %v1443
        %v1572 = vunpack.c.l.b16 %v1444
        %v1573 = vunpack.c.l.b16 %v1445
        %v1574 = vunpack.c.l.b16 %v1446
        %v1575 = vunpack.c.l.b16 %v1447
        %v1576 = vunpack.c.l.b16 %v1448
        %v1577 = vunpack.c.l.b16 %v1449
        %v1578 = vunpack.c.l.b16 %v1450
        %v1579 = vunpack.c.l.b16 %v1451
        %v1580 = vunpack.c.l.b16 %v1452
        %v1581 = vunpack.c.l.b16 %v1453
        %v1582 = vunpack.c.l.b16 %v1454
        %v1583 = vunpack.c.l.b16 %v1455
        %v1584 = vpack.c.b16 %v1521, %v1520
        %v1585 = vpack.c.b16 %v1523, %v1522
        %v1586 = vpack.c.b16 %v1525, %v1524
        %v1587 = vpack.c.b16 %v1527, %v1526
        %v1588 = vpack.c.b16 %v1529, %v1528
        %v1589 = vpack.c.b16 %v1531, %v1530
        %v1590 = vpack.c.b16 %v1533, %v1532
        %v1591 = vpack.c.b16 %v1535, %v1534
        %v1592 = vpack.c.b16 %v1537, %v1536
        %v1593 = vpack.c.b16 %v1539, %v1538
        %v1594 = vpack.c.b16 %v1541, %v1540
        %v1595 = vpack.c.b16 %v1543, %v1542
        %v1596 = vpack.c.b16 %v1545, %v1544
        %v1597 = vpack.c.b16 %v1547, %v1546
        %v1598 = vpack.c.b16 %v1549, %v1548
        %v1599 = vpack.c.b16 %v1551, %v1550
        %v1600 = vpack.c.b16 %v1553, %v1552
        %v1601 = vpack.c.b16 %v1555, %v1554
        %v1602 = vpack.c.b16 %v1557, %v1556
        %v1603 = vpack.c.b16 %v1559, %v1558
        %v1604 = vpack.c.b16 %v1561, %v1560
        %v1605 = vpack.c.b16 %v1563, %v1562
        %v1606 = vpack.c.b16 %v1565, %v1564
        %v1607 = vpack.c.b16 %v1567, %v1566
        %v1608 = vpack.c.b16 %v1569, %v1568
        %v1609 = vpack.c.b16 %v1571, %v1570
        %v1610 = vpack.c.b16 %v1573, %v1572
        %v1611 = vpack.c.b16 %v1575, %v1574
        %v1612 = vpack.c.b16 %v1577, %v1576
        %v1613 = vpack.c.b16 %v1579, %v1578
        %v1614 = vpack.c.b16 %v1581, %v1580
        %v1615 = vpack.c.b16 %v1583, %v1582
        %v1617 = vsel %vm858, %v1584, 0
        %v1620 = vsel %vm858, %v1585, 0
        %v1623 = vsel %vm858, %v1586, 0
        %v1626 = vsel %vm858, %v1587, 0
        %v1629 = vsel %vm858, %v1588, 0
        %v1632 = vsel %vm858, %v1589, 0
        %v1635 = vsel %vm858, %v1590, 0
        %v1638 = vsel %vm858, %v1591, 0
        %v1641 = vsel %vm858, %v1592, 0
        %v1644 = vsel %vm858, %v1593, 0
        %v1647 = vsel %vm858, %v1594, 0
        %v1650 = vsel %vm858, %v1595, 0
        %v1653 = vsel %vm858, %v1596, 0
        %v1656 = vsel %vm858, %v1597, 0
        %v1659 = vsel %vm858, %v1598, 0
        %v1662 = vsel %vm858, %v1599, 0
        %v1665 = vsel %vm858, %v1600, 0
        %v1668 = vsel %vm858, %v1601, 0
        %v1671 = vsel %vm858, %v1602, 0
        %v1674 = vsel %vm858, %v1603, 0
        %v1677 = vsel %vm858, %v1604, 0
        %v1680 = vsel %vm858, %v1605, 0
        %v1683 = vsel %vm858, %v1606, 0
        %v1686 = vsel %vm858, %v1607, 0
        %v1689 = vsel %vm858, %v1608, 0
        %v1692 = vsel %vm858, %v1609, 0
        %v1695 = vsel %vm858, %v1610, 0
        %v1698 = vsel %vm858, %v1611, 0
        %v1701 = vsel %vm858, %v1612, 0
        %v1704 = vsel %vm858, %v1613, 0
        %v1707 = vsel %vm858, %v1614, 0
        %v1710 = vsel %vm858, %v1615, 0
        %1712 = vmatprep.subr.bf16.mxu0 0
        %1713 = vmatpush1.bf16.msra.mxu0 0
        %1714 = vmatprep.subr.bf16.mxu0 0
        %1715 = vmatpush1.bf16.msra.mxu0 0
        %1716 = vmatprep.subr.bf16.mxu0 0
        %1717 = vmatpush1.bf16.msra.mxu0 0
        %1718 = vmatprep.subr.bf16.mxu0 0
        %1719 = vmatpush1.bf16.msra.mxu0 0
        %1720 = vmatprep.subr.bf16.mxu0 0
        %1721 = vmatpush1.bf16.msra.mxu0 0
        %1722 = vmatprep.subr.bf16.mxu0 0
        %1723 = vmatpush1.bf16.msra.mxu0 0
        %1724 = vmatprep.subr.bf16.mxu0 0
        %1725 = vmatpush1.bf16.msra.mxu0 %v960
        %1726 = vmatprep.subr.bf16.mxu0 0
        %1727 = vmatpush1.bf16.msra.mxu0 %v855
        %1728 = vmatprep.subr.bf16.mxu0 0
        %1729 = vmatpush2.bf16.msra.mxu0 0
        %1730 = vmatprep.subr.bf16.mxu0 0
        %1731 = vmatpush2.bf16.msra.mxu0 0
        %1732 = vmatprep.subr.bf16.mxu0 0
        %1733 = vmatpush2.bf16.msra.mxu0 0
        %1734 = vmatprep.subr.bf16.mxu0 0
        %1735 = vmatpush2.bf16.msra.mxu0 0
        %1736 = vmatprep.subr.bf16.mxu0 0
        %1737 = vmatpush2.bf16.msra.mxu0 0
        %1738 = vmatprep.subr.bf16.mxu0 0
        %1739 = vmatpush2.bf16.msra.mxu0 0
        %1740 = vmatprep.subr.bf16.mxu0 0
        %1741 = vmatpush2.bf16.msra.mxu0 0
        %1742 = vmatprep.subr.bf16.mxu0 0
        %1743 = vmatpush2.bf16.msra.mxu0 0
        %1744 = vmatprep.mubr.bf16.mxu0 0
        %1745 = vmatmul.mubr.bf16.gmra.mxu0 %v1617
        %v1746 = vpop.f32.mrf.mxu0
        %v1747 = vadd.f32 0.0, %v1746
        %v1748 = vpop.f32.mrf.mxu0
        %v1749 = vpop.f32.mrf.mxu0
        %v1750 = vadd.f32 0.0, %v1749
        %v1751 = vpop.f32.mrf.mxu0
        %1752 = vmatprep.mubr.bf16.mxu0 0
        %1753 = vmatmul.mubr.bf16.gmra.mxu0 %v1620
        %v1754 = vpop.f32.mrf.mxu0
        %v1755 = vadd.f32 0.0, %v1754
        %v1756 = vpop.f32.mrf.mxu0
        %v1757 = vpop.f32.mrf.mxu0
        %v1758 = vadd.f32 0.0, %v1757
        %v1759 = vpop.f32.mrf.mxu0
        %1760 = vmatprep.mubr.bf16.mxu0 0
        %1761 = vmatmul.mubr.bf16.gmra.mxu0 %v1623
        %v1762 = vpop.f32.mrf.mxu0
        %v1763 = vadd.f32 0.0, %v1762
        %v1764 = vpop.f32.mrf.mxu0
        %v1765 = vpop.f32.mrf.mxu0
        %v1766 = vadd.f32 0.0, %v1765
        %v1767 = vpop.f32.mrf.mxu0
        %1768 = vmatprep.mubr.bf16.mxu0 0
        %1769 = vmatmul.mubr.bf16.gmra.mxu0 %v1626
        %v1770 = vpop.f32.mrf.mxu0
        %v1771 = vadd.f32 0.0, %v1770
        %v1772 = vpop.f32.mrf.mxu0
        %v1773 = vpop.f32.mrf.mxu0
        %v1774 = vadd.f32 0.0, %v1773
        %v1775 = vpop.f32.mrf.mxu0
        %1776 = vmatprep.mubr.bf16.mxu0 0
        %1777 = vmatmul.mubr.bf16.gmra.mxu0 %v1629
        %v1778 = vpop.f32.mrf.mxu0
        %v1779 = vadd.f32 0.0, %v1778
        %v1780 = vpop.f32.mrf.mxu0
        %v1781 = vpop.f32.mrf.mxu0
        %v1782 = vadd.f32 0.0, %v1781
        %v1783 = vpop.f32.mrf.mxu0
        %1784 = vmatprep.mubr.bf16.mxu0 0
        %1785 = vmatmul.mubr.bf16.gmra.mxu0 %v1632
        %v1786 = vpop.f32.mrf.mxu0
        %v1787 = vadd.f32 0.0, %v1786
        %v1788 = vpop.f32.mrf.mxu0
        %v1789 = vpop.f32.mrf.mxu0
        %v1790 = vadd.f32 0.0, %v1789
        %v1791 = vpop.f32.mrf.mxu0
        %1792 = vmatprep.mubr.bf16.mxu0 0
        %1793 = vmatmul.mubr.bf16.gmra.mxu0 %v1635
        %v1794 = vpop.f32.mrf.mxu0
        %v1795 = vadd.f32 0.0, %v1794
        %v1796 = vpop.f32.mrf.mxu0
        %v1797 = vpop.f32.mrf.mxu0
        %v1798 = vadd.f32 0.0, %v1797
        %v1799 = vpop.f32.mrf.mxu0
        %1800 = vmatprep.mubr.bf16.mxu0 0
        %1801 = vmatmul.mubr.bf16.gmra.mxu0 %v1638
        %v1802 = vpop.f32.mrf.mxu0
        %v1803 = vadd.f32 0.0, %v1802
        %v1804 = vpop.f32.mrf.mxu0
        %v1805 = vpop.f32.mrf.mxu0
        %v1806 = vadd.f32 0.0, %v1805
        %v1807 = vpop.f32.mrf.mxu0
        %1808 = vmatprep.mubr.bf16.mxu0 0
        %1809 = vmatmul.mubr.bf16.gmra.mxu0 %v1641
        %v1810 = vpop.f32.mrf.mxu0
        %v1811 = vadd.f32 0.0, %v1810
        %v1812 = vpop.f32.mrf.mxu0
        %v1813 = vpop.f32.mrf.mxu0
        %v1814 = vadd.f32 0.0, %v1813
        %v1815 = vpop.f32.mrf.mxu0
        %1816 = vmatprep.mubr.bf16.mxu0 0
        %1817 = vmatmul.mubr.bf16.gmra.mxu0 %v1644
        %v1818 = vpop.f32.mrf.mxu0
        %v1819 = vadd.f32 0.0, %v1818
        %v1820 = vpop.f32.mrf.mxu0
        %v1821 = vpop.f32.mrf.mxu0
        %v1822 = vadd.f32 0.0, %v1821
        %v1823 = vpop.f32.mrf.mxu0
        %1824 = vmatprep.mubr.bf16.mxu0 0
        %1825 = vmatmul.mubr.bf16.gmra.mxu0 %v1647
        %v1826 = vpop.f32.mrf.mxu0
        %v1827 = vadd.f32 0.0, %v1826
        %v1828 = vpop.f32.mrf.mxu0
        %v1829 = vpop.f32.mrf.mxu0
        %v1830 = vadd.f32 0.0, %v1829
        %v1831 = vpop.f32.mrf.mxu0
        %1832 = vmatprep.mubr.bf16.mxu0 0
        %1833 = vmatmul.mubr.bf16.gmra.mxu0 %v1650
        %v1834 = vpop.f32.mrf.mxu0
        %v1835 = vadd.f32 0.0, %v1834
        %v1836 = vpop.f32.mrf.mxu0
        %v1837 = vpop.f32.mrf.mxu0
        %v1838 = vadd.f32 0.0, %v1837
        %v1839 = vpop.f32.mrf.mxu0
        %1840 = vmatprep.mubr.bf16.mxu0 0
        %1841 = vmatmul.mubr.bf16.gmra.mxu0 %v1653
        %v1842 = vpop.f32.mrf.mxu0
        %v1843 = vadd.f32 0.0, %v1842
        %v1844 = vpop.f32.mrf.mxu0
        %v1845 = vpop.f32.mrf.mxu0
        %v1846 = vadd.f32 0.0, %v1845
        %v1847 = vpop.f32.mrf.mxu0
        %1848 = vmatprep.mubr.bf16.mxu0 0
        %1849 = vmatmul.mubr.bf16.gmra.mxu0 %v1656
        %v1850 = vpop.f32.mrf.mxu0
        %v1851 = vadd.f32 0.0, %v1850
        %v1852 = vpop.f32.mrf.mxu0
        %v1853 = vpop.f32.mrf.mxu0
        %v1854 = vadd.f32 0.0, %v1853
        %v1855 = vpop.f32.mrf.mxu0
        %1856 = vmatprep.mubr.bf16.mxu0 0
        %1857 = vmatmul.mubr.bf16.gmra.mxu0 %v1659
        %v1858 = vpop.f32.mrf.mxu0
        %v1859 = vadd.f32 0.0, %v1858
        %v1860 = vpop.f32.mrf.mxu0
        %v1861 = vpop.f32.mrf.mxu0
        %v1862 = vadd.f32 0.0, %v1861
        %v1863 = vpop.f32.mrf.mxu0
        %1864 = vmatprep.mubr.bf16.mxu0 0
        %1865 = vmatmul.mubr.bf16.gmra.mxu0 %v1662
        %v1866 = vpop.f32.mrf.mxu0
        %v1867 = vadd.f32 0.0, %v1866
        %v1868 = vpop.f32.mrf.mxu0
        %v1869 = vpop.f32.mrf.mxu0
        %v1870 = vadd.f32 0.0, %v1869
        %v1871 = vpop.f32.mrf.mxu0
        %1872 = vmatprep.mubr.bf16.mxu0 0
        %1873 = vmatmul.mubr.bf16.gmra.mxu0 %v1665
        %v1874 = vpop.f32.mrf.mxu0
        %v1875 = vadd.f32 0.0, %v1874
        %v1876 = vpop.f32.mrf.mxu0
        %v1877 = vpop.f32.mrf.mxu0
        %v1878 = vadd.f32 0.0, %v1877
        %v1879 = vpop.f32.mrf.mxu0
        %1880 = vmatprep.mubr.bf16.mxu0 0
        %1881 = vmatmul.mubr.bf16.gmra.mxu0 %v1668
        %v1882 = vpop.f32.mrf.mxu0
        %v1883 = vadd.f32 0.0, %v1882
        %v1884 = vpop.f32.mrf.mxu0
        %v1885 = vpop.f32.mrf.mxu0
        %v1886 = vadd.f32 0.0, %v1885
        %v1887 = vpop.f32.mrf.mxu0
        %1888 = vmatprep.mubr.bf16.mxu0 0
        %1889 = vmatmul.mubr.bf16.gmra.mxu0 %v1671
        %v1890 = vpop.f32.mrf.mxu0
        %v1891 = vadd.f32 0.0, %v1890
        %v1892 = vpop.f32.mrf.mxu0
        %v1893 = vpop.f32.mrf.mxu0
        %v1894 = vadd.f32 0.0, %v1893
        %v1895 = vpop.f32.mrf.mxu0
        %1896 = vmatprep.mubr.bf16.mxu0 0
        %1897 = vmatmul.mubr.bf16.gmra.mxu0 %v1674
        %v1898 = vpop.f32.mrf.mxu0
        %v1899 = vadd.f32 0.0, %v1898
        %v1900 = vpop.f32.mrf.mxu0
        %v1901 = vpop.f32.mrf.mxu0
        %v1902 = vadd.f32 0.0, %v1901
        %v1903 = vpop.f32.mrf.mxu0
        %1904 = vmatprep.mubr.bf16.mxu0 0
        %1905 = vmatmul.mubr.bf16.gmra.mxu0 %v1677
        %v1906 = vpop.f32.mrf.mxu0
        %v1907 = vadd.f32 0.0, %v1906
        %v1908 = vpop.f32.mrf.mxu0
        %v1909 = vpop.f32.mrf.mxu0
        %v1910 = vadd.f32 0.0, %v1909
        %v1911 = vpop.f32.mrf.mxu0
        %1912 = vmatprep.mubr.bf16.mxu0 0
        %1913 = vmatmul.mubr.bf16.gmra.mxu0 %v1680
        %v1914 = vpop.f32.mrf.mxu0
        %v1915 = vadd.f32 0.0, %v1914
        %v1916 = vpop.f32.mrf.mxu0
        %v1917 = vpop.f32.mrf.mxu0
        %v1918 = vadd.f32 0.0, %v1917
        %v1919 = vpop.f32.mrf.mxu0
        %1920 = vmatprep.mubr.bf16.mxu0 0
        %1921 = vmatmul.mubr.bf16.gmra.mxu0 %v1683
        %v1922 = vpop.f32.mrf.mxu0
        %v1923 = vadd.f32 0.0, %v1922
        %v1924 = vpop.f32.mrf.mxu0
        %v1925 = vpop.f32.mrf.mxu0
        %v1926 = vadd.f32 0.0, %v1925
        %v1927 = vpop.f32.mrf.mxu0
        %1928 = vmatprep.mubr.bf16.mxu0 0
        %1929 = vmatmul.mubr.bf16.gmra.mxu0 %v1686
        %v1930 = vpop.f32.mrf.mxu0
        %v1931 = vadd.f32 0.0, %v1930
        %v1932 = vpop.f32.mrf.mxu0
        %v1933 = vpop.f32.mrf.mxu0
        %v1934 = vadd.f32 0.0, %v1933
        %v1935 = vpop.f32.mrf.mxu0
        %1936 = vmatprep.mubr.bf16.mxu0 0
        %1937 = vmatmul.mubr.bf16.gmra.mxu0 %v1689
        %v1938 = vpop.f32.mrf.mxu0
        %v1939 = vadd.f32 0.0, %v1938
        %v1940 = vpop.f32.mrf.mxu0
        %v1941 = vpop.f32.mrf.mxu0
        %v1942 = vadd.f32 0.0, %v1941
        %v1943 = vpop.f32.mrf.mxu0
        %1944 = vmatprep.mubr.bf16.mxu0 0
        %1945 = vmatmul.mubr.bf16.gmra.mxu0 %v1692
        %v1946 = vpop.f32.mrf.mxu0
        %v1947 = vadd.f32 0.0, %v1946
        %v1948 = vpop.f32.mrf.mxu0
        %v1949 = vpop.f32.mrf.mxu0
        %v1950 = vadd.f32 0.0, %v1949
        %v1951 = vpop.f32.mrf.mxu0
        %1952 = vmatprep.mubr.bf16.mxu0 0
        %1953 = vmatmul.mubr.bf16.gmra.mxu0 %v1695
        %v1954 = vpop.f32.mrf.mxu0
        %v1955 = vadd.f32 0.0, %v1954
        %v1956 = vpop.f32.mrf.mxu0
        %v1957 = vpop.f32.mrf.mxu0
        %v1958 = vadd.f32 0.0, %v1957
        %v1959 = vpop.f32.mrf.mxu0
        %1960 = vmatprep.mubr.bf16.mxu0 0
        %1961 = vmatmul.mubr.bf16.gmra.mxu0 %v1698
        %v1962 = vpop.f32.mrf.mxu0
        %v1963 = vadd.f32 0.0, %v1962
        %v1964 = vpop.f32.mrf.mxu0
        %v1965 = vpop.f32.mrf.mxu0
        %v1966 = vadd.f32 0.0, %v1965
        %v1967 = vpop.f32.mrf.mxu0
        %1968 = vmatprep.mubr.bf16.mxu0 0
        %1969 = vmatmul.mubr.bf16.gmra.mxu0 %v1701
        %v1970 = vpop.f32.mrf.mxu0
        %v1971 = vadd.f32 0.0, %v1970
        %v1972 = vpop.f32.mrf.mxu0
        %v1973 = vpop.f32.mrf.mxu0
        %v1974 = vadd.f32 0.0, %v1973
        %v1975 = vpop.f32.mrf.mxu0
        %1976 = vmatprep.mubr.bf16.mxu0 0
        %1977 = vmatmul.mubr.bf16.gmra.mxu0 %v1704
        %v1978 = vpop.f32.mrf.mxu0
        %v1979 = vadd.f32 0.0, %v1978
        %v1980 = vpop.f32.mrf.mxu0
        %v1981 = vpop.f32.mrf.mxu0
        %v1982 = vadd.f32 0.0, %v1981
        %v1983 = vpop.f32.mrf.mxu0
        %1984 = vmatprep.mubr.bf16.mxu0 0
        %1985 = vmatmul.mubr.bf16.gmra.mxu0 %v1707
        %v1986 = vpop.f32.mrf.mxu0
        %v1987 = vadd.f32 0.0, %v1986
        %v1988 = vpop.f32.mrf.mxu0
        %v1989 = vpop.f32.mrf.mxu0
        %v1990 = vadd.f32 0.0, %v1989
        %v1991 = vpop.f32.mrf.mxu0
        %1992 = vmatprep.mubr.bf16.mxu0 0
        %1993 = vmatmul.mubr.bf16.gmra.mxu0 %v1710
        %v1994 = vpop.f32.mrf.mxu0
        %v1995 = vadd.f32 0.0, %v1994
        %v1996 = vpop.f32.mrf.mxu0
        %v1997 = vpop.f32.mrf.mxu0
        %v1998 = vadd.f32 0.0, %v1997
        %v1999 = vpop.f32.mrf.mxu0
        %2000 = vdwg.mxu0
        %v2001 = vmul.f32 %v1747, %v1255
        %v2002 = vmul.f32 %v1750, %v1255
        %v2003 = vmul.f32 %v1755, %v1255
        %v2004 = vmul.f32 %v1758, %v1255
        %v2005 = vmul.f32 %v1763, %v1255
        %v2006 = vmul.f32 %v1766, %v1255
        %v2007 = vmul.f32 %v1771, %v1255
        %v2008 = vmul.f32 %v1774, %v1255
        %v2009 = vmul.f32 %v1779, %v1255
        %v2010 = vmul.f32 %v1782, %v1255
        %v2011 = vmul.f32 %v1787, %v1255
        %v2012 = vmul.f32 %v1790, %v1255
        %v2013 = vmul.f32 %v1795, %v1255
        %v2014 = vmul.f32 %v1798, %v1255
        %v2015 = vmul.f32 %v1803, %v1255
        %v2016 = vmul.f32 %v1806, %v1255
        %v2017 = vmul.f32 %v1811, %v1255
        %v2018 = vmul.f32 %v1814, %v1255
        %v2019 = vmul.f32 %v1819, %v1255
        %v2020 = vmul.f32 %v1822, %v1255
        %v2021 = vmul.f32 %v1827, %v1255
        %v2022 = vmul.f32 %v1830, %v1255
        %v2023 = vmul.f32 %v1835, %v1255
        %v2024 = vmul.f32 %v1838, %v1255
        %v2025 = vmul.f32 %v1843, %v1255
        %v2026 = vmul.f32 %v1846, %v1255
        %v2027 = vmul.f32 %v1851, %v1255
        %v2028 = vmul.f32 %v1854, %v1255
        %v2029 = vmul.f32 %v1859, %v1255
        %v2030 = vmul.f32 %v1862, %v1255
        %v2031 = vmul.f32 %v1867, %v1255
        %v2032 = vmul.f32 %v1870, %v1255
        %v2033 = vmul.f32 %v1875, %v1255
        %v2034 = vmul.f32 %v1878, %v1255
        %v2035 = vmul.f32 %v1883, %v1255
        %v2036 = vmul.f32 %v1886, %v1255
        %v2037 = vmul.f32 %v1891, %v1255
        %v2038 = vmul.f32 %v1894, %v1255
        %v2039 = vmul.f32 %v1899, %v1255
        %v2040 = vmul.f32 %v1902, %v1255
        %v2041 = vmul.f32 %v1907, %v1255
        %v2042 = vmul.f32 %v1910, %v1255
        %v2043 = vmul.f32 %v1915, %v1255
        %v2044 = vmul.f32 %v1918, %v1255
        %v2045 = vmul.f32 %v1923, %v1255
        %v2046 = vmul.f32 %v1926, %v1255
        %v2047 = vmul.f32 %v1931, %v1255
        %v2048 = vmul.f32 %v1934, %v1255
        %v2049 = vmul.f32 %v1939, %v1255
        %v2050 = vmul.f32 %v1942, %v1255
        %v2051 = vmul.f32 %v1947, %v1255
        %v2052 = vmul.f32 %v1950, %v1255
        %v2053 = vmul.f32 %v1955, %v1255
        %v2054 = vmul.f32 %v1958, %v1255
        %v2055 = vmul.f32 %v1963, %v1255
        %v2056 = vmul.f32 %v1966, %v1255
        %v2057 = vmul.f32 %v1971, %v1255
        %v2058 = vmul.f32 %v1974, %v1255
        %v2059 = vmul.f32 %v1979, %v1255
        %v2060 = vmul.f32 %v1982, %v1255
        %v2061 = vmul.f32 %v1987, %v1255
        %v2062 = vmul.f32 %v1990, %v1255
        %v2063 = vmul.f32 %v1995, %v1255
        %v2064 = vmul.f32 %v1998, %v1255
        %v2065 = vadd.f32 %v2001, %v1325
        %v2066 = vadd.f32 %v2002, %v1325
        %v2067 = vadd.f32 %v2003, %v1325
        %v2068 = vadd.f32 %v2004, %v1325
        %v2069 = vadd.f32 %v2005, %v1325
        %v2070 = vadd.f32 %v2006, %v1325
        %v2071 = vadd.f32 %v2007, %v1325
        %v2072 = vadd.f32 %v2008, %v1325
        %v2073 = vadd.f32 %v2009, %v1325
        %v2074 = vadd.f32 %v2010, %v1325
        %v2075 = vadd.f32 %v2011, %v1325
        %v2076 = vadd.f32 %v2012, %v1325
        %v2077 = vadd.f32 %v2013, %v1325
        %v2078 = vadd.f32 %v2014, %v1325
        %v2079 = vadd.f32 %v2015, %v1325
        %v2080 = vadd.f32 %v2016, %v1325
        %v2081 = vadd.f32 %v2017, %v1325
        %v2082 = vadd.f32 %v2018, %v1325
        %v2083 = vadd.f32 %v2019, %v1325
        %v2084 = vadd.f32 %v2020, %v1325
        %v2085 = vadd.f32 %v2021, %v1325
        %v2086 = vadd.f32 %v2022, %v1325
        %v2087 = vadd.f32 %v2023, %v1325
        %v2088 = vadd.f32 %v2024, %v1325
        %v2089 = vadd.f32 %v2025, %v1325
        %v2090 = vadd.f32 %v2026, %v1325
        %v2091 = vadd.f32 %v2027, %v1325
        %v2092 = vadd.f32 %v2028, %v1325
        %v2093 = vadd.f32 %v2029, %v1325
        %v2094 = vadd.f32 %v2030, %v1325
        %v2095 = vadd.f32 %v2031, %v1325
        %v2096 = vadd.f32 %v2032, %v1325
        %v2097 = vadd.f32 %v2033, %v1325
        %v2098 = vadd.f32 %v2034, %v1325
        %v2099 = vadd.f32 %v2035, %v1325
        %v2100 = vadd.f32 %v2036, %v1325
        %v2101 = vadd.f32 %v2037, %v1325
        %v2102 = vadd.f32 %v2038, %v1325
        %v2103 = vadd.f32 %v2039, %v1325
        %v2104 = vadd.f32 %v2040, %v1325
        %v2105 = vadd.f32 %v2041, %v1325
        %v2106 = vadd.f32 %v2042, %v1325
        %v2107 = vadd.f32 %v2043, %v1325
        %v2108 = vadd.f32 %v2044, %v1325
        %v2109 = vadd.f32 %v2045, %v1325
        %v2110 = vadd.f32 %v2046, %v1325
        %v2111 = vadd.f32 %v2047, %v1325
        %v2112 = vadd.f32 %v2048, %v1325
        %v2113 = vadd.f32 %v2049, %v1325
        %v2114 = vadd.f32 %v2050, %v1325
        %v2115 = vadd.f32 %v2051, %v1325
        %v2116 = vadd.f32 %v2052, %v1325
        %v2117 = vadd.f32 %v2053, %v1325
        %v2118 = vadd.f32 %v2054, %v1325
        %v2119 = vadd.f32 %v2055, %v1325
        %v2120 = vadd.f32 %v2056, %v1325
        %v2121 = vadd.f32 %v2057, %v1325
        %v2122 = vadd.f32 %v2058, %v1325
        %v2123 = vadd.f32 %v2059, %v1325
        %v2124 = vadd.f32 %v2060, %v1325
        %v2125 = vadd.f32 %v2061, %v1325
        %v2126 = vadd.f32 %v2062, %v1325
        %v2127 = vadd.f32 %v2063, %v1325
        %v2128 = vadd.f32 %v2064, %v1325
        %v2129 = vmax.f32 %v1327, %v2065
        %v2130 = vmax.f32 %v1328, %v2066
        %v2131 = vmax.f32 %v1329, %v2067
        %v2132 = vmax.f32 %v1330, %v2068
        %v2133 = vmax.f32 %v1331, %v2069
        %v2134 = vmax.f32 %v1332, %v2070
        %v2135 = vmax.f32 %v1333, %v2071
        %v2136 = vmax.f32 %v1334, %v2072
        %v2137 = vmax.f32 %v1335, %v2073
        %v2138 = vmax.f32 %v1336, %v2074
        %v2139 = vmax.f32 %v1337, %v2075
        %v2140 = vmax.f32 %v1338, %v2076
        %v2141 = vmax.f32 %v1339, %v2077
        %v2142 = vmax.f32 %v1340, %v2078
        %v2143 = vmax.f32 %v1341, %v2079
        %v2144 = vmax.f32 %v1342, %v2080
        %v2145 = vmax.f32 %v1343, %v2081
        %v2146 = vmax.f32 %v1344, %v2082
        %v2147 = vmax.f32 %v1345, %v2083
        %v2148 = vmax.f32 %v1346, %v2084
        %v2149 = vmax.f32 %v1347, %v2085
        %v2150 = vmax.f32 %v1348, %v2086
        %v2151 = vmax.f32 %v1349, %v2087
        %v2152 = vmax.f32 %v1350, %v2088
        %v2153 = vmax.f32 %v1351, %v2089
        %v2154 = vmax.f32 %v1352, %v2090
        %v2155 = vmax.f32 %v1353, %v2091
        %v2156 = vmax.f32 %v1354, %v2092
        %v2157 = vmax.f32 %v1355, %v2093
        %v2158 = vmax.f32 %v1356, %v2094
        %v2159 = vmax.f32 %v1357, %v2095
        %v2160 = vmax.f32 %v1358, %v2096
        %v2161 = vmax.f32 %v1359, %v2097
        %v2162 = vmax.f32 %v1360, %v2098
        %v2163 = vmax.f32 %v1361, %v2099
        %v2164 = vmax.f32 %v1362, %v2100
        %v2165 = vmax.f32 %v1363, %v2101
        %v2166 = vmax.f32 %v1364, %v2102
        %v2167 = vmax.f32 %v1365, %v2103
        %v2168 = vmax.f32 %v1366, %v2104
        %v2169 = vmax.f32 %v1367, %v2105
        %v2170 = vmax.f32 %v1368, %v2106
        %v2171 = vmax.f32 %v1369, %v2107
        %v2172 = vmax.f32 %v1370, %v2108
        %v2173 = vmax.f32 %v1371, %v2109
        %v2174 = vmax.f32 %v1372, %v2110
        %v2175 = vmax.f32 %v1373, %v2111
        %v2176 = vmax.f32 %v1374, %v2112
        %v2177 = vmax.f32 %v1375, %v2113
        %v2178 = vmax.f32 %v1376, %v2114
        %v2179 = vmax.f32 %v1377, %v2115
        %v2180 = vmax.f32 %v1378, %v2116
        %v2181 = vmax.f32 %v1379, %v2117
        %v2182 = vmax.f32 %v1380, %v2118
        %v2183 = vmax.f32 %v1381, %v2119
        %v2184 = vmax.f32 %v1382, %v2120
        %v2185 = vmax.f32 %v1383, %v2121
        %v2186 = vmax.f32 %v1384, %v2122
        %v2187 = vmax.f32 %v1385, %v2123
        %v2188 = vmax.f32 %v1386, %v2124
        %v2189 = vmax.f32 %v1387, %v2125
        %v2190 = vmax.f32 %v1388, %v2126
        %v2191 = vmax.f32 %v1389, %v2127
        %v2192 = vmax.f32 %v1390, %v2128
        %s2193 = scalar_lea.vmem %s584, 512 [#allocation2]
        %v2194 = vld [vmem:[%s2193] sm:$0xf]
        %v2195 = vld [vmem:[%s2193 + $0x4] sm:$0xf]
        %v2196 = vld [vmem:[%s2193 + $0x8] sm:$0xf]
        %v2197 = vld [vmem:[%s2193 + $0xc] sm:$0xf]
        %v2198 = vld [vmem:[%s2193 + $0x10] sm:$0xf]
        %v2199 = vld [vmem:[%s2193 + $0x14] sm:$0xf]
        %v2200 = vld [vmem:[%s2193 + $0x18] sm:$0xf]
        %v2201 = vld [vmem:[%s2193 + $0x1c] sm:$0xf]
        %v2202 = vld [vmem:[%s2193 + $0x20] sm:$0xf]
        %v2203 = vld [vmem:[%s2193 + $0x24] sm:$0xf]
        %v2204 = vld [vmem:[%s2193 + $0x28] sm:$0xf]
        %v2205 = vld [vmem:[%s2193 + $0x2c] sm:$0xf]
        %v2206 = vld [vmem:[%s2193 + $0x30] sm:$0xf]
        %v2207 = vld [vmem:[%s2193 + $0x34] sm:$0xf]
        %v2208 = vld [vmem:[%s2193 + $0x38] sm:$0xf]
        %v2209 = vld [vmem:[%s2193 + $0x3c] sm:$0xf]
        %v2210 = vld [vmem:[%s2193 + $0x40] sm:$0xf]
        %v2211 = vld [vmem:[%s2193 + $0x44] sm:$0xf]
        %v2212 = vld [vmem:[%s2193 + $0x48] sm:$0xf]
        %v2213 = vld [vmem:[%s2193 + $0x4c] sm:$0xf]
        %v2214 = vld [vmem:[%s2193 + $0x50] sm:$0xf]
        %v2215 = vld [vmem:[%s2193 + $0x54] sm:$0xf]
        %v2216 = vld [vmem:[%s2193 + $0x58] sm:$0xf]
        %v2217 = vld [vmem:[%s2193 + $0x5c] sm:$0xf]
        %v2218 = vld [vmem:[%s2193 + $0x60] sm:$0xf]
        %v2219 = vld [vmem:[%s2193 + $0x64] sm:$0xf]
        %v2220 = vld [vmem:[%s2193 + $0x68] sm:$0xf]
        %v2221 = vld [vmem:[%s2193 + $0x6c] sm:$0xf]
        %v2222 = vld [vmem:[%s2193 + $0x70] sm:$0xf]
        %v2223 = vld [vmem:[%s2193 + $0x74] sm:$0xf]
        %v2224 = vld [vmem:[%s2193 + $0x78] sm:$0xf]
        %v2225 = vld [vmem:[%s2193 + $0x7c] sm:$0xf]
        %v2226 = vld [vmem:[%s2193 + $0x80] sm:$0xf]
        %v2227 = vld [vmem:[%s2193 + $0x84] sm:$0xf]
        %v2228 = vld [vmem:[%s2193 + $0x88] sm:$0xf]
        %v2229 = vld [vmem:[%s2193 + $0x8c] sm:$0xf]
        %v2230 = vld [vmem:[%s2193 + $0x90] sm:$0xf]
        %v2231 = vld [vmem:[%s2193 + $0x94] sm:$0xf]
        %v2232 = vld [vmem:[%s2193 + $0x98] sm:$0xf]
        %v2233 = vld [vmem:[%s2193 + $0x9c] sm:$0xf]
        %v2234 = vld [vmem:[%s2193 + $0xa0] sm:$0xf]
        %v2235 = vld [vmem:[%s2193 + $0xa4] sm:$0xf]
        %v2236 = vld [vmem:[%s2193 + $0xa8] sm:$0xf]
        %v2237 = vld [vmem:[%s2193 + $0xac] sm:$0xf]
        %v2238 = vld [vmem:[%s2193 + $0xb0] sm:$0xf]
        %v2239 = vld [vmem:[%s2193 + $0xb4] sm:$0xf]
        %v2240 = vld [vmem:[%s2193 + $0xb8] sm:$0xf]
        %v2241 = vld [vmem:[%s2193 + $0xbc] sm:$0xf]
        %v2242 = vld [vmem:[%s2193 + $0xc0] sm:$0xf]
        %v2243 = vld [vmem:[%s2193 + $0xc4] sm:$0xf]
        %v2244 = vld [vmem:[%s2193 + $0xc8] sm:$0xf]
        %v2245 = vld [vmem:[%s2193 + $0xcc] sm:$0xf]
        %v2246 = vld [vmem:[%s2193 + $0xd0] sm:$0xf]
        %v2247 = vld [vmem:[%s2193 + $0xd4] sm:$0xf]
        %v2248 = vld [vmem:[%s2193 + $0xd8] sm:$0xf]
        %v2249 = vld [vmem:[%s2193 + $0xdc] sm:$0xf]
        %v2250 = vld [vmem:[%s2193 + $0xe0] sm:$0xf]
        %v2251 = vld [vmem:[%s2193 + $0xe4] sm:$0xf]
        %v2252 = vld [vmem:[%s2193 + $0xe8] sm:$0xf]
        %v2253 = vld [vmem:[%s2193 + $0xec] sm:$0xf]
        %v2254 = vld [vmem:[%s2193 + $0xf0] sm:$0xf]
        %v2255 = vld [vmem:[%s2193 + $0xf4] sm:$0xf]
        %v2256 = vld [vmem:[%s2193 + $0xf8] sm:$0xf]
        %v2257 = vld [vmem:[%s2193 + $0xfc] sm:$0xf]
        %v2322 = vunpack.c.l.b16 %v2194
        %v2323 = vunpack.c.l.b16 %v2195
        %v2324 = vunpack.c.l.b16 %v2196
        %v2325 = vunpack.c.l.b16 %v2197
        %v2326 = vunpack.c.l.b16 %v2198
        %v2327 = vunpack.c.l.b16 %v2199
        %v2328 = vunpack.c.l.b16 %v2200
        %v2329 = vunpack.c.l.b16 %v2201
        %v2330 = vunpack.c.l.b16 %v2202
        %v2331 = vunpack.c.l.b16 %v2203
        %v2332 = vunpack.c.l.b16 %v2204
        %v2333 = vunpack.c.l.b16 %v2205
        %v2334 = vunpack.c.l.b16 %v2206
        %v2335 = vunpack.c.l.b16 %v2207
        %v2336 = vunpack.c.l.b16 %v2208
        %v2337 = vunpack.c.l.b16 %v2209
        %v2338 = vunpack.c.l.b16 %v2210
        %v2339 = vunpack.c.l.b16 %v2211
        %v2340 = vunpack.c.l.b16 %v2212
        %v2341 = vunpack.c.l.b16 %v2213
        %v2342 = vunpack.c.l.b16 %v2214
        %v2343 = vunpack.c.l.b16 %v2215
        %v2344 = vunpack.c.l.b16 %v2216
        %v2345 = vunpack.c.l.b16 %v2217
        %v2346 = vunpack.c.l.b16 %v2218
        %v2347 = vunpack.c.l.b16 %v2219
        %v2348 = vunpack.c.l.b16 %v2220
        %v2349 = vunpack.c.l.b16 %v2221
        %v2350 = vunpack.c.l.b16 %v2222
        %v2351 = vunpack.c.l.b16 %v2223
        %v2352 = vunpack.c.l.b16 %v2224
        %v2353 = vunpack.c.l.b16 %v2225
        %v2354 = vunpack.c.l.b16 %v2226
        %v2355 = vunpack.c.l.b16 %v2227
        %v2356 = vunpack.c.l.b16 %v2228
        %v2357 = vunpack.c.l.b16 %v2229
        %v2358 = vunpack.c.l.b16 %v2230
        %v2359 = vunpack.c.l.b16 %v2231
        %v2360 = vunpack.c.l.b16 %v2232
        %v2361 = vunpack.c.l.b16 %v2233
        %v2362 = vunpack.c.l.b16 %v2234
        %v2363 = vunpack.c.l.b16 %v2235
        %v2364 = vunpack.c.l.b16 %v2236
        %v2365 = vunpack.c.l.b16 %v2237
        %v2366 = vunpack.c.l.b16 %v2238
        %v2367 = vunpack.c.l.b16 %v2239
        %v2368 = vunpack.c.l.b16 %v2240
        %v2369 = vunpack.c.l.b16 %v2241
        %v2370 = vunpack.c.l.b16 %v2242
        %v2371 = vunpack.c.l.b16 %v2243
        %v2372 = vunpack.c.l.b16 %v2244
        %v2373 = vunpack.c.l.b16 %v2245
        %v2374 = vunpack.c.l.b16 %v2246
        %v2375 = vunpack.c.l.b16 %v2247
        %v2376 = vunpack.c.l.b16 %v2248
        %v2377 = vunpack.c.l.b16 %v2249
        %v2378 = vunpack.c.l.b16 %v2250
        %v2379 = vunpack.c.l.b16 %v2251
        %v2380 = vunpack.c.l.b16 %v2252
        %v2381 = vunpack.c.l.b16 %v2253
        %v2382 = vunpack.c.l.b16 %v2254
        %v2383 = vunpack.c.l.b16 %v2255
        %v2384 = vunpack.c.l.b16 %v2256
        %v2385 = vunpack.c.l.b16 %v2257
        %v2386 = vpack.c.b16 %v2323, %v2322
        %v2387 = vpack.c.b16 %v2325, %v2324
        %v2388 = vpack.c.b16 %v2327, %v2326
        %v2389 = vpack.c.b16 %v2329, %v2328
        %v2390 = vpack.c.b16 %v2331, %v2330
        %v2391 = vpack.c.b16 %v2333, %v2332
        %v2392 = vpack.c.b16 %v2335, %v2334
        %v2393 = vpack.c.b16 %v2337, %v2336
        %v2394 = vpack.c.b16 %v2339, %v2338
        %v2395 = vpack.c.b16 %v2341, %v2340
        %v2396 = vpack.c.b16 %v2343, %v2342
        %v2397 = vpack.c.b16 %v2345, %v2344
        %v2398 = vpack.c.b16 %v2347, %v2346
        %v2399 = vpack.c.b16 %v2349, %v2348
        %v2400 = vpack.c.b16 %v2351, %v2350
        %v2401 = vpack.c.b16 %v2353, %v2352
        %v2402 = vpack.c.b16 %v2355, %v2354
        %v2403 = vpack.c.b16 %v2357, %v2356
        %v2404 = vpack.c.b16 %v2359, %v2358
        %v2405 = vpack.c.b16 %v2361, %v2360
        %v2406 = vpack.c.b16 %v2363, %v2362
        %v2407 = vpack.c.b16 %v2365, %v2364
        %v2408 = vpack.c.b16 %v2367, %v2366
        %v2409 = vpack.c.b16 %v2369, %v2368
        %v2410 = vpack.c.b16 %v2371, %v2370
        %v2411 = vpack.c.b16 %v2373, %v2372
        %v2412 = vpack.c.b16 %v2375, %v2374
        %v2413 = vpack.c.b16 %v2377, %v2376
        %v2414 = vpack.c.b16 %v2379, %v2378
        %v2415 = vpack.c.b16 %v2381, %v2380
        %v2416 = vpack.c.b16 %v2383, %v2382
        %v2417 = vpack.c.b16 %v2385, %v2384
        %v2419 = vsel %vm858, %v2386, 0
        %v2422 = vsel %vm858, %v2387, 0
        %v2425 = vsel %vm858, %v2388, 0
        %v2428 = vsel %vm858, %v2389, 0
        %v2431 = vsel %vm858, %v2390, 0
        %v2434 = vsel %vm858, %v2391, 0
        %v2437 = vsel %vm858, %v2392, 0
        %v2440 = vsel %vm858, %v2393, 0
        %v2443 = vsel %vm858, %v2394, 0
        %v2446 = vsel %vm858, %v2395, 0
        %v2449 = vsel %vm858, %v2396, 0
        %v2452 = vsel %vm858, %v2397, 0
        %v2455 = vsel %vm858, %v2398, 0
        %v2458 = vsel %vm858, %v2399, 0
        %v2461 = vsel %vm858, %v2400, 0
        %v2464 = vsel %vm858, %v2401, 0
        %v2467 = vsel %vm858, %v2402, 0
        %v2470 = vsel %vm858, %v2403, 0
        %v2473 = vsel %vm858, %v2404, 0
        %v2476 = vsel %vm858, %v2405, 0
        %v2479 = vsel %vm858, %v2406, 0
        %v2482 = vsel %vm858, %v2407, 0
        %v2485 = vsel %vm858, %v2408, 0
        %v2488 = vsel %vm858, %v2409, 0
        %v2491 = vsel %vm858, %v2410, 0
        %v2494 = vsel %vm858, %v2411, 0
        %v2497 = vsel %vm858, %v2412, 0
        %v2500 = vsel %vm858, %v2413, 0
        %v2503 = vsel %vm858, %v2414, 0
        %v2506 = vsel %vm858, %v2415, 0
        %v2509 = vsel %vm858, %v2416, 0
        %v2512 = vsel %vm858, %v2417, 0
        %2514 = vmatprep.subr.bf16.mxu0 0
        %2515 = vmatpush1.bf16.msra.mxu0 0
        %2516 = vmatprep.subr.bf16.mxu0 0
        %2517 = vmatpush1.bf16.msra.mxu0 0
        %2518 = vmatprep.subr.bf16.mxu0 0
        %2519 = vmatpush1.bf16.msra.mxu0 0
        %2520 = vmatprep.subr.bf16.mxu0 0
        %2521 = vmatpush1.bf16.msra.mxu0 0
        %2522 = vmatprep.subr.bf16.mxu0 0
        %2523 = vmatpush1.bf16.msra.mxu0 0
        %2524 = vmatprep.subr.bf16.mxu0 0
        %2525 = vmatpush1.bf16.msra.mxu0 0
        %2526 = vmatprep.subr.bf16.mxu0 0
        %2527 = vmatpush1.bf16.msra.mxu0 %v960
        %2528 = vmatprep.subr.bf16.mxu0 0
        %2529 = vmatpush1.bf16.msra.mxu0 %v855
        %2530 = vmatprep.subr.bf16.mxu0 0
        %2531 = vmatpush2.bf16.msra.mxu0 0
        %2532 = vmatprep.subr.bf16.mxu0 0
        %2533 = vmatpush2.bf16.msra.mxu0 0
        %2534 = vmatprep.subr.bf16.mxu0 0
        %2535 = vmatpush2.bf16.msra.mxu0 0
        %2536 = vmatprep.subr.bf16.mxu0 0
        %2537 = vmatpush2.bf16.msra.mxu0 0
        %2538 = vmatprep.subr.bf16.mxu0 0
        %2539 = vmatpush2.bf16.msra.mxu0 0
        %2540 = vmatprep.subr.bf16.mxu0 0
        %2541 = vmatpush2.bf16.msra.mxu0 0
        %2542 = vmatprep.subr.bf16.mxu0 0
        %2543 = vmatpush2.bf16.msra.mxu0 0
        %2544 = vmatprep.subr.bf16.mxu0 0
        %2545 = vmatpush2.bf16.msra.mxu0 0
        %2546 = vmatprep.mubr.bf16.mxu0 0
        %2547 = vmatmul.mubr.bf16.gmra.mxu0 %v2419
        %v2548 = vpop.f32.mrf.mxu0
        %v2549 = vadd.f32 0.0, %v2548
        %v2550 = vpop.f32.mrf.mxu0
        %v2551 = vpop.f32.mrf.mxu0
        %v2552 = vadd.f32 0.0, %v2551
        %v2553 = vpop.f32.mrf.mxu0
        %2554 = vmatprep.mubr.bf16.mxu0 0
        %2555 = vmatmul.mubr.bf16.gmra.mxu0 %v2422
        %v2556 = vpop.f32.mrf.mxu0
        %v2557 = vadd.f32 0.0, %v2556
        %v2558 = vpop.f32.mrf.mxu0
        %v2559 = vpop.f32.mrf.mxu0
        %v2560 = vadd.f32 0.0, %v2559
        %v2561 = vpop.f32.mrf.mxu0
        %2562 = vmatprep.mubr.bf16.mxu0 0
        %2563 = vmatmul.mubr.bf16.gmra.mxu0 %v2425
        %v2564 = vpop.f32.mrf.mxu0
        %v2565 = vadd.f32 0.0, %v2564
        %v2566 = vpop.f32.mrf.mxu0
        %v2567 = vpop.f32.mrf.mxu0
        %v2568 = vadd.f32 0.0, %v2567
        %v2569 = vpop.f32.mrf.mxu0
        %2570 = vmatprep.mubr.bf16.mxu0 0
        %2571 = vmatmul.mubr.bf16.gmra.mxu0 %v2428
        %v2572 = vpop.f32.mrf.mxu0
        %v2573 = vadd.f32 0.0, %v2572
        %v2574 = vpop.f32.mrf.mxu0
        %v2575 = vpop.f32.mrf.mxu0
        %v2576 = vadd.f32 0.0, %v2575
        %v2577 = vpop.f32.mrf.mxu0
        %2578 = vmatprep.mubr.bf16.mxu0 0
        %2579 = vmatmul.mubr.bf16.gmra.mxu0 %v2431
        %v2580 = vpop.f32.mrf.mxu0
        %v2581 = vadd.f32 0.0, %v2580
        %v2582 = vpop.f32.mrf.mxu0
        %v2583 = vpop.f32.mrf.mxu0
        %v2584 = vadd.f32 0.0, %v2583
        %v2585 = vpop.f32.mrf.mxu0
        %2586 = vmatprep.mubr.bf16.mxu0 0
        %2587 = vmatmul.mubr.bf16.gmra.mxu0 %v2434
        %v2588 = vpop.f32.mrf.mxu0
        %v2589 = vadd.f32 0.0, %v2588
        %v2590 = vpop.f32.mrf.mxu0
        %v2591 = vpop.f32.mrf.mxu0
        %v2592 = vadd.f32 0.0, %v2591
        %v2593 = vpop.f32.mrf.mxu0
        %2594 = vmatprep.mubr.bf16.mxu0 0
        %2595 = vmatmul.mubr.bf16.gmra.mxu0 %v2437
        %v2596 = vpop.f32.mrf.mxu0
        %v2597 = vadd.f32 0.0, %v2596
        %v2598 = vpop.f32.mrf.mxu0
        %v2599 = vpop.f32.mrf.mxu0
        %v2600 = vadd.f32 0.0, %v2599
        %v2601 = vpop.f32.mrf.mxu0
        %2602 = vmatprep.mubr.bf16.mxu0 0
        %2603 = vmatmul.mubr.bf16.gmra.mxu0 %v2440
        %v2604 = vpop.f32.mrf.mxu0
        %v2605 = vadd.f32 0.0, %v2604
        %v2606 = vpop.f32.mrf.mxu0
        %v2607 = vpop.f32.mrf.mxu0
        %v2608 = vadd.f32 0.0, %v2607
        %v2609 = vpop.f32.mrf.mxu0
        %2610 = vmatprep.mubr.bf16.mxu0 0
        %2611 = vmatmul.mubr.bf16.gmra.mxu0 %v2443
        %v2612 = vpop.f32.mrf.mxu0
        %v2613 = vadd.f32 0.0, %v2612
        %v2614 = vpop.f32.mrf.mxu0
        %v2615 = vpop.f32.mrf.mxu0
        %v2616 = vadd.f32 0.0, %v2615
        %v2617 = vpop.f32.mrf.mxu0
        %2618 = vmatprep.mubr.bf16.mxu0 0
        %2619 = vmatmul.mubr.bf16.gmra.mxu0 %v2446
        %v2620 = vpop.f32.mrf.mxu0
        %v2621 = vadd.f32 0.0, %v2620
        %v2622 = vpop.f32.mrf.mxu0
        %v2623 = vpop.f32.mrf.mxu0
        %v2624 = vadd.f32 0.0, %v2623
        %v2625 = vpop.f32.mrf.mxu0
        %2626 = vmatprep.mubr.bf16.mxu0 0
        %2627 = vmatmul.mubr.bf16.gmra.mxu0 %v2449
        %v2628 = vpop.f32.mrf.mxu0
        %v2629 = vadd.f32 0.0, %v2628
        %v2630 = vpop.f32.mrf.mxu0
        %v2631 = vpop.f32.mrf.mxu0
        %v2632 = vadd.f32 0.0, %v2631
        %v2633 = vpop.f32.mrf.mxu0
        %2634 = vmatprep.mubr.bf16.mxu0 0
        %2635 = vmatmul.mubr.bf16.gmra.mxu0 %v2452
        %v2636 = vpop.f32.mrf.mxu0
        %v2637 = vadd.f32 0.0, %v2636
        %v2638 = vpop.f32.mrf.mxu0
        %v2639 = vpop.f32.mrf.mxu0
        %v2640 = vadd.f32 0.0, %v2639
        %v2641 = vpop.f32.mrf.mxu0
        %2642 = vmatprep.mubr.bf16.mxu0 0
        %2643 = vmatmul.mubr.bf16.gmra.mxu0 %v2455
        %v2644 = vpop.f32.mrf.mxu0
        %v2645 = vadd.f32 0.0, %v2644
        %v2646 = vpop.f32.mrf.mxu0
        %v2647 = vpop.f32.mrf.mxu0
        %v2648 = vadd.f32 0.0, %v2647
        %v2649 = vpop.f32.mrf.mxu0
        %2650 = vmatprep.mubr.bf16.mxu0 0
        %2651 = vmatmul.mubr.bf16.gmra.mxu0 %v2458
        %v2652 = vpop.f32.mrf.mxu0
        %v2653 = vadd.f32 0.0, %v2652
        %v2654 = vpop.f32.mrf.mxu0
        %v2655 = vpop.f32.mrf.mxu0
        %v2656 = vadd.f32 0.0, %v2655
        %v2657 = vpop.f32.mrf.mxu0
        %2658 = vmatprep.mubr.bf16.mxu0 0
        %2659 = vmatmul.mubr.bf16.gmra.mxu0 %v2461
        %v2660 = vpop.f32.mrf.mxu0
        %v2661 = vadd.f32 0.0, %v2660
        %v2662 = vpop.f32.mrf.mxu0
        %v2663 = vpop.f32.mrf.mxu0
        %v2664 = vadd.f32 0.0, %v2663
        %v2665 = vpop.f32.mrf.mxu0
        %2666 = vmatprep.mubr.bf16.mxu0 0
        %2667 = vmatmul.mubr.bf16.gmra.mxu0 %v2464
        %v2668 = vpop.f32.mrf.mxu0
        %v2669 = vadd.f32 0.0, %v2668
        %v2670 = vpop.f32.mrf.mxu0
        %v2671 = vpop.f32.mrf.mxu0
        %v2672 = vadd.f32 0.0, %v2671
        %v2673 = vpop.f32.mrf.mxu0
        %2674 = vmatprep.mubr.bf16.mxu0 0
        %2675 = vmatmul.mubr.bf16.gmra.mxu0 %v2467
        %v2676 = vpop.f32.mrf.mxu0
        %v2677 = vadd.f32 0.0, %v2676
        %v2678 = vpop.f32.mrf.mxu0
        %v2679 = vpop.f32.mrf.mxu0
        %v2680 = vadd.f32 0.0, %v2679
        %v2681 = vpop.f32.mrf.mxu0
        %2682 = vmatprep.mubr.bf16.mxu0 0
        %2683 = vmatmul.mubr.bf16.gmra.mxu0 %v2470
        %v2684 = vpop.f32.mrf.mxu0
        %v2685 = vadd.f32 0.0, %v2684
        %v2686 = vpop.f32.mrf.mxu0
        %v2687 = vpop.f32.mrf.mxu0
        %v2688 = vadd.f32 0.0, %v2687
        %v2689 = vpop.f32.mrf.mxu0
        %2690 = vmatprep.mubr.bf16.mxu0 0
        %2691 = vmatmul.mubr.bf16.gmra.mxu0 %v2473
        %v2692 = vpop.f32.mrf.mxu0
        %v2693 = vadd.f32 0.0, %v2692
        %v2694 = vpop.f32.mrf.mxu0
        %v2695 = vpop.f32.mrf.mxu0
        %v2696 = vadd.f32 0.0, %v2695
        %v2697 = vpop.f32.mrf.mxu0
        %2698 = vmatprep.mubr.bf16.mxu0 0
        %2699 = vmatmul.mubr.bf16.gmra.mxu0 %v2476
        %v2700 = vpop.f32.mrf.mxu0
        %v2701 = vadd.f32 0.0, %v2700
        %v2702 = vpop.f32.mrf.mxu0
        %v2703 = vpop.f32.mrf.mxu0
        %v2704 = vadd.f32 0.0, %v2703
        %v2705 = vpop.f32.mrf.mxu0
        %2706 = vmatprep.mubr.bf16.mxu0 0
        %2707 = vmatmul.mubr.bf16.gmra.mxu0 %v2479
        %v2708 = vpop.f32.mrf.mxu0
        %v2709 = vadd.f32 0.0, %v2708
        %v2710 = vpop.f32.mrf.mxu0
        %v2711 = vpop.f32.mrf.mxu0
        %v2712 = vadd.f32 0.0, %v2711
        %v2713 = vpop.f32.mrf.mxu0
        %2714 = vmatprep.mubr.bf16.mxu0 0
        %2715 = vmatmul.mubr.bf16.gmra.mxu0 %v2482
        %v2716 = vpop.f32.mrf.mxu0
        %v2717 = vadd.f32 0.0, %v2716
        %v2718 = vpop.f32.mrf.mxu0
        %v2719 = vpop.f32.mrf.mxu0
        %v2720 = vadd.f32 0.0, %v2719
        %v2721 = vpop.f32.mrf.mxu0
        %2722 = vmatprep.mubr.bf16.mxu0 0
        %2723 = vmatmul.mubr.bf16.gmra.mxu0 %v2485
        %v2724 = vpop.f32.mrf.mxu0
        %v2725 = vadd.f32 0.0, %v2724
        %v2726 = vpop.f32.mrf.mxu0
        %v2727 = vpop.f32.mrf.mxu0
        %v2728 = vadd.f32 0.0, %v2727
        %v2729 = vpop.f32.mrf.mxu0
        %2730 = vmatprep.mubr.bf16.mxu0 0
        %2731 = vmatmul.mubr.bf16.gmra.mxu0 %v2488
        %v2732 = vpop.f32.mrf.mxu0
        %v2733 = vadd.f32 0.0, %v2732
        %v2734 = vpop.f32.mrf.mxu0
        %v2735 = vpop.f32.mrf.mxu0
        %v2736 = vadd.f32 0.0, %v2735
        %v2737 = vpop.f32.mrf.mxu0
        %2738 = vmatprep.mubr.bf16.mxu0 0
        %2739 = vmatmul.mubr.bf16.gmra.mxu0 %v2491
        %v2740 = vpop.f32.mrf.mxu0
        %v2741 = vadd.f32 0.0, %v2740
        %v2742 = vpop.f32.mrf.mxu0
        %v2743 = vpop.f32.mrf.mxu0
        %v2744 = vadd.f32 0.0, %v2743
        %v2745 = vpop.f32.mrf.mxu0
        %2746 = vmatprep.mubr.bf16.mxu0 0
        %2747 = vmatmul.mubr.bf16.gmra.mxu0 %v2494
        %v2748 = vpop.f32.mrf.mxu0
        %v2749 = vadd.f32 0.0, %v2748
        %v2750 = vpop.f32.mrf.mxu0
        %v2751 = vpop.f32.mrf.mxu0
        %v2752 = vadd.f32 0.0, %v2751
        %v2753 = vpop.f32.mrf.mxu0
        %2754 = vmatprep.mubr.bf16.mxu0 0
        %2755 = vmatmul.mubr.bf16.gmra.mxu0 %v2497
        %v2756 = vpop.f32.mrf.mxu0
        %v2757 = vadd.f32 0.0, %v2756
        %v2758 = vpop.f32.mrf.mxu0
        %v2759 = vpop.f32.mrf.mxu0
        %v2760 = vadd.f32 0.0, %v2759
        %v2761 = vpop.f32.mrf.mxu0
        %2762 = vmatprep.mubr.bf16.mxu0 0
        %2763 = vmatmul.mubr.bf16.gmra.mxu0 %v2500
        %v2764 = vpop.f32.mrf.mxu0
        %v2765 = vadd.f32 0.0, %v2764
        %v2766 = vpop.f32.mrf.mxu0
        %v2767 = vpop.f32.mrf.mxu0
        %v2768 = vadd.f32 0.0, %v2767
        %v2769 = vpop.f32.mrf.mxu0
        %2770 = vmatprep.mubr.bf16.mxu0 0
        %2771 = vmatmul.mubr.bf16.gmra.mxu0 %v2503
        %v2772 = vpop.f32.mrf.mxu0
        %v2773 = vadd.f32 0.0, %v2772
        %v2774 = vpop.f32.mrf.mxu0
        %v2775 = vpop.f32.mrf.mxu0
        %v2776 = vadd.f32 0.0, %v2775
        %v2777 = vpop.f32.mrf.mxu0
        %2778 = vmatprep.mubr.bf16.mxu0 0
        %2779 = vmatmul.mubr.bf16.gmra.mxu0 %v2506
        %v2780 = vpop.f32.mrf.mxu0
        %v2781 = vadd.f32 0.0, %v2780
        %v2782 = vpop.f32.mrf.mxu0
        %v2783 = vpop.f32.mrf.mxu0
        %v2784 = vadd.f32 0.0, %v2783
        %v2785 = vpop.f32.mrf.mxu0
        %2786 = vmatprep.mubr.bf16.mxu0 0
        %2787 = vmatmul.mubr.bf16.gmra.mxu0 %v2509
        %v2788 = vpop.f32.mrf.mxu0
        %v2789 = vadd.f32 0.0, %v2788
        %v2790 = vpop.f32.mrf.mxu0
        %v2791 = vpop.f32.mrf.mxu0
        %v2792 = vadd.f32 0.0, %v2791
        %v2793 = vpop.f32.mrf.mxu0
        %2794 = vmatprep.mubr.bf16.mxu0 0
        %2795 = vmatmul.mubr.bf16.gmra.mxu0 %v2512
        %v2796 = vpop.f32.mrf.mxu0
        %v2797 = vadd.f32 0.0, %v2796
        %v2798 = vpop.f32.mrf.mxu0
        %v2799 = vpop.f32.mrf.mxu0
        %v2800 = vadd.f32 0.0, %v2799
        %v2801 = vpop.f32.mrf.mxu0
        %2802 = vdwg.mxu0
        %v2803 = vmul.f32 %v2549, %v1255
        %v2804 = vmul.f32 %v2552, %v1255
        %v2805 = vmul.f32 %v2557, %v1255
        %v2806 = vmul.f32 %v2560, %v1255
        %v2807 = vmul.f32 %v2565, %v1255
        %v2808 = vmul.f32 %v2568, %v1255
        %v2809 = vmul.f32 %v2573, %v1255
        %v2810 = vmul.f32 %v2576, %v1255
        %v2811 = vmul.f32 %v2581, %v1255
        %v2812 = vmul.f32 %v2584, %v1255
        %v2813 = vmul.f32 %v2589, %v1255
        %v2814 = vmul.f32 %v2592, %v1255
        %v2815 = vmul.f32 %v2597, %v1255
        %v2816 = vmul.f32 %v2600, %v1255
        %v2817 = vmul.f32 %v2605, %v1255
        %v2818 = vmul.f32 %v2608, %v1255
        %v2819 = vmul.f32 %v2613, %v1255
        %v2820 = vmul.f32 %v2616, %v1255
        %v2821 = vmul.f32 %v2621, %v1255
        %v2822 = vmul.f32 %v2624, %v1255
        %v2823 = vmul.f32 %v2629, %v1255
        %v2824 = vmul.f32 %v2632, %v1255
        %v2825 = vmul.f32 %v2637, %v1255
        %v2826 = vmul.f32 %v2640, %v1255
        %v2827 = vmul.f32 %v2645, %v1255
        %v2828 = vmul.f32 %v2648, %v1255
        %v2829 = vmul.f32 %v2653, %v1255
        %v2830 = vmul.f32 %v2656, %v1255
        %v2831 = vmul.f32 %v2661, %v1255
        %v2832 = vmul.f32 %v2664, %v1255
        %v2833 = vmul.f32 %v2669, %v1255
        %v2834 = vmul.f32 %v2672, %v1255
        %v2835 = vmul.f32 %v2677, %v1255
        %v2836 = vmul.f32 %v2680, %v1255
        %v2837 = vmul.f32 %v2685, %v1255
        %v2838 = vmul.f32 %v2688, %v1255
        %v2839 = vmul.f32 %v2693, %v1255
        %v2840 = vmul.f32 %v2696, %v1255
        %v2841 = vmul.f32 %v2701, %v1255
        %v2842 = vmul.f32 %v2704, %v1255
        %v2843 = vmul.f32 %v2709, %v1255
        %v2844 = vmul.f32 %v2712, %v1255
        %v2845 = vmul.f32 %v2717, %v1255
        %v2846 = vmul.f32 %v2720, %v1255
        %v2847 = vmul.f32 %v2725, %v1255
        %v2848 = vmul.f32 %v2728, %v1255
        %v2849 = vmul.f32 %v2733, %v1255
        %v2850 = vmul.f32 %v2736, %v1255
        %v2851 = vmul.f32 %v2741, %v1255
        %v2852 = vmul.f32 %v2744, %v1255
        %v2853 = vmul.f32 %v2749, %v1255
        %v2854 = vmul.f32 %v2752, %v1255
        %v2855 = vmul.f32 %v2757, %v1255
        %v2856 = vmul.f32 %v2760, %v1255
        %v2857 = vmul.f32 %v2765, %v1255
        %v2858 = vmul.f32 %v2768, %v1255
        %v2859 = vmul.f32 %v2773, %v1255
        %v2860 = vmul.f32 %v2776, %v1255
        %v2861 = vmul.f32 %v2781, %v1255
        %v2862 = vmul.f32 %v2784, %v1255
        %v2863 = vmul.f32 %v2789, %v1255
        %v2864 = vmul.f32 %v2792, %v1255
        %v2865 = vmul.f32 %v2797, %v1255
        %v2866 = vmul.f32 %v2800, %v1255
        %v2867 = vadd.f32 %v2803, %v1325
        %v2868 = vadd.f32 %v2804, %v1325
        %v2869 = vadd.f32 %v2805, %v1325
        %v2870 = vadd.f32 %v2806, %v1325
        %v2871 = vadd.f32 %v2807, %v1325
        %v2872 = vadd.f32 %v2808, %v1325
        %v2873 = vadd.f32 %v2809, %v1325
        %v2874 = vadd.f32 %v2810, %v1325
        %v2875 = vadd.f32 %v2811, %v1325
        %v2876 = vadd.f32 %v2812, %v1325
        %v2877 = vadd.f32 %v2813, %v1325
        %v2878 = vadd.f32 %v2814, %v1325
        %v2879 = vadd.f32 %v2815, %v1325
        %v2880 = vadd.f32 %v2816, %v1325
        %v2881 = vadd.f32 %v2817, %v1325
        %v2882 = vadd.f32 %v2818, %v1325
        %v2883 = vadd.f32 %v2819, %v1325
        %v2884 = vadd.f32 %v2820, %v1325
        %v2885 = vadd.f32 %v2821, %v1325
        %v2886 = vadd.f32 %v2822, %v1325
        %v2887 = vadd.f32 %v2823, %v1325
        %v2888 = vadd.f32 %v2824, %v1325
        %v2889 = vadd.f32 %v2825, %v1325
        %v2890 = vadd.f32 %v2826, %v1325
        %v2891 = vadd.f32 %v2827, %v1325
        %v2892 = vadd.f32 %v2828, %v1325
        %v2893 = vadd.f32 %v2829, %v1325
        %v2894 = vadd.f32 %v2830, %v1325
        %v2895 = vadd.f32 %v2831, %v1325
        %v2896 = vadd.f32 %v2832, %v1325
        %v2897 = vadd.f32 %v2833, %v1325
        %v2898 = vadd.f32 %v2834, %v1325
        %v2899 = vadd.f32 %v2835, %v1325
        %v2900 = vadd.f32 %v2836, %v1325
        %v2901 = vadd.f32 %v2837, %v1325
        %v2902 = vadd.f32 %v2838, %v1325
        %v2903 = vadd.f32 %v2839, %v1325
        %v2904 = vadd.f32 %v2840, %v1325
        %v2905 = vadd.f32 %v2841, %v1325
        %v2906 = vadd.f32 %v2842, %v1325
        %v2907 = vadd.f32 %v2843, %v1325
        %v2908 = vadd.f32 %v2844, %v1325
        %v2909 = vadd.f32 %v2845, %v1325
        %v2910 = vadd.f32 %v2846, %v1325
        %v2911 = vadd.f32 %v2847, %v1325
        %v2912 = vadd.f32 %v2848, %v1325
        %v2913 = vadd.f32 %v2849, %v1325
        %v2914 = vadd.f32 %v2850, %v1325
        %v2915 = vadd.f32 %v2851, %v1325
        %v2916 = vadd.f32 %v2852, %v1325
        %v2917 = vadd.f32 %v2853, %v1325
        %v2918 = vadd.f32 %v2854, %v1325
        %v2919 = vadd.f32 %v2855, %v1325
        %v2920 = vadd.f32 %v2856, %v1325
        %v2921 = vadd.f32 %v2857, %v1325
        %v2922 = vadd.f32 %v2858, %v1325
        %v2923 = vadd.f32 %v2859, %v1325
        %v2924 = vadd.f32 %v2860, %v1325
        %v2925 = vadd.f32 %v2861, %v1325
        %v2926 = vadd.f32 %v2862, %v1325
        %v2927 = vadd.f32 %v2863, %v1325
        %v2928 = vadd.f32 %v2864, %v1325
        %v2929 = vadd.f32 %v2865, %v1325
        %v2930 = vadd.f32 %v2866, %v1325
        %v2931 = vmax.f32 %v2129, %v2867
        %v2932 = vmax.f32 %v2130, %v2868
        %v2933 = vmax.f32 %v2131, %v2869
        %v2934 = vmax.f32 %v2132, %v2870
        %v2935 = vmax.f32 %v2133, %v2871
        %v2936 = vmax.f32 %v2134, %v2872
        %v2937 = vmax.f32 %v2135, %v2873
        %v2938 = vmax.f32 %v2136, %v2874
        %v2939 = vmax.f32 %v2137, %v2875
        %v2940 = vmax.f32 %v2138, %v2876
        %v2941 = vmax.f32 %v2139, %v2877
        %v2942 = vmax.f32 %v2140, %v2878
        %v2943 = vmax.f32 %v2141, %v2879
        %v2944 = vmax.f32 %v2142, %v2880
        %v2945 = vmax.f32 %v2143, %v2881
        %v2946 = vmax.f32 %v2144, %v2882
        %v2947 = vmax.f32 %v2145, %v2883
        %v2948 = vmax.f32 %v2146, %v2884
        %v2949 = vmax.f32 %v2147, %v2885
        %v2950 = vmax.f32 %v2148, %v2886
        %v2951 = vmax.f32 %v2149, %v2887
        %v2952 = vmax.f32 %v2150, %v2888
        %v2953 = vmax.f32 %v2151, %v2889
        %v2954 = vmax.f32 %v2152, %v2890
        %v2955 = vmax.f32 %v2153, %v2891
        %v2956 = vmax.f32 %v2154, %v2892
        %v2957 = vmax.f32 %v2155, %v2893
        %v2958 = vmax.f32 %v2156, %v2894
        %v2959 = vmax.f32 %v2157, %v2895
        %v2960 = vmax.f32 %v2158, %v2896
        %v2961 = vmax.f32 %v2159, %v2897
        %v2962 = vmax.f32 %v2160, %v2898
        %v2963 = vmax.f32 %v2161, %v2899
        %v2964 = vmax.f32 %v2162, %v2900
        %v2965 = vmax.f32 %v2163, %v2901
        %v2966 = vmax.f32 %v2164, %v2902
        %v2967 = vmax.f32 %v2165, %v2903
        %v2968 = vmax.f32 %v2166, %v2904
        %v2969 = vmax.f32 %v2167, %v2905
        %v2970 = vmax.f32 %v2168, %v2906
        %v2971 = vmax.f32 %v2169, %v2907
        %v2972 = vmax.f32 %v2170, %v2908
        %v2973 = vmax.f32 %v2171, %v2909
        %v2974 = vmax.f32 %v2172, %v2910
        %v2975 = vmax.f32 %v2173, %v2911
        %v2976 = vmax.f32 %v2174, %v2912
        %v2977 = vmax.f32 %v2175, %v2913
        %v2978 = vmax.f32 %v2176, %v2914
        %v2979 = vmax.f32 %v2177, %v2915
        %v2980 = vmax.f32 %v2178, %v2916
        %v2981 = vmax.f32 %v2179, %v2917
        %v2982 = vmax.f32 %v2180, %v2918
        %v2983 = vmax.f32 %v2181, %v2919
        %v2984 = vmax.f32 %v2182, %v2920
        %v2985 = vmax.f32 %v2183, %v2921
        %v2986 = vmax.f32 %v2184, %v2922
        %v2987 = vmax.f32 %v2185, %v2923
        %v2988 = vmax.f32 %v2186, %v2924
        %v2989 = vmax.f32 %v2187, %v2925
        %v2990 = vmax.f32 %v2188, %v2926
        %v2991 = vmax.f32 %v2189, %v2927
        %v2992 = vmax.f32 %v2190, %v2928
        %v2993 = vmax.f32 %v2191, %v2929
        %v2994 = vmax.f32 %v2192, %v2930
        %s2995 = scalar_lea.vmem %s584, 768 [#allocation2]
        %v2996 = vld [vmem:[%s2995] sm:$0xf]
        %v2997 = vld [vmem:[%s2995 + $0x4] sm:$0xf]
        %v2998 = vld [vmem:[%s2995 + $0x8] sm:$0xf]
        %v2999 = vld [vmem:[%s2995 + $0xc] sm:$0xf]
        %v3000 = vld [vmem:[%s2995 + $0x10] sm:$0xf]
        %v3001 = vld [vmem:[%s2995 + $0x14] sm:$0xf]
        %v3002 = vld [vmem:[%s2995 + $0x18] sm:$0xf]
        %v3003 = vld [vmem:[%s2995 + $0x1c] sm:$0xf]
        %v3004 = vld [vmem:[%s2995 + $0x20] sm:$0xf]
        %v3005 = vld [vmem:[%s2995 + $0x24] sm:$0xf]
        %v3006 = vld [vmem:[%s2995 + $0x28] sm:$0xf]
        %v3007 = vld [vmem:[%s2995 + $0x2c] sm:$0xf]
        %v3008 = vld [vmem:[%s2995 + $0x30] sm:$0xf]
        %v3009 = vld [vmem:[%s2995 + $0x34] sm:$0xf]
        %v3010 = vld [vmem:[%s2995 + $0x38] sm:$0xf]
        %v3011 = vld [vmem:[%s2995 + $0x3c] sm:$0xf]
        %v3012 = vld [vmem:[%s2995 + $0x40] sm:$0xf]
        %v3013 = vld [vmem:[%s2995 + $0x44] sm:$0xf]
        %v3014 = vld [vmem:[%s2995 + $0x48] sm:$0xf]
        %v3015 = vld [vmem:[%s2995 + $0x4c] sm:$0xf]
        %v3016 = vld [vmem:[%s2995 + $0x50] sm:$0xf]
        %v3017 = vld [vmem:[%s2995 + $0x54] sm:$0xf]
        %v3018 = vld [vmem:[%s2995 + $0x58] sm:$0xf]
        %v3019 = vld [vmem:[%s2995 + $0x5c] sm:$0xf]
        %v3020 = vld [vmem:[%s2995 + $0x60] sm:$0xf]
        %v3021 = vld [vmem:[%s2995 + $0x64] sm:$0xf]
        %v3022 = vld [vmem:[%s2995 + $0x68] sm:$0xf]
        %v3023 = vld [vmem:[%s2995 + $0x6c] sm:$0xf]
        %v3024 = vld [vmem:[%s2995 + $0x70] sm:$0xf]
        %v3025 = vld [vmem:[%s2995 + $0x74] sm:$0xf]
        %v3026 = vld [vmem:[%s2995 + $0x78] sm:$0xf]
        %v3027 = vld [vmem:[%s2995 + $0x7c] sm:$0xf]
        %v3028 = vld [vmem:[%s2995 + $0x80] sm:$0xf]
        %v3029 = vld [vmem:[%s2995 + $0x84] sm:$0xf]
        %v3030 = vld [vmem:[%s2995 + $0x88] sm:$0xf]
        %v3031 = vld [vmem:[%s2995 + $0x8c] sm:$0xf]
        %v3032 = vld [vmem:[%s2995 + $0x90] sm:$0xf]
        %v3033 = vld [vmem:[%s2995 + $0x94] sm:$0xf]
        %v3034 = vld [vmem:[%s2995 + $0x98] sm:$0xf]
        %v3035 = vld [vmem:[%s2995 + $0x9c] sm:$0xf]
        %v3036 = vld [vmem:[%s2995 + $0xa0] sm:$0xf]
        %v3037 = vld [vmem:[%s2995 + $0xa4] sm:$0xf]
        %v3038 = vld [vmem:[%s2995 + $0xa8] sm:$0xf]
        %v3039 = vld [vmem:[%s2995 + $0xac] sm:$0xf]
        %v3040 = vld [vmem:[%s2995 + $0xb0] sm:$0xf]
        %v3041 = vld [vmem:[%s2995 + $0xb4] sm:$0xf]
        %v3042 = vld [vmem:[%s2995 + $0xb8] sm:$0xf]
        %v3043 = vld [vmem:[%s2995 + $0xbc] sm:$0xf]
        %v3044 = vld [vmem:[%s2995 + $0xc0] sm:$0xf]
        %v3045 = vld [vmem:[%s2995 + $0xc4] sm:$0xf]
        %v3046 = vld [vmem:[%s2995 + $0xc8] sm:$0xf]
        %v3047 = vld [vmem:[%s2995 + $0xcc] sm:$0xf]
        %v3048 = vld [vmem:[%s2995 + $0xd0] sm:$0xf]
        %v3049 = vld [vmem:[%s2995 + $0xd4] sm:$0xf]
        %v3050 = vld [vmem:[%s2995 + $0xd8] sm:$0xf]
        %v3051 = vld [vmem:[%s2995 + $0xdc] sm:$0xf]
        %v3052 = vld [vmem:[%s2995 + $0xe0] sm:$0xf]
        %v3053 = vld [vmem:[%s2995 + $0xe4] sm:$0xf]
        %v3054 = vld [vmem:[%s2995 + $0xe8] sm:$0xf]
        %v3055 = vld [vmem:[%s2995 + $0xec] sm:$0xf]
        %v3056 = vld [vmem:[%s2995 + $0xf0] sm:$0xf]
        %v3057 = vld [vmem:[%s2995 + $0xf4] sm:$0xf]
        %v3058 = vld [vmem:[%s2995 + $0xf8] sm:$0xf]
        %v3059 = vld [vmem:[%s2995 + $0xfc] sm:$0xf]
        %v3124 = vunpack.c.l.b16 %v2996
        %v3125 = vunpack.c.l.b16 %v2997
        %v3126 = vunpack.c.l.b16 %v2998
        %v3127 = vunpack.c.l.b16 %v2999
        %v3128 = vunpack.c.l.b16 %v3000
        %v3129 = vunpack.c.l.b16 %v3001
        %v3130 = vunpack.c.l.b16 %v3002
        %v3131 = vunpack.c.l.b16 %v3003
        %v3132 = vunpack.c.l.b16 %v3004
        %v3133 = vunpack.c.l.b16 %v3005
        %v3134 = vunpack.c.l.b16 %v3006
        %v3135 = vunpack.c.l.b16 %v3007
        %v3136 = vunpack.c.l.b16 %v3008
        %v3137 = vunpack.c.l.b16 %v3009
        %v3138 = vunpack.c.l.b16 %v3010
        %v3139 = vunpack.c.l.b16 %v3011
        %v3140 = vunpack.c.l.b16 %v3012
        %v3141 = vunpack.c.l.b16 %v3013
        %v3142 = vunpack.c.l.b16 %v3014
        %v3143 = vunpack.c.l.b16 %v3015
        %v3144 = vunpack.c.l.b16 %v3016
        %v3145 = vunpack.c.l.b16 %v3017
        %v3146 = vunpack.c.l.b16 %v3018
        %v3147 = vunpack.c.l.b16 %v3019
        %v3148 = vunpack.c.l.b16 %v3020
        %v3149 = vunpack.c.l.b16 %v3021
        %v3150 = vunpack.c.l.b16 %v3022
        %v3151 = vunpack.c.l.b16 %v3023
        %v3152 = vunpack.c.l.b16 %v3024
        %v3153 = vunpack.c.l.b16 %v3025
        %v3154 = vunpack.c.l.b16 %v3026
        %v3155 = vunpack.c.l.b16 %v3027
        %v3156 = vunpack.c.l.b16 %v3028
        %v3157 = vunpack.c.l.b16 %v3029
        %v3158 = vunpack.c.l.b16 %v3030
        %v3159 = vunpack.c.l.b16 %v3031
        %v3160 = vunpack.c.l.b16 %v3032
        %v3161 = vunpack.c.l.b16 %v3033
        %v3162 = vunpack.c.l.b16 %v3034
        %v3163 = vunpack.c.l.b16 %v3035
        %v3164 = vunpack.c.l.b16 %v3036
        %v3165 = vunpack.c.l.b16 %v3037
        %v3166 = vunpack.c.l.b16 %v3038
        %v3167 = vunpack.c.l.b16 %v3039
        %v3168 = vunpack.c.l.b16 %v3040
        %v3169 = vunpack.c.l.b16 %v3041
        %v3170 = vunpack.c.l.b16 %v3042
        %v3171 = vunpack.c.l.b16 %v3043
        %v3172 = vunpack.c.l.b16 %v3044
        %v3173 = vunpack.c.l.b16 %v3045
        %v3174 = vunpack.c.l.b16 %v3046
        %v3175 = vunpack.c.l.b16 %v3047
        %v3176 = vunpack.c.l.b16 %v3048
        %v3177 = vunpack.c.l.b16 %v3049
        %v3178 = vunpack.c.l.b16 %v3050
        %v3179 = vunpack.c.l.b16 %v3051
        %v3180 = vunpack.c.l.b16 %v3052
        %v3181 = vunpack.c.l.b16 %v3053
        %v3182 = vunpack.c.l.b16 %v3054
        %v3183 = vunpack.c.l.b16 %v3055
        %v3184 = vunpack.c.l.b16 %v3056
        %v3185 = vunpack.c.l.b16 %v3057
        %v3186 = vunpack.c.l.b16 %v3058
        %v3187 = vunpack.c.l.b16 %v3059
        %v3188 = vpack.c.b16 %v3125, %v3124
        %v3189 = vpack.c.b16 %v3127, %v3126
        %v3190 = vpack.c.b16 %v3129, %v3128
        %v3191 = vpack.c.b16 %v3131, %v3130
        %v3192 = vpack.c.b16 %v3133, %v3132
        %v3193 = vpack.c.b16 %v3135, %v3134
        %v3194 = vpack.c.b16 %v3137, %v3136
        %v3195 = vpack.c.b16 %v3139, %v3138
        %v3196 = vpack.c.b16 %v3141, %v3140
        %v3197 = vpack.c.b16 %v3143, %v3142
        %v3198 = vpack.c.b16 %v3145, %v3144
        %v3199 = vpack.c.b16 %v3147, %v3146
        %v3200 = vpack.c.b16 %v3149, %v3148
        %v3201 = vpack.c.b16 %v3151, %v3150
        %v3202 = vpack.c.b16 %v3153, %v3152
        %v3203 = vpack.c.b16 %v3155, %v3154
        %v3204 = vpack.c.b16 %v3157, %v3156
        %v3205 = vpack.c.b16 %v3159, %v3158
        %v3206 = vpack.c.b16 %v3161, %v3160
        %v3207 = vpack.c.b16 %v3163, %v3162
        %v3208 = vpack.c.b16 %v3165, %v3164
        %v3209 = vpack.c.b16 %v3167, %v3166
        %v3210 = vpack.c.b16 %v3169, %v3168
        %v3211 = vpack.c.b16 %v3171, %v3170
        %v3212 = vpack.c.b16 %v3173, %v3172
        %v3213 = vpack.c.b16 %v3175, %v3174
        %v3214 = vpack.c.b16 %v3177, %v3176
        %v3215 = vpack.c.b16 %v3179, %v3178
        %v3216 = vpack.c.b16 %v3181, %v3180
        %v3217 = vpack.c.b16 %v3183, %v3182
        %v3218 = vpack.c.b16 %v3185, %v3184
        %v3219 = vpack.c.b16 %v3187, %v3186
        %v3221 = vsel %vm858, %v3188, 0
        %v3224 = vsel %vm858, %v3189, 0
        %v3227 = vsel %vm858, %v3190, 0
        %v3230 = vsel %vm858, %v3191, 0
        %v3233 = vsel %vm858, %v3192, 0
        %v3236 = vsel %vm858, %v3193, 0
        %v3239 = vsel %vm858, %v3194, 0
        %v3242 = vsel %vm858, %v3195, 0
        %v3245 = vsel %vm858, %v3196, 0
        %v3248 = vsel %vm858, %v3197, 0
        %v3251 = vsel %vm858, %v3198, 0
        %v3254 = vsel %vm858, %v3199, 0
        %v3257 = vsel %vm858, %v3200, 0
        %v3260 = vsel %vm858, %v3201, 0
        %v3263 = vsel %vm858, %v3202, 0
        %v3266 = vsel %vm858, %v3203, 0
        %v3269 = vsel %vm858, %v3204, 0
        %v3272 = vsel %vm858, %v3205, 0
        %v3275 = vsel %vm858, %v3206, 0
        %v3278 = vsel %vm858, %v3207, 0
        %v3281 = vsel %vm858, %v3208, 0
        %v3284 = vsel %vm858, %v3209, 0
        %v3287 = vsel %vm858, %v3210, 0
        %v3290 = vsel %vm858, %v3211, 0
        %v3293 = vsel %vm858, %v3212, 0
        %v3296 = vsel %vm858, %v3213, 0
        %v3299 = vsel %vm858, %v3214, 0
        %v3302 = vsel %vm858, %v3215, 0
        %v3305 = vsel %vm858, %v3216, 0
        %v3308 = vsel %vm858, %v3217, 0
        %v3311 = vsel %vm858, %v3218, 0
        %v3314 = vsel %vm858, %v3219, 0
        %3316 = vmatprep.subr.bf16.mxu0 0
        %3317 = vmatpush1.bf16.msra.mxu0 0
        %3318 = vmatprep.subr.bf16.mxu0 0
        %3319 = vmatpush1.bf16.msra.mxu0 0
        %3320 = vmatprep.subr.bf16.mxu0 0
        %3321 = vmatpush1.bf16.msra.mxu0 0
        %3322 = vmatprep.subr.bf16.mxu0 0
        %3323 = vmatpush1.bf16.msra.mxu0 0
        %3324 = vmatprep.subr.bf16.mxu0 0
        %3325 = vmatpush1.bf16.msra.mxu0 0
        %3326 = vmatprep.subr.bf16.mxu0 0
        %3327 = vmatpush1.bf16.msra.mxu0 0
        %3328 = vmatprep.subr.bf16.mxu0 0
        %3329 = vmatpush1.bf16.msra.mxu0 %v960
        %3330 = vmatprep.subr.bf16.mxu0 0
        %3331 = vmatpush1.bf16.msra.mxu0 %v855
        %3332 = vmatprep.subr.bf16.mxu0 0
        %3333 = vmatpush2.bf16.msra.mxu0 0
        %3334 = vmatprep.subr.bf16.mxu0 0
        %3335 = vmatpush2.bf16.msra.mxu0 0
        %3336 = vmatprep.subr.bf16.mxu0 0
        %3337 = vmatpush2.bf16.msra.mxu0 0
        %3338 = vmatprep.subr.bf16.mxu0 0
        %3339 = vmatpush2.bf16.msra.mxu0 0
        %3340 = vmatprep.subr.bf16.mxu0 0
        %3341 = vmatpush2.bf16.msra.mxu0 0
        %3342 = vmatprep.subr.bf16.mxu0 0
        %3343 = vmatpush2.bf16.msra.mxu0 0
        %3344 = vmatprep.subr.bf16.mxu0 0
        %3345 = vmatpush2.bf16.msra.mxu0 0
        %3346 = vmatprep.subr.bf16.mxu0 0
        %3347 = vmatpush2.bf16.msra.mxu0 0
        %3348 = vmatprep.mubr.bf16.mxu0 0
        %3349 = vmatmul.mubr.bf16.gmra.mxu0 %v3221
        %v3350 = vpop.f32.mrf.mxu0
        %v3351 = vadd.f32 0.0, %v3350
        %v3352 = vpop.f32.mrf.mxu0
        %v3353 = vpop.f32.mrf.mxu0
        %v3354 = vadd.f32 0.0, %v3353
        %v3355 = vpop.f32.mrf.mxu0
        %3356 = vmatprep.mubr.bf16.mxu0 0
        %3357 = vmatmul.mubr.bf16.gmra.mxu0 %v3224
        %v3358 = vpop.f32.mrf.mxu0
        %v3359 = vadd.f32 0.0, %v3358
        %v3360 = vpop.f32.mrf.mxu0
        %v3361 = vpop.f32.mrf.mxu0
        %v3362 = vadd.f32 0.0, %v3361
        %v3363 = vpop.f32.mrf.mxu0
        %3364 = vmatprep.mubr.bf16.mxu0 0
        %3365 = vmatmul.mubr.bf16.gmra.mxu0 %v3227
        %v3366 = vpop.f32.mrf.mxu0
        %v3367 = vadd.f32 0.0, %v3366
        %v3368 = vpop.f32.mrf.mxu0
        %v3369 = vpop.f32.mrf.mxu0
        %v3370 = vadd.f32 0.0, %v3369
        %v3371 = vpop.f32.mrf.mxu0
        %3372 = vmatprep.mubr.bf16.mxu0 0
        %3373 = vmatmul.mubr.bf16.gmra.mxu0 %v3230
        %v3374 = vpop.f32.mrf.mxu0
        %v3375 = vadd.f32 0.0, %v3374
        %v3376 = vpop.f32.mrf.mxu0
        %v3377 = vpop.f32.mrf.mxu0
        %v3378 = vadd.f32 0.0, %v3377
        %v3379 = vpop.f32.mrf.mxu0
        %3380 = vmatprep.mubr.bf16.mxu0 0
        %3381 = vmatmul.mubr.bf16.gmra.mxu0 %v3233
        %v3382 = vpop.f32.mrf.mxu0
        %v3383 = vadd.f32 0.0, %v3382
        %v3384 = vpop.f32.mrf.mxu0
        %v3385 = vpop.f32.mrf.mxu0
        %v3386 = vadd.f32 0.0, %v3385
        %v3387 = vpop.f32.mrf.mxu0
        %3388 = vmatprep.mubr.bf16.mxu0 0
        %3389 = vmatmul.mubr.bf16.gmra.mxu0 %v3236
        %v3390 = vpop.f32.mrf.mxu0
        %v3391 = vadd.f32 0.0, %v3390
        %v3392 = vpop.f32.mrf.mxu0
        %v3393 = vpop.f32.mrf.mxu0
        %v3394 = vadd.f32 0.0, %v3393
        %v3395 = vpop.f32.mrf.mxu0
        %3396 = vmatprep.mubr.bf16.mxu0 0
        %3397 = vmatmul.mubr.bf16.gmra.mxu0 %v3239
        %v3398 = vpop.f32.mrf.mxu0
        %v3399 = vadd.f32 0.0, %v3398
        %v3400 = vpop.f32.mrf.mxu0
        %v3401 = vpop.f32.mrf.mxu0
        %v3402 = vadd.f32 0.0, %v3401
        %v3403 = vpop.f32.mrf.mxu0
        %3404 = vmatprep.mubr.bf16.mxu0 0
        %3405 = vmatmul.mubr.bf16.gmra.mxu0 %v3242
        %v3406 = vpop.f32.mrf.mxu0
        %v3407 = vadd.f32 0.0, %v3406
        %v3408 = vpop.f32.mrf.mxu0
        %v3409 = vpop.f32.mrf.mxu0
        %v3410 = vadd.f32 0.0, %v3409
        %v3411 = vpop.f32.mrf.mxu0
        %3412 = vmatprep.mubr.bf16.mxu0 0
        %3413 = vmatmul.mubr.bf16.gmra.mxu0 %v3245
        %v3414 = vpop.f32.mrf.mxu0
        %v3415 = vadd.f32 0.0, %v3414
        %v3416 = vpop.f32.mrf.mxu0
        %v3417 = vpop.f32.mrf.mxu0
        %v3418 = vadd.f32 0.0, %v3417
        %v3419 = vpop.f32.mrf.mxu0
        %3420 = vmatprep.mubr.bf16.mxu0 0
        %3421 = vmatmul.mubr.bf16.gmra.mxu0 %v3248
        %v3422 = vpop.f32.mrf.mxu0
        %v3423 = vadd.f32 0.0, %v3422
        %v3424 = vpop.f32.mrf.mxu0
        %v3425 = vpop.f32.mrf.mxu0
        %v3426 = vadd.f32 0.0, %v3425
        %v3427 = vpop.f32.mrf.mxu0
        %3428 = vmatprep.mubr.bf16.mxu0 0
        %3429 = vmatmul.mubr.bf16.gmra.mxu0 %v3251
        %v3430 = vpop.f32.mrf.mxu0
        %v3431 = vadd.f32 0.0, %v3430
        %v3432 = vpop.f32.mrf.mxu0
        %v3433 = vpop.f32.mrf.mxu0
        %v3434 = vadd.f32 0.0, %v3433
        %v3435 = vpop.f32.mrf.mxu0
        %3436 = vmatprep.mubr.bf16.mxu0 0
        %3437 = vmatmul.mubr.bf16.gmra.mxu0 %v3254
        %v3438 = vpop.f32.mrf.mxu0
        %v3439 = vadd.f32 0.0, %v3438
        %v3440 = vpop.f32.mrf.mxu0
        %v3441 = vpop.f32.mrf.mxu0
        %v3442 = vadd.f32 0.0, %v3441
        %v3443 = vpop.f32.mrf.mxu0
        %3444 = vmatprep.mubr.bf16.mxu0 0
        %3445 = vmatmul.mubr.bf16.gmra.mxu0 %v3257
        %v3446 = vpop.f32.mrf.mxu0
        %v3447 = vadd.f32 0.0, %v3446
        %v3448 = vpop.f32.mrf.mxu0
        %v3449 = vpop.f32.mrf.mxu0
        %v3450 = vadd.f32 0.0, %v3449
        %v3451 = vpop.f32.mrf.mxu0
        %3452 = vmatprep.mubr.bf16.mxu0 0
        %3453 = vmatmul.mubr.bf16.gmra.mxu0 %v3260
        %v3454 = vpop.f32.mrf.mxu0
        %v3455 = vadd.f32 0.0, %v3454
        %v3456 = vpop.f32.mrf.mxu0
        %v3457 = vpop.f32.mrf.mxu0
        %v3458 = vadd.f32 0.0, %v3457
        %v3459 = vpop.f32.mrf.mxu0
        %3460 = vmatprep.mubr.bf16.mxu0 0
        %3461 = vmatmul.mubr.bf16.gmra.mxu0 %v3263
        %v3462 = vpop.f32.mrf.mxu0
        %v3463 = vadd.f32 0.0, %v3462
        %v3464 = vpop.f32.mrf.mxu0
        %v3465 = vpop.f32.mrf.mxu0
        %v3466 = vadd.f32 0.0, %v3465
        %v3467 = vpop.f32.mrf.mxu0
        %3468 = vmatprep.mubr.bf16.mxu0 0
        %3469 = vmatmul.mubr.bf16.gmra.mxu0 %v3266
        %v3470 = vpop.f32.mrf.mxu0
        %v3471 = vadd.f32 0.0, %v3470
        %v3472 = vpop.f32.mrf.mxu0
        %v3473 = vpop.f32.mrf.mxu0
        %v3474 = vadd.f32 0.0, %v3473
        %v3475 = vpop.f32.mrf.mxu0
        %3476 = vmatprep.mubr.bf16.mxu0 0
        %3477 = vmatmul.mubr.bf16.gmra.mxu0 %v3269
        %v3478 = vpop.f32.mrf.mxu0
        %v3479 = vadd.f32 0.0, %v3478
        %v3480 = vpop.f32.mrf.mxu0
        %v3481 = vpop.f32.mrf.mxu0
        %v3482 = vadd.f32 0.0, %v3481
        %v3483 = vpop.f32.mrf.mxu0
        %3484 = vmatprep.mubr.bf16.mxu0 0
        %3485 = vmatmul.mubr.bf16.gmra.mxu0 %v3272
        %v3486 = vpop.f32.mrf.mxu0
        %v3487 = vadd.f32 0.0, %v3486
        %v3488 = vpop.f32.mrf.mxu0
        %v3489 = vpop.f32.mrf.mxu0
        %v3490 = vadd.f32 0.0, %v3489
        %v3491 = vpop.f32.mrf.mxu0
        %3492 = vmatprep.mubr.bf16.mxu0 0
        %3493 = vmatmul.mubr.bf16.gmra.mxu0 %v3275
        %v3494 = vpop.f32.mrf.mxu0
        %v3495 = vadd.f32 0.0, %v3494
        %v3496 = vpop.f32.mrf.mxu0
        %v3497 = vpop.f32.mrf.mxu0
        %v3498 = vadd.f32 0.0, %v3497
        %v3499 = vpop.f32.mrf.mxu0
        %3500 = vmatprep.mubr.bf16.mxu0 0
        %3501 = vmatmul.mubr.bf16.gmra.mxu0 %v3278
        %v3502 = vpop.f32.mrf.mxu0
        %v3503 = vadd.f32 0.0, %v3502
        %v3504 = vpop.f32.mrf.mxu0
        %v3505 = vpop.f32.mrf.mxu0
        %v3506 = vadd.f32 0.0, %v3505
        %v3507 = vpop.f32.mrf.mxu0
        %3508 = vmatprep.mubr.bf16.mxu0 0
        %3509 = vmatmul.mubr.bf16.gmra.mxu0 %v3281
        %v3510 = vpop.f32.mrf.mxu0
        %v3511 = vadd.f32 0.0, %v3510
        %v3512 = vpop.f32.mrf.mxu0
        %v3513 = vpop.f32.mrf.mxu0
        %v3514 = vadd.f32 0.0, %v3513
        %v3515 = vpop.f32.mrf.mxu0
        %3516 = vmatprep.mubr.bf16.mxu0 0
        %3517 = vmatmul.mubr.bf16.gmra.mxu0 %v3284
        %v3518 = vpop.f32.mrf.mxu0
        %v3519 = vadd.f32 0.0, %v3518
        %v3520 = vpop.f32.mrf.mxu0
        %v3521 = vpop.f32.mrf.mxu0
        %v3522 = vadd.f32 0.0, %v3521
        %v3523 = vpop.f32.mrf.mxu0
        %3524 = vmatprep.mubr.bf16.mxu0 0
        %3525 = vmatmul.mubr.bf16.gmra.mxu0 %v3287
        %v3526 = vpop.f32.mrf.mxu0
        %v3527 = vadd.f32 0.0, %v3526
        %v3528 = vpop.f32.mrf.mxu0
        %v3529 = vpop.f32.mrf.mxu0
        %v3530 = vadd.f32 0.0, %v3529
        %v3531 = vpop.f32.mrf.mxu0
        %3532 = vmatprep.mubr.bf16.mxu0 0
        %3533 = vmatmul.mubr.bf16.gmra.mxu0 %v3290
        %v3534 = vpop.f32.mrf.mxu0
        %v3535 = vadd.f32 0.0, %v3534
        %v3536 = vpop.f32.mrf.mxu0
        %v3537 = vpop.f32.mrf.mxu0
        %v3538 = vadd.f32 0.0, %v3537
        %v3539 = vpop.f32.mrf.mxu0
        %3540 = vmatprep.mubr.bf16.mxu0 0
        %3541 = vmatmul.mubr.bf16.gmra.mxu0 %v3293
        %v3542 = vpop.f32.mrf.mxu0
        %v3543 = vadd.f32 0.0, %v3542
        %v3544 = vpop.f32.mrf.mxu0
        %v3545 = vpop.f32.mrf.mxu0
        %v3546 = vadd.f32 0.0, %v3545
        %v3547 = vpop.f32.mrf.mxu0
        %3548 = vmatprep.mubr.bf16.mxu0 0
        %3549 = vmatmul.mubr.bf16.gmra.mxu0 %v3296
        %v3550 = vpop.f32.mrf.mxu0
        %v3551 = vadd.f32 0.0, %v3550
        %v3552 = vpop.f32.mrf.mxu0
        %v3553 = vpop.f32.mrf.mxu0
        %v3554 = vadd.f32 0.0, %v3553
        %v3555 = vpop.f32.mrf.mxu0
        %3556 = vmatprep.mubr.bf16.mxu0 0
        %3557 = vmatmul.mubr.bf16.gmra.mxu0 %v3299
        %v3558 = vpop.f32.mrf.mxu0
        %v3559 = vadd.f32 0.0, %v3558
        %v3560 = vpop.f32.mrf.mxu0
        %v3561 = vpop.f32.mrf.mxu0
        %v3562 = vadd.f32 0.0, %v3561
        %v3563 = vpop.f32.mrf.mxu0
        %3564 = vmatprep.mubr.bf16.mxu0 0
        %3565 = vmatmul.mubr.bf16.gmra.mxu0 %v3302
        %v3566 = vpop.f32.mrf.mxu0
        %v3567 = vadd.f32 0.0, %v3566
        %v3568 = vpop.f32.mrf.mxu0
        %v3569 = vpop.f32.mrf.mxu0
        %v3570 = vadd.f32 0.0, %v3569
        %v3571 = vpop.f32.mrf.mxu0
        %3572 = vmatprep.mubr.bf16.mxu0 0
        %3573 = vmatmul.mubr.bf16.gmra.mxu0 %v3305
        %v3574 = vpop.f32.mrf.mxu0
        %v3575 = vadd.f32 0.0, %v3574
        %v3576 = vpop.f32.mrf.mxu0
        %v3577 = vpop.f32.mrf.mxu0
        %v3578 = vadd.f32 0.0, %v3577
        %v3579 = vpop.f32.mrf.mxu0
        %3580 = vmatprep.mubr.bf16.mxu0 0
        %3581 = vmatmul.mubr.bf16.gmra.mxu0 %v3308
        %v3582 = vpop.f32.mrf.mxu0
        %v3583 = vadd.f32 0.0, %v3582
        %v3584 = vpop.f32.mrf.mxu0
        %v3585 = vpop.f32.mrf.mxu0
        %v3586 = vadd.f32 0.0, %v3585
        %v3587 = vpop.f32.mrf.mxu0
        %3588 = vmatprep.mubr.bf16.mxu0 0
        %3589 = vmatmul.mubr.bf16.gmra.mxu0 %v3311
        %v3590 = vpop.f32.mrf.mxu0
        %v3591 = vadd.f32 0.0, %v3590
        %v3592 = vpop.f32.mrf.mxu0
        %v3593 = vpop.f32.mrf.mxu0
        %v3594 = vadd.f32 0.0, %v3593
        %v3595 = vpop.f32.mrf.mxu0
        %3596 = vmatprep.mubr.bf16.mxu0 0
        %3597 = vmatmul.mubr.bf16.gmra.mxu0 %v3314
        %v3598 = vpop.f32.mrf.mxu0
        %v3599 = vadd.f32 0.0, %v3598
        %v3600 = vpop.f32.mrf.mxu0
        %v3601 = vpop.f32.mrf.mxu0
        %v3602 = vadd.f32 0.0, %v3601
        %v3603 = vpop.f32.mrf.mxu0
        %3604 = vdwg.mxu0
        %v3605 = vmul.f32 %v3351, %v1255
        %v3606 = vmul.f32 %v3354, %v1255
        %v3607 = vmul.f32 %v3359, %v1255
        %v3608 = vmul.f32 %v3362, %v1255
        %v3609 = vmul.f32 %v3367, %v1255
        %v3610 = vmul.f32 %v3370, %v1255
        %v3611 = vmul.f32 %v3375, %v1255
        %v3612 = vmul.f32 %v3378, %v1255
        %v3613 = vmul.f32 %v3383, %v1255
        %v3614 = vmul.f32 %v3386, %v1255
        %v3615 = vmul.f32 %v3391, %v1255
        %v3616 = vmul.f32 %v3394, %v1255
        %v3617 = vmul.f32 %v3399, %v1255
        %v3618 = vmul.f32 %v3402, %v1255
        %v3619 = vmul.f32 %v3407, %v1255
        %v3620 = vmul.f32 %v3410, %v1255
        %v3621 = vmul.f32 %v3415, %v1255
        %v3622 = vmul.f32 %v3418, %v1255
        %v3623 = vmul.f32 %v3423, %v1255
        %v3624 = vmul.f32 %v3426, %v1255
        %v3625 = vmul.f32 %v3431, %v1255
        %v3626 = vmul.f32 %v3434, %v1255
        %v3627 = vmul.f32 %v3439, %v1255
        %v3628 = vmul.f32 %v3442, %v1255
        %v3629 = vmul.f32 %v3447, %v1255
        %v3630 = vmul.f32 %v3450, %v1255
        %v3631 = vmul.f32 %v3455, %v1255
        %v3632 = vmul.f32 %v3458, %v1255
        %v3633 = vmul.f32 %v3463, %v1255
        %v3634 = vmul.f32 %v3466, %v1255
        %v3635 = vmul.f32 %v3471, %v1255
        %v3636 = vmul.f32 %v3474, %v1255
        %v3637 = vmul.f32 %v3479, %v1255
        %v3638 = vmul.f32 %v3482, %v1255
        %v3639 = vmul.f32 %v3487, %v1255
        %v3640 = vmul.f32 %v3490, %v1255
        %v3641 = vmul.f32 %v3495, %v1255
        %v3642 = vmul.f32 %v3498, %v1255
        %v3643 = vmul.f32 %v3503, %v1255
        %v3644 = vmul.f32 %v3506, %v1255
        %v3645 = vmul.f32 %v3511, %v1255
        %v3646 = vmul.f32 %v3514, %v1255
        %v3647 = vmul.f32 %v3519, %v1255
        %v3648 = vmul.f32 %v3522, %v1255
        %v3649 = vmul.f32 %v3527, %v1255
        %v3650 = vmul.f32 %v3530, %v1255
        %v3651 = vmul.f32 %v3535, %v1255
        %v3652 = vmul.f32 %v3538, %v1255
        %v3653 = vmul.f32 %v3543, %v1255
        %v3654 = vmul.f32 %v3546, %v1255
        %v3655 = vmul.f32 %v3551, %v1255
        %v3656 = vmul.f32 %v3554, %v1255
        %v3657 = vmul.f32 %v3559, %v1255
        %v3658 = vmul.f32 %v3562, %v1255
        %v3659 = vmul.f32 %v3567, %v1255
        %v3660 = vmul.f32 %v3570, %v1255
        %v3661 = vmul.f32 %v3575, %v1255
        %v3662 = vmul.f32 %v3578, %v1255
        %v3663 = vmul.f32 %v3583, %v1255
        %v3664 = vmul.f32 %v3586, %v1255
        %v3665 = vmul.f32 %v3591, %v1255
        %v3666 = vmul.f32 %v3594, %v1255
        %v3667 = vmul.f32 %v3599, %v1255
        %v3668 = vmul.f32 %v3602, %v1255
        %v3669 = vadd.f32 %v3605, %v1325
        %v3670 = vadd.f32 %v3606, %v1325
        %v3671 = vadd.f32 %v3607, %v1325
        %v3672 = vadd.f32 %v3608, %v1325
        %v3673 = vadd.f32 %v3609, %v1325
        %v3674 = vadd.f32 %v3610, %v1325
        %v3675 = vadd.f32 %v3611, %v1325
        %v3676 = vadd.f32 %v3612, %v1325
        %v3677 = vadd.f32 %v3613, %v1325
        %v3678 = vadd.f32 %v3614, %v1325
        %v3679 = vadd.f32 %v3615, %v1325
        %v3680 = vadd.f32 %v3616, %v1325
        %v3681 = vadd.f32 %v3617, %v1325
        %v3682 = vadd.f32 %v3618, %v1325
        %v3683 = vadd.f32 %v3619, %v1325
        %v3684 = vadd.f32 %v3620, %v1325
        %v3685 = vadd.f32 %v3621, %v1325
        %v3686 = vadd.f32 %v3622, %v1325
        %v3687 = vadd.f32 %v3623, %v1325
        %v3688 = vadd.f32 %v3624, %v1325
        %v3689 = vadd.f32 %v3625, %v1325
        %v3690 = vadd.f32 %v3626, %v1325
        %v3691 = vadd.f32 %v3627, %v1325
        %v3692 = vadd.f32 %v3628, %v1325
        %v3693 = vadd.f32 %v3629, %v1325
        %v3694 = vadd.f32 %v3630, %v1325
        %v3695 = vadd.f32 %v3631, %v1325
        %v3696 = vadd.f32 %v3632, %v1325
        %v3697 = vadd.f32 %v3633, %v1325
        %v3698 = vadd.f32 %v3634, %v1325
        %v3699 = vadd.f32 %v3635, %v1325
        %v3700 = vadd.f32 %v3636, %v1325
        %v3701 = vadd.f32 %v3637, %v1325
        %v3702 = vadd.f32 %v3638, %v1325
        %v3703 = vadd.f32 %v3639, %v1325
        %v3704 = vadd.f32 %v3640, %v1325
        %v3705 = vadd.f32 %v3641, %v1325
        %v3706 = vadd.f32 %v3642, %v1325
        %v3707 = vadd.f32 %v3643, %v1325
        %v3708 = vadd.f32 %v3644, %v1325
        %v3709 = vadd.f32 %v3645, %v1325
        %v3710 = vadd.f32 %v3646, %v1325
        %v3711 = vadd.f32 %v3647, %v1325
        %v3712 = vadd.f32 %v3648, %v1325
        %v3713 = vadd.f32 %v3649, %v1325
        %v3714 = vadd.f32 %v3650, %v1325
        %v3715 = vadd.f32 %v3651, %v1325
        %v3716 = vadd.f32 %v3652, %v1325
        %v3717 = vadd.f32 %v3653, %v1325
        %v3718 = vadd.f32 %v3654, %v1325
        %v3719 = vadd.f32 %v3655, %v1325
        %v3720 = vadd.f32 %v3656, %v1325
        %v3721 = vadd.f32 %v3657, %v1325
        %v3722 = vadd.f32 %v3658, %v1325
        %v3723 = vadd.f32 %v3659, %v1325
        %v3724 = vadd.f32 %v3660, %v1325
        %v3725 = vadd.f32 %v3661, %v1325
        %v3726 = vadd.f32 %v3662, %v1325
        %v3727 = vadd.f32 %v3663, %v1325
        %v3728 = vadd.f32 %v3664, %v1325
        %v3729 = vadd.f32 %v3665, %v1325
        %v3730 = vadd.f32 %v3666, %v1325
        %v3731 = vadd.f32 %v3667, %v1325
        %v3732 = vadd.f32 %v3668, %v1325
        %v3733 = vmax.f32 %v2931, %v3669
        %v3734 = vmax.f32 %v2932, %v3670
        %v3735 = vmax.f32 %v2933, %v3671
        %v3736 = vmax.f32 %v2934, %v3672
        %v3737 = vmax.f32 %v2935, %v3673
        %v3738 = vmax.f32 %v2936, %v3674
        %v3739 = vmax.f32 %v2937, %v3675
        %v3740 = vmax.f32 %v2938, %v3676
        %v3741 = vmax.f32 %v2939, %v3677
        %v3742 = vmax.f32 %v2940, %v3678
        %v3743 = vmax.f32 %v2941, %v3679
        %v3744 = vmax.f32 %v2942, %v3680
        %v3745 = vmax.f32 %v2943, %v3681
        %v3746 = vmax.f32 %v2944, %v3682
        %v3747 = vmax.f32 %v2945, %v3683
        %v3748 = vmax.f32 %v2946, %v3684
        %v3749 = vmax.f32 %v2947, %v3685
        %v3750 = vmax.f32 %v2948, %v3686
        %v3751 = vmax.f32 %v2949, %v3687
        %v3752 = vmax.f32 %v2950, %v3688
        %v3753 = vmax.f32 %v2951, %v3689
        %v3754 = vmax.f32 %v2952, %v3690
        %v3755 = vmax.f32 %v2953, %v3691
        %v3756 = vmax.f32 %v2954, %v3692
        %v3757 = vmax.f32 %v2955, %v3693
        %v3758 = vmax.f32 %v2956, %v3694
        %v3759 = vmax.f32 %v2957, %v3695
        %v3760 = vmax.f32 %v2958, %v3696
        %v3761 = vmax.f32 %v2959, %v3697
        %v3762 = vmax.f32 %v2960, %v3698
        %v3763 = vmax.f32 %v2961, %v3699
        %v3764 = vmax.f32 %v2962, %v3700
        %v3765 = vmax.f32 %v2963, %v3701
        %v3766 = vmax.f32 %v2964, %v3702
        %v3767 = vmax.f32 %v2965, %v3703
        %v3768 = vmax.f32 %v2966, %v3704
        %v3769 = vmax.f32 %v2967, %v3705
        %v3770 = vmax.f32 %v2968, %v3706
        %v3771 = vmax.f32 %v2969, %v3707
        %v3772 = vmax.f32 %v2970, %v3708
        %v3773 = vmax.f32 %v2971, %v3709
        %v3774 = vmax.f32 %v2972, %v3710
        %v3775 = vmax.f32 %v2973, %v3711
        %v3776 = vmax.f32 %v2974, %v3712
        %v3777 = vmax.f32 %v2975, %v3713
        %v3778 = vmax.f32 %v2976, %v3714
        %v3779 = vmax.f32 %v2977, %v3715
        %v3780 = vmax.f32 %v2978, %v3716
        %v3781 = vmax.f32 %v2979, %v3717
        %v3782 = vmax.f32 %v2980, %v3718
        %v3783 = vmax.f32 %v2981, %v3719
        %v3784 = vmax.f32 %v2982, %v3720
        %v3785 = vmax.f32 %v2983, %v3721
        %v3786 = vmax.f32 %v2984, %v3722
        %v3787 = vmax.f32 %v2985, %v3723
        %v3788 = vmax.f32 %v2986, %v3724
        %v3789 = vmax.f32 %v2987, %v3725
        %v3790 = vmax.f32 %v2988, %v3726
        %v3791 = vmax.f32 %v2989, %v3727
        %v3792 = vmax.f32 %v2990, %v3728
        %v3793 = vmax.f32 %v2991, %v3729
        %v3794 = vmax.f32 %v2992, %v3730
        %v3795 = vmax.f32 %v2993, %v3731
        %v3796 = vmax.f32 %v2994, %v3732
        %v3797 = vmax.f32 %v3733, 0.0
        %v3798 = vmax.f32 %v3734, 0.0
        %v3799 = vmax.f32 %v3735, 0.0
        %v3800 = vmax.f32 %v3736, 0.0
        %v3801 = vmax.f32 %v3737, 0.0
        %v3802 = vmax.f32 %v3738, 0.0
        %v3803 = vmax.f32 %v3739, 0.0
        %v3804 = vmax.f32 %v3740, 0.0
        %v3805 = vmax.f32 %v3741, 0.0
        %v3806 = vmax.f32 %v3742, 0.0
        %v3807 = vmax.f32 %v3743, 0.0
        %v3808 = vmax.f32 %v3744, 0.0
        %v3809 = vmax.f32 %v3745, 0.0
        %v3810 = vmax.f32 %v3746, 0.0
        %v3811 = vmax.f32 %v3747, 0.0
        %v3812 = vmax.f32 %v3748, 0.0
        %v3813 = vmax.f32 %v3749, 0.0
        %v3814 = vmax.f32 %v3750, 0.0
        %v3815 = vmax.f32 %v3751, 0.0
        %v3816 = vmax.f32 %v3752, 0.0
        %v3817 = vmax.f32 %v3753, 0.0
        %v3818 = vmax.f32 %v3754, 0.0
        %v3819 = vmax.f32 %v3755, 0.0
        %v3820 = vmax.f32 %v3756, 0.0
        %v3821 = vmax.f32 %v3757, 0.0
        %v3822 = vmax.f32 %v3758, 0.0
        %v3823 = vmax.f32 %v3759, 0.0
        %v3824 = vmax.f32 %v3760, 0.0
        %v3825 = vmax.f32 %v3761, 0.0
        %v3826 = vmax.f32 %v3762, 0.0
        %v3827 = vmax.f32 %v3763, 0.0
        %v3828 = vmax.f32 %v3764, 0.0
        %v3829 = vmax.f32 %v3765, 0.0
        %v3830 = vmax.f32 %v3766, 0.0
        %v3831 = vmax.f32 %v3767, 0.0
        %v3832 = vmax.f32 %v3768, 0.0
        %v3833 = vmax.f32 %v3769, 0.0
        %v3834 = vmax.f32 %v3770, 0.0
        %v3835 = vmax.f32 %v3771, 0.0
        %v3836 = vmax.f32 %v3772, 0.0
        %v3837 = vmax.f32 %v3773, 0.0
        %v3838 = vmax.f32 %v3774, 0.0
        %v3839 = vmax.f32 %v3775, 0.0
        %v3840 = vmax.f32 %v3776, 0.0
        %v3841 = vmax.f32 %v3777, 0.0
        %v3842 = vmax.f32 %v3778, 0.0
        %v3843 = vmax.f32 %v3779, 0.0
        %v3844 = vmax.f32 %v3780, 0.0
        %v3845 = vmax.f32 %v3781, 0.0
        %v3846 = vmax.f32 %v3782, 0.0
        %v3847 = vmax.f32 %v3783, 0.0
        %v3848 = vmax.f32 %v3784, 0.0
        %v3849 = vmax.f32 %v3785, 0.0
        %v3850 = vmax.f32 %v3786, 0.0
        %v3851 = vmax.f32 %v3787, 0.0
        %v3852 = vmax.f32 %v3788, 0.0
        %v3853 = vmax.f32 %v3789, 0.0
        %v3854 = vmax.f32 %v3790, 0.0
        %v3855 = vmax.f32 %v3791, 0.0
        %v3856 = vmax.f32 %v3792, 0.0
        %v3857 = vmax.f32 %v3793, 0.0
        %v3858 = vmax.f32 %v3794, 0.0
        %v3859 = vmax.f32 %v3795, 0.0
        %v3860 = vmax.f32 %v3796, 0.0
        %3861 = vst [vmem:[%s605] sm:$0xff] %v3797
        %3862 = vst [vmem:[%s605 + $0x8] sm:$0xff] %v3798
        %3863 = vst [vmem:[%s605 + $0x10] sm:$0xff] %v3799
        %3864 = vst [vmem:[%s605 + $0x18] sm:$0xff] %v3800
        %3865 = vst [vmem:[%s605 + $0x20] sm:$0xff] %v3801
        %3866 = vst [vmem:[%s605 + $0x28] sm:$0xff] %v3802
        %3867 = vst [vmem:[%s605 + $0x30] sm:$0xff] %v3803
        %3868 = vst [vmem:[%s605 + $0x38] sm:$0xff] %v3804
        %3869 = vst [vmem:[%s605 + $0x40] sm:$0xff] %v3805
        %3870 = vst [vmem:[%s605 + $0x48] sm:$0xff] %v3806
        %3871 = vst [vmem:[%s605 + $0x50] sm:$0xff] %v3807
        %3872 = vst [vmem:[%s605 + $0x58] sm:$0xff] %v3808
        %3873 = vst [vmem:[%s605 + $0x60] sm:$0xff] %v3809
        %3874 = vst [vmem:[%s605 + $0x68] sm:$0xff] %v3810
        %3875 = vst [vmem:[%s605 + $0x70] sm:$0xff] %v3811
        %3876 = vst [vmem:[%s605 + $0x78] sm:$0xff] %v3812
        %3877 = vst [vmem:[%s605 + $0x80] sm:$0xff] %v3813
        %3878 = vst [vmem:[%s605 + $0x88] sm:$0xff] %v3814
        %3879 = vst [vmem:[%s605 + $0x90] sm:$0xff] %v3815
        %3880 = vst [vmem:[%s605 + $0x98] sm:$0xff] %v3816
        %3881 = vst [vmem:[%s605 + $0xa0] sm:$0xff] %v3817
        %3882 = vst [vmem:[%s605 + $0xa8] sm:$0xff] %v3818
        %3883 = vst [vmem:[%s605 + $0xb0] sm:$0xff] %v3819
        %3884 = vst [vmem:[%s605 + $0xb8] sm:$0xff] %v3820
        %3885 = vst [vmem:[%s605 + $0xc0] sm:$0xff] %v3821
        %3886 = vst [vmem:[%s605 + $0xc8] sm:$0xff] %v3822
        %3887 = vst [vmem:[%s605 + $0xd0] sm:$0xff] %v3823
        %3888 = vst [vmem:[%s605 + $0xd8] sm:$0xff] %v3824
        %3889 = vst [vmem:[%s605 + $0xe0] sm:$0xff] %v3825
        %3890 = vst [vmem:[%s605 + $0xe8] sm:$0xff] %v3826
        %3891 = vst [vmem:[%s605 + $0xf0] sm:$0xff] %v3827
        %3892 = vst [vmem:[%s605 + $0xf8] sm:$0xff] %v3828
        %3893 = vst [vmem:[%s605 + $0x100] sm:$0xff] %v3829
        %3894 = vst [vmem:[%s605 + $0x108] sm:$0xff] %v3830
        %3895 = vst [vmem:[%s605 + $0x110] sm:$0xff] %v3831
        %3896 = vst [vmem:[%s605 + $0x118] sm:$0xff] %v3832
        %3897 = vst [vmem:[%s605 + $0x120] sm:$0xff] %v3833
        %3898 = vst [vmem:[%s605 + $0x128] sm:$0xff] %v3834
        %3899 = vst [vmem:[%s605 + $0x130] sm:$0xff] %v3835
        %3900 = vst [vmem:[%s605 + $0x138] sm:$0xff] %v3836
        %3901 = vst [vmem:[%s605 + $0x140] sm:$0xff] %v3837
        %3902 = vst [vmem:[%s605 + $0x148] sm:$0xff] %v3838
        %3903 = vst [vmem:[%s605 + $0x150] sm:$0xff] %v3839
        %3904 = vst [vmem:[%s605 + $0x158] sm:$0xff] %v3840
        %3905 = vst [vmem:[%s605 + $0x160] sm:$0xff] %v3841
        %3906 = vst [vmem:[%s605 + $0x168] sm:$0xff] %v3842
        %3907 = vst [vmem:[%s605 + $0x170] sm:$0xff] %v3843
        %3908 = vst [vmem:[%s605 + $0x178] sm:$0xff] %v3844
        %3909 = vst [vmem:[%s605 + $0x180] sm:$0xff] %v3845
        %3910 = vst [vmem:[%s605 + $0x188] sm:$0xff] %v3846
        %3911 = vst [vmem:[%s605 + $0x190] sm:$0xff] %v3847
        %3912 = vst [vmem:[%s605 + $0x198] sm:$0xff] %v3848
        %3913 = vst [vmem:[%s605 + $0x1a0] sm:$0xff] %v3849
        %3914 = vst [vmem:[%s605 + $0x1a8] sm:$0xff] %v3850
        %3915 = vst [vmem:[%s605 + $0x1b0] sm:$0xff] %v3851
        %3916 = vst [vmem:[%s605 + $0x1b8] sm:$0xff] %v3852
        %3917 = vst [vmem:[%s605 + $0x1c0] sm:$0xff] %v3853
        %3918 = vst [vmem:[%s605 + $0x1c8] sm:$0xff] %v3854
        %3919 = vst [vmem:[%s605 + $0x1d0] sm:$0xff] %v3855
        %3920 = vst [vmem:[%s605 + $0x1d8] sm:$0xff] %v3856
        %3921 = vst [vmem:[%s605 + $0x1e0] sm:$0xff] %v3857
        %3922 = vst [vmem:[%s605 + $0x1e8] sm:$0xff] %v3858
        %3923 = vst [vmem:[%s605 + $0x1f0] sm:$0xff] %v3859
        %3924 = vst [vmem:[%s605 + $0x1f8] sm:$0xff] %v3860
        %s3925 = sand.u32 %s112, 1
        %s3926 = sand.u32 %s112, 1
        %s3927 = smul.addr %s3926, 512
        %s3928 = scalar_lea.vmem [#allocation3], %s3927
        // Predicated region
        $region99: #{net6_forward.3} parent=93 // pred_check
          %p3929 = pneg %p122
        $region100: #{net6_forward.3} parent=93 // pred_check_branch
          %3931 = sbr.rel (%p3929) target = $region102
        $region101: #{net6_forward.3} parent=93 // pred_region
          %s3932 = smul.u32 64, %s15
          %s3933 = ssub.s32 225, %s3932
          %p3934 = scmp.lt.s32.totalorder %s3933, 64
          %s3935 = scalar_select %p3934, %s3933, 64
          %s3936 = smul.u32 128, %s3935
          %p3937 = scmp.ne.s32.totalorder 0, %s3936
          %s3938 = smul.addr %s3932, 8
          %s3939 = scalar_lea.vmem %s4, %s3938
          // Predicated region
          $region103: #{net6_forward.3} parent=101 // pred_check
            %p3940 = pneg %p3937
          $region104: #{net6_forward.3} parent=101 // pred_check_branch
            %3942 = sbr.rel (%p3940) target = $region106
          $region105: #{net6_forward.3} parent=101 // pred_region
            // Predicated region
            $region107: #{net6_forward.3} parent=105 // pred_check
              _
            $region108: #{net6_forward.3} parent=105 // pred_check_branch
              %3944 = sbr.rel (0) target = $region110
            $region109: #{net6_forward.3} parent=105 // pred_region
              // Predicated region
              $region129: #{net6_forward.3} parent=109 // pred_check
                _
              $region130: #{net6_forward.3} parent=109 // pred_check_branch
                %4120 = sbr.rel (0) target = $region132
              $region131: #{net6_forward.3} parent=109 // pred_region
                %s4121 = sshrl.u32 %s3935, 6
                // While loop
                $region133: #{net6_forward.3} parent=131 // loop_pre_header
                  _
                $region134: #{net6_forward.3} parent=131 // loop_header
                  %s4123 = sphi 0, %s4125
                  %p4124 = scmp.ge.s32.totalorder %s4123, %s4121
                  %s4128 = sphi 0, %s4261
                  %s4129 = sphi %s3928, %s4264
                  %s4130 = sphi %s3939, %s4265
                $region135: #{net6_forward.3} parent=131 // loop_header_branch
                  %4127 = sbr.rel (%p4124) target = $region139
                $region136: #{net6_forward.3} parent=131 // loop_body
                  %v4131 = vld [vmem:[%s4129] sm:$0xff]
                  %4132 = vst [vmem:[%s4130] sm:$0xff] %v4131
                  %v4133 = vld [vmem:[%s4129 + $0x8] sm:$0xff]
                  %4134 = vst [vmem:[%s4130 + $0x8] sm:$0xff] %v4133
                  %v4135 = vld [vmem:[%s4129 + $0x10] sm:$0xff]
                  %4136 = vst [vmem:[%s4130 + $0x10] sm:$0xff] %v4135
                  %v4137 = vld [vmem:[%s4129 + $0x18] sm:$0xff]
                  %4138 = vst [vmem:[%s4130 + $0x18] sm:$0xff] %v4137
                  %v4139 = vld [vmem:[%s4129 + $0x20] sm:$0xff]
                  %4140 = vst [vmem:[%s4130 + $0x20] sm:$0xff] %v4139
                  %v4141 = vld [vmem:[%s4129 + $0x28] sm:$0xff]
                  %4142 = vst [vmem:[%s4130 + $0x28] sm:$0xff] %v4141
                  %v4143 = vld [vmem:[%s4129 + $0x30] sm:$0xff]
                  %4144 = vst [vmem:[%s4130 + $0x30] sm:$0xff] %v4143
                  %v4145 = vld [vmem:[%s4129 + $0x38] sm:$0xff]
                  %4146 = vst [vmem:[%s4130 + $0x38] sm:$0xff] %v4145
                  %v4147 = vld [vmem:[%s4129 + $0x40] sm:$0xff]
                  %4148 = vst [vmem:[%s4130 + $0x40] sm:$0xff] %v4147
                  %v4149 = vld [vmem:[%s4129 + $0x48] sm:$0xff]
                  %4150 = vst [vmem:[%s4130 + $0x48] sm:$0xff] %v4149
                  %v4151 = vld [vmem:[%s4129 + $0x50] sm:$0xff]
                  %4152 = vst [vmem:[%s4130 + $0x50] sm:$0xff] %v4151
                  %v4153 = vld [vmem:[%s4129 + $0x58] sm:$0xff]
                  %4154 = vst [vmem:[%s4130 + $0x58] sm:$0xff] %v4153
                  %v4155 = vld [vmem:[%s4129 + $0x60] sm:$0xff]
                  %4156 = vst [vmem:[%s4130 + $0x60] sm:$0xff] %v4155
                  %v4157 = vld [vmem:[%s4129 + $0x68] sm:$0xff]
                  %4158 = vst [vmem:[%s4130 + $0x68] sm:$0xff] %v4157
                  %v4159 = vld [vmem:[%s4129 + $0x70] sm:$0xff]
                  %4160 = vst [vmem:[%s4130 + $0x70] sm:$0xff] %v4159
                  %v4161 = vld [vmem:[%s4129 + $0x78] sm:$0xff]
                  %4162 = vst [vmem:[%s4130 + $0x78] sm:$0xff] %v4161
                  %v4163 = vld [vmem:[%s4129 + $0x80] sm:$0xff]
                  %4164 = vst [vmem:[%s4130 + $0x80] sm:$0xff] %v4163
                  %v4165 = vld [vmem:[%s4129 + $0x88] sm:$0xff]
                  %4166 = vst [vmem:[%s4130 + $0x88] sm:$0xff] %v4165
                  %v4167 = vld [vmem:[%s4129 + $0x90] sm:$0xff]
                  %4168 = vst [vmem:[%s4130 + $0x90] sm:$0xff] %v4167
                  %v4169 = vld [vmem:[%s4129 + $0x98] sm:$0xff]
                  %4170 = vst [vmem:[%s4130 + $0x98] sm:$0xff] %v4169
                  %v4171 = vld [vmem:[%s4129 + $0xa0] sm:$0xff]
                  %4172 = vst [vmem:[%s4130 + $0xa0] sm:$0xff] %v4171
                  %v4173 = vld [vmem:[%s4129 + $0xa8] sm:$0xff]
                  %4174 = vst [vmem:[%s4130 + $0xa8] sm:$0xff] %v4173
                  %v4175 = vld [vmem:[%s4129 + $0xb0] sm:$0xff]
                  %4176 = vst [vmem:[%s4130 + $0xb0] sm:$0xff] %v4175
                  %v4177 = vld [vmem:[%s4129 + $0xb8] sm:$0xff]
                  %4178 = vst [vmem:[%s4130 + $0xb8] sm:$0xff] %v4177
                  %v4179 = vld [vmem:[%s4129 + $0xc0] sm:$0xff]
                  %4180 = vst [vmem:[%s4130 + $0xc0] sm:$0xff] %v4179
                  %v4181 = vld [vmem:[%s4129 + $0xc8] sm:$0xff]
                  %4182 = vst [vmem:[%s4130 + $0xc8] sm:$0xff] %v4181
                  %v4183 = vld [vmem:[%s4129 + $0xd0] sm:$0xff]
                  %4184 = vst [vmem:[%s4130 + $0xd0] sm:$0xff] %v4183
                  %v4185 = vld [vmem:[%s4129 + $0xd8] sm:$0xff]
                  %4186 = vst [vmem:[%s4130 + $0xd8] sm:$0xff] %v4185
                  %v4187 = vld [vmem:[%s4129 + $0xe0] sm:$0xff]
                  %4188 = vst [vmem:[%s4130 + $0xe0] sm:$0xff] %v4187
                  %v4189 = vld [vmem:[%s4129 + $0xe8] sm:$0xff]
                  %4190 = vst [vmem:[%s4130 + $0xe8] sm:$0xff] %v4189
                  %v4191 = vld [vmem:[%s4129 + $0xf0] sm:$0xff]
                  %4192 = vst [vmem:[%s4130 + $0xf0] sm:$0xff] %v4191
                  %v4193 = vld [vmem:[%s4129 + $0xf8] sm:$0xff]
                  %4194 = vst [vmem:[%s4130 + $0xf8] sm:$0xff] %v4193
                  %v4195 = vld [vmem:[%s4129 + $0x100] sm:$0xff]
                  %4196 = vst [vmem:[%s4130 + $0x100] sm:$0xff] %v4195
                  %v4197 = vld [vmem:[%s4129 + $0x108] sm:$0xff]
                  %4198 = vst [vmem:[%s4130 + $0x108] sm:$0xff] %v4197
                  %v4199 = vld [vmem:[%s4129 + $0x110] sm:$0xff]
                  %4200 = vst [vmem:[%s4130 + $0x110] sm:$0xff] %v4199
                  %v4201 = vld [vmem:[%s4129 + $0x118] sm:$0xff]
                  %4202 = vst [vmem:[%s4130 + $0x118] sm:$0xff] %v4201
                  %v4203 = vld [vmem:[%s4129 + $0x120] sm:$0xff]
                  %4204 = vst [vmem:[%s4130 + $0x120] sm:$0xff] %v4203
                  %v4205 = vld [vmem:[%s4129 + $0x128] sm:$0xff]
                  %4206 = vst [vmem:[%s4130 + $0x128] sm:$0xff] %v4205
                  %v4207 = vld [vmem:[%s4129 + $0x130] sm:$0xff]
                  %4208 = vst [vmem:[%s4130 + $0x130] sm:$0xff] %v4207
                  %v4209 = vld [vmem:[%s4129 + $0x138] sm:$0xff]
                  %4210 = vst [vmem:[%s4130 + $0x138] sm:$0xff] %v4209
                  %v4211 = vld [vmem:[%s4129 + $0x140] sm:$0xff]
                  %4212 = vst [vmem:[%s4130 + $0x140] sm:$0xff] %v4211
                  %v4213 = vld [vmem:[%s4129 + $0x148] sm:$0xff]
                  %4214 = vst [vmem:[%s4130 + $0x148] sm:$0xff] %v4213
                  %v4215 = vld [vmem:[%s4129 + $0x150] sm:$0xff]
                  %4216 = vst [vmem:[%s4130 + $0x150] sm:$0xff] %v4215
                  %v4217 = vld [vmem:[%s4129 + $0x158] sm:$0xff]
                  %4218 = vst [vmem:[%s4130 + $0x158] sm:$0xff] %v4217
                  %v4219 = vld [vmem:[%s4129 + $0x160] sm:$0xff]
                  %4220 = vst [vmem:[%s4130 + $0x160] sm:$0xff] %v4219
                  %v4221 = vld [vmem:[%s4129 + $0x168] sm:$0xff]
                  %4222 = vst [vmem:[%s4130 + $0x168] sm:$0xff] %v4221
                  %v4223 = vld [vmem:[%s4129 + $0x170] sm:$0xff]
                  %4224 = vst [vmem:[%s4130 + $0x170] sm:$0xff] %v4223
                  %v4225 = vld [vmem:[%s4129 + $0x178] sm:$0xff]
                  %4226 = vst [vmem:[%s4130 + $0x178] sm:$0xff] %v4225
                  %v4227 = vld [vmem:[%s4129 + $0x180] sm:$0xff]
                  %4228 = vst [vmem:[%s4130 + $0x180] sm:$0xff] %v4227
                  %v4229 = vld [vmem:[%s4129 + $0x188] sm:$0xff]
                  %4230 = vst [vmem:[%s4130 + $0x188] sm:$0xff] %v4229
                  %v4231 = vld [vmem:[%s4129 + $0x190] sm:$0xff]
                  %4232 = vst [vmem:[%s4130 + $0x190] sm:$0xff] %v4231
                  %v4233 = vld [vmem:[%s4129 + $0x198] sm:$0xff]
                  %4234 = vst [vmem:[%s4130 + $0x198] sm:$0xff] %v4233
                  %v4235 = vld [vmem:[%s4129 + $0x1a0] sm:$0xff]
                  %4236 = vst [vmem:[%s4130 + $0x1a0] sm:$0xff] %v4235
                  %v4237 = vld [vmem:[%s4129 + $0x1a8] sm:$0xff]
                  %4238 = vst [vmem:[%s4130 + $0x1a8] sm:$0xff] %v4237
                  %v4239 = vld [vmem:[%s4129 + $0x1b0] sm:$0xff]
                  %4240 = vst [vmem:[%s4130 + $0x1b0] sm:$0xff] %v4239
                  %v4241 = vld [vmem:[%s4129 + $0x1b8] sm:$0xff]
                  %4242 = vst [vmem:[%s4130 + $0x1b8] sm:$0xff] %v4241
                  %v4243 = vld [vmem:[%s4129 + $0x1c0] sm:$0xff]
                  %4244 = vst [vmem:[%s4130 + $0x1c0] sm:$0xff] %v4243
                  %v4245 = vld [vmem:[%s4129 + $0x1c8] sm:$0xff]
                  %4246 = vst [vmem:[%s4130 + $0x1c8] sm:$0xff] %v4245
                  %v4247 = vld [vmem:[%s4129 + $0x1d0] sm:$0xff]
                  %4248 = vst [vmem:[%s4130 + $0x1d0] sm:$0xff] %v4247
                  %v4249 = vld [vmem:[%s4129 + $0x1d8] sm:$0xff]
                  %4250 = vst [vmem:[%s4130 + $0x1d8] sm:$0xff] %v4249
                  %v4251 = vld [vmem:[%s4129 + $0x1e0] sm:$0xff]
                  %4252 = vst [vmem:[%s4130 + $0x1e0] sm:$0xff] %v4251
                  %v4253 = vld [vmem:[%s4129 + $0x1e8] sm:$0xff]
                  %4254 = vst [vmem:[%s4130 + $0x1e8] sm:$0xff] %v4253
                  %v4255 = vld [vmem:[%s4129 + $0x1f0] sm:$0xff]
                  %4256 = vst [vmem:[%s4130 + $0x1f0] sm:$0xff] %v4255
                  %v4257 = vld [vmem:[%s4129 + $0x1f8] sm:$0xff]
                  %4258 = vst [vmem:[%s4130 + $0x1f8] sm:$0xff] %v4257
                  %s4259 = sadd.s32 1, %s4128
                  %p4260 = scmp.ge.s32.totalorder %s4259, %s4121
                  %s4261 = scalar_select %p4260, 0, %s4259
                  %s4262 = smul.u32 %s4261, 512
                  %s4263 = smul.u32 %s4261, 512
                  %s4264 = scalar_lea.vmem %s3928, %s4262 [#allocation3]
                  %s4265 = scalar_lea.vmem %s3939, %s4263
                $region137: #{net6_forward.3} parent=131 // loop_footer
                  %s4125 = sadd.s32 %s4123, 1
                $region138: #{net6_forward.3} parent=131 // loop_footer_branch
                  %4122 = sbr.rel target = $region134
                $region139: #{net6_forward.3} parent=131 // loop_exit
                  _
                %s4266 = sshrl.u32 %s3935, 6
                %s4267 = sand.u32 %s3935, 63
                %s4268 = smul.u32 %s4266, 64
                %s4269 = smul.u32 8, %s4268
                %s4270 = scalar_lea.vmem %s3928, %s4269 [#allocation3]
                %s4271 = smul.u32 8, %s4268
                %s4272 = scalar_lea.vmem %s3939, %s4271
                // While loop
                $region140: #{net6_forward.3} parent=131 // loop_pre_header
                  _
                $region141: #{net6_forward.3} parent=131 // loop_header
                  %s4274 = sphi 0, %s4276
                  %p4275 = scmp.ge.s32.totalorder %s4274, %s4267
                  %s4279 = sphi 0, %s4286
                  %s4280 = sphi %s4270, %s4289
                  %s4281 = sphi %s4272, %s4290
                $region142: #{net6_forward.3} parent=131 // loop_header_branch
                  %4278 = sbr.rel (%p4275) target = $region146
                $region143: #{net6_forward.3} parent=131 // loop_body
                  %v4282 = vld [vmem:[%s4280] sm:$0xff]
                  %4283 = vst [vmem:[%s4281] sm:$0xff] %v4282
                  %s4284 = sadd.s32 1, %s4279
                  %p4285 = scmp.ge.s32.totalorder %s4284, %s4267
                  %s4286 = scalar_select %p4285, 0, %s4284
                  %s4287 = smul.u32 %s4286, 8
                  %s4288 = smul.u32 %s4286, 8
                  %s4289 = scalar_lea.vmem %s4270, %s4287 [#allocation3]
                  %s4290 = scalar_lea.vmem %s4272, %s4288
                $region144: #{net6_forward.3} parent=131 // loop_footer
                  %s4276 = sadd.s32 %s4274, 1
                $region145: #{net6_forward.3} parent=131 // loop_footer_branch
                  %4273 = sbr.rel target = $region141
                $region146: #{net6_forward.3} parent=131 // loop_exit
                  _
              $region132: #{net6_forward.3} parent=109 // pred_fallthru
                _
              // Predicated region
              $region147: #{net6_forward.3} parent=109 // pred_check
                _
              $region148: #{net6_forward.3} parent=109 // pred_check_branch
                %4292 = sbr.rel target = $region150
              $region149: #{net6_forward.3} parent=109 // pred_region
                _
              $region150: #{net6_forward.3} parent=109 // pred_fallthru
                _
            $region110: #{net6_forward.3} parent=105 // pred_fallthru
              _
            // Predicated region
            $region111: #{net6_forward.3} parent=105 // pred_check
              _
            $region112: #{net6_forward.3} parent=105 // pred_check_branch
              %3946 = sbr.rel target = $region114
            $region113: #{net6_forward.3} parent=105 // pred_region
              %s3948 = ssub.s32 256, 1
              %s3949 = sshrl.u32 %s3935, 6
              // While loop
              $region115: #{net6_forward.3} parent=113 // loop_pre_header
                _
              $region116: #{net6_forward.3} parent=113 // loop_header
                %s3951 = sphi 0, %s3953
                %p3952 = scmp.ge.s32.totalorder %s3951, %s3949
                %s3956 = sphi 0, %s4089
                %s3957 = sphi %s3928, %s4092
                %s3958 = sphi %s3939, %s4093
              $region117: #{net6_forward.3} parent=113 // loop_header_branch
                %3955 = sbr.rel (%p3952) target = $region121
              $region118: #{net6_forward.3} parent=113 // loop_body
                %v3959 = vld [vmem:[%s3957] sm:%s3948]
                %3960 = vst [vmem:[%s3958] sm:%s3948] %v3959
                %v3961 = vld [vmem:[%s3957 + $0x8] sm:%s3948]
                %3962 = vst [vmem:[%s3958 + $0x8] sm:%s3948] %v3961
                %v3963 = vld [vmem:[%s3957 + $0x10] sm:%s3948]
                %3964 = vst [vmem:[%s3958 + $0x10] sm:%s3948] %v3963
                %v3965 = vld [vmem:[%s3957 + $0x18] sm:%s3948]
                %3966 = vst [vmem:[%s3958 + $0x18] sm:%s3948] %v3965
                %v3967 = vld [vmem:[%s3957 + $0x20] sm:%s3948]
                %3968 = vst [vmem:[%s3958 + $0x20] sm:%s3948] %v3967
                %v3969 = vld [vmem:[%s3957 + $0x28] sm:%s3948]
                %3970 = vst [vmem:[%s3958 + $0x28] sm:%s3948] %v3969
                %v3971 = vld [vmem:[%s3957 + $0x30] sm:%s3948]
                %3972 = vst [vmem:[%s3958 + $0x30] sm:%s3948] %v3971
                %v3973 = vld [vmem:[%s3957 + $0x38] sm:%s3948]
                %3974 = vst [vmem:[%s3958 + $0x38] sm:%s3948] %v3973
                %v3975 = vld [vmem:[%s3957 + $0x40] sm:%s3948]
                %3976 = vst [vmem:[%s3958 + $0x40] sm:%s3948] %v3975
                %v3977 = vld [vmem:[%s3957 + $0x48] sm:%s3948]
                %3978 = vst [vmem:[%s3958 + $0x48] sm:%s3948] %v3977
                %v3979 = vld [vmem:[%s3957 + $0x50] sm:%s3948]
                %3980 = vst [vmem:[%s3958 + $0x50] sm:%s3948] %v3979
                %v3981 = vld [vmem:[%s3957 + $0x58] sm:%s3948]
                %3982 = vst [vmem:[%s3958 + $0x58] sm:%s3948] %v3981
                %v3983 = vld [vmem:[%s3957 + $0x60] sm:%s3948]
                %3984 = vst [vmem:[%s3958 + $0x60] sm:%s3948] %v3983
                %v3985 = vld [vmem:[%s3957 + $0x68] sm:%s3948]
                %3986 = vst [vmem:[%s3958 + $0x68] sm:%s3948] %v3985
                %v3987 = vld [vmem:[%s3957 + $0x70] sm:%s3948]
                %3988 = vst [vmem:[%s3958 + $0x70] sm:%s3948] %v3987
                %v3989 = vld [vmem:[%s3957 + $0x78] sm:%s3948]
                %3990 = vst [vmem:[%s3958 + $0x78] sm:%s3948] %v3989
                %v3991 = vld [vmem:[%s3957 + $0x80] sm:%s3948]
                %3992 = vst [vmem:[%s3958 + $0x80] sm:%s3948] %v3991
                %v3993 = vld [vmem:[%s3957 + $0x88] sm:%s3948]
                %3994 = vst [vmem:[%s3958 + $0x88] sm:%s3948] %v3993
                %v3995 = vld [vmem:[%s3957 + $0x90] sm:%s3948]
                %3996 = vst [vmem:[%s3958 + $0x90] sm:%s3948] %v3995
                %v3997 = vld [vmem:[%s3957 + $0x98] sm:%s3948]
                %3998 = vst [vmem:[%s3958 + $0x98] sm:%s3948] %v3997
                %v3999 = vld [vmem:[%s3957 + $0xa0] sm:%s3948]
                %4000 = vst [vmem:[%s3958 + $0xa0] sm:%s3948] %v3999
                %v4001 = vld [vmem:[%s3957 + $0xa8] sm:%s3948]
                %4002 = vst [vmem:[%s3958 + $0xa8] sm:%s3948] %v4001
                %v4003 = vld [vmem:[%s3957 + $0xb0] sm:%s3948]
                %4004 = vst [vmem:[%s3958 + $0xb0] sm:%s3948] %v4003
                %v4005 = vld [vmem:[%s3957 + $0xb8] sm:%s3948]
                %4006 = vst [vmem:[%s3958 + $0xb8] sm:%s3948] %v4005
                %v4007 = vld [vmem:[%s3957 + $0xc0] sm:%s3948]
                %4008 = vst [vmem:[%s3958 + $0xc0] sm:%s3948] %v4007
                %v4009 = vld [vmem:[%s3957 + $0xc8] sm:%s3948]
                %4010 = vst [vmem:[%s3958 + $0xc8] sm:%s3948] %v4009
                %v4011 = vld [vmem:[%s3957 + $0xd0] sm:%s3948]
                %4012 = vst [vmem:[%s3958 + $0xd0] sm:%s3948] %v4011
                %v4013 = vld [vmem:[%s3957 + $0xd8] sm:%s3948]
                %4014 = vst [vmem:[%s3958 + $0xd8] sm:%s3948] %v4013
                %v4015 = vld [vmem:[%s3957 + $0xe0] sm:%s3948]
                %4016 = vst [vmem:[%s3958 + $0xe0] sm:%s3948] %v4015
                %v4017 = vld [vmem:[%s3957 + $0xe8] sm:%s3948]
                %4018 = vst [vmem:[%s3958 + $0xe8] sm:%s3948] %v4017
                %v4019 = vld [vmem:[%s3957 + $0xf0] sm:%s3948]
                %4020 = vst [vmem:[%s3958 + $0xf0] sm:%s3948] %v4019
                %v4021 = vld [vmem:[%s3957 + $0xf8] sm:%s3948]
                %4022 = vst [vmem:[%s3958 + $0xf8] sm:%s3948] %v4021
                %v4023 = vld [vmem:[%s3957 + $0x100] sm:%s3948]
                %4024 = vst [vmem:[%s3958 + $0x100] sm:%s3948] %v4023
                %v4025 = vld [vmem:[%s3957 + $0x108] sm:%s3948]
                %4026 = vst [vmem:[%s3958 + $0x108] sm:%s3948] %v4025
                %v4027 = vld [vmem:[%s3957 + $0x110] sm:%s3948]
                %4028 = vst [vmem:[%s3958 + $0x110] sm:%s3948] %v4027
                %v4029 = vld [vmem:[%s3957 + $0x118] sm:%s3948]
                %4030 = vst [vmem:[%s3958 + $0x118] sm:%s3948] %v4029
                %v4031 = vld [vmem:[%s3957 + $0x120] sm:%s3948]
                %4032 = vst [vmem:[%s3958 + $0x120] sm:%s3948] %v4031
                %v4033 = vld [vmem:[%s3957 + $0x128] sm:%s3948]
                %4034 = vst [vmem:[%s3958 + $0x128] sm:%s3948] %v4033
                %v4035 = vld [vmem:[%s3957 + $0x130] sm:%s3948]
                %4036 = vst [vmem:[%s3958 + $0x130] sm:%s3948] %v4035
                %v4037 = vld [vmem:[%s3957 + $0x138] sm:%s3948]
                %4038 = vst [vmem:[%s3958 + $0x138] sm:%s3948] %v4037
                %v4039 = vld [vmem:[%s3957 + $0x140] sm:%s3948]
                %4040 = vst [vmem:[%s3958 + $0x140] sm:%s3948] %v4039
                %v4041 = vld [vmem:[%s3957 + $0x148] sm:%s3948]
                %4042 = vst [vmem:[%s3958 + $0x148] sm:%s3948] %v4041
                %v4043 = vld [vmem:[%s3957 + $0x150] sm:%s3948]
                %4044 = vst [vmem:[%s3958 + $0x150] sm:%s3948] %v4043
                %v4045 = vld [vmem:[%s3957 + $0x158] sm:%s3948]
                %4046 = vst [vmem:[%s3958 + $0x158] sm:%s3948] %v4045
                %v4047 = vld [vmem:[%s3957 + $0x160] sm:%s3948]
                %4048 = vst [vmem:[%s3958 + $0x160] sm:%s3948] %v4047
                %v4049 = vld [vmem:[%s3957 + $0x168] sm:%s3948]
                %4050 = vst [vmem:[%s3958 + $0x168] sm:%s3948] %v4049
                %v4051 = vld [vmem:[%s3957 + $0x170] sm:%s3948]
                %4052 = vst [vmem:[%s3958 + $0x170] sm:%s3948] %v4051
                %v4053 = vld [vmem:[%s3957 + $0x178] sm:%s3948]
                %4054 = vst [vmem:[%s3958 + $0x178] sm:%s3948] %v4053
                %v4055 = vld [vmem:[%s3957 + $0x180] sm:%s3948]
                %4056 = vst [vmem:[%s3958 + $0x180] sm:%s3948] %v4055
                %v4057 = vld [vmem:[%s3957 + $0x188] sm:%s3948]
                %4058 = vst [vmem:[%s3958 + $0x188] sm:%s3948] %v4057
                %v4059 = vld [vmem:[%s3957 + $0x190] sm:%s3948]
                %4060 = vst [vmem:[%s3958 + $0x190] sm:%s3948] %v4059
                %v4061 = vld [vmem:[%s3957 + $0x198] sm:%s3948]
                %4062 = vst [vmem:[%s3958 + $0x198] sm:%s3948] %v4061
                %v4063 = vld [vmem:[%s3957 + $0x1a0] sm:%s3948]
                %4064 = vst [vmem:[%s3958 + $0x1a0] sm:%s3948] %v4063
                %v4065 = vld [vmem:[%s3957 + $0x1a8] sm:%s3948]
                %4066 = vst [vmem:[%s3958 + $0x1a8] sm:%s3948] %v4065
                %v4067 = vld [vmem:[%s3957 + $0x1b0] sm:%s3948]
                %4068 = vst [vmem:[%s3958 + $0x1b0] sm:%s3948] %v4067
                %v4069 = vld [vmem:[%s3957 + $0x1b8] sm:%s3948]
                %4070 = vst [vmem:[%s3958 + $0x1b8] sm:%s3948] %v4069
                %v4071 = vld [vmem:[%s3957 + $0x1c0] sm:%s3948]
                %4072 = vst [vmem:[%s3958 + $0x1c0] sm:%s3948] %v4071
                %v4073 = vld [vmem:[%s3957 + $0x1c8] sm:%s3948]
                %4074 = vst [vmem:[%s3958 + $0x1c8] sm:%s3948] %v4073
                %v4075 = vld [vmem:[%s3957 + $0x1d0] sm:%s3948]
                %4076 = vst [vmem:[%s3958 + $0x1d0] sm:%s3948] %v4075
                %v4077 = vld [vmem:[%s3957 + $0x1d8] sm:%s3948]
                %4078 = vst [vmem:[%s3958 + $0x1d8] sm:%s3948] %v4077
                %v4079 = vld [vmem:[%s3957 + $0x1e0] sm:%s3948]
                %4080 = vst [vmem:[%s3958 + $0x1e0] sm:%s3948] %v4079
                %v4081 = vld [vmem:[%s3957 + $0x1e8] sm:%s3948]
                %4082 = vst [vmem:[%s3958 + $0x1e8] sm:%s3948] %v4081
                %v4083 = vld [vmem:[%s3957 + $0x1f0] sm:%s3948]
                %4084 = vst [vmem:[%s3958 + $0x1f0] sm:%s3948] %v4083
                %v4085 = vld [vmem:[%s3957 + $0x1f8] sm:%s3948]
                %4086 = vst [vmem:[%s3958 + $0x1f8] sm:%s3948] %v4085
                %s4087 = sadd.s32 1, %s3956
                %p4088 = scmp.ge.s32.totalorder %s4087, %s3949
                %s4089 = scalar_select %p4088, 0, %s4087
                %s4090 = smul.u32 %s4089, 512
                %s4091 = smul.u32 %s4089, 512
                %s4092 = scalar_lea.vmem %s3928, %s4090 [#allocation3]
                %s4093 = scalar_lea.vmem %s3939, %s4091
              $region119: #{net6_forward.3} parent=113 // loop_footer
                %s3953 = sadd.s32 %s3951, 1
              $region120: #{net6_forward.3} parent=113 // loop_footer_branch
                %3950 = sbr.rel target = $region116
              $region121: #{net6_forward.3} parent=113 // loop_exit
                _
              %s4094 = sshrl.u32 %s3935, 6
              %s4095 = sand.u32 %s3935, 63
              %s4096 = smul.u32 %s4094, 64
              %s4097 = smul.u32 8, %s4096
              %s4098 = scalar_lea.vmem %s3928, %s4097 [#allocation3]
              %s4099 = smul.u32 8, %s4096
              %s4100 = scalar_lea.vmem %s3939, %s4099
              // While loop
              $region122: #{net6_forward.3} parent=113 // loop_pre_header
                _
              $region123: #{net6_forward.3} parent=113 // loop_header
                %s4102 = sphi 0, %s4104
                %p4103 = scmp.ge.s32.totalorder %s4102, %s4095
                %s4107 = sphi 0, %s4114
                %s4108 = sphi %s4098, %s4117
                %s4109 = sphi %s4100, %s4118
              $region124: #{net6_forward.3} parent=113 // loop_header_branch
                %4106 = sbr.rel (%p4103) target = $region128
              $region125: #{net6_forward.3} parent=113 // loop_body
                %v4110 = vld [vmem:[%s4108] sm:%s3948]
                %4111 = vst [vmem:[%s4109] sm:%s3948] %v4110
                %s4112 = sadd.s32 1, %s4107
                %p4113 = scmp.ge.s32.totalorder %s4112, %s4095
                %s4114 = scalar_select %p4113, 0, %s4112
                %s4115 = smul.u32 %s4114, 8
                %s4116 = smul.u32 %s4114, 8
                %s4117 = scalar_lea.vmem %s4098, %s4115 [#allocation3]
                %s4118 = scalar_lea.vmem %s4100, %s4116
              $region126: #{net6_forward.3} parent=113 // loop_footer
                %s4104 = sadd.s32 %s4102, 1
              $region127: #{net6_forward.3} parent=113 // loop_footer_branch
                %4101 = sbr.rel target = $region123
              $region128: #{net6_forward.3} parent=113 // loop_exit
                _
            $region114: #{net6_forward.3} parent=105 // pred_fallthru
              _
          $region106: #{net6_forward.3} parent=101 // pred_fallthru
            _
          %4293 = vnop
        $region102: #{net6_forward.3} parent=93 // pred_fallthru
          _
      $region94: #{net6_forward.3} parent=5 // pred_fallthru
        _
      %p4294 = scmp.le.s32.totalorder 2, %s10
      // Predicated region
      $region151: #{net6_forward.3} parent=5 // pred_check
        %p4295 = pneg %p4294
      $region152: #{net6_forward.3} parent=5 // pred_check_branch
        %4297 = sbr.rel (%p4295) target = $region154
      $region153: #{net6_forward.3} parent=5 // pred_region
        %s4298 = ssub.s32 %s10, 2
        // Predicated region
        $region155: #{net6_forward.3} parent=153 // pred_check
          %p4299 = pneg %p128
        $region156: #{net6_forward.3} parent=153 // pred_check_branch
          %4301 = sbr.rel (%p4299) target = $region158
        $region157: #{net6_forward.3} parent=153 // pred_region
          %s4302 = sand.u32 %s113, 1
          %s4303 = sand.u32 %s113, 1
          %s4304 = smul.addr %s4303, 512
          %s4305 = scalar_lea.vmem [#allocation3], %s4304
        $region158: #{net6_forward.3} parent=153 // pred_fallthru
          _
      $region154: #{net6_forward.3} parent=5 // pred_fallthru
        _
    $region6: #{net6_forward.3} parent=1 // loop_footer
      %s14 = sadd.s32 1, %s10
    $region7: #{net6_forward.3} parent=1 // loop_footer_branch
      %9 = sbr.rel target = $region3
    $region8: #{net6_forward.3} parent=1 // loop_exit
      _

// kernel: net6_forward.4
$region0: #{net6_forward.4}
  #allocation0 [shape = 'u32[]', space=smem, size = 0x4, offset = 0x4, fixed_abs, tag = 'smem constant byte address 0x4 - core index']
  #allocation1 [shape = 'u32[144,128]{1,0:T(1,128)}', space=vmem, size = 0x12000, scoped, tag = 'internal scratch']
  %s0 = inlined_call_operand.vmem [shape: bf16[4,392,90], index: 0, kind: input, shape index: {}]
  %s1 = inlined_call_operand.vmem [shape: bf16[90,128], index: 1, kind: input, shape index: {}]
  %s2 = inlined_call_operand.vmem [shape: f32[1,128], index: 2, kind: input, shape index: {}]
  %s3 = inlined_call_operand.vmem [shape: f32[1,128], index: 3, kind: input, shape index: {}]
  %s4 = inlined_call_operand.vmem [shape: f32[392,128], index: 4, kind: output, shape index: {}]
  %s5 = sld [smem:[#allocation0]]
  $region159: #{net6_forward.4} parent=0
    _
  %s7 = ssub.s32 1, %s5
  %s8 = scalar_select 0, %s7, %s5
  $region1: #{net6_forward.4} parent=0
    #allocation2 [shape = 'u8[409600]{0}', space=vmem, size = 0x64000, scoped, tag = 'input window, operand 0']
    #allocation3 [shape = 'u8[204800]{0}', space=vmem, size = 0x32000, scoped, tag = 'output window, operand 0']
    loop: start=0, step=1, limit=4
    $region2: #{net6_forward.4} parent=1 // loop_pre_header
      _
    $region3: #{net6_forward.4} parent=1 // loop_header
      %s10 = sphi 0, %s14
      %p11 = scmp.ge.s32.totalorder %s10, 4
      %s20 = sphi 0, %s22
      %s23 = sphi 0, %s20
      %s24 = sphi 0, %s23
      %s40 = sphi 0, %s24
      %s44 = sphi 0, %s44
      %s46 = sphi 0, %s44
      %s47 = sphi 0, %s46
      %s61 = sphi 0, %s47
      %s65 = sphi 0, %s65
      %s67 = sphi 0, %s65
      %s68 = sphi 0, %s67
      %s82 = sphi 0, %s68
      %s86 = sphi 0, %s86
      %s88 = sphi 0, %s86
      %s89 = sphi 0, %s88
      %s103 = sphi 0, %s89
      %s109 = sphi 0, %s111
      %s112 = sphi 0, %s109
      %s113 = sphi 0, %s112
      %s129 = sphi 0, %s113
    $region4: #{net6_forward.4} parent=1 // loop_header_branch
      %13 = sbr.rel (%p11) target = $region8
    $region5: #{net6_forward.4} parent=1 // loop_body
      %s15 = ssub.s32 %s10, 1
      %s16 = ssub.s32 %s10, 2
      %s17 = sadd.s32 %s10, 1
      %s18 = ssub.s32 %s10, %s17
      %p19 = scmp.eq.s32.totalorder %s18, 0
      %s21 = sadd.s32 %s20, 1
      %s22 = scalar_select %p19, %s20, %s21
      %p25 = pneg %p19
      %p26 = scmp.eq.s32.totalorder %s10, 1
      %p27 = por %p25, %p26
      %p28 = scmp.ne.s32.totalorder %s20, %s23
      %p29 = scmp.eq.s32.totalorder %s10, 0
      %p30 = por %p28, %p29
      %p31 = scmp.ne.s32.totalorder %s20, %s23
      %p32 = scmp.eq.s32.totalorder %s15, 1
      %p33 = por %p31, %p32
      %p34 = scmp.ne.s32.totalorder %s23, %s24
      %p35 = scmp.eq.s32.totalorder %s15, 0
      %p36 = por %p34, %p35
      %p37 = scmp.ne.s32.totalorder %s23, %s24
      %p38 = scmp.eq.s32.totalorder %s16, 1
      %p39 = por %p37, %p38
      %p41 = scmp.ne.s32.totalorder %s24, %s40
      %p42 = scmp.eq.s32.totalorder %s16, 0
      %p43 = por %p41, %p42
      %s45 = sadd.s32 %s44, 1
      %p48 = scmp.eq.s32.totalorder %s10, 1
      %p49 = scmp.ne.s32.totalorder %s44, %s46
      %p50 = scmp.eq.s32.totalorder %s10, 0
      %p51 = por %p49, %p50
      %p52 = scmp.ne.s32.totalorder %s44, %s46
      %p53 = scmp.eq.s32.totalorder %s15, 1
      %p54 = por %p52, %p53
      %p55 = scmp.ne.s32.totalorder %s46, %s47
      %p56 = scmp.eq.s32.totalorder %s15, 0
      %p57 = por %p55, %p56
      %p58 = scmp.ne.s32.totalorder %s46, %s47
      %p59 = scmp.eq.s32.totalorder %s16, 1
      %p60 = por %p58, %p59
      %p62 = scmp.ne.s32.totalorder %s47, %s61
      %p63 = scmp.eq.s32.totalorder %s16, 0
      %p64 = por %p62, %p63
      %s66 = sadd.s32 %s65, 1
      %p69 = scmp.eq.s32.totalorder %s10, 1
      %p70 = scmp.ne.s32.totalorder %s65, %s67
      %p71 = scmp.eq.s32.totalorder %s10, 0
      %p72 = por %p70, %p71
      %p73 = scmp.ne.s32.totalorder %s65, %s67
      %p74 = scmp.eq.s32.totalorder %s15, 1
      %p75 = por %p73, %p74
      %p76 = scmp.ne.s32.totalorder %s67, %s68
      %p77 = scmp.eq.s32.totalorder %s15, 0
      %p78 = por %p76, %p77
      %p79 = scmp.ne.s32.totalorder %s67, %s68
      %p80 = scmp.eq.s32.totalorder %s16, 1
      %p81 = por %p79, %p80
      %p83 = scmp.ne.s32.totalorder %s68, %s82
      %p84 = scmp.eq.s32.totalorder %s16, 0
      %p85 = por %p83, %p84
      %s87 = sadd.s32 %s86, 1
      %p90 = scmp.eq.s32.totalorder %s10, 1
      %p91 = scmp.ne.s32.totalorder %s86, %s88
      %p92 = scmp.eq.s32.totalorder %s10, 0
      %p93 = por %p91, %p92
      %p94 = scmp.ne.s32.totalorder %s86, %s88
      %p95 = scmp.eq.s32.totalorder %s15, 1
      %p96 = por %p94, %p95
      %p97 = scmp.ne.s32.totalorder %s88, %s89
      %p98 = scmp.eq.s32.totalorder %s15, 0
      %p99 = por %p97, %p98
      %p100 = scmp.ne.s32.totalorder %s88, %s89
      %p101 = scmp.eq.s32.totalorder %s16, 1
      %p102 = por %p100, %p101
      %p104 = scmp.ne.s32.totalorder %s89, %s103
      %p105 = scmp.eq.s32.totalorder %s16, 0
      %p106 = por %p104, %p105
      %s107 = ssub.s32 %s10, %s17
      %p108 = scmp.eq.s32.totalorder %s107, 0
      %s110 = sadd.s32 %s109, 1
      %s111 = scalar_select %p108, %s109, %s110
      %p114 = pneg %p108
      %p115 = scmp.eq.s32.totalorder %s10, 1
      %p116 = por %p114, %p115
      %p117 = scmp.ne.s32.totalorder %s109, %s112
      %p118 = scmp.eq.s32.totalorder %s10, 0
      %p119 = por %p117, %p118
      %p120 = scmp.ne.s32.totalorder %s109, %s112
      %p121 = scmp.eq.s32.totalorder %s15, 1
      %p122 = por %p120, %p121
      %p123 = scmp.ne.s32.totalorder %s112, %s113
      %p124 = scmp.eq.s32.totalorder %s15, 0
      %p125 = por %p123, %p124
      %p126 = scmp.ne.s32.totalorder %s112, %s113
      %p127 = scmp.eq.s32.totalorder %s16, 1
      %p128 = por %p126, %p127
      %p130 = scmp.ne.s32.totalorder %s113, %s129
      %p131 = scmp.eq.s32.totalorder %s16, 0
      %p132 = por %p130, %p131
      %p133 = scmp.le.s32.totalorder 1, %s10
      %p134 = scmp.lt.s32.totalorder %s10, 3
      %p135 = pnand %p133, %p134
      %p136 = pneg %p135
      // Predicated region
      $region9: #{net6_forward.4} parent=5 // pred_check
        _
      $region10: #{net6_forward.4} parent=5 // pred_check_branch
        %138 = sbr.rel (%p135) target = $region12
      $region11: #{net6_forward.4} parent=5 // pred_region
        %s139 = ssub.s32 %s10, 1
        // Predicated region
        $region13: #{net6_forward.4} parent=11 // pred_check
          %p140 = pneg %p57
        $region14: #{net6_forward.4} parent=11 // pred_check_branch
          %142 = sbr.rel (%p140) target = $region16
        $region15: #{net6_forward.4} parent=11 // pred_region
          _
        $region16: #{net6_forward.4} parent=11 // pred_fallthru
          _
        // Predicated region
        $region17: #{net6_forward.4} parent=11 // pred_check
          %p143 = pneg %p78
        $region18: #{net6_forward.4} parent=11 // pred_check_branch
          %145 = sbr.rel (%p143) target = $region20
        $region19: #{net6_forward.4} parent=11 // pred_region
          _
        $region20: #{net6_forward.4} parent=11 // pred_fallthru
          _
        // Predicated region
        $region21: #{net6_forward.4} parent=11 // pred_check
          %p146 = pneg %p99
        $region22: #{net6_forward.4} parent=11 // pred_check_branch
          %148 = sbr.rel (%p146) target = $region24
        $region23: #{net6_forward.4} parent=11 // pred_region
          _
        $region24: #{net6_forward.4} parent=11 // pred_fallthru
          _
      $region12: #{net6_forward.4} parent=5 // pred_fallthru
        _
      %p149 = scmp.lt.s32.totalorder %s10, 2
      // Predicated region
      $region25: #{net6_forward.4} parent=5 // pred_check
        %p150 = pneg %p149
      $region26: #{net6_forward.4} parent=5 // pred_check_branch
        %152 = sbr.rel (%p150) target = $region28
      $region27: #{net6_forward.4} parent=5 // pred_region
        // Predicated region
        $region29: #{net6_forward.4} parent=27 // pred_check
          %p153 = pneg %p30
        $region30: #{net6_forward.4} parent=27 // pred_check_branch
          %155 = sbr.rel (%p153) target = $region32
        $region31: #{net6_forward.4} parent=27 // pred_region
          %s156 = sand.u32 %s20, 1
          %s157 = sand.u32 %s20, 1
          %s158 = smul.addr %s157, 400
          %s159 = scalar_lea.vmem [#allocation2], %s158
          %s160 = smul.u32 25, %s10
          %s161 = ssub.s32 49, %s160
          %p162 = scmp.lt.s32.totalorder %s161, 25
          %s163 = scalar_select %p162, %s161, 25
          %s164 = smul.u32 256, %s163
          %p165 = scmp.ne.s32.totalorder 0, %s164
          %s166 = smul.addr %s160, 4
          %s167 = scalar_lea.vmem %s0, %s166
          // Predicated region
          $region33: #{net6_forward.4} parent=31 // pred_check
            %p168 = pneg %p165
          $region34: #{net6_forward.4} parent=31 // pred_check_branch
            %170 = sbr.rel (%p168) target = $region36
          $region35: #{net6_forward.4} parent=31 // pred_region
            // Predicated region
            $region37: #{net6_forward.4} parent=35 // pred_check
              _
            $region38: #{net6_forward.4} parent=35 // pred_check_branch
              %172 = sbr.rel target = $region40
            $region39: #{net6_forward.4} parent=35 // pred_region
              // Predicated region
              $region59: #{net6_forward.4} parent=39 // pred_check
                _
              $region60: #{net6_forward.4} parent=39 // pred_check_branch
                %354 = sbr.rel (0) target = $region62
              $region61: #{net6_forward.4} parent=39 // pred_region
                %s355 = sdiv.u32.pop %s163, 25
                %s356 = srem.u32.pop %s163, 25
                // While loop
                $region63: #{net6_forward.4} parent=61 // loop_pre_header
                  _
                $region64: #{net6_forward.4} parent=61 // loop_header
                  %s358 = sphi 0, %s360
                  %p359 = scmp.ge.s32.totalorder %s358, %s355
                  %s363 = sphi 0, %s368
                  %s364 = sphi %s167, %s371
                  %s365 = sphi %s159, %s372
                $region65: #{net6_forward.4} parent=61 // loop_header_branch
                  %362 = sbr.rel (%p359) target = $region69
                $region66: #{net6_forward.4} parent=61 // loop_body
                  %s366 = sadd.s32 1, %s363
                  %p367 = scmp.ge.s32.totalorder %s366, %s355
                  %s368 = scalar_select %p367, 0, %s366
                  %s369 = smul.u32 %s368, 100
                  %s370 = smul.u32 %s368, 100
                  %s371 = scalar_lea.vmem %s167, %s369
                  %s372 = scalar_lea.vmem %s159, %s370 [#allocation2]
                $region67: #{net6_forward.4} parent=61 // loop_footer
                  %s360 = sadd.s32 %s358, 1
                $region68: #{net6_forward.4} parent=61 // loop_footer_branch
                  %357 = sbr.rel target = $region64
                $region69: #{net6_forward.4} parent=61 // loop_exit
                  _
                %s373 = sdiv.u32.pop %s163, 25
                %s374 = srem.u32.pop %s163, 25
                %s375 = smul.u32 %s373, 25
                %s376 = smul.u32 4, %s375
                %s377 = scalar_lea.vmem %s167, %s376
                %s378 = smul.u32 4, %s375
                %s379 = scalar_lea.vmem %s159, %s378 [#allocation2]
                // While loop
                $region70: #{net6_forward.4} parent=61 // loop_pre_header
                  _
                $region71: #{net6_forward.4} parent=61 // loop_header
                  %s381 = sphi 0, %s383
                  %p382 = scmp.ge.s32.totalorder %s381, %s374
                  %s386 = sphi 0, %s391
                  %s387 = sphi %s377, %s394
                  %s388 = sphi %s379, %s395
                $region72: #{net6_forward.4} parent=61 // loop_header_branch
                  %385 = sbr.rel (%p382) target = $region76
                $region73: #{net6_forward.4} parent=61 // loop_body
                  %s389 = sadd.s32 1, %s386
                  %p390 = scmp.ge.s32.totalorder %s389, %s374
                  %s391 = scalar_select %p390, 0, %s389
                  %s392 = smul.u32 %s391, 4
                  %s393 = smul.u32 %s391, 4
                  %s394 = scalar_lea.vmem %s377, %s392
                  %s395 = scalar_lea.vmem %s379, %s393 [#allocation2]
                $region74: #{net6_forward.4} parent=61 // loop_footer
                  %s383 = sadd.s32 %s381, 1
                $region75: #{net6_forward.4} parent=61 // loop_footer_branch
                  %380 = sbr.rel target = $region71
                $region76: #{net6_forward.4} parent=61 // loop_exit
                  _
                %s397 = ssub.s32 16, 1
                %s398 = sshrl.u32 %s163, 4
                // While loop
                $region77: #{net6_forward.4} parent=61 // loop_pre_header
                  _
                $region78: #{net6_forward.4} parent=61 // loop_header
                  %s400 = sphi 0, %s402
                  %p401 = scmp.ge.s32.totalorder %s400, %s398
                  %s405 = sphi 0, %s538
                  %s406 = sphi %s167, %s541
                  %s407 = sphi %s159, %s542
                $region79: #{net6_forward.4} parent=61 // loop_header_branch
                  %404 = sbr.rel (%p401) target = $region83
                $region80: #{net6_forward.4} parent=61 // loop_body
                  %v408 = vld [vmem:[%s406] sm:%s397]
                  %409 = vst [vmem:[%s407] sm:%s397] %v408
                  %v410 = vld [vmem:[%s406 + $0x4] sm:%s397]
                  %411 = vst [vmem:[%s407 + $0x4] sm:%s397] %v410
                  %v412 = vld [vmem:[%s406 + $0x8] sm:%s397]
                  %413 = vst [vmem:[%s407 + $0x8] sm:%s397] %v412
                  %v414 = vld [vmem:[%s406 + $0xc] sm:%s397]
                  %415 = vst [vmem:[%s407 + $0xc] sm:%s397] %v414
                  %v416 = vld [vmem:[%s406 + $0x10] sm:%s397]
                  %417 = vst [vmem:[%s407 + $0x10] sm:%s397] %v416
                  %v418 = vld [vmem:[%s406 + $0x14] sm:%s397]
                  %419 = vst [vmem:[%s407 + $0x14] sm:%s397] %v418
                  %v420 = vld [vmem:[%s406 + $0x18] sm:%s397]
                  %421 = vst [vmem:[%s407 + $0x18] sm:%s397] %v420
                  %v422 = vld [vmem:[%s406 + $0x1c] sm:%s397]
                  %423 = vst [vmem:[%s407 + $0x1c] sm:%s397] %v422
                  %v424 = vld [vmem:[%s406 + $0x20] sm:%s397]
                  %425 = vst [vmem:[%s407 + $0x20] sm:%s397] %v424
                  %v426 = vld [vmem:[%s406 + $0x24] sm:%s397]
                  %427 = vst [vmem:[%s407 + $0x24] sm:%s397] %v426
                  %v428 = vld [vmem:[%s406 + $0x28] sm:%s397]
                  %429 = vst [vmem:[%s407 + $0x28] sm:%s397] %v428
                  %v430 = vld [vmem:[%s406 + $0x2c] sm:%s397]
                  %431 = vst [vmem:[%s407 + $0x2c] sm:%s397] %v430
                  %v432 = vld [vmem:[%s406 + $0x30] sm:%s397]
                  %433 = vst [vmem:[%s407 + $0x30] sm:%s397] %v432
                  %v434 = vld [vmem:[%s406 + $0x34] sm:%s397]
                  %435 = vst [vmem:[%s407 + $0x34] sm:%s397] %v434
                  %v436 = vld [vmem:[%s406 + $0x38] sm:%s397]
                  %437 = vst [vmem:[%s407 + $0x38] sm:%s397] %v436
                  %v438 = vld [vmem:[%s406 + $0x3c] sm:%s397]
                  %439 = vst [vmem:[%s407 + $0x3c] sm:%s397] %v438
                  %v440 = vld [vmem:[%s406 + $0xc4] sm:%s397]
                  %441 = vst [vmem:[%s407 + $0x64] sm:%s397] %v440
                  %v442 = vld [vmem:[%s406 + $0xc8] sm:%s397]
                  %443 = vst [vmem:[%s407 + $0x68] sm:%s397] %v442
                  %v444 = vld [vmem:[%s406 + $0xcc] sm:%s397]
                  %445 = vst [vmem:[%s407 + $0x6c] sm:%s397] %v444
                  %v446 = vld [vmem:[%s406 + $0xd0] sm:%s397]
                  %447 = vst [vmem:[%s407 + $0x70] sm:%s397] %v446
                  %v448 = vld [vmem:[%s406 + $0xd4] sm:%s397]
                  %449 = vst [vmem:[%s407 + $0x74] sm:%s397] %v448
                  %v450 = vld [vmem:[%s406 + $0xd8] sm:%s397]
                  %451 = vst [vmem:[%s407 + $0x78] sm:%s397] %v450
                  %v452 = vld [vmem:[%s406 + $0xdc] sm:%s397]
                  %453 = vst [vmem:[%s407 + $0x7c] sm:%s397] %v452
                  %v454 = vld [vmem:[%s406 + $0xe0] sm:%s397]
                  %455 = vst [vmem:[%s407 + $0x80] sm:%s397] %v454
                  %v456 = vld [vmem:[%s406 + $0xe4] sm:%s397]
                  %457 = vst [vmem:[%s407 + $0x84] sm:%s397] %v456
                  %v458 = vld [vmem:[%s406 + $0xe8] sm:%s397]
                  %459 = vst [vmem:[%s407 + $0x88] sm:%s397] %v458
                  %v460 = vld [vmem:[%s406 + $0xec] sm:%s397]
                  %461 = vst [vmem:[%s407 + $0x8c] sm:%s397] %v460
                  %v462 = vld [vmem:[%s406 + $0xf0] sm:%s397]
                  %463 = vst [vmem:[%s407 + $0x90] sm:%s397] %v462
                  %v464 = vld [vmem:[%s406 + $0xf4] sm:%s397]
                  %465 = vst [vmem:[%s407 + $0x94] sm:%s397] %v464
                  %v466 = vld [vmem:[%s406 + $0xf8] sm:%s397]
                  %467 = vst [vmem:[%s407 + $0x98] sm:%s397] %v466
                  %v468 = vld [vmem:[%s406 + $0xfc] sm:%s397]
                  %469 = vst [vmem:[%s407 + $0x9c] sm:%s397] %v468
                  %v470 = vld [vmem:[%s406 + $0x100] sm:%s397]
                  %471 = vst [vmem:[%s407 + $0xa0] sm:%s397] %v470
                  %v472 = vld [vmem:[%s406 + $0x188] sm:%s397]
                  %473 = vst [vmem:[%s407 + $0xc8] sm:%s397] %v472
                  %v474 = vld [vmem:[%s406 + $0x18c] sm:%s397]
                  %475 = vst [vmem:[%s407 + $0xcc] sm:%s397] %v474
                  %v476 = vld [vmem:[%s406 + $0x190] sm:%s397]
                  %477 = vst [vmem:[%s407 + $0xd0] sm:%s397] %v476
                  %v478 = vld [vmem:[%s406 + $0x194] sm:%s397]
                  %479 = vst [vmem:[%s407 + $0xd4] sm:%s397] %v478
                  %v480 = vld [vmem:[%s406 + $0x198] sm:%s397]
                  %481 = vst [vmem:[%s407 + $0xd8] sm:%s397] %v480
                  %v482 = vld [vmem:[%s406 + $0x19c] sm:%s397]
                  %483 = vst [vmem:[%s407 + $0xdc] sm:%s397] %v482
                  %v484 = vld [vmem:[%s406 + $0x1a0] sm:%s397]
                  %485 = vst [vmem:[%s407 + $0xe0] sm:%s397] %v484
                  %v486 = vld [vmem:[%s406 + $0x1a4] sm:%s397]
                  %487 = vst [vmem:[%s407 + $0xe4] sm:%s397] %v486
                  %v488 = vld [vmem:[%s406 + $0x1a8] sm:%s397]
                  %489 = vst [vmem:[%s407 + $0xe8] sm:%s397] %v488
                  %v490 = vld [vmem:[%s406 + $0x1ac] sm:%s397]
                  %491 = vst [vmem:[%s407 + $0xec] sm:%s397] %v490
                  %v492 = vld [vmem:[%s406 + $0x1b0] sm:%s397]
                  %493 = vst [vmem:[%s407 + $0xf0] sm:%s397] %v492
                  %v494 = vld [vmem:[%s406 + $0x1b4] sm:%s397]
                  %495 = vst [vmem:[%s407 + $0xf4] sm:%s397] %v494
                  %v496 = vld [vmem:[%s406 + $0x1b8] sm:%s397]
                  %497 = vst [vmem:[%s407 + $0xf8] sm:%s397] %v496
                  %v498 = vld [vmem:[%s406 + $0x1bc] sm:%s397]
                  %499 = vst [vmem:[%s407 + $0xfc] sm:%s397] %v498
                  %v500 = vld [vmem:[%s406 + $0x1c0] sm:%s397]
                  %501 = vst [vmem:[%s407 + $0x100] sm:%s397] %v500
                  %v502 = vld [vmem:[%s406 + $0x1c4] sm:%s397]
                  %503 = vst [vmem:[%s407 + $0x104] sm:%s397] %v502
                  %v504 = vld [vmem:[%s406 + $0x24c] sm:%s397]
                  %505 = vst [vmem:[%s407 + $0x12c] sm:%s397] %v504
                  %v506 = vld [vmem:[%s406 + $0x250] sm:%s397]
                  %507 = vst [vmem:[%s407 + $0x130] sm:%s397] %v506
                  %v508 = vld [vmem:[%s406 + $0x254] sm:%s397]
                  %509 = vst [vmem:[%s407 + $0x134] sm:%s397] %v508
                  %v510 = vld [vmem:[%s406 + $0x258] sm:%s397]
                  %511 = vst [vmem:[%s407 + $0x138] sm:%s397] %v510
                  %v512 = vld [vmem:[%s406 + $0x25c] sm:%s397]
                  %513 = vst [vmem:[%s407 + $0x13c] sm:%s397] %v512
                  %v514 = vld [vmem:[%s406 + $0x260] sm:%s397]
                  %515 = vst [vmem:[%s407 + $0x140] sm:%s397] %v514
                  %v516 = vld [vmem:[%s406 + $0x264] sm:%s397]
                  %517 = vst [vmem:[%s407 + $0x144] sm:%s397] %v516
                  %v518 = vld [vmem:[%s406 + $0x268] sm:%s397]
                  %519 = vst [vmem:[%s407 + $0x148] sm:%s397] %v518
                  %v520 = vld [vmem:[%s406 + $0x26c] sm:%s397]
                  %521 = vst [vmem:[%s407 + $0x14c] sm:%s397] %v520
                  %v522 = vld [vmem:[%s406 + $0x270] sm:%s397]
                  %523 = vst [vmem:[%s407 + $0x150] sm:%s397] %v522
                  %v524 = vld [vmem:[%s406 + $0x274] sm:%s397]
                  %525 = vst [vmem:[%s407 + $0x154] sm:%s397] %v524
                  %v526 = vld [vmem:[%s406 + $0x278] sm:%s397]
                  %527 = vst [vmem:[%s407 + $0x158] sm:%s397] %v526
                  %v528 = vld [vmem:[%s406 + $0x27c] sm:%s397]
                  %529 = vst [vmem:[%s407 + $0x15c] sm:%s397] %v528
                  %v530 = vld [vmem:[%s406 + $0x280] sm:%s397]
                  %531 = vst [vmem:[%s407 + $0x160] sm:%s397] %v530
                  %v532 = vld [vmem:[%s406 + $0x284] sm:%s397]
                  %533 = vst [vmem:[%s407 + $0x164] sm:%s397] %v532
                  %v534 = vld [vmem:[%s406 + $0x288] sm:%s397]
                  %535 = vst [vmem:[%s407 + $0x168] sm:%s397] %v534
                  %s536 = sadd.s32 1, %s405
                  %p537 = scmp.ge.s32.totalorder %s536, %s398
                  %s538 = scalar_select %p537, 0, %s536
                  %s539 = smul.u32 %s538, 64
                  %s540 = smul.u32 %s538, 64
                  %s541 = scalar_lea.vmem %s167, %s539
                  %s542 = scalar_lea.vmem %s159, %s540 [#allocation2]
                $region81: #{net6_forward.4} parent=61 // loop_footer
                  %s402 = sadd.s32 %s400, 1
                $region82: #{net6_forward.4} parent=61 // loop_footer_branch
                  %399 = sbr.rel target = $region78
                $region83: #{net6_forward.4} parent=61 // loop_exit
                  _
                %s543 = sshrl.u32 %s163, 4
                %s544 = sand.u32 %s163, 15
                %s545 = smul.u32 %s543, 16
                %s546 = smul.u32 4, %s545
                %s547 = scalar_lea.vmem %s167, %s546
                %s548 = smul.u32 4, %s545
                %s549 = scalar_lea.vmem %s159, %s548 [#allocation2]
                // While loop
                $region84: #{net6_forward.4} parent=61 // loop_pre_header
                  _
                $region85: #{net6_forward.4} parent=61 // loop_header
                  %s551 = sphi 0, %s553
                  %p552 = scmp.ge.s32.totalorder %s551, %s544
                  %s556 = sphi 0, %s569
                  %s557 = sphi %s547, %s572
                  %s558 = sphi %s549, %s573
                $region86: #{net6_forward.4} parent=61 // loop_header_branch
                  %555 = sbr.rel (%p552) target = $region90
                $region87: #{net6_forward.4} parent=61 // loop_body
                  %v559 = vld [vmem:[%s557] sm:%s397]
                  %560 = vst [vmem:[%s558] sm:%s397] %v559
                  %v561 = vld [vmem:[%s557 + $0xc4] sm:%s397]
                  %562 = vst [vmem:[%s558 + $0x64] sm:%s397] %v561
                  %v563 = vld [vmem:[%s557 + $0x188] sm:%s397]
                  %564 = vst [vmem:[%s558 + $0xc8] sm:%s397] %v563
                  %v565 = vld [vmem:[%s557 + $0x24c] sm:%s397]
                  %566 = vst [vmem:[%s558 + $0x12c] sm:%s397] %v565
                  %s567 = sadd.s32 1, %s556
                  %p568 = scmp.ge.s32.totalorder %s567, %s544
                  %s569 = scalar_select %p568, 0, %s567
                  %s570 = smul.u32 %s569, 4
                  %s571 = smul.u32 %s569, 4
                  %s572 = scalar_lea.vmem %s547, %s570
                  %s573 = scalar_lea.vmem %s549, %s571 [#allocation2]
                $region88: #{net6_forward.4} parent=61 // loop_footer
                  %s553 = sadd.s32 %s551, 1
                $region89: #{net6_forward.4} parent=61 // loop_footer_branch
                  %550 = sbr.rel target = $region85
                $region90: #{net6_forward.4} parent=61 // loop_exit
                  _
              $region62: #{net6_forward.4} parent=39 // pred_fallthru
                _
            $region40: #{net6_forward.4} parent=35 // pred_fallthru
              _
            // Predicated region
            $region41: #{net6_forward.4} parent=35 // pred_check
              _
            $region42: #{net6_forward.4} parent=35 // pred_check_branch
              %174 = sbr.rel (0) target = $region44
            $region43: #{net6_forward.4} parent=35 // pred_region
              %s176 = ssub.s32 16, 1
              %s177 = sshrl.u32 %s163, 4
              // While loop
              $region45: #{net6_forward.4} parent=43 // loop_pre_header
                _
              $region46: #{net6_forward.4} parent=43 // loop_header
                %s179 = sphi 0, %s181
                %p180 = scmp.ge.s32.totalorder %s179, %s177
                %s184 = sphi 0, %s317
                %s185 = sphi %s167, %s320
                %s186 = sphi %s159, %s321
              $region47: #{net6_forward.4} parent=43 // loop_header_branch
                %183 = sbr.rel (%p180) target = $region51
              $region48: #{net6_forward.4} parent=43 // loop_body
                %v187 = vld [vmem:[%s185] sm:%s176]
                %188 = vst [vmem:[%s186] sm:%s176] %v187
                %v189 = vld [vmem:[%s185 + $0x4] sm:%s176]
                %190 = vst [vmem:[%s186 + $0x4] sm:%s176] %v189
                %v191 = vld [vmem:[%s185 + $0x8] sm:%s176]
                %192 = vst [vmem:[%s186 + $0x8] sm:%s176] %v191
                %v193 = vld [vmem:[%s185 + $0xc] sm:%s176]
                %194 = vst [vmem:[%s186 + $0xc] sm:%s176] %v193
                %v195 = vld [vmem:[%s185 + $0x10] sm:%s176]
                %196 = vst [vmem:[%s186 + $0x10] sm:%s176] %v195
                %v197 = vld [vmem:[%s185 + $0x14] sm:%s176]
                %198 = vst [vmem:[%s186 + $0x14] sm:%s176] %v197
                %v199 = vld [vmem:[%s185 + $0x18] sm:%s176]
                %200 = vst [vmem:[%s186 + $0x18] sm:%s176] %v199
                %v201 = vld [vmem:[%s185 + $0x1c] sm:%s176]
                %202 = vst [vmem:[%s186 + $0x1c] sm:%s176] %v201
                %v203 = vld [vmem:[%s185 + $0x20] sm:%s176]
                %204 = vst [vmem:[%s186 + $0x20] sm:%s176] %v203
                %v205 = vld [vmem:[%s185 + $0x24] sm:%s176]
                %206 = vst [vmem:[%s186 + $0x24] sm:%s176] %v205
                %v207 = vld [vmem:[%s185 + $0x28] sm:%s176]
                %208 = vst [vmem:[%s186 + $0x28] sm:%s176] %v207
                %v209 = vld [vmem:[%s185 + $0x2c] sm:%s176]
                %210 = vst [vmem:[%s186 + $0x2c] sm:%s176] %v209
                %v211 = vld [vmem:[%s185 + $0x30] sm:%s176]
                %212 = vst [vmem:[%s186 + $0x30] sm:%s176] %v211
                %v213 = vld [vmem:[%s185 + $0x34] sm:%s176]
                %214 = vst [vmem:[%s186 + $0x34] sm:%s176] %v213
                %v215 = vld [vmem:[%s185 + $0x38] sm:%s176]
                %216 = vst [vmem:[%s186 + $0x38] sm:%s176] %v215
                %v217 = vld [vmem:[%s185 + $0x3c] sm:%s176]
                %218 = vst [vmem:[%s186 + $0x3c] sm:%s176] %v217
                %v219 = vld [vmem:[%s185 + $0xc4] sm:%s176]
                %220 = vst [vmem:[%s186 + $0x64] sm:%s176] %v219
                %v221 = vld [vmem:[%s185 + $0xc8] sm:%s176]
                %222 = vst [vmem:[%s186 + $0x68] sm:%s176] %v221
                %v223 = vld [vmem:[%s185 + $0xcc] sm:%s176]
                %224 = vst [vmem:[%s186 + $0x6c] sm:%s176] %v223
                %v225 = vld [vmem:[%s185 + $0xd0] sm:%s176]
                %226 = vst [vmem:[%s186 + $0x70] sm:%s176] %v225
                %v227 = vld [vmem:[%s185 + $0xd4] sm:%s176]
                %228 = vst [vmem:[%s186 + $0x74] sm:%s176] %v227
                %v229 = vld [vmem:[%s185 + $0xd8] sm:%s176]
                %230 = vst [vmem:[%s186 + $0x78] sm:%s176] %v229
                %v231 = vld [vmem:[%s185 + $0xdc] sm:%s176]
                %232 = vst [vmem:[%s186 + $0x7c] sm:%s176] %v231
                %v233 = vld [vmem:[%s185 + $0xe0] sm:%s176]
                %234 = vst [vmem:[%s186 + $0x80] sm:%s176] %v233
                %v235 = vld [vmem:[%s185 + $0xe4] sm:%s176]
                %236 = vst [vmem:[%s186 + $0x84] sm:%s176] %v235
                %v237 = vld [vmem:[%s185 + $0xe8] sm:%s176]
                %238 = vst [vmem:[%s186 + $0x88] sm:%s176] %v237
                %v239 = vld [vmem:[%s185 + $0xec] sm:%s176]
                %240 = vst [vmem:[%s186 + $0x8c] sm:%s176] %v239
                %v241 = vld [vmem:[%s185 + $0xf0] sm:%s176]
                %242 = vst [vmem:[%s186 + $0x90] sm:%s176] %v241
                %v243 = vld [vmem:[%s185 + $0xf4] sm:%s176]
                %244 = vst [vmem:[%s186 + $0x94] sm:%s176] %v243
                %v245 = vld [vmem:[%s185 + $0xf8] sm:%s176]
                %246 = vst [vmem:[%s186 + $0x98] sm:%s176] %v245
                %v247 = vld [vmem:[%s185 + $0xfc] sm:%s176]
                %248 = vst [vmem:[%s186 + $0x9c] sm:%s176] %v247
                %v249 = vld [vmem:[%s185 + $0x100] sm:%s176]
                %250 = vst [vmem:[%s186 + $0xa0] sm:%s176] %v249
                %v251 = vld [vmem:[%s185 + $0x188] sm:%s176]
                %252 = vst [vmem:[%s186 + $0xc8] sm:%s176] %v251
                %v253 = vld [vmem:[%s185 + $0x18c] sm:%s176]
                %254 = vst [vmem:[%s186 + $0xcc] sm:%s176] %v253
                %v255 = vld [vmem:[%s185 + $0x190] sm:%s176]
                %256 = vst [vmem:[%s186 + $0xd0] sm:%s176] %v255
                %v257 = vld [vmem:[%s185 + $0x194] sm:%s176]
                %258 = vst [vmem:[%s186 + $0xd4] sm:%s176] %v257
                %v259 = vld [vmem:[%s185 + $0x198] sm:%s176]
                %260 = vst [vmem:[%s186 + $0xd8] sm:%s176] %v259
                %v261 = vld [vmem:[%s185 + $0x19c] sm:%s176]
                %262 = vst [vmem:[%s186 + $0xdc] sm:%s176] %v261
                %v263 = vld [vmem:[%s185 + $0x1a0] sm:%s176]
                %264 = vst [vmem:[%s186 + $0xe0] sm:%s176] %v263
                %v265 = vld [vmem:[%s185 + $0x1a4] sm:%s176]
                %266 = vst [vmem:[%s186 + $0xe4] sm:%s176] %v265
                %v267 = vld [vmem:[%s185 + $0x1a8] sm:%s176]
                %268 = vst [vmem:[%s186 + $0xe8] sm:%s176] %v267
                %v269 = vld [vmem:[%s185 + $0x1ac] sm:%s176]
                %270 = vst [vmem:[%s186 + $0xec] sm:%s176] %v269
                %v271 = vld [vmem:[%s185 + $0x1b0] sm:%s176]
                %272 = vst [vmem:[%s186 + $0xf0] sm:%s176] %v271
                %v273 = vld [vmem:[%s185 + $0x1b4] sm:%s176]
                %274 = vst [vmem:[%s186 + $0xf4] sm:%s176] %v273
                %v275 = vld [vmem:[%s185 + $0x1b8] sm:%s176]
                %276 = vst [vmem:[%s186 + $0xf8] sm:%s176] %v275
                %v277 = vld [vmem:[%s185 + $0x1bc] sm:%s176]
                %278 = vst [vmem:[%s186 + $0xfc] sm:%s176] %v277
                %v279 = vld [vmem:[%s185 + $0x1c0] sm:%s176]
                %280 = vst [vmem:[%s186 + $0x100] sm:%s176] %v279
                %v281 = vld [vmem:[%s185 + $0x1c4] sm:%s176]
                %282 = vst [vmem:[%s186 + $0x104] sm:%s176] %v281
                %v283 = vld [vmem:[%s185 + $0x24c] sm:%s176]
                %284 = vst [vmem:[%s186 + $0x12c] sm:%s176] %v283
                %v285 = vld [vmem:[%s185 + $0x250] sm:%s176]
                %286 = vst [vmem:[%s186 + $0x130] sm:%s176] %v285
                %v287 = vld [vmem:[%s185 + $0x254] sm:%s176]
                %288 = vst [vmem:[%s186 + $0x134] sm:%s176] %v287
                %v289 = vld [vmem:[%s185 + $0x258] sm:%s176]
                %290 = vst [vmem:[%s186 + $0x138] sm:%s176] %v289
                %v291 = vld [vmem:[%s185 + $0x25c] sm:%s176]
                %292 = vst [vmem:[%s186 + $0x13c] sm:%s176] %v291
                %v293 = vld [vmem:[%s185 + $0x260] sm:%s176]
                %294 = vst [vmem:[%s186 + $0x140] sm:%s176] %v293
                %v295 = vld [vmem:[%s185 + $0x264] sm:%s176]
                %296 = vst [vmem:[%s186 + $0x144] sm:%s176] %v295
                %v297 = vld [vmem:[%s185 + $0x268] sm:%s176]
                %298 = vst [vmem:[%s186 + $0x148] sm:%s176] %v297
                %v299 = vld [vmem:[%s185 + $0x26c] sm:%s176]
                %300 = vst [vmem:[%s186 + $0x14c] sm:%s176] %v299
                %v301 = vld [vmem:[%s185 + $0x270] sm:%s176]
                %302 = vst [vmem:[%s186 + $0x150] sm:%s176] %v301
                %v303 = vld [vmem:[%s185 + $0x274] sm:%s176]
                %304 = vst [vmem:[%s186 + $0x154] sm:%s176] %v303
                %v305 = vld [vmem:[%s185 + $0x278] sm:%s176]
                %306 = vst [vmem:[%s186 + $0x158] sm:%s176] %v305
                %v307 = vld [vmem:[%s185 + $0x27c] sm:%s176]
                %308 = vst [vmem:[%s186 + $0x15c] sm:%s176] %v307
                %v309 = vld [vmem:[%s185 + $0x280] sm:%s176]
                %310 = vst [vmem:[%s186 + $0x160] sm:%s176] %v309
                %v311 = vld [vmem:[%s185 + $0x284] sm:%s176]
                %312 = vst [vmem:[%s186 + $0x164] sm:%s176] %v311
                %v313 = vld [vmem:[%s185 + $0x288] sm:%s176]
                %314 = vst [vmem:[%s186 + $0x168] sm:%s176] %v313
                %s315 = sadd.s32 1, %s184
                %p316 = scmp.ge.s32.totalorder %s315, %s177
                %s317 = scalar_select %p316, 0, %s315
                %s318 = smul.u32 %s317, 64
                %s319 = smul.u32 %s317, 64
                %s320 = scalar_lea.vmem %s167, %s318
                %s321 = scalar_lea.vmem %s159, %s319 [#allocation2]
              $region49: #{net6_forward.4} parent=43 // loop_footer
                %s181 = sadd.s32 %s179, 1
              $region50: #{net6_forward.4} parent=43 // loop_footer_branch
                %178 = sbr.rel target = $region46
              $region51: #{net6_forward.4} parent=43 // loop_exit
                _
              %s322 = sshrl.u32 %s163, 4
              %s323 = sand.u32 %s163, 15
              %s324 = smul.u32 %s322, 16
              %s325 = smul.u32 4, %s324
              %s326 = scalar_lea.vmem %s167, %s325
              %s327 = smul.u32 4, %s324
              %s328 = scalar_lea.vmem %s159, %s327 [#allocation2]
              // While loop
              $region52: #{net6_forward.4} parent=43 // loop_pre_header
                _
              $region53: #{net6_forward.4} parent=43 // loop_header
                %s330 = sphi 0, %s332
                %p331 = scmp.ge.s32.totalorder %s330, %s323
                %s335 = sphi 0, %s348
                %s336 = sphi %s326, %s351
                %s337 = sphi %s328, %s352
              $region54: #{net6_forward.4} parent=43 // loop_header_branch
                %334 = sbr.rel (%p331) target = $region58
              $region55: #{net6_forward.4} parent=43 // loop_body
                %v338 = vld [vmem:[%s336] sm:%s176]
                %339 = vst [vmem:[%s337] sm:%s176] %v338
                %v340 = vld [vmem:[%s336 + $0xc4] sm:%s176]
                %341 = vst [vmem:[%s337 + $0x64] sm:%s176] %v340
                %v342 = vld [vmem:[%s336 + $0x188] sm:%s176]
                %343 = vst [vmem:[%s337 + $0xc8] sm:%s176] %v342
                %v344 = vld [vmem:[%s336 + $0x24c] sm:%s176]
                %345 = vst [vmem:[%s337 + $0x12c] sm:%s176] %v344
                %s346 = sadd.s32 1, %s335
                %p347 = scmp.ge.s32.totalorder %s346, %s323
                %s348 = scalar_select %p347, 0, %s346
                %s349 = smul.u32 %s348, 4
                %s350 = smul.u32 %s348, 4
                %s351 = scalar_lea.vmem %s326, %s349
                %s352 = scalar_lea.vmem %s328, %s350 [#allocation2]
              $region56: #{net6_forward.4} parent=43 // loop_footer
                %s332 = sadd.s32 %s330, 1
              $region57: #{net6_forward.4} parent=43 // loop_footer_branch
                %329 = sbr.rel target = $region53
              $region58: #{net6_forward.4} parent=43 // loop_exit
                _
            $region44: #{net6_forward.4} parent=35 // pred_fallthru
              _
          $region36: #{net6_forward.4} parent=31 // pred_fallthru
            _
          %574 = vnop
        $region32: #{net6_forward.4} parent=27 // pred_fallthru
          _
      $region28: #{net6_forward.4} parent=5 // pred_fallthru
        _
      %p575 = scmp.le.s32.totalorder 1, %s10
      %p576 = scmp.lt.s32.totalorder %s10, 3
      %p577 = pnand %p575, %p576
      %p578 = pneg %p577
      // Predicated region
      $region91: #{net6_forward.4} parent=5 // pred_check
        _
      $region92: #{net6_forward.4} parent=5 // pred_check_branch
        %580 = sbr.rel (%p577) target = $region94
      $region93: #{net6_forward.4} parent=5 // pred_region
        %s581 = ssub.s32 %s10, 1
        %s582 = sand.u32 %s23, 1
        %s583 = sand.u32 %s23, 1
        %s584 = smul.addr %s583, 400
        %s585 = scalar_lea.vmem [#allocation2], %s584
        // Predicated region
        $region95: #{net6_forward.4} parent=93 // pred_check
          %p586 = pneg %p36
        $region96: #{net6_forward.4} parent=93 // pred_check_branch
          %588 = sbr.rel (%p586) target = $region98
        $region97: #{net6_forward.4} parent=93 // pred_region
          _
        $region98: #{net6_forward.4} parent=93 // pred_fallthru
          _
        %s589 = sand.u32 %s23, 1
        %s590 = sand.u32 %s23, 1
        %s591 = smul.addr %s590, 400
        %s592 = scalar_lea.vmem [#allocation2], %s591
        %p593 = pneg %p36
        %p594 = pneg %p33
        %p595 = pneg %p57
        %p596 = pneg %p54
        %p597 = pneg %p78
        %p598 = pneg %p75
        %p599 = pneg %p99
        %p600 = pneg %p96
        %p601 = pneg %p125
        %p602 = pneg %p122
        %s603 = sand.u32 %s112, 1
        %s604 = sand.u32 %s112, 1
        %s605 = smul.addr %s604, 200
        %s606 = scalar_lea.vmem [#allocation3], %s605
        %s607 = smul.u32 25, %s15
        %s608 = ssub.s32 49, %s607
        %p609 = scmp.lt.s32.totalorder %s608, 25
        %s610 = scalar_select %p609, %s608, 25
        %s611 = smul.u32 256, %s610
        %s612 = smul.u32 25, %s15
        %s613 = ssub.s32 49, %s612
        %p614 = scmp.lt.s32.totalorder %s613, 25
        %s615 = scalar_select %p614, %s613, 25
        %s616 = smul.u32 128, %s615
        %v618 = vld [vmem:[%s1] sm:$0xf]
        %v619 = vld [vmem:[%s1 + $0x4] sm:$0xf]
        %v620 = vld [vmem:[%s1 + $0x8] sm:$0xf]
        %v621 = vld [vmem:[%s1 + $0xc] sm:$0xf]
        %v622 = vld [vmem:[%s1 + $0x10] sm:$0xf]
        %v623 = vld [vmem:[%s1 + $0x14] sm:$0xf]
        %v624 = vld [vmem:[%s1 + $0x18] sm:$0xf]
        %v625 = vld [vmem:[%s1 + $0x1c] sm:$0xf]
        %v626 = vld [vmem:[%s1 + $0x20] sm:$0xf]
        %v627 = vld [vmem:[%s1 + $0x24] sm:$0xf]
        %v628 = vld [vmem:[%s1 + $0x28] sm:$0xf]
        %v629 = vld [vmem:[%s1 + $0x2c] sm:$0x1]
        %v630 = vld [vmem:[%s2] sm:$0x1]
        %v631 = vld [vmem:[%s3] sm:$0x1]
        %v632 = vld [vmem:[%s585] sm:$0xf]
        %v633 = vld [vmem:[%s585 + $0x4] sm:$0xf]
        %v634 = vld [vmem:[%s585 + $0x8] sm:$0xf]
        %v635 = vld [vmem:[%s585 + $0xc] sm:$0xf]
        %v636 = vld [vmem:[%s585 + $0x10] sm:$0xf]
        %v637 = vld [vmem:[%s585 + $0x14] sm:$0xf]
        %v638 = vld [vmem:[%s585 + $0x18] sm:$0xf]
        %v639 = vld [vmem:[%s585 + $0x1c] sm:$0xf]
        %v640 = vld [vmem:[%s585 + $0x20] sm:$0xf]
        %v641 = vld [vmem:[%s585 + $0x24] sm:$0xf]
        %v642 = vld [vmem:[%s585 + $0x28] sm:$0xf]
        %v643 = vld [vmem:[%s585 + $0x2c] sm:$0xf]
        %v644 = vld [vmem:[%s585 + $0x30] sm:$0xf]
        %v645 = vld [vmem:[%s585 + $0x34] sm:$0xf]
        %v646 = vld [vmem:[%s585 + $0x38] sm:$0xf]
        %v647 = vld [vmem:[%s585 + $0x3c] sm:$0xf]
        %v648 = vld [vmem:[%s585 + $0x40] sm:$0xf]
        %v649 = vld [vmem:[%s585 + $0x44] sm:$0xf]
        %v650 = vld [vmem:[%s585 + $0x48] sm:$0xf]
        %v651 = vld [vmem:[%s585 + $0x4c] sm:$0xf]
        %v652 = vld [vmem:[%s585 + $0x50] sm:$0xf]
        %v653 = vld [vmem:[%s585 + $0x54] sm:$0xf]
        %v654 = vld [vmem:[%s585 + $0x58] sm:$0xf]
        %v655 = vld [vmem:[%s585 + $0x5c] sm:$0xf]
        %v656 = vld [vmem:[%s585 + $0x60] sm:$0xf]
        %v682 = vunpack.c.l.b16 %v632
        %v683 = vunpack.c.l.b16 %v633
        %v684 = vunpack.c.l.b16 %v634
        %v685 = vunpack.c.l.b16 %v635
        %v686 = vunpack.c.l.b16 %v636
        %v687 = vunpack.c.l.b16 %v637
        %v688 = vunpack.c.l.b16 %v638
        %v689 = vunpack.c.l.b16 %v639
        %v690 = vunpack.c.l.b16 %v640
        %v691 = vunpack.c.l.b16 %v641
        %v692 = vunpack.c.l.b16 %v642
        %v693 = vunpack.c.l.b16 %v643
        %v694 = vunpack.c.l.b16 %v644
        %v695 = vunpack.c.l.b16 %v645
        %v696 = vunpack.c.l.b16 %v646
        %v697 = vunpack.c.l.b16 %v647
        %v698 = vunpack.c.l.b16 %v648
        %v699 = vunpack.c.l.b16 %v649
        %v700 = vunpack.c.l.b16 %v650
        %v701 = vunpack.c.l.b16 %v651
        %v702 = vunpack.c.l.b16 %v652
        %v703 = vunpack.c.l.b16 %v653
        %v704 = vunpack.c.l.b16 %v654
        %v705 = vunpack.c.l.b16 %v655
        %v706 = vunpack.c.l.b16 %v656
        %v707 = vpack.c.b16 %v683, %v682
        %v708 = vpack.c.b16 %v685, %v684
        %v709 = vpack.c.b16 %v687, %v686
        %v710 = vpack.c.b16 %v689, %v688
        %v711 = vpack.c.b16 %v691, %v690
        %v712 = vpack.c.b16 %v693, %v692
        %v713 = vpack.c.b16 %v695, %v694
        %v714 = vpack.c.b16 %v697, %v696
        %v715 = vpack.c.b16 %v699, %v698
        %v716 = vpack.c.b16 %v701, %v700
        %v717 = vpack.c.b16 %v703, %v702
        %v718 = vpack.c.b16 %v705, %v704
        %v719 = vpack.c.b16 %v706, %v706
        %v732 = vunpack.c.l.b16 %v618
        %v733 = vunpack.c.l.b16 %v619
        %v734 = vunpack.c.l.b16 %v620
        %v735 = vunpack.c.l.b16 %v621
        %v736 = vunpack.c.l.b16 %v622
        %v737 = vunpack.c.l.b16 %v623
        %v738 = vunpack.c.l.b16 %v624
        %v739 = vunpack.c.l.b16 %v625
        %v740 = vunpack.c.l.b16 %v626
        %v741 = vunpack.c.l.b16 %v627
        %v742 = vunpack.c.l.b16 %v628
        %v743 = vunpack.c.l.b16 %v629
        %v744 = vpack.c.b16 %v733, %v732
        %v745 = vpack.c.b16 %v735, %v734
        %v746 = vpack.c.b16 %v737, %v736
        %v747 = vpack.c.b16 %v739, %v738
        %v748 = vpack.c.b16 %v741, %v740
        %v749 = vpack.c.b16 %v743, %v742
        %vm755 = vcmask 736256
        %v757 = vsel %vm755, %v707, 0
        %v760 = vsel %vm755, %v708, 0
        %v763 = vsel %vm755, %v709, 0
        %v766 = vsel %vm755, %v710, 0
        %v769 = vsel %vm755, %v711, 0
        %v772 = vsel %vm755, %v712, 0
        %v775 = vsel %vm755, %v713, 0
        %v778 = vsel %vm755, %v714, 0
        %v781 = vsel %vm755, %v715, 0
        %v784 = vsel %vm755, %v716, 0
        %v787 = vsel %vm755, %v717, 0
        %v790 = vsel %vm755, %v718, 0
        %v793 = vsel %vm755, %v719, 0
        %vm795 = vcmask 1044480
        %v797 = vsel %vm795, %v749, 0
        %799 = vmatprep.subr.bf16.mxu0 0
        %800 = vmatpush1.bf16.msra.mxu0 0
        %801 = vmatprep.subr.bf16.mxu0 0
        %802 = vmatpush1.bf16.msra.mxu0 0
        %803 = vmatprep.subr.bf16.mxu0 0
        %804 = vmatpush1.bf16.msra.mxu0 %v797
        %805 = vmatprep.subr.bf16.mxu0 0
        %806 = vmatpush1.bf16.msra.mxu0 %v748
        %807 = vmatprep.subr.bf16.mxu0 0
        %808 = vmatpush1.bf16.msra.mxu0 %v747
        %809 = vmatprep.subr.bf16.mxu0 0
        %810 = vmatpush1.bf16.msra.mxu0 %v746
        %811 = vmatprep.subr.bf16.mxu0 0
        %812 = vmatpush1.bf16.msra.mxu0 %v745
        %813 = vmatprep.subr.bf16.mxu0 0
        %814 = vmatpush1.bf16.msra.mxu0 %v744
        %815 = vmatprep.subr.bf16.mxu0 0
        %816 = vmatpush2.bf16.msra.mxu0 0
        %817 = vmatprep.subr.bf16.mxu0 0
        %818 = vmatpush2.bf16.msra.mxu0 0
        %819 = vmatprep.subr.bf16.mxu0 0
        %820 = vmatpush2.bf16.msra.mxu0 0
        %821 = vmatprep.subr.bf16.mxu0 0
        %822 = vmatpush2.bf16.msra.mxu0 0
        %823 = vmatprep.subr.bf16.mxu0 0
        %824 = vmatpush2.bf16.msra.mxu0 0
        %825 = vmatprep.subr.bf16.mxu0 0
        %826 = vmatpush2.bf16.msra.mxu0 0
        %827 = vmatprep.subr.bf16.mxu0 0
        %828 = vmatpush2.bf16.msra.mxu0 0
        %829 = vmatprep.subr.bf16.mxu0 0
        %830 = vmatpush2.bf16.msra.mxu0 0
        %831 = vmatprep.mubr.bf16.mxu0 0
        %832 = vmatmul.mubr.bf16.gmra.mxu0 %v757
        %v833 = vpop.f32.mrf.mxu0
        %v834 = vadd.f32 0.0, %v833
        %v835 = vpop.f32.mrf.mxu0
        %v836 = vpop.f32.mrf.mxu0
        %v837 = vadd.f32 0.0, %v836
        %v838 = vpop.f32.mrf.mxu0
        %839 = vmatprep.mubr.bf16.mxu0 0
        %840 = vmatmul.mubr.bf16.gmra.mxu0 %v760
        %v841 = vpop.f32.mrf.mxu0
        %v842 = vadd.f32 0.0, %v841
        %v843 = vpop.f32.mrf.mxu0
        %v844 = vpop.f32.mrf.mxu0
        %v845 = vadd.f32 0.0, %v844
        %v846 = vpop.f32.mrf.mxu0
        %847 = vmatprep.mubr.bf16.mxu0 0
        %848 = vmatmul.mubr.bf16.gmra.mxu0 %v763
        %v849 = vpop.f32.mrf.mxu0
        %v850 = vadd.f32 0.0, %v849
        %v851 = vpop.f32.mrf.mxu0
        %v852 = vpop.f32.mrf.mxu0
        %v853 = vadd.f32 0.0, %v852
        %v854 = vpop.f32.mrf.mxu0
        %855 = vmatprep.mubr.bf16.mxu0 0
        %856 = vmatmul.mubr.bf16.gmra.mxu0 %v766
        %v857 = vpop.f32.mrf.mxu0
        %v858 = vadd.f32 0.0, %v857
        %v859 = vpop.f32.mrf.mxu0
        %v860 = vpop.f32.mrf.mxu0
        %v861 = vadd.f32 0.0, %v860
        %v862 = vpop.f32.mrf.mxu0
        %863 = vmatprep.mubr.bf16.mxu0 0
        %864 = vmatmul.mubr.bf16.gmra.mxu0 %v769
        %v865 = vpop.f32.mrf.mxu0
        %v866 = vadd.f32 0.0, %v865
        %v867 = vpop.f32.mrf.mxu0
        %v868 = vpop.f32.mrf.mxu0
        %v869 = vadd.f32 0.0, %v868
        %v870 = vpop.f32.mrf.mxu0
        %871 = vmatprep.mubr.bf16.mxu0 0
        %872 = vmatmul.mubr.bf16.gmra.mxu0 %v772
        %v873 = vpop.f32.mrf.mxu0
        %v874 = vadd.f32 0.0, %v873
        %v875 = vpop.f32.mrf.mxu0
        %v876 = vpop.f32.mrf.mxu0
        %v877 = vadd.f32 0.0, %v876
        %v878 = vpop.f32.mrf.mxu0
        %879 = vmatprep.mubr.bf16.mxu0 0
        %880 = vmatmul.mubr.bf16.gmra.mxu0 %v775
        %v881 = vpop.f32.mrf.mxu0
        %v882 = vadd.f32 0.0, %v881
        %v883 = vpop.f32.mrf.mxu0
        %v884 = vpop.f32.mrf.mxu0
        %v885 = vadd.f32 0.0, %v884
        %v886 = vpop.f32.mrf.mxu0
        %887 = vmatprep.mubr.bf16.mxu0 0
        %888 = vmatmul.mubr.bf16.gmra.mxu0 %v778
        %v889 = vpop.f32.mrf.mxu0
        %v890 = vadd.f32 0.0, %v889
        %v891 = vpop.f32.mrf.mxu0
        %v892 = vpop.f32.mrf.mxu0
        %v893 = vadd.f32 0.0, %v892
        %v894 = vpop.f32.mrf.mxu0
        %895 = vmatprep.mubr.bf16.mxu0 0
        %896 = vmatmul.mubr.bf16.gmra.mxu0 %v781
        %v897 = vpop.f32.mrf.mxu0
        %v898 = vadd.f32 0.0, %v897
        %v899 = vpop.f32.mrf.mxu0
        %v900 = vpop.f32.mrf.mxu0
        %v901 = vadd.f32 0.0, %v900
        %v902 = vpop.f32.mrf.mxu0
        %903 = vmatprep.mubr.bf16.mxu0 0
        %904 = vmatmul.mubr.bf16.gmra.mxu0 %v784
        %v905 = vpop.f32.mrf.mxu0
        %v906 = vadd.f32 0.0, %v905
        %v907 = vpop.f32.mrf.mxu0
        %v908 = vpop.f32.mrf.mxu0
        %v909 = vadd.f32 0.0, %v908
        %v910 = vpop.f32.mrf.mxu0
        %911 = vmatprep.mubr.bf16.mxu0 0
        %912 = vmatmul.mubr.bf16.gmra.mxu0 %v787
        %v913 = vpop.f32.mrf.mxu0
        %v914 = vadd.f32 0.0, %v913
        %v915 = vpop.f32.mrf.mxu0
        %v916 = vpop.f32.mrf.mxu0
        %v917 = vadd.f32 0.0, %v916
        %v918 = vpop.f32.mrf.mxu0
        %919 = vmatprep.mubr.bf16.mxu0 0
        %920 = vmatmul.mubr.bf16.gmra.mxu0 %v790
        %v921 = vpop.f32.mrf.mxu0
        %v922 = vadd.f32 0.0, %v921
        %v923 = vpop.f32.mrf.mxu0
        %v924 = vpop.f32.mrf.mxu0
        %v925 = vadd.f32 0.0, %v924
        %v926 = vpop.f32.mrf.mxu0
        %927 = vmatprep.mubr.bf16.mxu0 0
        %928 = vmatmul.mubr.bf16.gmra.mxu0 %v793
        %v929 = vpop.f32.mrf.mxu0
        %v930 = vadd.f32 0.0, %v929
        %v931 = vpop.f32.mrf.mxu0
        %v932 = vpop.f32.mrf.mxu0
        %v933 = vpop.f32.mrf.mxu0
        %934 = vdwg.mxu0
        %v936 = vlaneseq
        %v937 = vshrl.u32 %v936, 7
        %v938 = vsub.s32 0, %v937
        %v939 = vrot.slane %v630, %v938
        %v941 = vmul.f32 %v834, %v939
        %v942 = vmul.f32 %v837, %v939
        %v943 = vmul.f32 %v842, %v939
        %v944 = vmul.f32 %v845, %v939
        %v945 = vmul.f32 %v850, %v939
        %v946 = vmul.f32 %v853, %v939
        %v947 = vmul.f32 %v858, %v939
        %v948 = vmul.f32 %v861, %v939
        %v949 = vmul.f32 %v866, %v939
        %v950 = vmul.f32 %v869, %v939
        %v951 = vmul.f32 %v874, %v939
        %v952 = vmul.f32 %v877, %v939
        %v953 = vmul.f32 %v882, %v939
        %v954 = vmul.f32 %v885, %v939
        %v955 = vmul.f32 %v890, %v939
        %v956 = vmul.f32 %v893, %v939
        %v957 = vmul.f32 %v898, %v939
        %v958 = vmul.f32 %v901, %v939
        %v959 = vmul.f32 %v906, %v939
        %v960 = vmul.f32 %v909, %v939
        %v961 = vmul.f32 %v914, %v939
        %v962 = vmul.f32 %v917, %v939
        %v963 = vmul.f32 %v922, %v939
        %v964 = vmul.f32 %v925, %v939
        %v965 = vmul.f32 %v930, %v939
        %v967 = vlaneseq
        %v968 = vshrl.u32 %v967, 7
        %v969 = vsub.s32 0, %v968
        %v970 = vrot.slane %v631, %v969
        %v972 = vadd.f32 %v941, %v970
        %v973 = vadd.f32 %v942, %v970
        %v974 = vadd.f32 %v943, %v970
        %v975 = vadd.f32 %v944, %v970
        %v976 = vadd.f32 %v945, %v970
        %v977 = vadd.f32 %v946, %v970
        %v978 = vadd.f32 %v947, %v970
        %v979 = vadd.f32 %v948, %v970
        %v980 = vadd.f32 %v949, %v970
        %v981 = vadd.f32 %v950, %v970
        %v982 = vadd.f32 %v951, %v970
        %v983 = vadd.f32 %v952, %v970
        %v984 = vadd.f32 %v953, %v970
        %v985 = vadd.f32 %v954, %v970
        %v986 = vadd.f32 %v955, %v970
        %v987 = vadd.f32 %v956, %v970
        %v988 = vadd.f32 %v957, %v970
        %v989 = vadd.f32 %v958, %v970
        %v990 = vadd.f32 %v959, %v970
        %v991 = vadd.f32 %v960, %v970
        %v992 = vadd.f32 %v961, %v970
        %v993 = vadd.f32 %v962, %v970
        %v994 = vadd.f32 %v963, %v970
        %v995 = vadd.f32 %v964, %v970
        %v996 = vadd.f32 %v965, %v970
        %s997 = scalar_lea.vmem %s585, 100 [#allocation2]
        %v998 = vld [vmem:[%s997] sm:$0xf]
        %v999 = vld [vmem:[%s997 + $0x4] sm:$0xf]
        %v1000 = vld [vmem:[%s997 + $0x8] sm:$0xf]
        %v1001 = vld [vmem:[%s997 + $0xc] sm:$0xf]
        %v1002 = vld [vmem:[%s997 + $0x10] sm:$0xf]
        %v1003 = vld [vmem:[%s997 + $0x14] sm:$0xf]
        %v1004 = vld [vmem:[%s997 + $0x18] sm:$0xf]
        %v1005 = vld [vmem:[%s997 + $0x1c] sm:$0xf]
        %v1006 = vld [vmem:[%s997 + $0x20] sm:$0xf]
        %v1007 = vld [vmem:[%s997 + $0x24] sm:$0xf]
        %v1008 = vld [vmem:[%s997 + $0x28] sm:$0xf]
        %v1009 = vld [vmem:[%s997 + $0x2c] sm:$0xf]
        %v1010 = vld [vmem:[%s997 + $0x30] sm:$0xf]
        %v1011 = vld [vmem:[%s997 + $0x34] sm:$0xf]
        %v1012 = vld [vmem:[%s997 + $0x38] sm:$0xf]
        %v1013 = vld [vmem:[%s997 + $0x3c] sm:$0xf]
        %v1014 = vld [vmem:[%s997 + $0x40] sm:$0xf]
        %v1015 = vld [vmem:[%s997 + $0x44] sm:$0xf]
        %v1016 = vld [vmem:[%s997 + $0x48] sm:$0xf]
        %v1017 = vld [vmem:[%s997 + $0x4c] sm:$0xf]
        %v1018 = vld [vmem:[%s997 + $0x50] sm:$0xf]
        %v1019 = vld [vmem:[%s997 + $0x54] sm:$0xf]
        %v1020 = vld [vmem:[%s997 + $0x58] sm:$0xf]
        %v1021 = vld [vmem:[%s997 + $0x5c] sm:$0xf]
        %v1022 = vld [vmem:[%s997 + $0x60] sm:$0xf]
        %v1048 = vunpack.c.l.b16 %v998
        %v1049 = vunpack.c.l.b16 %v999
        %v1050 = vunpack.c.l.b16 %v1000
        %v1051 = vunpack.c.l.b16 %v1001
        %v1052 = vunpack.c.l.b16 %v1002
        %v1053 = vunpack.c.l.b16 %v1003
        %v1054 = vunpack.c.l.b16 %v1004
        %v1055 = vunpack.c.l.b16 %v1005
        %v1056 = vunpack.c.l.b16 %v1006
        %v1057 = vunpack.c.l.b16 %v1007
        %v1058 = vunpack.c.l.b16 %v1008
        %v1059 = vunpack.c.l.b16 %v1009
        %v1060 = vunpack.c.l.b16 %v1010
        %v1061 = vunpack.c.l.b16 %v1011
        %v1062 = vunpack.c.l.b16 %v1012
        %v1063 = vunpack.c.l.b16 %v1013
        %v1064 = vunpack.c.l.b16 %v1014
        %v1065 = vunpack.c.l.b16 %v1015
        %v1066 = vunpack.c.l.b16 %v1016
        %v1067 = vunpack.c.l.b16 %v1017
        %v1068 = vunpack.c.l.b16 %v1018
        %v1069 = vunpack.c.l.b16 %v1019
        %v1070 = vunpack.c.l.b16 %v1020
        %v1071 = vunpack.c.l.b16 %v1021
        %v1072 = vunpack.c.l.b16 %v1022
        %v1073 = vpack.c.b16 %v1049, %v1048
        %v1074 = vpack.c.b16 %v1051, %v1050
        %v1075 = vpack.c.b16 %v1053, %v1052
        %v1076 = vpack.c.b16 %v1055, %v1054
        %v1077 = vpack.c.b16 %v1057, %v1056
        %v1078 = vpack.c.b16 %v1059, %v1058
        %v1079 = vpack.c.b16 %v1061, %v1060
        %v1080 = vpack.c.b16 %v1063, %v1062
        %v1081 = vpack.c.b16 %v1065, %v1064
        %v1082 = vpack.c.b16 %v1067, %v1066
        %v1083 = vpack.c.b16 %v1069, %v1068
        %v1084 = vpack.c.b16 %v1071, %v1070
        %v1085 = vpack.c.b16 %v1072, %v1072
        %v1087 = vsel %vm755, %v1073, 0
        %v1090 = vsel %vm755, %v1074, 0
        %v1093 = vsel %vm755, %v1075, 0
        %v1096 = vsel %vm755, %v1076, 0
        %v1099 = vsel %vm755, %v1077, 0
        %v1102 = vsel %vm755, %v1078, 0
        %v1105 = vsel %vm755, %v1079, 0
        %v1108 = vsel %vm755, %v1080, 0
        %v1111 = vsel %vm755, %v1081, 0
        %v1114 = vsel %vm755, %v1082, 0
        %v1117 = vsel %vm755, %v1083, 0
        %v1120 = vsel %vm755, %v1084, 0
        %v1123 = vsel %vm755, %v1085, 0
        %1125 = vmatprep.subr.bf16.mxu0 0
        %1126 = vmatpush1.bf16.msra.mxu0 0
        %1127 = vmatprep.subr.bf16.mxu0 0
        %1128 = vmatpush1.bf16.msra.mxu0 0
        %1129 = vmatprep.subr.bf16.mxu0 0
        %1130 = vmatpush1.bf16.msra.mxu0 %v797
        %1131 = vmatprep.subr.bf16.mxu0 0
        %1132 = vmatpush1.bf16.msra.mxu0 %v748
        %1133 = vmatprep.subr.bf16.mxu0 0
        %1134 = vmatpush1.bf16.msra.mxu0 %v747
        %1135 = vmatprep.subr.bf16.mxu0 0
        %1136 = vmatpush1.bf16.msra.mxu0 %v746
        %1137 = vmatprep.subr.bf16.mxu0 0
        %1138 = vmatpush1.bf16.msra.mxu0 %v745
        %1139 = vmatprep.subr.bf16.mxu0 0
        %1140 = vmatpush1.bf16.msra.mxu0 %v744
        %1141 = vmatprep.subr.bf16.mxu0 0
        %1142 = vmatpush2.bf16.msra.mxu0 0
        %1143 = vmatprep.subr.bf16.mxu0 0
        %1144 = vmatpush2.bf16.msra.mxu0 0
        %1145 = vmatprep.subr.bf16.mxu0 0
        %1146 = vmatpush2.bf16.msra.mxu0 0
        %1147 = vmatprep.subr.bf16.mxu0 0
        %1148 = vmatpush2.bf16.msra.mxu0 0
        %1149 = vmatprep.subr.bf16.mxu0 0
        %1150 = vmatpush2.bf16.msra.mxu0 0
        %1151 = vmatprep.subr.bf16.mxu0 0
        %1152 = vmatpush2.bf16.msra.mxu0 0
        %1153 = vmatprep.subr.bf16.mxu0 0
        %1154 = vmatpush2.bf16.msra.mxu0 0
        %1155 = vmatprep.subr.bf16.mxu0 0
        %1156 = vmatpush2.bf16.msra.mxu0 0
        %1157 = vmatprep.mubr.bf16.mxu0 0
        %1158 = vmatmul.mubr.bf16.gmra.mxu0 %v1087
        %v1159 = vpop.f32.mrf.mxu0
        %v1160 = vadd.f32 0.0, %v1159
        %v1161 = vpop.f32.mrf.mxu0
        %v1162 = vpop.f32.mrf.mxu0
        %v1163 = vadd.f32 0.0, %v1162
        %v1164 = vpop.f32.mrf.mxu0
        %1165 = vmatprep.mubr.bf16.mxu0 0
        %1166 = vmatmul.mubr.bf16.gmra.mxu0 %v1090
        %v1167 = vpop.f32.mrf.mxu0
        %v1168 = vadd.f32 0.0, %v1167
        %v1169 = vpop.f32.mrf.mxu0
        %v1170 = vpop.f32.mrf.mxu0
        %v1171 = vadd.f32 0.0, %v1170
        %v1172 = vpop.f32.mrf.mxu0
        %1173 = vmatprep.mubr.bf16.mxu0 0
        %1174 = vmatmul.mubr.bf16.gmra.mxu0 %v1093
        %v1175 = vpop.f32.mrf.mxu0
        %v1176 = vadd.f32 0.0, %v1175
        %v1177 = vpop.f32.mrf.mxu0
        %v1178 = vpop.f32.mrf.mxu0
        %v1179 = vadd.f32 0.0, %v1178
        %v1180 = vpop.f32.mrf.mxu0
        %1181 = vmatprep.mubr.bf16.mxu0 0
        %1182 = vmatmul.mubr.bf16.gmra.mxu0 %v1096
        %v1183 = vpop.f32.mrf.mxu0
        %v1184 = vadd.f32 0.0, %v1183
        %v1185 = vpop.f32.mrf.mxu0
        %v1186 = vpop.f32.mrf.mxu0
        %v1187 = vadd.f32 0.0, %v1186
        %v1188 = vpop.f32.mrf.mxu0
        %1189 = vmatprep.mubr.bf16.mxu0 0
        %1190 = vmatmul.mubr.bf16.gmra.mxu0 %v1099
        %v1191 = vpop.f32.mrf.mxu0
        %v1192 = vadd.f32 0.0, %v1191
        %v1193 = vpop.f32.mrf.mxu0
        %v1194 = vpop.f32.mrf.mxu0
        %v1195 = vadd.f32 0.0, %v1194
        %v1196 = vpop.f32.mrf.mxu0
        %1197 = vmatprep.mubr.bf16.mxu0 0
        %1198 = vmatmul.mubr.bf16.gmra.mxu0 %v1102
        %v1199 = vpop.f32.mrf.mxu0
        %v1200 = vadd.f32 0.0, %v1199
        %v1201 = vpop.f32.mrf.mxu0
        %v1202 = vpop.f32.mrf.mxu0
        %v1203 = vadd.f32 0.0, %v1202
        %v1204 = vpop.f32.mrf.mxu0
        %1205 = vmatprep.mubr.bf16.mxu0 0
        %1206 = vmatmul.mubr.bf16.gmra.mxu0 %v1105
        %v1207 = vpop.f32.mrf.mxu0
        %v1208 = vadd.f32 0.0, %v1207
        %v1209 = vpop.f32.mrf.mxu0
        %v1210 = vpop.f32.mrf.mxu0
        %v1211 = vadd.f32 0.0, %v1210
        %v1212 = vpop.f32.mrf.mxu0
        %1213 = vmatprep.mubr.bf16.mxu0 0
        %1214 = vmatmul.mubr.bf16.gmra.mxu0 %v1108
        %v1215 = vpop.f32.mrf.mxu0
        %v1216 = vadd.f32 0.0, %v1215
        %v1217 = vpop.f32.mrf.mxu0
        %v1218 = vpop.f32.mrf.mxu0
        %v1219 = vadd.f32 0.0, %v1218
        %v1220 = vpop.f32.mrf.mxu0
        %1221 = vmatprep.mubr.bf16.mxu0 0
        %1222 = vmatmul.mubr.bf16.gmra.mxu0 %v1111
        %v1223 = vpop.f32.mrf.mxu0
        %v1224 = vadd.f32 0.0, %v1223
        %v1225 = vpop.f32.mrf.mxu0
        %v1226 = vpop.f32.mrf.mxu0
        %v1227 = vadd.f32 0.0, %v1226
        %v1228 = vpop.f32.mrf.mxu0
        %1229 = vmatprep.mubr.bf16.mxu0 0
        %1230 = vmatmul.mubr.bf16.gmra.mxu0 %v1114
        %v1231 = vpop.f32.mrf.mxu0
        %v1232 = vadd.f32 0.0, %v1231
        %v1233 = vpop.f32.mrf.mxu0
        %v1234 = vpop.f32.mrf.mxu0
        %v1235 = vadd.f32 0.0, %v1234
        %v1236 = vpop.f32.mrf.mxu0
        %1237 = vmatprep.mubr.bf16.mxu0 0
        %1238 = vmatmul.mubr.bf16.gmra.mxu0 %v1117
        %v1239 = vpop.f32.mrf.mxu0
        %v1240 = vadd.f32 0.0, %v1239
        %v1241 = vpop.f32.mrf.mxu0
        %v1242 = vpop.f32.mrf.mxu0
        %v1243 = vadd.f32 0.0, %v1242
        %v1244 = vpop.f32.mrf.mxu0
        %1245 = vmatprep.mubr.bf16.mxu0 0
        %1246 = vmatmul.mubr.bf16.gmra.mxu0 %v1120
        %v1247 = vpop.f32.mrf.mxu0
        %v1248 = vadd.f32 0.0, %v1247
        %v1249 = vpop.f32.mrf.mxu0
        %v1250 = vpop.f32.mrf.mxu0
        %v1251 = vadd.f32 0.0, %v1250
        %v1252 = vpop.f32.mrf.mxu0
        %1253 = vmatprep.mubr.bf16.mxu0 0
        %1254 = vmatmul.mubr.bf16.gmra.mxu0 %v1123
        %v1255 = vpop.f32.mrf.mxu0
        %v1256 = vadd.f32 0.0, %v1255
        %v1257 = vpop.f32.mrf.mxu0
        %v1258 = vpop.f32.mrf.mxu0
        %v1259 = vpop.f32.mrf.mxu0
        %1260 = vdwg.mxu0
        %v1261 = vmul.f32 %v1160, %v939
        %v1262 = vmul.f32 %v1163, %v939
        %v1263 = vmul.f32 %v1168, %v939
        %v1264 = vmul.f32 %v1171, %v939
        %v1265 = vmul.f32 %v1176, %v939
        %v1266 = vmul.f32 %v1179, %v939
        %v1267 = vmul.f32 %v1184, %v939
        %v1268 = vmul.f32 %v1187, %v939
        %v1269 = vmul.f32 %v1192, %v939
        %v1270 = vmul.f32 %v1195, %v939
        %v1271 = vmul.f32 %v1200, %v939
        %v1272 = vmul.f32 %v1203, %v939
        %v1273 = vmul.f32 %v1208, %v939
        %v1274 = vmul.f32 %v1211, %v939
        %v1275 = vmul.f32 %v1216, %v939
        %v1276 = vmul.f32 %v1219, %v939
        %v1277 = vmul.f32 %v1224, %v939
        %v1278 = vmul.f32 %v1227, %v939
        %v1279 = vmul.f32 %v1232, %v939
        %v1280 = vmul.f32 %v1235, %v939
        %v1281 = vmul.f32 %v1240, %v939
        %v1282 = vmul.f32 %v1243, %v939
        %v1283 = vmul.f32 %v1248, %v939
        %v1284 = vmul.f32 %v1251, %v939
        %v1285 = vmul.f32 %v1256, %v939
        %v1286 = vadd.f32 %v1261, %v970
        %v1287 = vadd.f32 %v1262, %v970
        %v1288 = vadd.f32 %v1263, %v970
        %v1289 = vadd.f32 %v1264, %v970
        %v1290 = vadd.f32 %v1265, %v970
        %v1291 = vadd.f32 %v1266, %v970
        %v1292 = vadd.f32 %v1267, %v970
        %v1293 = vadd.f32 %v1268, %v970
        %v1294 = vadd.f32 %v1269, %v970
        %v1295 = vadd.f32 %v1270, %v970
        %v1296 = vadd.f32 %v1271, %v970
        %v1297 = vadd.f32 %v1272, %v970
        %v1298 = vadd.f32 %v1273, %v970
        %v1299 = vadd.f32 %v1274, %v970
        %v1300 = vadd.f32 %v1275, %v970
        %v1301 = vadd.f32 %v1276, %v970
        %v1302 = vadd.f32 %v1277, %v970
        %v1303 = vadd.f32 %v1278, %v970
        %v1304 = vadd.f32 %v1279, %v970
        %v1305 = vadd.f32 %v1280, %v970
        %v1306 = vadd.f32 %v1281, %v970
        %v1307 = vadd.f32 %v1282, %v970
        %v1308 = vadd.f32 %v1283, %v970
        %v1309 = vadd.f32 %v1284, %v970
        %v1310 = vadd.f32 %v1285, %v970
        %v1311 = vmax.f32 %v972, %v1286
        %v1312 = vmax.f32 %v973, %v1287
        %v1313 = vmax.f32 %v974, %v1288
        %v1314 = vmax.f32 %v975, %v1289
        %v1315 = vmax.f32 %v976, %v1290
        %v1316 = vmax.f32 %v977, %v1291
        %v1317 = vmax.f32 %v978, %v1292
        %v1318 = vmax.f32 %v979, %v1293
        %v1319 = vmax.f32 %v980, %v1294
        %v1320 = vmax.f32 %v981, %v1295
        %v1321 = vmax.f32 %v982, %v1296
        %v1322 = vmax.f32 %v983, %v1297
        %v1323 = vmax.f32 %v984, %v1298
        %v1324 = vmax.f32 %v985, %v1299
        %v1325 = vmax.f32 %v986, %v1300
        %v1326 = vmax.f32 %v987, %v1301
        %v1327 = vmax.f32 %v988, %v1302
        %v1328 = vmax.f32 %v989, %v1303
        %v1329 = vmax.f32 %v990, %v1304
        %v1330 = vmax.f32 %v991, %v1305
        %v1331 = vmax.f32 %v992, %v1306
        %v1332 = vmax.f32 %v993, %v1307
        %v1333 = vmax.f32 %v994, %v1308
        %v1334 = vmax.f32 %v995, %v1309
        %v1335 = vmax.f32 %v996, %v1310
        %s1336 = scalar_lea.vmem %s585, 200 [#allocation2]
        %v1337 = vld [vmem:[%s1336] sm:$0xf]
        %v1338 = vld [vmem:[%s1336 + $0x4] sm:$0xf]
        %v1339 = vld [vmem:[%s1336 + $0x8] sm:$0xf]
        %v1340 = vld [vmem:[%s1336 + $0xc] sm:$0xf]
        %v1341 = vld [vmem:[%s1336 + $0x10] sm:$0xf]
        %v1342 = vld [vmem:[%s1336 + $0x14] sm:$0xf]
        %v1343 = vld [vmem:[%s1336 + $0x18] sm:$0xf]
        %v1344 = vld [vmem:[%s1336 + $0x1c] sm:$0xf]
        %v1345 = vld [vmem:[%s1336 + $0x20] sm:$0xf]
        %v1346 = vld [vmem:[%s1336 + $0x24] sm:$0xf]
        %v1347 = vld [vmem:[%s1336 + $0x28] sm:$0xf]
        %v1348 = vld [vmem:[%s1336 + $0x2c] sm:$0xf]
        %v1349 = vld [vmem:[%s1336 + $0x30] sm:$0xf]
        %v1350 = vld [vmem:[%s1336 + $0x34] sm:$0xf]
        %v1351 = vld [vmem:[%s1336 + $0x38] sm:$0xf]
        %v1352 = vld [vmem:[%s1336 + $0x3c] sm:$0xf]
        %v1353 = vld [vmem:[%s1336 + $0x40] sm:$0xf]
        %v1354 = vld [vmem:[%s1336 + $0x44] sm:$0xf]
        %v1355 = vld [vmem:[%s1336 + $0x48] sm:$0xf]
        %v1356 = vld [vmem:[%s1336 + $0x4c] sm:$0xf]
        %v1357 = vld [vmem:[%s1336 + $0x50] sm:$0xf]
        %v1358 = vld [vmem:[%s1336 + $0x54] sm:$0xf]
        %v1359 = vld [vmem:[%s1336 + $0x58] sm:$0xf]
        %v1360 = vld [vmem:[%s1336 + $0x5c] sm:$0xf]
        %v1361 = vld [vmem:[%s1336 + $0x60] sm:$0xf]
        %v1387 = vunpack.c.l.b16 %v1337
        %v1388 = vunpack.c.l.b16 %v1338
        %v1389 = vunpack.c.l.b16 %v1339
        %v1390 = vunpack.c.l.b16 %v1340
        %v1391 = vunpack.c.l.b16 %v1341
        %v1392 = vunpack.c.l.b16 %v1342
        %v1393 = vunpack.c.l.b16 %v1343
        %v1394 = vunpack.c.l.b16 %v1344
        %v1395 = vunpack.c.l.b16 %v1345
        %v1396 = vunpack.c.l.b16 %v1346
        %v1397 = vunpack.c.l.b16 %v1347
        %v1398 = vunpack.c.l.b16 %v1348
        %v1399 = vunpack.c.l.b16 %v1349
        %v1400 = vunpack.c.l.b16 %v1350
        %v1401 = vunpack.c.l.b16 %v1351
        %v1402 = vunpack.c.l.b16 %v1352
        %v1403 = vunpack.c.l.b16 %v1353
        %v1404 = vunpack.c.l.b16 %v1354
        %v1405 = vunpack.c.l.b16 %v1355
        %v1406 = vunpack.c.l.b16 %v1356
        %v1407 = vunpack.c.l.b16 %v1357
        %v1408 = vunpack.c.l.b16 %v1358
        %v1409 = vunpack.c.l.b16 %v1359
        %v1410 = vunpack.c.l.b16 %v1360
        %v1411 = vunpack.c.l.b16 %v1361
        %v1412 = vpack.c.b16 %v1388, %v1387
        %v1413 = vpack.c.b16 %v1390, %v1389
        %v1414 = vpack.c.b16 %v1392, %v1391
        %v1415 = vpack.c.b16 %v1394, %v1393
        %v1416 = vpack.c.b16 %v1396, %v1395
        %v1417 = vpack.c.b16 %v1398, %v1397
        %v1418 = vpack.c.b16 %v1400, %v1399
        %v1419 = vpack.c.b16 %v1402, %v1401
        %v1420 = vpack.c.b16 %v1404, %v1403
        %v1421 = vpack.c.b16 %v1406, %v1405
        %v1422 = vpack.c.b16 %v1408, %v1407
        %v1423 = vpack.c.b16 %v1410, %v1409
        %v1424 = vpack.c.b16 %v1411, %v1411
        %v1426 = vsel %vm755, %v1412, 0
        %v1429 = vsel %vm755, %v1413, 0
        %v1432 = vsel %vm755, %v1414, 0
        %v1435 = vsel %vm755, %v1415, 0
        %v1438 = vsel %vm755, %v1416, 0
        %v1441 = vsel %vm755, %v1417, 0
        %v1444 = vsel %vm755, %v1418, 0
        %v1447 = vsel %vm755, %v1419, 0
        %v1450 = vsel %vm755, %v1420, 0
        %v1453 = vsel %vm755, %v1421, 0
        %v1456 = vsel %vm755, %v1422, 0
        %v1459 = vsel %vm755, %v1423, 0
        %v1462 = vsel %vm755, %v1424, 0
        %1464 = vmatprep.subr.bf16.mxu0 0
        %1465 = vmatpush1.bf16.msra.mxu0 0
        %1466 = vmatprep.subr.bf16.mxu0 0
        %1467 = vmatpush1.bf16.msra.mxu0 0
        %1468 = vmatprep.subr.bf16.mxu0 0
        %1469 = vmatpush1.bf16.msra.mxu0 %v797
        %1470 = vmatprep.subr.bf16.mxu0 0
        %1471 = vmatpush1.bf16.msra.mxu0 %v748
        %1472 = vmatprep.subr.bf16.mxu0 0
        %1473 = vmatpush1.bf16.msra.mxu0 %v747
        %1474 = vmatprep.subr.bf16.mxu0 0
        %1475 = vmatpush1.bf16.msra.mxu0 %v746
        %1476 = vmatprep.subr.bf16.mxu0 0
        %1477 = vmatpush1.bf16.msra.mxu0 %v745
        %1478 = vmatprep.subr.bf16.mxu0 0
        %1479 = vmatpush1.bf16.msra.mxu0 %v744
        %1480 = vmatprep.subr.bf16.mxu0 0
        %1481 = vmatpush2.bf16.msra.mxu0 0
        %1482 = vmatprep.subr.bf16.mxu0 0
        %1483 = vmatpush2.bf16.msra.mxu0 0
        %1484 = vmatprep.subr.bf16.mxu0 0
        %1485 = vmatpush2.bf16.msra.mxu0 0
        %1486 = vmatprep.subr.bf16.mxu0 0
        %1487 = vmatpush2.bf16.msra.mxu0 0
        %1488 = vmatprep.subr.bf16.mxu0 0
        %1489 = vmatpush2.bf16.msra.mxu0 0
        %1490 = vmatprep.subr.bf16.mxu0 0
        %1491 = vmatpush2.bf16.msra.mxu0 0
        %1492 = vmatprep.subr.bf16.mxu0 0
        %1493 = vmatpush2.bf16.msra.mxu0 0
        %1494 = vmatprep.subr.bf16.mxu0 0
        %1495 = vmatpush2.bf16.msra.mxu0 0
        %1496 = vmatprep.mubr.bf16.mxu0 0
        %1497 = vmatmul.mubr.bf16.gmra.mxu0 %v1426
        %v1498 = vpop.f32.mrf.mxu0
        %v1499 = vadd.f32 0.0, %v1498
        %v1500 = vpop.f32.mrf.mxu0
        %v1501 = vpop.f32.mrf.mxu0
        %v1502 = vadd.f32 0.0, %v1501
        %v1503 = vpop.f32.mrf.mxu0
        %1504 = vmatprep.mubr.bf16.mxu0 0
        %1505 = vmatmul.mubr.bf16.gmra.mxu0 %v1429
        %v1506 = vpop.f32.mrf.mxu0
        %v1507 = vadd.f32 0.0, %v1506
        %v1508 = vpop.f32.mrf.mxu0
        %v1509 = vpop.f32.mrf.mxu0
        %v1510 = vadd.f32 0.0, %v1509
        %v1511 = vpop.f32.mrf.mxu0
        %1512 = vmatprep.mubr.bf16.mxu0 0
        %1513 = vmatmul.mubr.bf16.gmra.mxu0 %v1432
        %v1514 = vpop.f32.mrf.mxu0
        %v1515 = vadd.f32 0.0, %v1514
        %v1516 = vpop.f32.mrf.mxu0
        %v1517 = vpop.f32.mrf.mxu0
        %v1518 = vadd.f32 0.0, %v1517
        %v1519 = vpop.f32.mrf.mxu0
        %1520 = vmatprep.mubr.bf16.mxu0 0
        %1521 = vmatmul.mubr.bf16.gmra.mxu0 %v1435
        %v1522 = vpop.f32.mrf.mxu0
        %v1523 = vadd.f32 0.0, %v1522
        %v1524 = vpop.f32.mrf.mxu0
        %v1525 = vpop.f32.mrf.mxu0
        %v1526 = vadd.f32 0.0, %v1525
        %v1527 = vpop.f32.mrf.mxu0
        %1528 = vmatprep.mubr.bf16.mxu0 0
        %1529 = vmatmul.mubr.bf16.gmra.mxu0 %v1438
        %v1530 = vpop.f32.mrf.mxu0
        %v1531 = vadd.f32 0.0, %v1530
        %v1532 = vpop.f32.mrf.mxu0
        %v1533 = vpop.f32.mrf.mxu0
        %v1534 = vadd.f32 0.0, %v1533
        %v1535 = vpop.f32.mrf.mxu0
        %1536 = vmatprep.mubr.bf16.mxu0 0
        %1537 = vmatmul.mubr.bf16.gmra.mxu0 %v1441
        %v1538 = vpop.f32.mrf.mxu0
        %v1539 = vadd.f32 0.0, %v1538
        %v1540 = vpop.f32.mrf.mxu0
        %v1541 = vpop.f32.mrf.mxu0
        %v1542 = vadd.f32 0.0, %v1541
        %v1543 = vpop.f32.mrf.mxu0
        %1544 = vmatprep.mubr.bf16.mxu0 0
        %1545 = vmatmul.mubr.bf16.gmra.mxu0 %v1444
        %v1546 = vpop.f32.mrf.mxu0
        %v1547 = vadd.f32 0.0, %v1546
        %v1548 = vpop.f32.mrf.mxu0
        %v1549 = vpop.f32.mrf.mxu0
        %v1550 = vadd.f32 0.0, %v1549
        %v1551 = vpop.f32.mrf.mxu0
        %1552 = vmatprep.mubr.bf16.mxu0 0
        %1553 = vmatmul.mubr.bf16.gmra.mxu0 %v1447
        %v1554 = vpop.f32.mrf.mxu0
        %v1555 = vadd.f32 0.0, %v1554
        %v1556 = vpop.f32.mrf.mxu0
        %v1557 = vpop.f32.mrf.mxu0
        %v1558 = vadd.f32 0.0, %v1557
        %v1559 = vpop.f32.mrf.mxu0
        %1560 = vmatprep.mubr.bf16.mxu0 0
        %1561 = vmatmul.mubr.bf16.gmra.mxu0 %v1450
        %v1562 = vpop.f32.mrf.mxu0
        %v1563 = vadd.f32 0.0, %v1562
        %v1564 = vpop.f32.mrf.mxu0
        %v1565 = vpop.f32.mrf.mxu0
        %v1566 = vadd.f32 0.0, %v1565
        %v1567 = vpop.f32.mrf.mxu0
        %1568 = vmatprep.mubr.bf16.mxu0 0
        %1569 = vmatmul.mubr.bf16.gmra.mxu0 %v1453
        %v1570 = vpop.f32.mrf.mxu0
        %v1571 = vadd.f32 0.0, %v1570
        %v1572 = vpop.f32.mrf.mxu0
        %v1573 = vpop.f32.mrf.mxu0
        %v1574 = vadd.f32 0.0, %v1573
        %v1575 = vpop.f32.mrf.mxu0
        %1576 = vmatprep.mubr.bf16.mxu0 0
        %1577 = vmatmul.mubr.bf16.gmra.mxu0 %v1456
        %v1578 = vpop.f32.mrf.mxu0
        %v1579 = vadd.f32 0.0, %v1578
        %v1580 = vpop.f32.mrf.mxu0
        %v1581 = vpop.f32.mrf.mxu0
        %v1582 = vadd.f32 0.0, %v1581
        %v1583 = vpop.f32.mrf.mxu0
        %1584 = vmatprep.mubr.bf16.mxu0 0
        %1585 = vmatmul.mubr.bf16.gmra.mxu0 %v1459
        %v1586 = vpop.f32.mrf.mxu0
        %v1587 = vadd.f32 0.0, %v1586
        %v1588 = vpop.f32.mrf.mxu0
        %v1589 = vpop.f32.mrf.mxu0
        %v1590 = vadd.f32 0.0, %v1589
        %v1591 = vpop.f32.mrf.mxu0
        %1592 = vmatprep.mubr.bf16.mxu0 0
        %1593 = vmatmul.mubr.bf16.gmra.mxu0 %v1462
        %v1594 = vpop.f32.mrf.mxu0
        %v1595 = vadd.f32 0.0, %v1594
        %v1596 = vpop.f32.mrf.mxu0
        %v1597 = vpop.f32.mrf.mxu0
        %v1598 = vpop.f32.mrf.mxu0
        %1599 = vdwg.mxu0
        %v1600 = vmul.f32 %v1499, %v939
        %v1601 = vmul.f32 %v1502, %v939
        %v1602 = vmul.f32 %v1507, %v939
        %v1603 = vmul.f32 %v1510, %v939
        %v1604 = vmul.f32 %v1515, %v939
        %v1605 = vmul.f32 %v1518, %v939
        %v1606 = vmul.f32 %v1523, %v939
        %v1607 = vmul.f32 %v1526, %v939
        %v1608 = vmul.f32 %v1531, %v939
        %v1609 = vmul.f32 %v1534, %v939
        %v1610 = vmul.f32 %v1539, %v939
        %v1611 = vmul.f32 %v1542, %v939
        %v1612 = vmul.f32 %v1547, %v939
        %v1613 = vmul.f32 %v1550, %v939
        %v1614 = vmul.f32 %v1555, %v939
        %v1615 = vmul.f32 %v1558, %v939
        %v1616 = vmul.f32 %v1563, %v939
        %v1617 = vmul.f32 %v1566, %v939
        %v1618 = vmul.f32 %v1571, %v939
        %v1619 = vmul.f32 %v1574, %v939
        %v1620 = vmul.f32 %v1579, %v939
        %v1621 = vmul.f32 %v1582, %v939
        %v1622 = vmul.f32 %v1587, %v939
        %v1623 = vmul.f32 %v1590, %v939
        %v1624 = vmul.f32 %v1595, %v939
        %v1625 = vadd.f32 %v1600, %v970
        %v1626 = vadd.f32 %v1601, %v970
        %v1627 = vadd.f32 %v1602, %v970
        %v1628 = vadd.f32 %v1603, %v970
        %v1629 = vadd.f32 %v1604, %v970
        %v1630 = vadd.f32 %v1605, %v970
        %v1631 = vadd.f32 %v1606, %v970
        %v1632 = vadd.f32 %v1607, %v970
        %v1633 = vadd.f32 %v1608, %v970
        %v1634 = vadd.f32 %v1609, %v970
        %v1635 = vadd.f32 %v1610, %v970
        %v1636 = vadd.f32 %v1611, %v970
        %v1637 = vadd.f32 %v1612, %v970
        %v1638 = vadd.f32 %v1613, %v970
        %v1639 = vadd.f32 %v1614, %v970
        %v1640 = vadd.f32 %v1615, %v970
        %v1641 = vadd.f32 %v1616, %v970
        %v1642 = vadd.f32 %v1617, %v970
        %v1643 = vadd.f32 %v1618, %v970
        %v1644 = vadd.f32 %v1619, %v970
        %v1645 = vadd.f32 %v1620, %v970
        %v1646 = vadd.f32 %v1621, %v970
        %v1647 = vadd.f32 %v1622, %v970
        %v1648 = vadd.f32 %v1623, %v970
        %v1649 = vadd.f32 %v1624, %v970
        %v1650 = vmax.f32 %v1311, %v1625
        %v1651 = vmax.f32 %v1312, %v1626
        %v1652 = vmax.f32 %v1313, %v1627
        %v1653 = vmax.f32 %v1314, %v1628
        %v1654 = vmax.f32 %v1315, %v1629
        %v1655 = vmax.f32 %v1316, %v1630
        %v1656 = vmax.f32 %v1317, %v1631
        %v1657 = vmax.f32 %v1318, %v1632
        %v1658 = vmax.f32 %v1319, %v1633
        %v1659 = vmax.f32 %v1320, %v1634
        %v1660 = vmax.f32 %v1321, %v1635
        %v1661 = vmax.f32 %v1322, %v1636
        %v1662 = vmax.f32 %v1323, %v1637
        %v1663 = vmax.f32 %v1324, %v1638
        %v1664 = vmax.f32 %v1325, %v1639
        %v1665 = vmax.f32 %v1326, %v1640
        %v1666 = vmax.f32 %v1327, %v1641
        %v1667 = vmax.f32 %v1328, %v1642
        %v1668 = vmax.f32 %v1329, %v1643
        %v1669 = vmax.f32 %v1330, %v1644
        %v1670 = vmax.f32 %v1331, %v1645
        %v1671 = vmax.f32 %v1332, %v1646
        %v1672 = vmax.f32 %v1333, %v1647
        %v1673 = vmax.f32 %v1334, %v1648
        %v1674 = vmax.f32 %v1335, %v1649
        %s1675 = scalar_lea.vmem %s585, 300 [#allocation2]
        %v1676 = vld [vmem:[%s1675] sm:$0xf]
        %v1677 = vld [vmem:[%s1675 + $0x4] sm:$0xf]
        %v1678 = vld [vmem:[%s1675 + $0x8] sm:$0xf]
        %v1679 = vld [vmem:[%s1675 + $0xc] sm:$0xf]
        %v1680 = vld [vmem:[%s1675 + $0x10] sm:$0xf]
        %v1681 = vld [vmem:[%s1675 + $0x14] sm:$0xf]
        %v1682 = vld [vmem:[%s1675 + $0x18] sm:$0xf]
        %v1683 = vld [vmem:[%s1675 + $0x1c] sm:$0xf]
        %v1684 = vld [vmem:[%s1675 + $0x20] sm:$0xf]
        %v1685 = vld [vmem:[%s1675 + $0x24] sm:$0xf]
        %v1686 = vld [vmem:[%s1675 + $0x28] sm:$0xf]
        %v1687 = vld [vmem:[%s1675 + $0x2c] sm:$0xf]
        %v1688 = vld [vmem:[%s1675 + $0x30] sm:$0xf]
        %v1689 = vld [vmem:[%s1675 + $0x34] sm:$0xf]
        %v1690 = vld [vmem:[%s1675 + $0x38] sm:$0xf]
        %v1691 = vld [vmem:[%s1675 + $0x3c] sm:$0xf]
        %v1692 = vld [vmem:[%s1675 + $0x40] sm:$0xf]
        %v1693 = vld [vmem:[%s1675 + $0x44] sm:$0xf]
        %v1694 = vld [vmem:[%s1675 + $0x48] sm:$0xf]
        %v1695 = vld [vmem:[%s1675 + $0x4c] sm:$0xf]
        %v1696 = vld [vmem:[%s1675 + $0x50] sm:$0xf]
        %v1697 = vld [vmem:[%s1675 + $0x54] sm:$0xf]
        %v1698 = vld [vmem:[%s1675 + $0x58] sm:$0xf]
        %v1699 = vld [vmem:[%s1675 + $0x5c] sm:$0xf]
        %v1700 = vld [vmem:[%s1675 + $0x60] sm:$0xf]
        %v1726 = vunpack.c.l.b16 %v1676
        %v1727 = vunpack.c.l.b16 %v1677
        %v1728 = vunpack.c.l.b16 %v1678
        %v1729 = vunpack.c.l.b16 %v1679
        %v1730 = vunpack.c.l.b16 %v1680
        %v1731 = vunpack.c.l.b16 %v1681
        %v1732 = vunpack.c.l.b16 %v1682
        %v1733 = vunpack.c.l.b16 %v1683
        %v1734 = vunpack.c.l.b16 %v1684
        %v1735 = vunpack.c.l.b16 %v1685
        %v1736 = vunpack.c.l.b16 %v1686
        %v1737 = vunpack.c.l.b16 %v1687
        %v1738 = vunpack.c.l.b16 %v1688
        %v1739 = vunpack.c.l.b16 %v1689
        %v1740 = vunpack.c.l.b16 %v1690
        %v1741 = vunpack.c.l.b16 %v1691
        %v1742 = vunpack.c.l.b16 %v1692
        %v1743 = vunpack.c.l.b16 %v1693
        %v1744 = vunpack.c.l.b16 %v1694
        %v1745 = vunpack.c.l.b16 %v1695
        %v1746 = vunpack.c.l.b16 %v1696
        %v1747 = vunpack.c.l.b16 %v1697
        %v1748 = vunpack.c.l.b16 %v1698
        %v1749 = vunpack.c.l.b16 %v1699
        %v1750 = vunpack.c.l.b16 %v1700
        %v1751 = vpack.c.b16 %v1727, %v1726
        %v1752 = vpack.c.b16 %v1729, %v1728
        %v1753 = vpack.c.b16 %v1731, %v1730
        %v1754 = vpack.c.b16 %v1733, %v1732
        %v1755 = vpack.c.b16 %v1735, %v1734
        %v1756 = vpack.c.b16 %v1737, %v1736
        %v1757 = vpack.c.b16 %v1739, %v1738
        %v1758 = vpack.c.b16 %v1741, %v1740
        %v1759 = vpack.c.b16 %v1743, %v1742
        %v1760 = vpack.c.b16 %v1745, %v1744
        %v1761 = vpack.c.b16 %v1747, %v1746
        %v1762 = vpack.c.b16 %v1749, %v1748
        %v1763 = vpack.c.b16 %v1750, %v1750
        %v1765 = vsel %vm755, %v1751, 0
        %v1768 = vsel %vm755, %v1752, 0
        %v1771 = vsel %vm755, %v1753, 0
        %v1774 = vsel %vm755, %v1754, 0
        %v1777 = vsel %vm755, %v1755, 0
        %v1780 = vsel %vm755, %v1756, 0
        %v1783 = vsel %vm755, %v1757, 0
        %v1786 = vsel %vm755, %v1758, 0
        %v1789 = vsel %vm755, %v1759, 0
        %v1792 = vsel %vm755, %v1760, 0
        %v1795 = vsel %vm755, %v1761, 0
        %v1798 = vsel %vm755, %v1762, 0
        %v1801 = vsel %vm755, %v1763, 0
        %1803 = vmatprep.subr.bf16.mxu0 0
        %1804 = vmatpush1.bf16.msra.mxu0 0
        %1805 = vmatprep.subr.bf16.mxu0 0
        %1806 = vmatpush1.bf16.msra.mxu0 0
        %1807 = vmatprep.subr.bf16.mxu0 0
        %1808 = vmatpush1.bf16.msra.mxu0 %v797
        %1809 = vmatprep.subr.bf16.mxu0 0
        %1810 = vmatpush1.bf16.msra.mxu0 %v748
        %1811 = vmatprep.subr.bf16.mxu0 0
        %1812 = vmatpush1.bf16.msra.mxu0 %v747
        %1813 = vmatprep.subr.bf16.mxu0 0
        %1814 = vmatpush1.bf16.msra.mxu0 %v746
        %1815 = vmatprep.subr.bf16.mxu0 0
        %1816 = vmatpush1.bf16.msra.mxu0 %v745
        %1817 = vmatprep.subr.bf16.mxu0 0
        %1818 = vmatpush1.bf16.msra.mxu0 %v744
        %1819 = vmatprep.subr.bf16.mxu0 0
        %1820 = vmatpush2.bf16.msra.mxu0 0
        %1821 = vmatprep.subr.bf16.mxu0 0
        %1822 = vmatpush2.bf16.msra.mxu0 0
        %1823 = vmatprep.subr.bf16.mxu0 0
        %1824 = vmatpush2.bf16.msra.mxu0 0
        %1825 = vmatprep.subr.bf16.mxu0 0
        %1826 = vmatpush2.bf16.msra.mxu0 0
        %1827 = vmatprep.subr.bf16.mxu0 0
        %1828 = vmatpush2.bf16.msra.mxu0 0
        %1829 = vmatprep.subr.bf16.mxu0 0
        %1830 = vmatpush2.bf16.msra.mxu0 0
        %1831 = vmatprep.subr.bf16.mxu0 0
        %1832 = vmatpush2.bf16.msra.mxu0 0
        %1833 = vmatprep.subr.bf16.mxu0 0
        %1834 = vmatpush2.bf16.msra.mxu0 0
        %1835 = vmatprep.mubr.bf16.mxu0 0
        %1836 = vmatmul.mubr.bf16.gmra.mxu0 %v1765
        %v1837 = vpop.f32.mrf.mxu0
        %v1838 = vadd.f32 0.0, %v1837
        %v1839 = vpop.f32.mrf.mxu0
        %v1840 = vpop.f32.mrf.mxu0
        %v1841 = vadd.f32 0.0, %v1840
        %v1842 = vpop.f32.mrf.mxu0
        %1843 = vmatprep.mubr.bf16.mxu0 0
        %1844 = vmatmul.mubr.bf16.gmra.mxu0 %v1768
        %v1845 = vpop.f32.mrf.mxu0
        %v1846 = vadd.f32 0.0, %v1845
        %v1847 = vpop.f32.mrf.mxu0
        %v1848 = vpop.f32.mrf.mxu0
        %v1849 = vadd.f32 0.0, %v1848
        %v1850 = vpop.f32.mrf.mxu0
        %1851 = vmatprep.mubr.bf16.mxu0 0
        %1852 = vmatmul.mubr.bf16.gmra.mxu0 %v1771
        %v1853 = vpop.f32.mrf.mxu0
        %v1854 = vadd.f32 0.0, %v1853
        %v1855 = vpop.f32.mrf.mxu0
        %v1856 = vpop.f32.mrf.mxu0
        %v1857 = vadd.f32 0.0, %v1856
        %v1858 = vpop.f32.mrf.mxu0
        %1859 = vmatprep.mubr.bf16.mxu0 0
        %1860 = vmatmul.mubr.bf16.gmra.mxu0 %v1774
        %v1861 = vpop.f32.mrf.mxu0
        %v1862 = vadd.f32 0.0, %v1861
        %v1863 = vpop.f32.mrf.mxu0
        %v1864 = vpop.f32.mrf.mxu0
        %v1865 = vadd.f32 0.0, %v1864
        %v1866 = vpop.f32.mrf.mxu0
        %1867 = vmatprep.mubr.bf16.mxu0 0
        %1868 = vmatmul.mubr.bf16.gmra.mxu0 %v1777
        %v1869 = vpop.f32.mrf.mxu0
        %v1870 = vadd.f32 0.0, %v1869
        %v1871 = vpop.f32.mrf.mxu0
        %v1872 = vpop.f32.mrf.mxu0
        %v1873 = vadd.f32 0.0, %v1872
        %v1874 = vpop.f32.mrf.mxu0
        %1875 = vmatprep.mubr.bf16.mxu0 0
        %1876 = vmatmul.mubr.bf16.gmra.mxu0 %v1780
        %v1877 = vpop.f32.mrf.mxu0
        %v1878 = vadd.f32 0.0, %v1877
        %v1879 = vpop.f32.mrf.mxu0
        %v1880 = vpop.f32.mrf.mxu0
        %v1881 = vadd.f32 0.0, %v1880
        %v1882 = vpop.f32.mrf.mxu0
        %1883 = vmatprep.mubr.bf16.mxu0 0
        %1884 = vmatmul.mubr.bf16.gmra.mxu0 %v1783
        %v1885 = vpop.f32.mrf.mxu0
        %v1886 = vadd.f32 0.0, %v1885
        %v1887 = vpop.f32.mrf.mxu0
        %v1888 = vpop.f32.mrf.mxu0
        %v1889 = vadd.f32 0.0, %v1888
        %v1890 = vpop.f32.mrf.mxu0
        %1891 = vmatprep.mubr.bf16.mxu0 0
        %1892 = vmatmul.mubr.bf16.gmra.mxu0 %v1786
        %v1893 = vpop.f32.mrf.mxu0
        %v1894 = vadd.f32 0.0, %v1893
        %v1895 = vpop.f32.mrf.mxu0
        %v1896 = vpop.f32.mrf.mxu0
        %v1897 = vadd.f32 0.0, %v1896
        %v1898 = vpop.f32.mrf.mxu0
        %1899 = vmatprep.mubr.bf16.mxu0 0
        %1900 = vmatmul.mubr.bf16.gmra.mxu0 %v1789
        %v1901 = vpop.f32.mrf.mxu0
        %v1902 = vadd.f32 0.0, %v1901
        %v1903 = vpop.f32.mrf.mxu0
        %v1904 = vpop.f32.mrf.mxu0
        %v1905 = vadd.f32 0.0, %v1904
        %v1906 = vpop.f32.mrf.mxu0
        %1907 = vmatprep.mubr.bf16.mxu0 0
        %1908 = vmatmul.mubr.bf16.gmra.mxu0 %v1792
        %v1909 = vpop.f32.mrf.mxu0
        %v1910 = vadd.f32 0.0, %v1909
        %v1911 = vpop.f32.mrf.mxu0
        %v1912 = vpop.f32.mrf.mxu0
        %v1913 = vadd.f32 0.0, %v1912
        %v1914 = vpop.f32.mrf.mxu0
        %1915 = vmatprep.mubr.bf16.mxu0 0
        %1916 = vmatmul.mubr.bf16.gmra.mxu0 %v1795
        %v1917 = vpop.f32.mrf.mxu0
        %v1918 = vadd.f32 0.0, %v1917
        %v1919 = vpop.f32.mrf.mxu0
        %v1920 = vpop.f32.mrf.mxu0
        %v1921 = vadd.f32 0.0, %v1920
        %v1922 = vpop.f32.mrf.mxu0
        %1923 = vmatprep.mubr.bf16.mxu0 0
        %1924 = vmatmul.mubr.bf16.gmra.mxu0 %v1798
        %v1925 = vpop.f32.mrf.mxu0
        %v1926 = vadd.f32 0.0, %v1925
        %v1927 = vpop.f32.mrf.mxu0
        %v1928 = vpop.f32.mrf.mxu0
        %v1929 = vadd.f32 0.0, %v1928
        %v1930 = vpop.f32.mrf.mxu0
        %1931 = vmatprep.mubr.bf16.mxu0 0
        %1932 = vmatmul.mubr.bf16.gmra.mxu0 %v1801
        %v1933 = vpop.f32.mrf.mxu0
        %v1934 = vadd.f32 0.0, %v1933
        %v1935 = vpop.f32.mrf.mxu0
        %v1936 = vpop.f32.mrf.mxu0
        %v1937 = vpop.f32.mrf.mxu0
        %1938 = vdwg.mxu0
        %v1939 = vmul.f32 %v1838, %v939
        %v1940 = vmul.f32 %v1841, %v939
        %v1941 = vmul.f32 %v1846, %v939
        %v1942 = vmul.f32 %v1849, %v939
        %v1943 = vmul.f32 %v1854, %v939
        %v1944 = vmul.f32 %v1857, %v939
        %v1945 = vmul.f32 %v1862, %v939
        %v1946 = vmul.f32 %v1865, %v939
        %v1947 = vmul.f32 %v1870, %v939
        %v1948 = vmul.f32 %v1873, %v939
        %v1949 = vmul.f32 %v1878, %v939
        %v1950 = vmul.f32 %v1881, %v939
        %v1951 = vmul.f32 %v1886, %v939
        %v1952 = vmul.f32 %v1889, %v939
        %v1953 = vmul.f32 %v1894, %v939
        %v1954 = vmul.f32 %v1897, %v939
        %v1955 = vmul.f32 %v1902, %v939
        %v1956 = vmul.f32 %v1905, %v939
        %v1957 = vmul.f32 %v1910, %v939
        %v1958 = vmul.f32 %v1913, %v939
        %v1959 = vmul.f32 %v1918, %v939
        %v1960 = vmul.f32 %v1921, %v939
        %v1961 = vmul.f32 %v1926, %v939
        %v1962 = vmul.f32 %v1929, %v939
        %v1963 = vmul.f32 %v1934, %v939
        %v1964 = vadd.f32 %v1939, %v970
        %v1965 = vadd.f32 %v1940, %v970
        %v1966 = vadd.f32 %v1941, %v970
        %v1967 = vadd.f32 %v1942, %v970
        %v1968 = vadd.f32 %v1943, %v970
        %v1969 = vadd.f32 %v1944, %v970
        %v1970 = vadd.f32 %v1945, %v970
        %v1971 = vadd.f32 %v1946, %v970
        %v1972 = vadd.f32 %v1947, %v970
        %v1973 = vadd.f32 %v1948, %v970
        %v1974 = vadd.f32 %v1949, %v970
        %v1975 = vadd.f32 %v1950, %v970
        %v1976 = vadd.f32 %v1951, %v970
        %v1977 = vadd.f32 %v1952, %v970
        %v1978 = vadd.f32 %v1953, %v970
        %v1979 = vadd.f32 %v1954, %v970
        %v1980 = vadd.f32 %v1955, %v970
        %v1981 = vadd.f32 %v1956, %v970
        %v1982 = vadd.f32 %v1957, %v970
        %v1983 = vadd.f32 %v1958, %v970
        %v1984 = vadd.f32 %v1959, %v970
        %v1985 = vadd.f32 %v1960, %v970
        %v1986 = vadd.f32 %v1961, %v970
        %v1987 = vadd.f32 %v1962, %v970
        %v1988 = vadd.f32 %v1963, %v970
        %v1989 = vmax.f32 %v1650, %v1964
        %v1990 = vmax.f32 %v1651, %v1965
        %v1991 = vmax.f32 %v1652, %v1966
        %v1992 = vmax.f32 %v1653, %v1967
        %v1993 = vmax.f32 %v1654, %v1968
        %v1994 = vmax.f32 %v1655, %v1969
        %v1995 = vmax.f32 %v1656, %v1970
        %v1996 = vmax.f32 %v1657, %v1971
        %v1997 = vmax.f32 %v1658, %v1972
        %v1998 = vmax.f32 %v1659, %v1973
        %v1999 = vmax.f32 %v1660, %v1974
        %v2000 = vmax.f32 %v1661, %v1975
        %v2001 = vmax.f32 %v1662, %v1976
        %v2002 = vmax.f32 %v1663, %v1977
        %v2003 = vmax.f32 %v1664, %v1978
        %v2004 = vmax.f32 %v1665, %v1979
        %v2005 = vmax.f32 %v1666, %v1980
        %v2006 = vmax.f32 %v1667, %v1981
        %v2007 = vmax.f32 %v1668, %v1982
        %v2008 = vmax.f32 %v1669, %v1983
        %v2009 = vmax.f32 %v1670, %v1984
        %v2010 = vmax.f32 %v1671, %v1985
        %v2011 = vmax.f32 %v1672, %v1986
        %v2012 = vmax.f32 %v1673, %v1987
        %v2013 = vmax.f32 %v1674, %v1988
        %v2014 = vmax.f32 %v1989, 0.0
        %v2015 = vmax.f32 %v1990, 0.0
        %v2016 = vmax.f32 %v1991, 0.0
        %v2017 = vmax.f32 %v1992, 0.0
        %v2018 = vmax.f32 %v1993, 0.0
        %v2019 = vmax.f32 %v1994, 0.0
        %v2020 = vmax.f32 %v1995, 0.0
        %v2021 = vmax.f32 %v1996, 0.0
        %v2022 = vmax.f32 %v1997, 0.0
        %v2023 = vmax.f32 %v1998, 0.0
        %v2024 = vmax.f32 %v1999, 0.0
        %v2025 = vmax.f32 %v2000, 0.0
        %v2026 = vmax.f32 %v2001, 0.0
        %v2027 = vmax.f32 %v2002, 0.0
        %v2028 = vmax.f32 %v2003, 0.0
        %v2029 = vmax.f32 %v2004, 0.0
        %v2030 = vmax.f32 %v2005, 0.0
        %v2031 = vmax.f32 %v2006, 0.0
        %v2032 = vmax.f32 %v2007, 0.0
        %v2033 = vmax.f32 %v2008, 0.0
        %v2034 = vmax.f32 %v2009, 0.0
        %v2035 = vmax.f32 %v2010, 0.0
        %v2036 = vmax.f32 %v2011, 0.0
        %v2037 = vmax.f32 %v2012, 0.0
        %v2038 = vmax.f32 %v2013, 0.0
        %2039 = vst [vmem:[%s606] sm:$0xff] %v2014
        %2040 = vst [vmem:[%s606 + $0x8] sm:$0xff] %v2015
        %2041 = vst [vmem:[%s606 + $0x10] sm:$0xff] %v2016
        %2042 = vst [vmem:[%s606 + $0x18] sm:$0xff] %v2017
        %2043 = vst [vmem:[%s606 + $0x20] sm:$0xff] %v2018
        %2044 = vst [vmem:[%s606 + $0x28] sm:$0xff] %v2019
        %2045 = vst [vmem:[%s606 + $0x30] sm:$0xff] %v2020
        %2046 = vst [vmem:[%s606 + $0x38] sm:$0xff] %v2021
        %2047 = vst [vmem:[%s606 + $0x40] sm:$0xff] %v2022
        %2048 = vst [vmem:[%s606 + $0x48] sm:$0xff] %v2023
        %2049 = vst [vmem:[%s606 + $0x50] sm:$0xff] %v2024
        %2050 = vst [vmem:[%s606 + $0x58] sm:$0xff] %v2025
        %2051 = vst [vmem:[%s606 + $0x60] sm:$0xff] %v2026
        %2052 = vst [vmem:[%s606 + $0x68] sm:$0xff] %v2027
        %2053 = vst [vmem:[%s606 + $0x70] sm:$0xff] %v2028
        %2054 = vst [vmem:[%s606 + $0x78] sm:$0xff] %v2029
        %2055 = vst [vmem:[%s606 + $0x80] sm:$0xff] %v2030
        %2056 = vst [vmem:[%s606 + $0x88] sm:$0xff] %v2031
        %2057 = vst [vmem:[%s606 + $0x90] sm:$0xff] %v2032
        %2058 = vst [vmem:[%s606 + $0x98] sm:$0xff] %v2033
        %2059 = vst [vmem:[%s606 + $0xa0] sm:$0xff] %v2034
        %2060 = vst [vmem:[%s606 + $0xa8] sm:$0xff] %v2035
        %2061 = vst [vmem:[%s606 + $0xb0] sm:$0xff] %v2036
        %2062 = vst [vmem:[%s606 + $0xb8] sm:$0xff] %v2037
        %2063 = vst [vmem:[%s606 + $0xc0] sm:$0xff] %v2038
        %s2064 = sand.u32 %s112, 1
        %s2065 = sand.u32 %s112, 1
        %s2066 = smul.addr %s2065, 200
        %s2067 = scalar_lea.vmem [#allocation3], %s2066
        // Predicated region
        $region99: #{net6_forward.4} parent=93 // pred_check
          %p2068 = pneg %p122
        $region100: #{net6_forward.4} parent=93 // pred_check_branch
          %2070 = sbr.rel (%p2068) target = $region102
        $region101: #{net6_forward.4} parent=93 // pred_region
          %s2071 = smul.u32 25, %s15
          %s2072 = ssub.s32 49, %s2071
          %p2073 = scmp.lt.s32.totalorder %s2072, 25
          %s2074 = scalar_select %p2073, %s2072, 25
          %s2075 = smul.u32 128, %s2074
          %p2076 = scmp.ne.s32.totalorder 0, %s2075
          %s2077 = smul.addr %s2071, 8
          %s2078 = scalar_lea.vmem %s4, %s2077
          // Predicated region
          $region103: #{net6_forward.4} parent=101 // pred_check
            %p2079 = pneg %p2076
          $region104: #{net6_forward.4} parent=101 // pred_check_branch
            %2081 = sbr.rel (%p2079) target = $region106
          $region105: #{net6_forward.4} parent=101 // pred_region
            // Predicated region
            $region107: #{net6_forward.4} parent=105 // pred_check
              _
            $region108: #{net6_forward.4} parent=105 // pred_check_branch
              %2083 = sbr.rel (0) target = $region110
            $region109: #{net6_forward.4} parent=105 // pred_region
              // Predicated region
              $region129: #{net6_forward.4} parent=109 // pred_check
                _
              $region130: #{net6_forward.4} parent=109 // pred_check_branch
                %2182 = sbr.rel (0) target = $region132
              $region131: #{net6_forward.4} parent=109 // pred_region
                %s2183 = sdiv.u32.pop %s2074, 25
                %s2184 = srem.u32.pop %s2074, 25
                // While loop
                $region133: #{net6_forward.4} parent=131 // loop_pre_header
                  _
                $region134: #{net6_forward.4} parent=131 // loop_header
                  %s2186 = sphi 0, %s2188
                  %p2187 = scmp.ge.s32.totalorder %s2186, %s2183
                  %s2191 = sphi 0, %s2246
                  %s2192 = sphi %s2067, %s2249
                  %s2193 = sphi %s2078, %s2250
                $region135: #{net6_forward.4} parent=131 // loop_header_branch
                  %2190 = sbr.rel (%p2187) target = $region139
                $region136: #{net6_forward.4} parent=131 // loop_body
                  %v2194 = vld [vmem:[%s2192] sm:$0xff]
                  %2195 = vst [vmem:[%s2193] sm:$0xff] %v2194
                  %v2196 = vld [vmem:[%s2192 + $0x8] sm:$0xff]
                  %2197 = vst [vmem:[%s2193 + $0x8] sm:$0xff] %v2196
                  %v2198 = vld [vmem:[%s2192 + $0x10] sm:$0xff]
                  %2199 = vst [vmem:[%s2193 + $0x10] sm:$0xff] %v2198
                  %v2200 = vld [vmem:[%s2192 + $0x18] sm:$0xff]
                  %2201 = vst [vmem:[%s2193 + $0x18] sm:$0xff] %v2200
                  %v2202 = vld [vmem:[%s2192 + $0x20] sm:$0xff]
                  %2203 = vst [vmem:[%s2193 + $0x20] sm:$0xff] %v2202
                  %v2204 = vld [vmem:[%s2192 + $0x28] sm:$0xff]
                  %2205 = vst [vmem:[%s2193 + $0x28] sm:$0xff] %v2204
                  %v2206 = vld [vmem:[%s2192 + $0x30] sm:$0xff]
                  %2207 = vst [vmem:[%s2193 + $0x30] sm:$0xff] %v2206
                  %v2208 = vld [vmem:[%s2192 + $0x38] sm:$0xff]
                  %2209 = vst [vmem:[%s2193 + $0x38] sm:$0xff] %v2208
                  %v2210 = vld [vmem:[%s2192 + $0x40] sm:$0xff]
                  %2211 = vst [vmem:[%s2193 + $0x40] sm:$0xff] %v2210
                  %v2212 = vld [vmem:[%s2192 + $0x48] sm:$0xff]
                  %2213 = vst [vmem:[%s2193 + $0x48] sm:$0xff] %v2212
                  %v2214 = vld [vmem:[%s2192 + $0x50] sm:$0xff]
                  %2215 = vst [vmem:[%s2193 + $0x50] sm:$0xff] %v2214
                  %v2216 = vld [vmem:[%s2192 + $0x58] sm:$0xff]
                  %2217 = vst [vmem:[%s2193 + $0x58] sm:$0xff] %v2216
                  %v2218 = vld [vmem:[%s2192 + $0x60] sm:$0xff]
                  %2219 = vst [vmem:[%s2193 + $0x60] sm:$0xff] %v2218
                  %v2220 = vld [vmem:[%s2192 + $0x68] sm:$0xff]
                  %2221 = vst [vmem:[%s2193 + $0x68] sm:$0xff] %v2220
                  %v2222 = vld [vmem:[%s2192 + $0x70] sm:$0xff]
                  %2223 = vst [vmem:[%s2193 + $0x70] sm:$0xff] %v2222
                  %v2224 = vld [vmem:[%s2192 + $0x78] sm:$0xff]
                  %2225 = vst [vmem:[%s2193 + $0x78] sm:$0xff] %v2224
                  %v2226 = vld [vmem:[%s2192 + $0x80] sm:$0xff]
                  %2227 = vst [vmem:[%s2193 + $0x80] sm:$0xff] %v2226
                  %v2228 = vld [vmem:[%s2192 + $0x88] sm:$0xff]
                  %2229 = vst [vmem:[%s2193 + $0x88] sm:$0xff] %v2228
                  %v2230 = vld [vmem:[%s2192 + $0x90] sm:$0xff]
                  %2231 = vst [vmem:[%s2193 + $0x90] sm:$0xff] %v2230
                  %v2232 = vld [vmem:[%s2192 + $0x98] sm:$0xff]
                  %2233 = vst [vmem:[%s2193 + $0x98] sm:$0xff] %v2232
                  %v2234 = vld [vmem:[%s2192 + $0xa0] sm:$0xff]
                  %2235 = vst [vmem:[%s2193 + $0xa0] sm:$0xff] %v2234
                  %v2236 = vld [vmem:[%s2192 + $0xa8] sm:$0xff]
                  %2237 = vst [vmem:[%s2193 + $0xa8] sm:$0xff] %v2236
                  %v2238 = vld [vmem:[%s2192 + $0xb0] sm:$0xff]
                  %2239 = vst [vmem:[%s2193 + $0xb0] sm:$0xff] %v2238
                  %v2240 = vld [vmem:[%s2192 + $0xb8] sm:$0xff]
                  %2241 = vst [vmem:[%s2193 + $0xb8] sm:$0xff] %v2240
                  %v2242 = vld [vmem:[%s2192 + $0xc0] sm:$0xff]
                  %2243 = vst [vmem:[%s2193 + $0xc0] sm:$0xff] %v2242
                  %s2244 = sadd.s32 1, %s2191
                  %p2245 = scmp.ge.s32.totalorder %s2244, %s2183
                  %s2246 = scalar_select %p2245, 0, %s2244
                  %s2247 = smul.u32 %s2246, 200
                  %s2248 = smul.u32 %s2246, 200
                  %s2249 = scalar_lea.vmem %s2067, %s2247 [#allocation3]
                  %s2250 = scalar_lea.vmem %s2078, %s2248
                $region137: #{net6_forward.4} parent=131 // loop_footer
                  %s2188 = sadd.s32 %s2186, 1
                $region138: #{net6_forward.4} parent=131 // loop_footer_branch
                  %2185 = sbr.rel target = $region134
                $region139: #{net6_forward.4} parent=131 // loop_exit
                  _
                %s2251 = sdiv.u32.pop %s2074, 25
                %s2252 = srem.u32.pop %s2074, 25
                %s2253 = smul.u32 %s2251, 25
                %s2254 = smul.u32 8, %s2253
                %s2255 = scalar_lea.vmem %s2067, %s2254 [#allocation3]
                %s2256 = smul.u32 8, %s2253
                %s2257 = scalar_lea.vmem %s2078, %s2256
                // While loop
                $region140: #{net6_forward.4} parent=131 // loop_pre_header
                  _
                $region141: #{net6_forward.4} parent=131 // loop_header
                  %s2259 = sphi 0, %s2261
                  %p2260 = scmp.ge.s32.totalorder %s2259, %s2252
                  %s2264 = sphi 0, %s2271
                  %s2265 = sphi %s2255, %s2274
                  %s2266 = sphi %s2257, %s2275
                $region142: #{net6_forward.4} parent=131 // loop_header_branch
                  %2263 = sbr.rel (%p2260) target = $region146
                $region143: #{net6_forward.4} parent=131 // loop_body
                  %v2267 = vld [vmem:[%s2265] sm:$0xff]
                  %2268 = vst [vmem:[%s2266] sm:$0xff] %v2267
                  %s2269 = sadd.s32 1, %s2264
                  %p2270 = scmp.ge.s32.totalorder %s2269, %s2252
                  %s2271 = scalar_select %p2270, 0, %s2269
                  %s2272 = smul.u32 %s2271, 8
                  %s2273 = smul.u32 %s2271, 8
                  %s2274 = scalar_lea.vmem %s2255, %s2272 [#allocation3]
                  %s2275 = scalar_lea.vmem %s2257, %s2273
                $region144: #{net6_forward.4} parent=131 // loop_footer
                  %s2261 = sadd.s32 %s2259, 1
                $region145: #{net6_forward.4} parent=131 // loop_footer_branch
                  %2258 = sbr.rel target = $region141
                $region146: #{net6_forward.4} parent=131 // loop_exit
                  _
              $region132: #{net6_forward.4} parent=109 // pred_fallthru
                _
              // Predicated region
              $region147: #{net6_forward.4} parent=109 // pred_check
                _
              $region148: #{net6_forward.4} parent=109 // pred_check_branch
                %2277 = sbr.rel target = $region150
              $region149: #{net6_forward.4} parent=109 // pred_region
                _
              $region150: #{net6_forward.4} parent=109 // pred_fallthru
                _
            $region110: #{net6_forward.4} parent=105 // pred_fallthru
              _
            // Predicated region
            $region111: #{net6_forward.4} parent=105 // pred_check
              _
            $region112: #{net6_forward.4} parent=105 // pred_check_branch
              %2085 = sbr.rel target = $region114
            $region113: #{net6_forward.4} parent=105 // pred_region
              %s2087 = ssub.s32 256, 1
              %s2088 = sdiv.u32.pop %s2074, 25
              %s2089 = srem.u32.pop %s2074, 25
              // While loop
              $region115: #{net6_forward.4} parent=113 // loop_pre_header
                _
              $region116: #{net6_forward.4} parent=113 // loop_header
                %s2091 = sphi 0, %s2093
                %p2092 = scmp.ge.s32.totalorder %s2091, %s2088
                %s2096 = sphi 0, %s2151
                %s2097 = sphi %s2067, %s2154
                %s2098 = sphi %s2078, %s2155
              $region117: #{net6_forward.4} parent=113 // loop_header_branch
                %2095 = sbr.rel (%p2092) target = $region121
              $region118: #{net6_forward.4} parent=113 // loop_body
                %v2099 = vld [vmem:[%s2097] sm:%s2087]
                %2100 = vst [vmem:[%s2098] sm:%s2087] %v2099
                %v2101 = vld [vmem:[%s2097 + $0x8] sm:%s2087]
                %2102 = vst [vmem:[%s2098 + $0x8] sm:%s2087] %v2101
                %v2103 = vld [vmem:[%s2097 + $0x10] sm:%s2087]
                %2104 = vst [vmem:[%s2098 + $0x10] sm:%s2087] %v2103
                %v2105 = vld [vmem:[%s2097 + $0x18] sm:%s2087]
                %2106 = vst [vmem:[%s2098 + $0x18] sm:%s2087] %v2105
                %v2107 = vld [vmem:[%s2097 + $0x20] sm:%s2087]
                %2108 = vst [vmem:[%s2098 + $0x20] sm:%s2087] %v2107
                %v2109 = vld [vmem:[%s2097 + $0x28] sm:%s2087]
                %2110 = vst [vmem:[%s2098 + $0x28] sm:%s2087] %v2109
                %v2111 = vld [vmem:[%s2097 + $0x30] sm:%s2087]
                %2112 = vst [vmem:[%s2098 + $0x30] sm:%s2087] %v2111
                %v2113 = vld [vmem:[%s2097 + $0x38] sm:%s2087]
                %2114 = vst [vmem:[%s2098 + $0x38] sm:%s2087] %v2113
                %v2115 = vld [vmem:[%s2097 + $0x40] sm:%s2087]
                %2116 = vst [vmem:[%s2098 + $0x40] sm:%s2087] %v2115
                %v2117 = vld [vmem:[%s2097 + $0x48] sm:%s2087]
                %2118 = vst [vmem:[%s2098 + $0x48] sm:%s2087] %v2117
                %v2119 = vld [vmem:[%s2097 + $0x50] sm:%s2087]
                %2120 = vst [vmem:[%s2098 + $0x50] sm:%s2087] %v2119
                %v2121 = vld [vmem:[%s2097 + $0x58] sm:%s2087]
                %2122 = vst [vmem:[%s2098 + $0x58] sm:%s2087] %v2121
                %v2123 = vld [vmem:[%s2097 + $0x60] sm:%s2087]
                %2124 = vst [vmem:[%s2098 + $0x60] sm:%s2087] %v2123
                %v2125 = vld [vmem:[%s2097 + $0x68] sm:%s2087]
                %2126 = vst [vmem:[%s2098 + $0x68] sm:%s2087] %v2125
                %v2127 = vld [vmem:[%s2097 + $0x70] sm:%s2087]
                %2128 = vst [vmem:[%s2098 + $0x70] sm:%s2087] %v2127
                %v2129 = vld [vmem:[%s2097 + $0x78] sm:%s2087]
                %2130 = vst [vmem:[%s2098 + $0x78] sm:%s2087] %v2129
                %v2131 = vld [vmem:[%s2097 + $0x80] sm:%s2087]
                %2132 = vst [vmem:[%s2098 + $0x80] sm:%s2087] %v2131
                %v2133 = vld [vmem:[%s2097 + $0x88] sm:%s2087]
                %2134 = vst [vmem:[%s2098 + $0x88] sm:%s2087] %v2133
                %v2135 = vld [vmem:[%s2097 + $0x90] sm:%s2087]
                %2136 = vst [vmem:[%s2098 + $0x90] sm:%s2087] %v2135
                %v2137 = vld [vmem:[%s2097 + $0x98] sm:%s2087]
                %2138 = vst [vmem:[%s2098 + $0x98] sm:%s2087] %v2137
                %v2139 = vld [vmem:[%s2097 + $0xa0] sm:%s2087]
                %2140 = vst [vmem:[%s2098 + $0xa0] sm:%s2087] %v2139
                %v2141 = vld [vmem:[%s2097 + $0xa8] sm:%s2087]
                %2142 = vst [vmem:[%s2098 + $0xa8] sm:%s2087] %v2141
                %v2143 = vld [vmem:[%s2097 + $0xb0] sm:%s2087]
                %2144 = vst [vmem:[%s2098 + $0xb0] sm:%s2087] %v2143
                %v2145 = vld [vmem:[%s2097 + $0xb8] sm:%s2087]
                %2146 = vst [vmem:[%s2098 + $0xb8] sm:%s2087] %v2145
                %v2147 = vld [vmem:[%s2097 + $0xc0] sm:%s2087]
                %2148 = vst [vmem:[%s2098 + $0xc0] sm:%s2087] %v2147
                %s2149 = sadd.s32 1, %s2096
                %p2150 = scmp.ge.s32.totalorder %s2149, %s2088
                %s2151 = scalar_select %p2150, 0, %s2149
                %s2152 = smul.u32 %s2151, 200
                %s2153 = smul.u32 %s2151, 200
                %s2154 = scalar_lea.vmem %s2067, %s2152 [#allocation3]
                %s2155 = scalar_lea.vmem %s2078, %s2153
              $region119: #{net6_forward.4} parent=113 // loop_footer
                %s2093 = sadd.s32 %s2091, 1
              $region120: #{net6_forward.4} parent=113 // loop_footer_branch
                %2090 = sbr.rel target = $region116
              $region121: #{net6_forward.4} parent=113 // loop_exit
                _
              %s2156 = sdiv.u32.pop %s2074, 25
              %s2157 = srem.u32.pop %s2074, 25
              %s2158 = smul.u32 %s2156, 25
              %s2159 = smul.u32 8, %s2158
              %s2160 = scalar_lea.vmem %s2067, %s2159 [#allocation3]
              %s2161 = smul.u32 8, %s2158
              %s2162 = scalar_lea.vmem %s2078, %s2161
              // While loop
              $region122: #{net6_forward.4} parent=113 // loop_pre_header
                _
              $region123: #{net6_forward.4} parent=113 // loop_header
                %s2164 = sphi 0, %s2166
                %p2165 = scmp.ge.s32.totalorder %s2164, %s2157
                %s2169 = sphi 0, %s2176
                %s2170 = sphi %s2160, %s2179
                %s2171 = sphi %s2162, %s2180
              $region124: #{net6_forward.4} parent=113 // loop_header_branch
                %2168 = sbr.rel (%p2165) target = $region128
              $region125: #{net6_forward.4} parent=113 // loop_body
                %v2172 = vld [vmem:[%s2170] sm:%s2087]
                %2173 = vst [vmem:[%s2171] sm:%s2087] %v2172
                %s2174 = sadd.s32 1, %s2169
                %p2175 = scmp.ge.s32.totalorder %s2174, %s2157
                %s2176 = scalar_select %p2175, 0, %s2174
                %s2177 = smul.u32 %s2176, 8
                %s2178 = smul.u32 %s2176, 8
                %s2179 = scalar_lea.vmem %s2160, %s2177 [#allocation3]
                %s2180 = scalar_lea.vmem %s2162, %s2178
              $region126: #{net6_forward.4} parent=113 // loop_footer
                %s2166 = sadd.s32 %s2164, 1
              $region127: #{net6_forward.4} parent=113 // loop_footer_branch
                %2163 = sbr.rel target = $region123
              $region128: #{net6_forward.4} parent=113 // loop_exit
                _
            $region114: #{net6_forward.4} parent=105 // pred_fallthru
              _
          $region106: #{net6_forward.4} parent=101 // pred_fallthru
            _
          %2278 = vnop
        $region102: #{net6_forward.4} parent=93 // pred_fallthru
          _
      $region94: #{net6_forward.4} parent=5 // pred_fallthru
        _
      %p2279 = scmp.le.s32.totalorder 2, %s10
      // Predicated region
      $region151: #{net6_forward.4} parent=5 // pred_check
        %p2280 = pneg %p2279
      $region152: #{net6_forward.4} parent=5 // pred_check_branch
        %2282 = sbr.rel (%p2280) target = $region154
      $region153: #{net6_forward.4} parent=5 // pred_region
        %s2283 = ssub.s32 %s10, 2
        // Predicated region
        $region155: #{net6_forward.4} parent=153 // pred_check
          %p2284 = pneg %p128
        $region156: #{net6_forward.4} parent=153 // pred_check_branch
          %2286 = sbr.rel (%p2284) target = $region158
        $region157: #{net6_forward.4} parent=153 // pred_region
          %s2287 = sand.u32 %s113, 1
          %s2288 = sand.u32 %s113, 1
          %s2289 = smul.addr %s2288, 200
          %s2290 = scalar_lea.vmem [#allocation3], %s2289
        $region158: #{net6_forward.4} parent=153 // pred_fallthru
          _
      $region154: #{net6_forward.4} parent=5 // pred_fallthru
        _
    $region6: #{net6_forward.4} parent=1 // loop_footer
      %s14 = sadd.s32 1, %s10
    $region7: #{net6_forward.4} parent=1 // loop_footer_branch
      %9 = sbr.rel target = $region3
    $region8: #{net6_forward.4} parent=1 // loop_exit
      _

// kernel: net6_forward.5
$region0: #{net6_forward.5}
  #allocation0 [shape = 'u32[]', space=smem, size = 0x4, offset = 0x4, fixed_abs, tag = 'smem constant byte address 0x4 - core index']
  #allocation1 [shape = 'u32[144,128]{1,0:T(1,128)}', space=vmem, size = 0x12000, scoped, tag = 'internal scratch']
  %s0 = inlined_call_operand.vmem [shape: bf16[2,3920], index: 0, kind: input, shape index: {}]
  %s1 = inlined_call_operand.vmem [shape: bf16[3920,200], index: 1, kind: input, shape index: {}]
  %s2 = inlined_call_operand.vmem [shape: f32[1,200], index: 2, kind: input, shape index: {}]
  %s3 = inlined_call_operand.vmem [shape: bf16[200,80], index: 3, kind: input, shape index: {}]
  %s4 = inlined_call_operand.vmem [shape: f32[1,80], index: 4, kind: input, shape index: {}]
  %s5 = inlined_call_operand.vmem [shape: bf16[80,8], index: 5, kind: input, shape index: {}]
  %s6 = inlined_call_operand.vmem [shape: f32[1,8], index: 6, kind: input, shape index: {}]
  %s7 = inlined_call_operand.hbm [shape: f32[2,8], index: 7, kind: output, shape index: {}]
  %s8 = sld [smem:[#allocation0]]
  $region38: #{net6_forward.5} parent=0
    _
  %s10 = ssub.s32 1, %s8
  %s11 = scalar_select 0, %s10, %s8
  $region1: #{net6_forward.5} parent=0
    #allocation2 [shape = 'u8[1024]{0}', space=vmem, size = 0x400, scoped, tag = 'output window, operand 0, single buffered']
    #allocation3 [shape = 's32[1]{0}', space=sflag, size = 0x4, scoped, tag = 'scoped memory for net6_forward.5']
    %12 = vsyncpa [#allocation3], 0
    // Predicated region
    $region2: #{net6_forward.5} parent=1 // pred_check
      _
    $region3: #{net6_forward.5} parent=1 // pred_check_branch
      %14 = sbr.rel (0) target = $region5
    $region4: #{net6_forward.5} parent=1 // pred_region
      _
    $region5: #{net6_forward.5} parent=1 // pred_fallthru
      _
    // Predicated region
    $region6: #{net6_forward.5} parent=1 // pred_check
      _
    $region7: #{net6_forward.5} parent=1 // pred_check_branch
      %16 = sbr.rel (0) target = $region9
    $region8: #{net6_forward.5} parent=1 // pred_region
      _
    $region9: #{net6_forward.5} parent=1 // pred_fallthru
      _
    // Predicated region
    $region10: #{net6_forward.5} parent=1 // pred_check
      _
    $region11: #{net6_forward.5} parent=1 // pred_check_branch
      %18 = sbr.rel (0) target = $region13
    $region12: #{net6_forward.5} parent=1 // pred_region
      _
    $region13: #{net6_forward.5} parent=1 // pred_fallthru
      _
    // Predicated region
    $region14: #{net6_forward.5} parent=1 // pred_check
      _
    $region15: #{net6_forward.5} parent=1 // pred_check_branch
      %20 = sbr.rel (0) target = $region17
    $region16: #{net6_forward.5} parent=1 // pred_region
      _
    $region17: #{net6_forward.5} parent=1 // pred_fallthru
      _
    // Predicated region
    $region18: #{net6_forward.5} parent=1 // pred_check
      _
    $region19: #{net6_forward.5} parent=1 // pred_check_branch
      %22 = sbr.rel (0) target = $region21
    $region20: #{net6_forward.5} parent=1 // pred_region
      _
    $region21: #{net6_forward.5} parent=1 // pred_fallthru
      _
    // Predicated region
    $region22: #{net6_forward.5} parent=1 // pred_check
      _
    $region23: #{net6_forward.5} parent=1 // pred_check_branch
      %24 = sbr.rel (0) target = $region25
    $region24: #{net6_forward.5} parent=1 // pred_region
      _
    $region25: #{net6_forward.5} parent=1 // pred_fallthru
      _
    // Predicated region
    $region26: #{net6_forward.5} parent=1 // pred_check
      _
    $region27: #{net6_forward.5} parent=1 // pred_check_branch
      %26 = sbr.rel (0) target = $region29
    $region28: #{net6_forward.5} parent=1 // pred_region
      _
    $region29: #{net6_forward.5} parent=1 // pred_fallthru
      _
    %v28 = vld [vmem:[%s0] sm:$0xff]
    %v29 = vld [vmem:[%s0 + $0x8] sm:$0xff]
    %v30 = vld [vmem:[%s0 + $0x10] sm:$0xff]
    %v31 = vld [vmem:[%s0 + $0x18] sm:$0x7f]
    %v32 = vld [vmem:[%s1] sm:$0xff]
    %v33 = vld [vmem:[%s1 + $0x8] sm:$0xff]
    %v34 = vld [vmem:[%s1 + $0x10] sm:$0xff]
    %v35 = vld [vmem:[%s1 + $0x18] sm:$0xff]
    %v36 = vld [vmem:[%s1 + $0x20] sm:$0xff]
    %v37 = vld [vmem:[%s1 + $0x28] sm:$0xff]
    %v38 = vld [vmem:[%s1 + $0x30] sm:$0xff]
    %v39 = vld [vmem:[%s1 + $0x38] sm:$0xff]
    %v40 = vld [vmem:[%s1 + $0x40] sm:$0xff]
    %v41 = vld [vmem:[%s1 + $0x48] sm:$0xff]
    %v42 = vld [vmem:[%s1 + $0x50] sm:$0xff]
    %v43 = vld [vmem:[%s1 + $0x58] sm:$0xff]
    %v44 = vld [vmem:[%s1 + $0x60] sm:$0xff]
    %v45 = vld [vmem:[%s1 + $0x68] sm:$0xff]
    %v46 = vld [vmem:[%s1 + $0x70] sm:$0xff]
    %v47 = vld [vmem:[%s1 + $0x78] sm:$0xff]
    %v48 = vld [vmem:[%s1 + $0x80] sm:$0xff]
    %v49 = vld [vmem:[%s1 + $0x88] sm:$0xff]
    %v50 = vld [vmem:[%s1 + $0x90] sm:$0xff]
    %v51 = vld [vmem:[%s1 + $0x98] sm:$0xff]
    %v52 = vld [vmem:[%s1 + $0xa0] sm:$0xff]
    %v53 = vld [vmem:[%s1 + $0xa8] sm:$0xff]
    %v54 = vld [vmem:[%s1 + $0xb0] sm:$0xff]
    %v55 = vld [vmem:[%s1 + $0xb8] sm:$0xff]
    %v56 = vld [vmem:[%s1 + $0xc0] sm:$0xff]
    %v57 = vld [vmem:[%s1 + $0xc8] sm:$0xff]
    %v58 = vld [vmem:[%s1 + $0xd0] sm:$0xff]
    %v59 = vld [vmem:[%s1 + $0xd8] sm:$0xff]
    %v60 = vld [vmem:[%s1 + $0xe0] sm:$0xff]
    %v61 = vld [vmem:[%s1 + $0xe8] sm:$0xff]
    %v62 = vld [vmem:[%s1 + $0xf0] sm:$0xff]
    %v63 = vld [vmem:[%s1 + $0xf8] sm:$0xff]
    %v64 = vld [vmem:[%s1 + $0x100] sm:$0xff]
    %v65 = vld [vmem:[%s1 + $0x108] sm:$0xff]
    %v66 = vld [vmem:[%s1 + $0x110] sm:$0xff]
    %v67 = vld [vmem:[%s1 + $0x118] sm:$0xff]
    %v68 = vld [vmem:[%s1 + $0x120] sm:$0xff]
    %v69 = vld [vmem:[%s1 + $0x128] sm:$0xff]
    %v70 = vld [vmem:[%s1 + $0x130] sm:$0xff]
    %v71 = vld [vmem:[%s1 + $0x138] sm:$0xff]
    %v72 = vld [vmem:[%s1 + $0x140] sm:$0xff]
    %v73 = vld [vmem:[%s1 + $0x148] sm:$0xff]
    %v74 = vld [vmem:[%s1 + $0x150] sm:$0xff]
    %v75 = vld [vmem:[%s1 + $0x158] sm:$0xff]
    %v76 = vld [vmem:[%s1 + $0x160] sm:$0xff]
    %v77 = vld [vmem:[%s1 + $0x168] sm:$0xff]
    %v78 = vld [vmem:[%s1 + $0x170] sm:$0xff]
    %v79 = vld [vmem:[%s1 + $0x178] sm:$0xff]
    %v80 = vld [vmem:[%s1 + $0x180] sm:$0xff]
    %v81 = vld [vmem:[%s1 + $0x188] sm:$0xff]
    %v82 = vld [vmem:[%s1 + $0x190] sm:$0xff]
    %v83 = vld [vmem:[%s1 + $0x198] sm:$0xff]
    %v84 = vld [vmem:[%s1 + $0x1a0] sm:$0xff]
    %v85 = vld [vmem:[%s1 + $0x1a8] sm:$0xff]
    %v86 = vld [vmem:[%s1 + $0x1b0] sm:$0xff]
    %v87 = vld [vmem:[%s1 + $0x1b8] sm:$0xff]
    %v88 = vld [vmem:[%s1 + $0x1c0] sm:$0xff]
    %v89 = vld [vmem:[%s1 + $0x1c8] sm:$0xff]
    %v90 = vld [vmem:[%s1 + $0x1d0] sm:$0xff]
    %v91 = vld [vmem:[%s1 + $0x1d8] sm:$0xff]
    %v92 = vld [vmem:[%s1 + $0x1e0] sm:$0xff]
    %v93 = vld [vmem:[%s1 + $0x1e8] sm:$0xff]
    %v94 = vld [vmem:[%s1 + $0x1f0] sm:$0xff]
    %v95 = vld [vmem:[%s1 + $0x1f8] sm:$0xff]
    %v96 = vld [vmem:[%s1 + $0x200] sm:$0xff]
    %v97 = vld [vmem:[%s1 + $0x208] sm:$0xff]
    %v98 = vld [vmem:[%s1 + $0x210] sm:$0xff]
    %v99 = vld [vmem:[%s1 + $0x218] sm:$0xff]
    %v100 = vld [vmem:[%s1 + $0x220] sm:$0xff]
    %v101 = vld [vmem:[%s1 + $0x228] sm:$0xff]
    %v102 = vld [vmem:[%s1 + $0x230] sm:$0xff]
    %v103 = vld [vmem:[%s1 + $0x238] sm:$0xff]
    %v104 = vld [vmem:[%s1 + $0x240] sm:$0xff]
    %v105 = vld [vmem:[%s1 + $0x248] sm:$0xff]
    %v106 = vld [vmem:[%s1 + $0x250] sm:$0xff]
    %v107 = vld [vmem:[%s1 + $0x258] sm:$0xff]
    %v108 = vld [vmem:[%s1 + $0x260] sm:$0xff]
    %v109 = vld [vmem:[%s1 + $0x268] sm:$0xff]
    %v110 = vld [vmem:[%s1 + $0x270] sm:$0xff]
    %v111 = vld [vmem:[%s1 + $0x278] sm:$0xff]
    %v112 = vld [vmem:[%s1 + $0x280] sm:$0xff]
    %v113 = vld [vmem:[%s1 + $0x288] sm:$0xff]
    %v114 = vld [vmem:[%s1 + $0x290] sm:$0xff]
    %v115 = vld [vmem:[%s1 + $0x298] sm:$0xff]
    %v116 = vld [vmem:[%s1 + $0x2a0] sm:$0xff]
    %v117 = vld [vmem:[%s1 + $0x2a8] sm:$0xff]
    %v118 = vld [vmem:[%s1 + $0x2b0] sm:$0xff]
    %v119 = vld [vmem:[%s1 + $0x2b8] sm:$0xff]
    %v120 = vld [vmem:[%s1 + $0x2c0] sm:$0xff]
    %v121 = vld [vmem:[%s1 + $0x2c8] sm:$0xff]
    %v122 = vld [vmem:[%s1 + $0x2d0] sm:$0xff]
    %v123 = vld [vmem:[%s1 + $0x2d8] sm:$0xff]
    %v124 = vld [vmem:[%s1 + $0x2e0] sm:$0xff]
    %v125 = vld [vmem:[%s1 + $0x2e8] sm:$0xff]
    %v126 = vld [vmem:[%s1 + $0x2f0] sm:$0xff]
    %v127 = vld [vmem:[%s1 + $0x2f8] sm:$0xff]
    %v128 = vld [vmem:[%s1 + $0x300] sm:$0xff]
    %v129 = vld [vmem:[%s1 + $0x308] sm:$0xff]
    %v130 = vld [vmem:[%s1 + $0x310] sm:$0xff]
    %v131 = vld [vmem:[%s1 + $0x318] sm:$0xff]
    %v132 = vld [vmem:[%s1 + $0x320] sm:$0xff]
    %v133 = vld [vmem:[%s1 + $0x328] sm:$0xff]
    %v134 = vld [vmem:[%s1 + $0x330] sm:$0xff]
    %v135 = vld [vmem:[%s1 + $0x338] sm:$0xff]
    %v136 = vld [vmem:[%s1 + $0x340] sm:$0xff]
    %v137 = vld [vmem:[%s1 + $0x348] sm:$0xff]
    %v138 = vld [vmem:[%s1 + $0x350] sm:$0xff]
    %v139 = vld [vmem:[%s1 + $0x358] sm:$0xff]
    %v140 = vld [vmem:[%s1 + $0x360] sm:$0xff]
    %v141 = vld [vmem:[%s1 + $0x368] sm:$0xff]
    %v142 = vld [vmem:[%s1 + $0x370] sm:$0xff]
    %v143 = vld [vmem:[%s1 + $0x378] sm:$0xff]
    %v144 = vld [vmem:[%s1 + $0x380] sm:$0xff]
    %v145 = vld [vmem:[%s1 + $0x388] sm:$0xff]
    %v146 = vld [vmem:[%s1 + $0x390] sm:$0xff]
    %v147 = vld [vmem:[%s1 + $0x398] sm:$0xff]
    %v148 = vld [vmem:[%s1 + $0x3a0] sm:$0xff]
    %v149 = vld [vmem:[%s1 + $0x3a8] sm:$0xff]
    %v150 = vld [vmem:[%s1 + $0x3b0] sm:$0xff]
    %v151 = vld [vmem:[%s1 + $0x3b8] sm:$0xff]
    %v152 = vld [vmem:[%s1 + $0x3c0] sm:$0xff]
    %v153 = vld [vmem:[%s1 + $0x3c8] sm:$0xff]
    %v154 = vld [vmem:[%s1 + $0x3d0] sm:$0xff]
    %v155 = vld [vmem:[%s1 + $0x3d8] sm:$0xff]
    %v156 = vld [vmem:[%s1 + $0x3e0] sm:$0xff]
    %v157 = vld [vmem:[%s1 + $0x3e8] sm:$0xff]
    %v158 = vld [vmem:[%s1 + $0x3f0] sm:$0xff]
    %v159 = vld [vmem:[%s1 + $0x3f8] sm:$0xff]
    %v160 = vld [vmem:[%s1 + $0x400] sm:$0xff]
    %v161 = vld [vmem:[%s1 + $0x408] sm:$0xff]
    %v162 = vld [vmem:[%s1 + $0x410] sm:$0xff]
    %v163 = vld [vmem:[%s1 + $0x418] sm:$0xff]
    %v164 = vld [vmem:[%s1 + $0x420] sm:$0xff]
    %v165 = vld [vmem:[%s1 + $0x428] sm:$0xff]
    %v166 = vld [vmem:[%s1 + $0x430] sm:$0xff]
    %v167 = vld [vmem:[%s1 + $0x438] sm:$0xff]
    %v168 = vld [vmem:[%s1 + $0x440] sm:$0xff]
    %v169 = vld [vmem:[%s1 + $0x448] sm:$0xff]
    %v170 = vld [vmem:[%s1 + $0x450] sm:$0xff]
    %v171 = vld [vmem:[%s1 + $0x458] sm:$0xff]
    %v172 = vld [vmem:[%s1 + $0x460] sm:$0xff]
    %v173 = vld [vmem:[%s1 + $0x468] sm:$0xff]
    %v174 = vld [vmem:[%s1 + $0x470] sm:$0xff]
    %v175 = vld [vmem:[%s1 + $0x478] sm:$0xff]
    %v176 = vld [vmem:[%s1 + $0x480] sm:$0xff]
    %v177 = vld [vmem:[%s1 + $0x488] sm:$0xff]
    %v178 = vld [vmem:[%s1 + $0x490] sm:$0xff]
    %v179 = vld [vmem:[%s1 + $0x498] sm:$0xff]
    %v180 = vld [vmem:[%s1 + $0x4a0] sm:$0xff]
    %v181 = vld [vmem:[%s1 + $0x4a8] sm:$0xff]
    %v182 = vld [vmem:[%s1 + $0x4b0] sm:$0xff]
    %v183 = vld [vmem:[%s1 + $0x4b8] sm:$0xff]
    %v184 = vld [vmem:[%s1 + $0x4c0] sm:$0xff]
    %v185 = vld [vmem:[%s1 + $0x4c8] sm:$0xff]
    %v186 = vld [vmem:[%s1 + $0x4d0] sm:$0xff]
    %v187 = vld [vmem:[%s1 + $0x4d8] sm:$0xff]
    %v188 = vld [vmem:[%s1 + $0x4e0] sm:$0xff]
    %v189 = vld [vmem:[%s1 + $0x4e8] sm:$0xff]
    %v190 = vld [vmem:[%s1 + $0x4f0] sm:$0xff]
    %v191 = vld [vmem:[%s1 + $0x4f8] sm:$0xff]
    %v192 = vld [vmem:[%s1 + $0x500] sm:$0xff]
    %v193 = vld [vmem:[%s1 + $0x508] sm:$0xff]
    %v194 = vld [vmem:[%s1 + $0x510] sm:$0xff]
    %v195 = vld [vmem:[%s1 + $0x518] sm:$0xff]
    %v196 = vld [vmem:[%s1 + $0x520] sm:$0xff]
    %v197 = vld [vmem:[%s1 + $0x528] sm:$0xff]
    %v198 = vld [vmem:[%s1 + $0x530] sm:$0xff]
    %v199 = vld [vmem:[%s1 + $0x538] sm:$0xff]
    %v200 = vld [vmem:[%s1 + $0x540] sm:$0xff]
    %v201 = vld [vmem:[%s1 + $0x548] sm:$0xff]
    %v202 = vld [vmem:[%s1 + $0x550] sm:$0xff]
    %v203 = vld [vmem:[%s1 + $0x558] sm:$0xff]
    %v204 = vld [vmem:[%s1 + $0x560] sm:$0xff]
    %v205 = vld [vmem:[%s1 + $0x568] sm:$0xff]
    %v206 = vld [vmem:[%s1 + $0x570] sm:$0xff]
    %v207 = vld [vmem:[%s1 + $0x578] sm:$0xff]
    %v208 = vld [vmem:[%s1 + $0x580] sm:$0xff]
    %v209 = vld [vmem:[%s1 + $0x588] sm:$0xff]
    %v210 = vld [vmem:[%s1 + $0x590] sm:$0xff]
    %v211 = vld [vmem:[%s1 + $0x598] sm:$0xff]
    %v212 = vld [vmem:[%s1 + $0x5a0] sm:$0xff]
    %v213 = vld [vmem:[%s1 + $0x5a8] sm:$0xff]
    %v214 = vld [vmem:[%s1 + $0x5b0] sm:$0xff]
    %v215 = vld [vmem:[%s1 + $0x5b8] sm:$0xff]
    %v216 = vld [vmem:[%s1 + $0x5c0] sm:$0xff]
    %v217 = vld [vmem:[%s1 + $0x5c8] sm:$0xff]
    %v218 = vld [vmem:[%s1 + $0x5d0] sm:$0xff]
    %v219 = vld [vmem:[%s1 + $0x5d8] sm:$0xff]
    %v220 = vld [vmem:[%s1 + $0x5e0] sm:$0xff]
    %v221 = vld [vmem:[%s1 + $0x5e8] sm:$0xff]
    %v222 = vld [vmem:[%s1 + $0x5f0] sm:$0xff]
    %v223 = vld [vmem:[%s1 + $0x5f8] sm:$0xff]
    %v224 = vld [vmem:[%s1 + $0x600] sm:$0xff]
    %v225 = vld [vmem:[%s1 + $0x608] sm:$0xff]
    %v226 = vld [vmem:[%s1 + $0x610] sm:$0xff]
    %v227 = vld [vmem:[%s1 + $0x618] sm:$0xff]
    %v228 = vld [vmem:[%s1 + $0x620] sm:$0xff]
    %v229 = vld [vmem:[%s1 + $0x628] sm:$0xff]
    %v230 = vld [vmem:[%s1 + $0x630] sm:$0xff]
    %v231 = vld [vmem:[%s1 + $0x638] sm:$0xff]
    %v232 = vld [vmem:[%s1 + $0x640] sm:$0xff]
    %v233 = vld [vmem:[%s1 + $0x648] sm:$0xff]
    %v234 = vld [vmem:[%s1 + $0x650] sm:$0xff]
    %v235 = vld [vmem:[%s1 + $0x658] sm:$0xff]
    %v236 = vld [vmem:[%s1 + $0x660] sm:$0xff]
    %v237 = vld [vmem:[%s1 + $0x668] sm:$0xff]
    %v238 = vld [vmem:[%s1 + $0x670] sm:$0xff]
    %v239 = vld [vmem:[%s1 + $0x678] sm:$0xff]
    %v240 = vld [vmem:[%s1 + $0x680] sm:$0xff]
    %v241 = vld [vmem:[%s1 + $0x688] sm:$0xff]
    %v242 = vld [vmem:[%s1 + $0x690] sm:$0xff]
    %v243 = vld [vmem:[%s1 + $0x698] sm:$0xff]
    %v244 = vld [vmem:[%s1 + $0x6a0] sm:$0xff]
    %v245 = vld [vmem:[%s1 + $0x6a8] sm:$0xff]
    %v246 = vld [vmem:[%s1 + $0x6b0] sm:$0xff]
    %v247 = vld [vmem:[%s1 + $0x6b8] sm:$0xff]
    %v248 = vld [vmem:[%s1 + $0x6c0] sm:$0xff]
    %v249 = vld [vmem:[%s1 + $0x6c8] sm:$0xff]
    %v250 = vld [vmem:[%s1 + $0x6d0] sm:$0xff]
    %v251 = vld [vmem:[%s1 + $0x6d8] sm:$0xff]
    %v252 = vld [vmem:[%s1 + $0x6e0] sm:$0xff]
    %v253 = vld [vmem:[%s1 + $0x6e8] sm:$0xff]
    %v254 = vld [vmem:[%s1 + $0x6f0] sm:$0xff]
    %v255 = vld [vmem:[%s1 + $0x6f8] sm:$0xff]
    %v256 = vld [vmem:[%s1 + $0x700] sm:$0xff]
    %v257 = vld [vmem:[%s1 + $0x708] sm:$0xff]
    %v258 = vld [vmem:[%s1 + $0x710] sm:$0xff]
    %v259 = vld [vmem:[%s1 + $0x718] sm:$0xff]
    %v260 = vld [vmem:[%s1 + $0x720] sm:$0xff]
    %v261 = vld [vmem:[%s1 + $0x728] sm:$0xff]
    %v262 = vld [vmem:[%s1 + $0x730] sm:$0xff]
    %v263 = vld [vmem:[%s1 + $0x738] sm:$0xff]
    %v264 = vld [vmem:[%s1 + $0x740] sm:$0xff]
    %v265 = vld [vmem:[%s1 + $0x748] sm:$0xff]
    %v266 = vld [vmem:[%s1 + $0x750] sm:$0xff]
    %v267 = vld [vmem:[%s1 + $0x758] sm:$0xff]
    %v268 = vld [vmem:[%s1 + $0x760] sm:$0xff]
    %v269 = vld [vmem:[%s1 + $0x768] sm:$0xff]
    %v270 = vld [vmem:[%s1 + $0x770] sm:$0xff]
    %v271 = vld [vmem:[%s1 + $0x778] sm:$0xff]
    %v272 = vld [vmem:[%s1 + $0x780] sm:$0xff]
    %v273 = vld [vmem:[%s1 + $0x788] sm:$0xff]
    %v274 = vld [vmem:[%s1 + $0x790] sm:$0xff]
    %v275 = vld [vmem:[%s1 + $0x798] sm:$0xff]
    %v276 = vld [vmem:[%s1 + $0x7a0] sm:$0xff]
    %v277 = vld [vmem:[%s1 + $0x7a8] sm:$0xff]
    %v278 = vld [vmem:[%s1 + $0x7b0] sm:$0xff]
    %v279 = vld [vmem:[%s1 + $0x7b8] sm:$0xff]
    %v280 = vld [vmem:[%s1 + $0x7c0] sm:$0xff]
    %v281 = vld [vmem:[%s1 + $0x7c8] sm:$0xff]
    %v282 = vld [vmem:[%s1 + $0x7d0] sm:$0xff]
    %v283 = vld [vmem:[%s1 + $0x7d8] sm:$0xff]
    %v284 = vld [vmem:[%s1 + $0x7e0] sm:$0xff]
    %v285 = vld [vmem:[%s1 + $0x7e8] sm:$0xff]
    %v286 = vld [vmem:[%s1 + $0x7f0] sm:$0xff]
    %v287 = vld [vmem:[%s1 + $0x7f8] sm:$0xff]
    %v288 = vld [vmem:[%s1 + $0x800] sm:$0xff]
    %v289 = vld [vmem:[%s1 + $0x808] sm:$0xff]
    %v290 = vld [vmem:[%s1 + $0x810] sm:$0xff]
    %v291 = vld [vmem:[%s1 + $0x818] sm:$0xff]
    %v292 = vld [vmem:[%s1 + $0x820] sm:$0xff]
    %v293 = vld [vmem:[%s1 + $0x828] sm:$0xff]
    %v294 = vld [vmem:[%s1 + $0x830] sm:$0xff]
    %v295 = vld [vmem:[%s1 + $0x838] sm:$0xff]
    %v296 = vld [vmem:[%s1 + $0x840] sm:$0xff]
    %v297 = vld [vmem:[%s1 + $0x848] sm:$0xff]
    %v298 = vld [vmem:[%s1 + $0x850] sm:$0xff]
    %v299 = vld [vmem:[%s1 + $0x858] sm:$0xff]
    %v300 = vld [vmem:[%s1 + $0x860] sm:$0xff]
    %v301 = vld [vmem:[%s1 + $0x868] sm:$0xff]
    %v302 = vld [vmem:[%s1 + $0x870] sm:$0xff]
    %v303 = vld [vmem:[%s1 + $0x878] sm:$0xff]
    %v304 = vld [vmem:[%s1 + $0x880] sm:$0xff]
    %v305 = vld [vmem:[%s1 + $0x888] sm:$0xff]
    %v306 = vld [vmem:[%s1 + $0x890] sm:$0xff]
    %v307 = vld [vmem:[%s1 + $0x898] sm:$0xff]
    %v308 = vld [vmem:[%s1 + $0x8a0] sm:$0xff]
    %v309 = vld [vmem:[%s1 + $0x8a8] sm:$0xff]
    %v310 = vld [vmem:[%s1 + $0x8b0] sm:$0xff]
    %v311 = vld [vmem:[%s1 + $0x8b8] sm:$0xff]
    %v312 = vld [vmem:[%s1 + $0x8c0] sm:$0xff]
    %v313 = vld [vmem:[%s1 + $0x8c8] sm:$0xff]
    %v314 = vld [vmem:[%s1 + $0x8d0] sm:$0xff]
    %v315 = vld [vmem:[%s1 + $0x8d8] sm:$0xff]
    %v316 = vld [vmem:[%s1 + $0x8e0] sm:$0xff]
    %v317 = vld [vmem:[%s1 + $0x8e8] sm:$0xff]
    %v318 = vld [vmem:[%s1 + $0x8f0] sm:$0xff]
    %v319 = vld [vmem:[%s1 + $0x8f8] sm:$0xff]
    %v320 = vld [vmem:[%s1 + $0x900] sm:$0xff]
    %v321 = vld [vmem:[%s1 + $0x908] sm:$0xff]
    %v322 = vld [vmem:[%s1 + $0x910] sm:$0xff]
    %v323 = vld [vmem:[%s1 + $0x918] sm:$0xff]
    %v324 = vld [vmem:[%s1 + $0x920] sm:$0xff]
    %v325 = vld [vmem:[%s1 + $0x928] sm:$0xff]
    %v326 = vld [vmem:[%s1 + $0x930] sm:$0xff]
    %v327 = vld [vmem:[%s1 + $0x938] sm:$0xff]
    %v328 = vld [vmem:[%s1 + $0x940] sm:$0xff]
    %v329 = vld [vmem:[%s1 + $0x948] sm:$0xff]
    %v330 = vld [vmem:[%s1 + $0x950] sm:$0xff]
    %v331 = vld [vmem:[%s1 + $0x958] sm:$0xff]
    %v332 = vld [vmem:[%s1 + $0x960] sm:$0xff]
    %v333 = vld [vmem:[%s1 + $0x968] sm:$0xff]
    %v334 = vld [vmem:[%s1 + $0x970] sm:$0xff]
    %v335 = vld [vmem:[%s1 + $0x978] sm:$0xff]
    %v336 = vld [vmem:[%s1 + $0x980] sm:$0xff]
    %v337 = vld [vmem:[%s1 + $0x988] sm:$0xff]
    %v338 = vld [vmem:[%s1 + $0x990] sm:$0xff]
    %v339 = vld [vmem:[%s1 + $0x998] sm:$0xff]
    %v340 = vld [vmem:[%s1 + $0x9a0] sm:$0xff]
    %v341 = vld [vmem:[%s1 + $0x9a8] sm:$0xff]
    %v342 = vld [vmem:[%s1 + $0x9b0] sm:$0xff]
    %v343 = vld [vmem:[%s1 + $0x9b8] sm:$0xff]
    %v344 = vld [vmem:[%s1 + $0x9c0] sm:$0xff]
    %v345 = vld [vmem:[%s1 + $0x9c8] sm:$0xff]
    %v346 = vld [vmem:[%s1 + $0x9d0] sm:$0xff]
    %v347 = vld [vmem:[%s1 + $0x9d8] sm:$0xff]
    %v348 = vld [vmem:[%s1 + $0x9e0] sm:$0xff]
    %v349 = vld [vmem:[%s1 + $0x9e8] sm:$0xff]
    %v350 = vld [vmem:[%s1 + $0x9f0] sm:$0xff]
    %v351 = vld [vmem:[%s1 + $0x9f8] sm:$0xff]
    %v352 = vld [vmem:[%s1 + $0xa00] sm:$0xff]
    %v353 = vld [vmem:[%s1 + $0xa08] sm:$0xff]
    %v354 = vld [vmem:[%s1 + $0xa10] sm:$0xff]
    %v355 = vld [vmem:[%s1 + $0xa18] sm:$0xff]
    %v356 = vld [vmem:[%s1 + $0xa20] sm:$0xff]
    %v357 = vld [vmem:[%s1 + $0xa28] sm:$0xff]
    %v358 = vld [vmem:[%s1 + $0xa30] sm:$0xff]
    %v359 = vld [vmem:[%s1 + $0xa38] sm:$0xff]
    %v360 = vld [vmem:[%s1 + $0xa40] sm:$0xff]
    %v361 = vld [vmem:[%s1 + $0xa48] sm:$0xff]
    %v362 = vld [vmem:[%s1 + $0xa50] sm:$0xff]
    %v363 = vld [vmem:[%s1 + $0xa58] sm:$0xff]
    %v364 = vld [vmem:[%s1 + $0xa60] sm:$0xff]
    %v365 = vld [vmem:[%s1 + $0xa68] sm:$0xff]
    %v366 = vld [vmem:[%s1 + $0xa70] sm:$0xff]
    %v367 = vld [vmem:[%s1 + $0xa78] sm:$0xff]
    %v368 = vld [vmem:[%s1 + $0xa80] sm:$0xff]
    %v369 = vld [vmem:[%s1 + $0xa88] sm:$0xff]
    %v370 = vld [vmem:[%s1 + $0xa90] sm:$0xff]
    %v371 = vld [vmem:[%s1 + $0xa98] sm:$0xff]
    %v372 = vld [vmem:[%s1 + $0xaa0] sm:$0xff]
    %v373 = vld [vmem:[%s1 + $0xaa8] sm:$0xff]
    %v374 = vld [vmem:[%s1 + $0xab0] sm:$0xff]
    %v375 = vld [vmem:[%s1 + $0xab8] sm:$0xff]
    %v376 = vld [vmem:[%s1 + $0xac0] sm:$0xff]
    %v377 = vld [vmem:[%s1 + $0xac8] sm:$0xff]
    %v378 = vld [vmem:[%s1 + $0xad0] sm:$0xff]
    %v379 = vld [vmem:[%s1 + $0xad8] sm:$0xff]
    %v380 = vld [vmem:[%s1 + $0xae0] sm:$0xff]
    %v381 = vld [vmem:[%s1 + $0xae8] sm:$0xff]
    %v382 = vld [vmem:[%s1 + $0xaf0] sm:$0xff]
    %v383 = vld [vmem:[%s1 + $0xaf8] sm:$0xff]
    %v384 = vld [vmem:[%s1 + $0xb00] sm:$0xff]
    %v385 = vld [vmem:[%s1 + $0xb08] sm:$0xff]
    %v386 = vld [vmem:[%s1 + $0xb10] sm:$0xff]
    %v387 = vld [vmem:[%s1 + $0xb18] sm:$0xff]
    %v388 = vld [vmem:[%s1 + $0xb20] sm:$0xff]
    %v389 = vld [vmem:[%s1 + $0xb28] sm:$0xff]
    %v390 = vld [vmem:[%s1 + $0xb30] sm:$0xff]
    %v391 = vld [vmem:[%s1 + $0xb38] sm:$0xff]
    %v392 = vld [vmem:[%s1 + $0xb40] sm:$0xff]
    %v393 = vld [vmem:[%s1 + $0xb48] sm:$0xff]
    %v394 = vld [vmem:[%s1 + $0xb50] sm:$0xff]
    %v395 = vld [vmem:[%s1 + $0xb58] sm:$0xff]
    %v396 = vld [vmem:[%s1 + $0xb60] sm:$0xff]
    %v397 = vld [vmem:[%s1 + $0xb68] sm:$0xff]
    %v398 = vld [vmem:[%s1 + $0xb70] sm:$0xff]
    %v399 = vld [vmem:[%s1 + $0xb78] sm:$0xff]
    %v400 = vld [vmem:[%s1 + $0xb80] sm:$0xff]
    %v401 = vld [vmem:[%s1 + $0xb88] sm:$0xff]
    %v402 = vld [vmem:[%s1 + $0xb90] sm:$0xff]
    %v403 = vld [vmem:[%s1 + $0xb98] sm:$0xff]
    %v404 = vld [vmem:[%s1 + $0xba0] sm:$0xff]
    %v405 = vld [vmem:[%s1 + $0xba8] sm:$0xff]
    %v406 = vld [vmem:[%s1 + $0xbb0] sm:$0xff]
    %v407 = vld [vmem:[%s1 + $0xbb8] sm:$0xff]
    %v408 = vld [vmem:[%s1 + $0xbc0] sm:$0xff]
    %v409 = vld [vmem:[%s1 + $0xbc8] sm:$0xff]
    %v410 = vld [vmem:[%s1 + $0xbd0] sm:$0xff]
    %v411 = vld [vmem:[%s1 + $0xbd8] sm:$0xff]
    %v412 = vld [vmem:[%s1 + $0xbe0] sm:$0xff]
    %v413 = vld [vmem:[%s1 + $0xbe8] sm:$0xff]
    %v414 = vld [vmem:[%s1 + $0xbf0] sm:$0xff]
    %v415 = vld [vmem:[%s1 + $0xbf8] sm:$0xff]
    %v416 = vld [vmem:[%s1 + $0xc00] sm:$0xff]
    %v417 = vld [vmem:[%s1 + $0xc08] sm:$0xff]
    %v418 = vld [vmem:[%s1 + $0xc10] sm:$0xff]
    %v419 = vld [vmem:[%s1 + $0xc18] sm:$0xff]
    %v420 = vld [vmem:[%s1 + $0xc20] sm:$0xff]
    %v421 = vld [vmem:[%s1 + $0xc28] sm:$0xff]
    %v422 = vld [vmem:[%s1 + $0xc30] sm:$0xff]
    %v423 = vld [vmem:[%s1 + $0xc38] sm:$0xff]
    %v424 = vld [vmem:[%s1 + $0xc40] sm:$0xff]
    %v425 = vld [vmem:[%s1 + $0xc48] sm:$0xff]
    %v426 = vld [vmem:[%s1 + $0xc50] sm:$0xff]
    %v427 = vld [vmem:[%s1 + $0xc58] sm:$0xff]
    %v428 = vld [vmem:[%s1 + $0xc60] sm:$0xff]
    %v429 = vld [vmem:[%s1 + $0xc68] sm:$0xff]
    %v430 = vld [vmem:[%s1 + $0xc70] sm:$0xff]
    %v431 = vld [vmem:[%s1 + $0xc78] sm:$0xff]
    %v432 = vld [vmem:[%s1 + $0xc80] sm:$0xff]
    %v433 = vld [vmem:[%s1 + $0xc88] sm:$0xff]
    %v434 = vld [vmem:[%s1 + $0xc90] sm:$0xff]
    %v435 = vld [vmem:[%s1 + $0xc98] sm:$0xff]
    %v436 = vld [vmem:[%s1 + $0xca0] sm:$0xff]
    %v437 = vld [vmem:[%s1 + $0xca8] sm:$0xff]
    %v438 = vld [vmem:[%s1 + $0xcb0] sm:$0xff]
    %v439 = vld [vmem:[%s1 + $0xcb8] sm:$0xff]
    %v440 = vld [vmem:[%s1 + $0xcc0] sm:$0xff]
    %v441 = vld [vmem:[%s1 + $0xcc8] sm:$0xff]
    %v442 = vld [vmem:[%s1 + $0xcd0] sm:$0xff]
    %v443 = vld [vmem:[%s1 + $0xcd8] sm:$0xff]
    %v444 = vld [vmem:[%s1 + $0xce0] sm:$0xff]
    %v445 = vld [vmem:[%s1 + $0xce8] sm:$0xff]
    %v446 = vld [vmem:[%s1 + $0xcf0] sm:$0xff]
    %v447 = vld [vmem:[%s1 + $0xcf8] sm:$0xff]
    %v448 = vld [vmem:[%s1 + $0xd00] sm:$0xff]
    %v449 = vld [vmem:[%s1 + $0xd08] sm:$0xff]
    %v450 = vld [vmem:[%s1 + $0xd10] sm:$0xff]
    %v451 = vld [vmem:[%s1 + $0xd18] sm:$0xff]
    %v452 = vld [vmem:[%s1 + $0xd20] sm:$0xff]
    %v453 = vld [vmem:[%s1 + $0xd28] sm:$0xff]
    %v454 = vld [vmem:[%s1 + $0xd30] sm:$0xff]
    %v455 = vld [vmem:[%s1 + $0xd38] sm:$0xff]
    %v456 = vld [vmem:[%s1 + $0xd40] sm:$0xff]
    %v457 = vld [vmem:[%s1 + $0xd48] sm:$0xff]
    %v458 = vld [vmem:[%s1 + $0xd50] sm:$0xff]
    %v459 = vld [vmem:[%s1 + $0xd58] sm:$0xff]
    %v460 = vld [vmem:[%s1 + $0xd60] sm:$0xff]
    %v461 = vld [vmem:[%s1 + $0xd68] sm:$0xff]
    %v462 = vld [vmem:[%s1 + $0xd70] sm:$0xff]
    %v463 = vld [vmem:[%s1 + $0xd78] sm:$0xff]
    %v464 = vld [vmem:[%s1 + $0xd80] sm:$0xff]
    %v465 = vld [vmem:[%s1 + $0xd88] sm:$0xff]
    %v466 = vld [vmem:[%s1 + $0xd90] sm:$0xff]
    %v467 = vld [vmem:[%s1 + $0xd98] sm:$0xff]
    %v468 = vld [vmem:[%s1 + $0xda0] sm:$0xff]
    %v469 = vld [vmem:[%s1 + $0xda8] sm:$0xff]
    %v470 = vld [vmem:[%s1 + $0xdb0] sm:$0xff]
    %v471 = vld [vmem:[%s1 + $0xdb8] sm:$0xff]
    %v472 = vld [vmem:[%s1 + $0xdc0] sm:$0xff]
    %v473 = vld [vmem:[%s1 + $0xdc8] sm:$0xff]
    %v474 = vld [vmem:[%s1 + $0xdd0] sm:$0xff]
    %v475 = vld [vmem:[%s1 + $0xdd8] sm:$0xff]
    %v476 = vld [vmem:[%s1 + $0xde0] sm:$0xff]
    %v477 = vld [vmem:[%s1 + $0xde8] sm:$0xff]
    %v478 = vld [vmem:[%s1 + $0xdf0] sm:$0xff]
    %v479 = vld [vmem:[%s1 + $0xdf8] sm:$0xff]
    %v480 = vld [vmem:[%s1 + $0xe00] sm:$0xff]
    %v481 = vld [vmem:[%s1 + $0xe08] sm:$0xff]
    %v482 = vld [vmem:[%s1 + $0xe10] sm:$0xff]
    %v483 = vld [vmem:[%s1 + $0xe18] sm:$0xff]
    %v484 = vld [vmem:[%s1 + $0xe20] sm:$0xff]
    %v485 = vld [vmem:[%s1 + $0xe28] sm:$0xff]
    %v486 = vld [vmem:[%s1 + $0xe30] sm:$0xff]
    %v487 = vld [vmem:[%s1 + $0xe38] sm:$0xff]
    %v488 = vld [vmem:[%s1 + $0xe40] sm:$0xff]
    %v489 = vld [vmem:[%s1 + $0xe48] sm:$0xff]
    %v490 = vld [vmem:[%s1 + $0xe50] sm:$0xff]
    %v491 = vld [vmem:[%s1 + $0xe58] sm:$0xff]
    %v492 = vld [vmem:[%s1 + $0xe60] sm:$0xff]
    %v493 = vld [vmem:[%s1 + $0xe68] sm:$0xff]
    %v494 = vld [vmem:[%s1 + $0xe70] sm:$0xff]
    %v495 = vld [vmem:[%s1 + $0xe78] sm:$0xff]
    %v496 = vld [vmem:[%s1 + $0xe80] sm:$0xff]
    %v497 = vld [vmem:[%s1 + $0xe88] sm:$0xff]
    %v498 = vld [vmem:[%s1 + $0xe90] sm:$0xff]
    %v499 = vld [vmem:[%s1 + $0xe98] sm:$0xff]
    %v500 = vld [vmem:[%s1 + $0xea0] sm:$0xff]
    %v501 = vld [vmem:[%s1 + $0xea8] sm:$0xff]
    %v502 = vld [vmem:[%s1 + $0xeb0] sm:$0xff]
    %v503 = vld [vmem:[%s1 + $0xeb8] sm:$0xff]
    %v504 = vld [vmem:[%s1 + $0xec0] sm:$0xff]
    %v505 = vld [vmem:[%s1 + $0xec8] sm:$0xff]
    %v506 = vld [vmem:[%s1 + $0xed0] sm:$0xff]
    %v507 = vld [vmem:[%s1 + $0xed8] sm:$0xff]
    %v508 = vld [vmem:[%s1 + $0xee0] sm:$0xff]
    %v509 = vld [vmem:[%s1 + $0xee8] sm:$0xff]
    %v510 = vld [vmem:[%s1 + $0xef0] sm:$0xff]
    %v511 = vld [vmem:[%s1 + $0xef8] sm:$0xff]
    %v512 = vld [vmem:[%s1 + $0xf00] sm:$0xff]
    %v513 = vld [vmem:[%s1 + $0xf08] sm:$0xff]
    %v514 = vld [vmem:[%s1 + $0xf10] sm:$0xff]
    %v515 = vld [vmem:[%s1 + $0xf18] sm:$0xff]
    %v516 = vld [vmem:[%s1 + $0xf20] sm:$0xff]
    %v517 = vld [vmem:[%s1 + $0xf28] sm:$0xff]
    %v518 = vld [vmem:[%s1 + $0xf30] sm:$0xff]
    %v519 = vld [vmem:[%s1 + $0xf38] sm:$0xff]
    %v520 = vld [vmem:[%s1 + $0xf40] sm:$0xff]
    %v521 = vld [vmem:[%s1 + $0xf48] sm:$0xff]
    %v522 = vld [vmem:[%s2] sm:$0x3]
    %v524 = vlaneseq
    %v525 = vshrl.u32 %v524, 7
    %v526 = vsub.s32 0, %v525
    %v527 = vrot.slane %v522, %v526
    %v528 = vlaneseq
    %v529 = vshrl.u32 %v528, 7
    %v530 = vsub.s32 1, %v529
    %v531 = vrot.slane %v522, %v530
    %v538 = vcombine.high %v28, %v28
    %v540 = vunpack.c.l.s4 1966171168
    %v541 = vunpack.c.0.s8 %v540
    %v542 = vlaneseq
    %v543 = vshrl.u32 %v542, 7
    %v544 = vsub.s32 %v541, %v543
    %v545 = vrot.slane %v28, %v544
    %v547 = vunpack.c.l.s4 1966171168
    %v548 = vunpack.c.0.s8 %v547
    %v549 = vlaneseq
    %v550 = vshrl.u32 %v549, 7
    %v551 = vsub.s32 %v548, %v550
    %v552 = vrot.slane %v538, %v551
    %v553 = vcombine.high %v545, %v545
    %v554 = vcombine.high %v552, %v552
    %v556 = vunpack.c.l.s4 1966171168
    %v557 = vunpack.c.0.s8 %v556
    %v558 = vlaneseq
    %v559 = vshrl.u32 %v558, 7
    %v560 = vsub.s32 %v557, %v559
    %v561 = vrot.slane %v545, %v560
    %v563 = vunpack.c.l.s4 1966171168
    %v564 = vunpack.c.0.s8 %v563
    %v565 = vlaneseq
    %v566 = vshrl.u32 %v565, 7
    %v567 = vsub.s32 %v564, %v566
    %v568 = vrot.slane %v552, %v567
    %v570 = vunpack.c.l.s4 1966171168
    %v571 = vunpack.c.0.s8 %v570
    %v572 = vlaneseq
    %v573 = vshrl.u32 %v572, 7
    %v574 = vsub.s32 %v571, %v573
    %v575 = vrot.slane %v553, %v574
    %v577 = vunpack.c.l.s4 1966171168
    %v578 = vunpack.c.0.s8 %v577
    %v579 = vlaneseq
    %v580 = vshrl.u32 %v579, 7
    %v581 = vsub.s32 %v578, %v580
    %v582 = vrot.slane %v554, %v581
    %v583 = vcombine.high %v561, %v561
    %v584 = vcombine.high %v568, %v568
    %v585 = vcombine.high %v575, %v575
    %v586 = vcombine.high %v582, %v582
    %v587 = vcombine.high %v29, %v29
    %v589 = vunpack.c.l.s4 1966171168
    %v590 = vunpack.c.0.s8 %v589
    %v591 = vlaneseq
    %v592 = vshrl.u32 %v591, 7
    %v593 = vsub.s32 %v590, %v592
    %v594 = vrot.slane %v29, %v593
    %v596 = vunpack.c.l.s4 1966171168
    %v597 = vunpack.c.0.s8 %v596
    %v598 = vlaneseq
    %v599 = vshrl.u32 %v598, 7
    %v600 = vsub.s32 %v597, %v599
    %v601 = vrot.slane %v587, %v600
    %v602 = vcombine.high %v594, %v594
    %v603 = vcombine.high %v601, %v601
    %v605 = vunpack.c.l.s4 1966171168
    %v606 = vunpack.c.0.s8 %v605
    %v607 = vlaneseq
    %v608 = vshrl.u32 %v607, 7
    %v609 = vsub.s32 %v606, %v608
    %v610 = vrot.slane %v594, %v609
    %v612 = vunpack.c.l.s4 1966171168
    %v613 = vunpack.c.0.s8 %v612
    %v614 = vlaneseq
    %v615 = vshrl.u32 %v614, 7
    %v616 = vsub.s32 %v613, %v615
    %v617 = vrot.slane %v601, %v616
    %v619 = vunpack.c.l.s4 1966171168
    %v620 = vunpack.c.0.s8 %v619
    %v621 = vlaneseq
    %v622 = vshrl.u32 %v621, 7
    %v623 = vsub.s32 %v620, %v622
    %v624 = vrot.slane %v602, %v623
    %v626 = vunpack.c.l.s4 1966171168
    %v627 = vunpack.c.0.s8 %v626
    %v628 = vlaneseq
    %v629 = vshrl.u32 %v628, 7
    %v630 = vsub.s32 %v627, %v629
    %v631 = vrot.slane %v603, %v630
    %v632 = vcombine.high %v610, %v610
    %v633 = vcombine.high %v617, %v617
    %v634 = vcombine.high %v624, %v624
    %v635 = vcombine.high %v631, %v631
    %v636 = vcombine.high %v30, %v30
    %v638 = vunpack.c.l.s4 1966171168
    %v639 = vunpack.c.0.s8 %v638
    %v640 = vlaneseq
    %v641 = vshrl.u32 %v640, 7
    %v642 = vsub.s32 %v639, %v641
    %v643 = vrot.slane %v30, %v642
    %v645 = vunpack.c.l.s4 1966171168
    %v646 = vunpack.c.0.s8 %v645
    %v647 = vlaneseq
    %v648 = vshrl.u32 %v647, 7
    %v649 = vsub.s32 %v646, %v648
    %v650 = vrot.slane %v636, %v649
    %v651 = vcombine.high %v643, %v643
    %v652 = vcombine.high %v650, %v650
    %v654 = vunpack.c.l.s4 1966171168
    %v655 = vunpack.c.0.s8 %v654
    %v656 = vlaneseq
    %v657 = vshrl.u32 %v656, 7
    %v658 = vsub.s32 %v655, %v657
    %v659 = vrot.slane %v643, %v658
    %v661 = vunpack.c.l.s4 1966171168
    %v662 = vunpack.c.0.s8 %v661
    %v663 = vlaneseq
    %v664 = vshrl.u32 %v663, 7
    %v665 = vsub.s32 %v662, %v664
    %v666 = vrot.slane %v650, %v665
    %v668 = vunpack.c.l.s4 1966171168
    %v669 = vunpack.c.0.s8 %v668
    %v670 = vlaneseq
    %v671 = vshrl.u32 %v670, 7
    %v672 = vsub.s32 %v669, %v671
    %v673 = vrot.slane %v651, %v672
    %v675 = vunpack.c.l.s4 1966171168
    %v676 = vunpack.c.0.s8 %v675
    %v677 = vlaneseq
    %v678 = vshrl.u32 %v677, 7
    %v679 = vsub.s32 %v676, %v678
    %v680 = vrot.slane %v652, %v679
    %v681 = vcombine.high %v659, %v659
    %v682 = vcombine.high %v666, %v666
    %v683 = vcombine.high %v673, %v673
    %v684 = vcombine.high %v680, %v680
    %v685 = vcombine.high %v31, %v31
    %v687 = vunpack.c.l.s4 1966171168
    %v688 = vunpack.c.0.s8 %v687
    %v689 = vlaneseq
    %v690 = vshrl.u32 %v689, 7
    %v691 = vsub.s32 %v688, %v690
    %v692 = vrot.slane %v31, %v691
    %v694 = vunpack.c.l.s4 1966171168
    %v695 = vunpack.c.0.s8 %v694
    %v696 = vlaneseq
    %v697 = vshrl.u32 %v696, 7
    %v698 = vsub.s32 %v695, %v697
    %v699 = vrot.slane %v685, %v698
    %v700 = vcombine.high %v692, %v692
    %v701 = vcombine.high %v699, %v699
    %v703 = vunpack.c.l.s4 1966171168
    %v704 = vunpack.c.0.s8 %v703
    %v705 = vlaneseq
    %v706 = vshrl.u32 %v705, 7
    %v707 = vsub.s32 %v704, %v706
    %v708 = vrot.slane %v692, %v707
    %v710 = vunpack.c.l.s4 1966171168
    %v711 = vunpack.c.0.s8 %v710
    %v712 = vlaneseq
    %v713 = vshrl.u32 %v712, 7
    %v714 = vsub.s32 %v711, %v713
    %v715 = vrot.slane %v699, %v714
    %v717 = vunpack.c.l.s4 1966171168
    %v718 = vunpack.c.0.s8 %v717
    %v719 = vlaneseq
    %v720 = vshrl.u32 %v719, 7
    %v721 = vsub.s32 %v718, %v720
    %v722 = vrot.slane %v700, %v721
    %v724 = vunpack.c.l.s4 1966171168
    %v725 = vunpack.c.0.s8 %v724
    %v726 = vlaneseq
    %v727 = vshrl.u32 %v726, 7
    %v728 = vsub.s32 %v725, %v727
    %v729 = vrot.slane %v701, %v728
    %v730 = vcombine.high %v708, %v708
    %v731 = vcombine.high %v715, %v715
    %v732 = vcombine.high %v722, %v722
    %v1253 = vunpack.c.l.b16 %v32
    %v1254 = vunpack.c.h.b16 %v32
    %v1255 = vunpack.c.l.b16 %v33
    %v1256 = vunpack.c.h.b16 %v33
    %v1257 = vunpack.c.l.b16 %v34
    %v1258 = vunpack.c.h.b16 %v34
    %v1259 = vunpack.c.l.b16 %v35
    %v1260 = vunpack.c.h.b16 %v35
    %v1261 = vunpack.c.l.b16 %v36
    %v1262 = vunpack.c.h.b16 %v36
    %v1263 = vunpack.c.l.b16 %v37
    %v1264 = vunpack.c.h.b16 %v37
    %v1265 = vunpack.c.l.b16 %v38
    %v1266 = vunpack.c.h.b16 %v38
    %v1267 = vunpack.c.l.b16 %v39
    %v1268 = vunpack.c.h.b16 %v39
    %v1269 = vunpack.c.l.b16 %v40
    %v1270 = vunpack.c.h.b16 %v40
    %v1271 = vunpack.c.l.b16 %v41
    %v1272 = vunpack.c.h.b16 %v41
    %v1273 = vunpack.c.l.b16 %v42
    %v1274 = vunpack.c.h.b16 %v42
    %v1275 = vunpack.c.l.b16 %v43
    %v1276 = vunpack.c.h.b16 %v43
    %v1277 = vunpack.c.l.b16 %v44
    %v1278 = vunpack.c.h.b16 %v44
    %v1279 = vunpack.c.l.b16 %v45
    %v1280 = vunpack.c.h.b16 %v45
    %v1281 = vunpack.c.l.b16 %v46
    %v1282 = vunpack.c.h.b16 %v46
    %v1283 = vunpack.c.l.b16 %v47
    %v1284 = vunpack.c.h.b16 %v47
    %v1285 = vunpack.c.l.b16 %v48
    %v1286 = vunpack.c.h.b16 %v48
    %v1287 = vunpack.c.l.b16 %v49
    %v1288 = vunpack.c.h.b16 %v49
    %v1289 = vunpack.c.l.b16 %v50
    %v1290 = vunpack.c.h.b16 %v50
    %v1291 = vunpack.c.l.b16 %v51
    %v1292 = vunpack.c.h.b16 %v51
    %v1293 = vunpack.c.l.b16 %v52
    %v1294 = vunpack.c.h.b16 %v52
    %v1295 = vunpack.c.l.b16 %v53
    %v1296 = vunpack.c.h.b16 %v53
    %v1297 = vunpack.c.l.b16 %v54
    %v1298 = vunpack.c.h.b16 %v54
    %v1299 = vunpack.c.l.b16 %v55
    %v1300 = vunpack.c.h.b16 %v55
    %v1301 = vunpack.c.l.b16 %v56
    %v1302 = vunpack.c.h.b16 %v56
    %v1303 = vunpack.c.l.b16 %v57
    %v1304 = vunpack.c.h.b16 %v57
    %v1305 = vunpack.c.l.b16 %v58
    %v1306 = vunpack.c.h.b16 %v58
    %v1307 = vunpack.c.l.b16 %v59
    %v1308 = vunpack.c.h.b16 %v59
    %v1309 = vunpack.c.l.b16 %v60
    %v1310 = vunpack.c.h.b16 %v60
    %v1311 = vunpack.c.l.b16 %v61
    %v1312 = vunpack.c.h.b16 %v61
    %v1313 = vunpack.c.l.b16 %v62
    %v1314 = vunpack.c.h.b16 %v62
    %v1315 = vunpack.c.l.b16 %v63
    %v1316 = vunpack.c.h.b16 %v63
    %v1317 = vunpack.c.l.b16 %v64
    %v1318 = vunpack.c.h.b16 %v64
    %v1319 = vunpack.c.l.b16 %v65
    %v1320 = vunpack.c.h.b16 %v65
    %v1321 = vunpack.c.l.b16 %v66
    %v1322 = vunpack.c.h.b16 %v66
    %v1323 = vunpack.c.l.b16 %v67
    %v1324 = vunpack.c.h.b16 %v67
    %v1325 = vunpack.c.l.b16 %v68
    %v1326 = vunpack.c.h.b16 %v68
    %v1327 = vunpack.c.l.b16 %v69
    %v1328 = vunpack.c.h.b16 %v69
    %v1329 = vunpack.c.l.b16 %v70
    %v1330 = vunpack.c.h.b16 %v70
    %v1331 = vunpack.c.l.b16 %v71
    %v1332 = vunpack.c.h.b16 %v71
    %v1333 = vunpack.c.l.b16 %v72
    %v1334 = vunpack.c.h.b16 %v72
    %v1335 = vunpack.c.l.b16 %v73
    %v1336 = vunpack.c.h.b16 %v73
    %v1337 = vunpack.c.l.b16 %v74
    %v1338 = vunpack.c.h.b16 %v74
    %v1339 = vunpack.c.l.b16 %v75
    %v1340 = vunpack.c.h.b16 %v75
    %v1341 = vunpack.c.l.b16 %v76
    %v1342 = vunpack.c.h.b16 %v76
    %v1343 = vunpack.c.l.b16 %v77
    %v1344 = vunpack.c.h.b16 %v77
    %v1345 = vunpack.c.l.b16 %v78
    %v1346 = vunpack.c.h.b16 %v78
    %v1347 = vunpack.c.l.b16 %v79
    %v1348 = vunpack.c.h.b16 %v79
    %v1349 = vunpack.c.l.b16 %v80
    %v1350 = vunpack.c.h.b16 %v80
    %v1351 = vunpack.c.l.b16 %v81
    %v1352 = vunpack.c.h.b16 %v81
    %v1353 = vunpack.c.l.b16 %v82
    %v1354 = vunpack.c.h.b16 %v82
    %v1355 = vunpack.c.l.b16 %v83
    %v1356 = vunpack.c.h.b16 %v83
    %v1357 = vunpack.c.l.b16 %v84
    %v1358 = vunpack.c.h.b16 %v84
    %v1359 = vunpack.c.l.b16 %v85
    %v1360 = vunpack.c.h.b16 %v85
    %v1361 = vunpack.c.l.b16 %v86
    %v1362 = vunpack.c.h.b16 %v86
    %v1363 = vunpack.c.l.b16 %v87
    %v1364 = vunpack.c.h.b16 %v87
    %v1365 = vunpack.c.l.b16 %v88
    %v1366 = vunpack.c.h.b16 %v88
    %v1367 = vunpack.c.l.b16 %v89
    %v1368 = vunpack.c.h.b16 %v89
    %v1369 = vunpack.c.l.b16 %v90
    %v1370 = vunpack.c.h.b16 %v90
    %v1371 = vunpack.c.l.b16 %v91
    %v1372 = vunpack.c.h.b16 %v91
    %v1373 = vunpack.c.l.b16 %v92
    %v1374 = vunpack.c.h.b16 %v92
    %v1375 = vunpack.c.l.b16 %v93
    %v1376 = vunpack.c.h.b16 %v93
    %v1377 = vunpack.c.l.b16 %v94
    %v1378 = vunpack.c.h.b16 %v94
    %v1379 = vunpack.c.l.b16 %v95
    %v1380 = vunpack.c.h.b16 %v95
    %v1381 = vunpack.c.l.b16 %v96
    %v1382 = vunpack.c.h.b16 %v96
    %v1383 = vunpack.c.l.b16 %v97
    %v1384 = vunpack.c.h.b16 %v97
    %v1385 = vunpack.c.l.b16 %v98
    %v1386 = vunpack.c.h.b16 %v98
    %v1387 = vunpack.c.l.b16 %v99
    %v1388 = vunpack.c.h.b16 %v99
    %v1389 = vunpack.c.l.b16 %v100
    %v1390 = vunpack.c.h.b16 %v100
    %v1391 = vunpack.c.l.b16 %v101
    %v1392 = vunpack.c.h.b16 %v101
    %v1393 = vunpack.c.l.b16 %v102
    %v1394 = vunpack.c.h.b16 %v102
    %v1395 = vunpack.c.l.b16 %v103
    %v1396 = vunpack.c.h.b16 %v103
    %v1397 = vunpack.c.l.b16 %v104
    %v1398 = vunpack.c.h.b16 %v104
    %v1399 = vunpack.c.l.b16 %v105
    %v1400 = vunpack.c.h.b16 %v105
    %v1401 = vunpack.c.l.b16 %v106
    %v1402 = vunpack.c.h.b16 %v106
    %v1403 = vunpack.c.l.b16 %v107
    %v1404 = vunpack.c.h.b16 %v107
    %v1405 = vunpack.c.l.b16 %v108
    %v1406 = vunpack.c.h.b16 %v108
    %v1407 = vunpack.c.l.b16 %v109
    %v1408 = vunpack.c.h.b16 %v109
    %v1409 = vunpack.c.l.b16 %v110
    %v1410 = vunpack.c.h.b16 %v110
    %v1411 = vunpack.c.l.b16 %v111
    %v1412 = vunpack.c.h.b16 %v111
    %v1413 = vunpack.c.l.b16 %v112
    %v1414 = vunpack.c.h.b16 %v112
    %v1415 = vunpack.c.l.b16 %v113
    %v1416 = vunpack.c.h.b16 %v113
    %v1417 = vunpack.c.l.b16 %v114
    %v1418 = vunpack.c.h.b16 %v114
    %v1419 = vunpack.c.l.b16 %v115
    %v1420 = vunpack.c.h.b16 %v115
    %v1421 = vunpack.c.l.b16 %v116
    %v1422 = vunpack.c.h.b16 %v116
    %v1423 = vunpack.c.l.b16 %v117
    %v1424 = vunpack.c.h.b16 %v117
    %v1425 = vunpack.c.l.b16 %v118
    %v1426 = vunpack.c.h.b16 %v118
    %v1427 = vunpack.c.l.b16 %v119
    %v1428 = vunpack.c.h.b16 %v119
    %v1429 = vunpack.c.l.b16 %v120
    %v1430 = vunpack.c.h.b16 %v120
    %v1431 = vunpack.c.l.b16 %v121
    %v1432 = vunpack.c.h.b16 %v121
    %v1433 = vunpack.c.l.b16 %v122
    %v1434 = vunpack.c.h.b16 %v122
    %v1435 = vunpack.c.l.b16 %v123
    %v1436 = vunpack.c.h.b16 %v123
    %v1437 = vunpack.c.l.b16 %v124
    %v1438 = vunpack.c.h.b16 %v124
    %v1439 = vunpack.c.l.b16 %v125
    %v1440 = vunpack.c.h.b16 %v125
    %v1441 = vunpack.c.l.b16 %v126
    %v1442 = vunpack.c.h.b16 %v126
    %v1443 = vunpack.c.l.b16 %v127
    %v1444 = vunpack.c.h.b16 %v127
    %v1445 = vunpack.c.l.b16 %v128
    %v1446 = vunpack.c.h.b16 %v128
    %v1447 = vunpack.c.l.b16 %v129
    %v1448 = vunpack.c.h.b16 %v129
    %v1449 = vunpack.c.l.b16 %v130
    %v1450 = vunpack.c.h.b16 %v130
    %v1451 = vunpack.c.l.b16 %v131
    %v1452 = vunpack.c.h.b16 %v131
    %v1453 = vunpack.c.l.b16 %v132
    %v1454 = vunpack.c.h.b16 %v132
    %v1455 = vunpack.c.l.b16 %v133
    %v1456 = vunpack.c.h.b16 %v133
    %v1457 = vunpack.c.l.b16 %v134
    %v1458 = vunpack.c.h.b16 %v134
    %v1459 = vunpack.c.l.b16 %v135
    %v1460 = vunpack.c.h.b16 %v135
    %v1461 = vunpack.c.l.b16 %v136
    %v1462 = vunpack.c.h.b16 %v136
    %v1463 = vunpack.c.l.b16 %v137
    %v1464 = vunpack.c.h.b16 %v137
    %v1465 = vunpack.c.l.b16 %v138
    %v1466 = vunpack.c.h.b16 %v138
    %v1467 = vunpack.c.l.b16 %v139
    %v1468 = vunpack.c.h.b16 %v139
    %v1469 = vunpack.c.l.b16 %v140
    %v1470 = vunpack.c.h.b16 %v140
    %v1471 = vunpack.c.l.b16 %v141
    %v1472 = vunpack.c.h.b16 %v141
    %v1473 = vunpack.c.l.b16 %v142
    %v1474 = vunpack.c.h.b16 %v142
    %v1475 = vunpack.c.l.b16 %v143
    %v1476 = vunpack.c.h.b16 %v143
    %v1477 = vunpack.c.l.b16 %v144
    %v1478 = vunpack.c.h.b16 %v144
    %v1479 = vunpack.c.l.b16 %v145
    %v1480 = vunpack.c.h.b16 %v145
    %v1481 = vunpack.c.l.b16 %v146
    %v1482 = vunpack.c.h.b16 %v146
    %v1483 = vunpack.c.l.b16 %v147
    %v1484 = vunpack.c.h.b16 %v147
    %v1485 = vunpack.c.l.b16 %v148
    %v1486 = vunpack.c.h.b16 %v148
    %v1487 = vunpack.c.l.b16 %v149
    %v1488 = vunpack.c.h.b16 %v149
    %v1489 = vunpack.c.l.b16 %v150
    %v1490 = vunpack.c.h.b16 %v150
    %v1491 = vunpack.c.l.b16 %v151
    %v1492 = vunpack.c.h.b16 %v151
    %v1493 = vunpack.c.l.b16 %v152
    %v1494 = vunpack.c.h.b16 %v152
    %v1495 = vunpack.c.l.b16 %v153
    %v1496 = vunpack.c.h.b16 %v153
    %v1497 = vunpack.c.l.b16 %v154
    %v1498 = vunpack.c.h.b16 %v154
    %v1499 = vunpack.c.l.b16 %v155
    %v1500 = vunpack.c.h.b16 %v155
    %v1501 = vunpack.c.l.b16 %v156
    %v1502 = vunpack.c.h.b16 %v156
    %v1503 = vunpack.c.l.b16 %v157
    %v1504 = vunpack.c.h.b16 %v157
    %v1505 = vunpack.c.l.b16 %v158
    %v1506 = vunpack.c.h.b16 %v158
    %v1507 = vunpack.c.l.b16 %v159
    %v1508 = vunpack.c.h.b16 %v159
    %v1509 = vunpack.c.l.b16 %v160
    %v1510 = vunpack.c.h.b16 %v160
    %v1511 = vunpack.c.l.b16 %v161
    %v1512 = vunpack.c.h.b16 %v161
    %v1513 = vunpack.c.l.b16 %v162
    %v1514 = vunpack.c.h.b16 %v162
    %v1515 = vunpack.c.l.b16 %v163
    %v1516 = vunpack.c.h.b16 %v163
    %v1517 = vunpack.c.l.b16 %v164
    %v1518 = vunpack.c.h.b16 %v164
    %v1519 = vunpack.c.l.b16 %v165
    %v1520 = vunpack.c.h.b16 %v165
    %v1521 = vunpack.c.l.b16 %v166
    %v1522 = vunpack.c.h.b16 %v166
    %v1523 = vunpack.c.l.b16 %v167
    %v1524 = vunpack.c.h.b16 %v167
    %v1525 = vunpack.c.l.b16 %v168
    %v1526 = vunpack.c.h.b16 %v168
    %v1527 = vunpack.c.l.b16 %v169
    %v1528 = vunpack.c.h.b16 %v169
    %v1529 = vunpack.c.l.b16 %v170
    %v1530 = vunpack.c.h.b16 %v170
    %v1531 = vunpack.c.l.b16 %v171
    %v1532 = vunpack.c.h.b16 %v171
    %v1533 = vunpack.c.l.b16 %v172
    %v1534 = vunpack.c.h.b16 %v172
    %v1535 = vunpack.c.l.b16 %v173
    %v1536 = vunpack.c.h.b16 %v173
    %v1537 = vunpack.c.l.b16 %v174
    %v1538 = vunpack.c.h.b16 %v174
    %v1539 = vunpack.c.l.b16 %v175
    %v1540 = vunpack.c.h.b16 %v175
    %v1541 = vunpack.c.l.b16 %v176
    %v1542 = vunpack.c.h.b16 %v176
    %v1543 = vunpack.c.l.b16 %v177
    %v1544 = vunpack.c.h.b16 %v177
    %v1545 = vunpack.c.l.b16 %v178
    %v1546 = vunpack.c.h.b16 %v178
    %v1547 = vunpack.c.l.b16 %v179
    %v1548 = vunpack.c.h.b16 %v179
    %v1549 = vunpack.c.l.b16 %v180
    %v1550 = vunpack.c.h.b16 %v180
    %v1551 = vunpack.c.l.b16 %v181
    %v1552 = vunpack.c.h.b16 %v181
    %v1553 = vunpack.c.l.b16 %v182
    %v1554 = vunpack.c.h.b16 %v182
    %v1555 = vunpack.c.l.b16 %v183
    %v1556 = vunpack.c.h.b16 %v183
    %v1557 = vunpack.c.l.b16 %v184
    %v1558 = vunpack.c.h.b16 %v184
    %v1559 = vunpack.c.l.b16 %v185
    %v1560 = vunpack.c.h.b16 %v185
    %v1561 = vunpack.c.l.b16 %v186
    %v1562 = vunpack.c.h.b16 %v186
    %v1563 = vunpack.c.l.b16 %v187
    %v1564 = vunpack.c.h.b16 %v187
    %v1565 = vunpack.c.l.b16 %v188
    %v1566 = vunpack.c.h.b16 %v188
    %v1567 = vunpack.c.l.b16 %v189
    %v1568 = vunpack.c.h.b16 %v189
    %v1569 = vunpack.c.l.b16 %v190
    %v1570 = vunpack.c.h.b16 %v190
    %v1571 = vunpack.c.l.b16 %v191
    %v1572 = vunpack.c.h.b16 %v191
    %v1573 = vunpack.c.l.b16 %v192
    %v1574 = vunpack.c.h.b16 %v192
    %v1575 = vunpack.c.l.b16 %v193
    %v1576 = vunpack.c.h.b16 %v193
    %v1577 = vunpack.c.l.b16 %v194
    %v1578 = vunpack.c.h.b16 %v194
    %v1579 = vunpack.c.l.b16 %v195
    %v1580 = vunpack.c.h.b16 %v195
    %v1581 = vunpack.c.l.b16 %v196
    %v1582 = vunpack.c.h.b16 %v196
    %v1583 = vunpack.c.l.b16 %v197
    %v1584 = vunpack.c.h.b16 %v197
    %v1585 = vunpack.c.l.b16 %v198
    %v1586 = vunpack.c.h.b16 %v198
    %v1587 = vunpack.c.l.b16 %v199
    %v1588 = vunpack.c.h.b16 %v199
    %v1589 = vunpack.c.l.b16 %v200
    %v1590 = vunpack.c.h.b16 %v200
    %v1591 = vunpack.c.l.b16 %v201
    %v1592 = vunpack.c.h.b16 %v201
    %v1593 = vunpack.c.l.b16 %v202
    %v1594 = vunpack.c.h.b16 %v202
    %v1595 = vunpack.c.l.b16 %v203
    %v1596 = vunpack.c.h.b16 %v203
    %v1597 = vunpack.c.l.b16 %v204
    %v1598 = vunpack.c.h.b16 %v204
    %v1599 = vunpack.c.l.b16 %v205
    %v1600 = vunpack.c.h.b16 %v205
    %v1601 = vunpack.c.l.b16 %v206
    %v1602 = vunpack.c.h.b16 %v206
    %v1603 = vunpack.c.l.b16 %v207
    %v1604 = vunpack.c.h.b16 %v207
    %v1605 = vunpack.c.l.b16 %v208
    %v1606 = vunpack.c.h.b16 %v208
    %v1607 = vunpack.c.l.b16 %v209
    %v1608 = vunpack.c.h.b16 %v209
    %v1609 = vunpack.c.l.b16 %v210
    %v1610 = vunpack.c.h.b16 %v210
    %v1611 = vunpack.c.l.b16 %v211
    %v1612 = vunpack.c.h.b16 %v211
    %v1613 = vunpack.c.l.b16 %v212
    %v1614 = vunpack.c.h.b16 %v212
    %v1615 = vunpack.c.l.b16 %v213
    %v1616 = vunpack.c.h.b16 %v213
    %v1617 = vunpack.c.l.b16 %v214
    %v1618 = vunpack.c.h.b16 %v214
    %v1619 = vunpack.c.l.b16 %v215
    %v1620 = vunpack.c.h.b16 %v215
    %v1621 = vunpack.c.l.b16 %v216
    %v1622 = vunpack.c.h.b16 %v216
    %v1623 = vunpack.c.l.b16 %v217
    %v1624 = vunpack.c.h.b16 %v217
    %v1625 = vunpack.c.l.b16 %v218
    %v1626 = vunpack.c.h.b16 %v218
    %v1627 = vunpack.c.l.b16 %v219
    %v1628 = vunpack.c.h.b16 %v219
    %v1629 = vunpack.c.l.b16 %v220
    %v1630 = vunpack.c.h.b16 %v220
    %v1631 = vunpack.c.l.b16 %v221
    %v1632 = vunpack.c.h.b16 %v221
    %v1633 = vunpack.c.l.b16 %v222
    %v1634 = vunpack.c.h.b16 %v222
    %v1635 = vunpack.c.l.b16 %v223
    %v1636 = vunpack.c.h.b16 %v223
    %v1637 = vunpack.c.l.b16 %v224
    %v1638 = vunpack.c.h.b16 %v224
    %v1639 = vunpack.c.l.b16 %v225
    %v1640 = vunpack.c.h.b16 %v225
    %v1641 = vunpack.c.l.b16 %v226
    %v1642 = vunpack.c.h.b16 %v226
    %v1643 = vunpack.c.l.b16 %v227
    %v1644 = vunpack.c.h.b16 %v227
    %v1645 = vunpack.c.l.b16 %v228
    %v1646 = vunpack.c.h.b16 %v228
    %v1647 = vunpack.c.l.b16 %v229
    %v1648 = vunpack.c.h.b16 %v229
    %v1649 = vunpack.c.l.b16 %v230
    %v1650 = vunpack.c.h.b16 %v230
    %v1651 = vunpack.c.l.b16 %v231
    %v1652 = vunpack.c.h.b16 %v231
    %v1653 = vunpack.c.l.b16 %v232
    %v1654 = vunpack.c.h.b16 %v232
    %v1655 = vunpack.c.l.b16 %v233
    %v1656 = vunpack.c.h.b16 %v233
    %v1657 = vunpack.c.l.b16 %v234
    %v1658 = vunpack.c.h.b16 %v234
    %v1659 = vunpack.c.l.b16 %v235
    %v1660 = vunpack.c.h.b16 %v235
    %v1661 = vunpack.c.l.b16 %v236
    %v1662 = vunpack.c.h.b16 %v236
    %v1663 = vunpack.c.l.b16 %v237
    %v1664 = vunpack.c.h.b16 %v237
    %v1665 = vunpack.c.l.b16 %v238
    %v1666 = vunpack.c.h.b16 %v238
    %v1667 = vunpack.c.l.b16 %v239
    %v1668 = vunpack.c.h.b16 %v239
    %v1669 = vunpack.c.l.b16 %v240
    %v1670 = vunpack.c.h.b16 %v240
    %v1671 = vunpack.c.l.b16 %v241
    %v1672 = vunpack.c.h.b16 %v241
    %v1673 = vunpack.c.l.b16 %v242
    %v1674 = vunpack.c.h.b16 %v242
    %v1675 = vunpack.c.l.b16 %v243
    %v1676 = vunpack.c.h.b16 %v243
    %v1677 = vunpack.c.l.b16 %v244
    %v1678 = vunpack.c.h.b16 %v244
    %v1679 = vunpack.c.l.b16 %v245
    %v1680 = vunpack.c.h.b16 %v245
    %v1681 = vunpack.c.l.b16 %v246
    %v1682 = vunpack.c.h.b16 %v246
    %v1683 = vunpack.c.l.b16 %v247
    %v1684 = vunpack.c.h.b16 %v247
    %v1685 = vunpack.c.l.b16 %v248
    %v1686 = vunpack.c.h.b16 %v248
    %v1687 = vunpack.c.l.b16 %v249
    %v1688 = vunpack.c.h.b16 %v249
    %v1689 = vunpack.c.l.b16 %v250
    %v1690 = vunpack.c.h.b16 %v250
    %v1691 = vunpack.c.l.b16 %v251
    %v1692 = vunpack.c.h.b16 %v251
    %v1693 = vunpack.c.l.b16 %v252
    %v1694 = vunpack.c.h.b16 %v252
    %v1695 = vunpack.c.l.b16 %v253
    %v1696 = vunpack.c.h.b16 %v253
    %v1697 = vunpack.c.l.b16 %v254
    %v1698 = vunpack.c.h.b16 %v254
    %v1699 = vunpack.c.l.b16 %v255
    %v1700 = vunpack.c.h.b16 %v255
    %v1701 = vunpack.c.l.b16 %v256
    %v1702 = vunpack.c.h.b16 %v256
    %v1703 = vunpack.c.l.b16 %v257
    %v1704 = vunpack.c.h.b16 %v257
    %v1705 = vunpack.c.l.b16 %v258
    %v1706 = vunpack.c.h.b16 %v258
    %v1707 = vunpack.c.l.b16 %v259
    %v1708 = vunpack.c.h.b16 %v259
    %v1709 = vunpack.c.l.b16 %v260
    %v1710 = vunpack.c.h.b16 %v260
    %v1711 = vunpack.c.l.b16 %v261
    %v1712 = vunpack.c.h.b16 %v261
    %v1713 = vunpack.c.l.b16 %v262
    %v1714 = vunpack.c.h.b16 %v262
    %v1715 = vunpack.c.l.b16 %v263
    %v1716 = vunpack.c.h.b16 %v263
    %v1717 = vunpack.c.l.b16 %v264
    %v1718 = vunpack.c.h.b16 %v264
    %v1719 = vunpack.c.l.b16 %v265
    %v1720 = vunpack.c.h.b16 %v265
    %v1721 = vunpack.c.l.b16 %v266
    %v1722 = vunpack.c.h.b16 %v266
    %v1723 = vunpack.c.l.b16 %v267
    %v1724 = vunpack.c.h.b16 %v267
    %v1725 = vunpack.c.l.b16 %v268
    %v1726 = vunpack.c.h.b16 %v268
    %v1727 = vunpack.c.l.b16 %v269
    %v1728 = vunpack.c.h.b16 %v269
    %v1729 = vunpack.c.l.b16 %v270
    %v1730 = vunpack.c.h.b16 %v270
    %v1731 = vunpack.c.l.b16 %v271
    %v1732 = vunpack.c.h.b16 %v271
    %v1733 = vunpack.c.l.b16 %v272
    %v1734 = vunpack.c.h.b16 %v272
    %v1735 = vunpack.c.l.b16 %v273
    %v1736 = vunpack.c.h.b16 %v273
    %v1737 = vunpack.c.l.b16 %v274
    %v1738 = vunpack.c.h.b16 %v274
    %v1739 = vunpack.c.l.b16 %v275
    %v1740 = vunpack.c.h.b16 %v275
    %v1741 = vunpack.c.l.b16 %v276
    %v1742 = vunpack.c.h.b16 %v276
    %v1743 = vunpack.c.l.b16 %v277
    %v1744 = vunpack.c.h.b16 %v277
    %v1745 = vunpack.c.l.b16 %v278
    %v1746 = vunpack.c.h.b16 %v278
    %v1747 = vunpack.c.l.b16 %v279
    %v1748 = vunpack.c.h.b16 %v279
    %v1749 = vunpack.c.l.b16 %v280
    %v1750 = vunpack.c.h.b16 %v280
    %v1751 = vunpack.c.l.b16 %v281
    %v1752 = vunpack.c.h.b16 %v281
    %v1753 = vunpack.c.l.b16 %v282
    %v1754 = vunpack.c.h.b16 %v282
    %v1755 = vunpack.c.l.b16 %v283
    %v1756 = vunpack.c.h.b16 %v283
    %v1757 = vunpack.c.l.b16 %v284
    %v1758 = vunpack.c.h.b16 %v284
    %v1759 = vunpack.c.l.b16 %v285
    %v1760 = vunpack.c.h.b16 %v285
    %v1761 = vunpack.c.l.b16 %v286
    %v1762 = vunpack.c.h.b16 %v286
    %v1763 = vunpack.c.l.b16 %v287
    %v1764 = vunpack.c.h.b16 %v287
    %v1765 = vunpack.c.l.b16 %v288
    %v1766 = vunpack.c.h.b16 %v288
    %v1767 = vunpack.c.l.b16 %v289
    %v1768 = vunpack.c.h.b16 %v289
    %v1769 = vunpack.c.l.b16 %v290
    %v1770 = vunpack.c.h.b16 %v290
    %v1771 = vunpack.c.l.b16 %v291
    %v1772 = vunpack.c.h.b16 %v291
    %v1773 = vunpack.c.l.b16 %v292
    %v1774 = vunpack.c.h.b16 %v292
    %v1775 = vunpack.c.l.b16 %v293
    %v1776 = vunpack.c.h.b16 %v293
    %v1777 = vunpack.c.l.b16 %v294
    %v1778 = vunpack.c.h.b16 %v294
    %v1779 = vunpack.c.l.b16 %v295
    %v1780 = vunpack.c.h.b16 %v295
    %v1781 = vunpack.c.l.b16 %v296
    %v1782 = vunpack.c.h.b16 %v296
    %v1783 = vunpack.c.l.b16 %v297
    %v1784 = vunpack.c.h.b16 %v297
    %v1785 = vunpack.c.l.b16 %v298
    %v1786 = vunpack.c.h.b16 %v298
    %v1787 = vunpack.c.l.b16 %v299
    %v1788 = vunpack.c.h.b16 %v299
    %v1789 = vunpack.c.l.b16 %v300
    %v1790 = vunpack.c.h.b16 %v300
    %v1791 = vunpack.c.l.b16 %v301
    %v1792 = vunpack.c.h.b16 %v301
    %v1793 = vunpack.c.l.b16 %v302
    %v1794 = vunpack.c.h.b16 %v302
    %v1795 = vunpack.c.l.b16 %v303
    %v1796 = vunpack.c.h.b16 %v303
    %v1797 = vunpack.c.l.b16 %v304
    %v1798 = vunpack.c.h.b16 %v304
    %v1799 = vunpack.c.l.b16 %v305
    %v1800 = vunpack.c.h.b16 %v305
    %v1801 = vunpack.c.l.b16 %v306
    %v1802 = vunpack.c.h.b16 %v306
    %v1803 = vunpack.c.l.b16 %v307
    %v1804 = vunpack.c.h.b16 %v307
    %v1805 = vunpack.c.l.b16 %v308
    %v1806 = vunpack.c.h.b16 %v308
    %v1807 = vunpack.c.l.b16 %v309
    %v1808 = vunpack.c.h.b16 %v309
    %v1809 = vunpack.c.l.b16 %v310
    %v1810 = vunpack.c.h.b16 %v310
    %v1811 = vunpack.c.l.b16 %v311
    %v1812 = vunpack.c.h.b16 %v311
    %v1813 = vunpack.c.l.b16 %v312
    %v1814 = vunpack.c.h.b16 %v312
    %v1815 = vunpack.c.l.b16 %v313
    %v1816 = vunpack.c.h.b16 %v313
    %v1817 = vunpack.c.l.b16 %v314
    %v1818 = vunpack.c.h.b16 %v314
    %v1819 = vunpack.c.l.b16 %v315
    %v1820 = vunpack.c.h.b16 %v315
    %v1821 = vunpack.c.l.b16 %v316
    %v1822 = vunpack.c.h.b16 %v316
    %v1823 = vunpack.c.l.b16 %v317
    %v1824 = vunpack.c.h.b16 %v317
    %v1825 = vunpack.c.l.b16 %v318
    %v1826 = vunpack.c.h.b16 %v318
    %v1827 = vunpack.c.l.b16 %v319
    %v1828 = vunpack.c.h.b16 %v319
    %v1829 = vunpack.c.l.b16 %v320
    %v1830 = vunpack.c.h.b16 %v320
    %v1831 = vunpack.c.l.b16 %v321
    %v1832 = vunpack.c.h.b16 %v321
    %v1833 = vunpack.c.l.b16 %v322
    %v1834 = vunpack.c.h.b16 %v322
    %v1835 = vunpack.c.l.b16 %v323
    %v1836 = vunpack.c.h.b16 %v323
    %v1837 = vunpack.c.l.b16 %v324
    %v1838 = vunpack.c.h.b16 %v324
    %v1839 = vunpack.c.l.b16 %v325
    %v1840 = vunpack.c.h.b16 %v325
    %v1841 = vunpack.c.l.b16 %v326
    %v1842 = vunpack.c.h.b16 %v326
    %v1843 = vunpack.c.l.b16 %v327
    %v1844 = vunpack.c.h.b16 %v327
    %v1845 = vunpack.c.l.b16 %v328
    %v1846 = vunpack.c.h.b16 %v328
    %v1847 = vunpack.c.l.b16 %v329
    %v1848 = vunpack.c.h.b16 %v329
    %v1849 = vunpack.c.l.b16 %v330
    %v1850 = vunpack.c.h.b16 %v330
    %v1851 = vunpack.c.l.b16 %v331
    %v1852 = vunpack.c.h.b16 %v331
    %v1853 = vunpack.c.l.b16 %v332
    %v1854 = vunpack.c.h.b16 %v332
    %v1855 = vunpack.c.l.b16 %v333
    %v1856 = vunpack.c.h.b16 %v333
    %v1857 = vunpack.c.l.b16 %v334
    %v1858 = vunpack.c.h.b16 %v334
    %v1859 = vunpack.c.l.b16 %v335
    %v1860 = vunpack.c.h.b16 %v335
    %v1861 = vunpack.c.l.b16 %v336
    %v1862 = vunpack.c.h.b16 %v336
    %v1863 = vunpack.c.l.b16 %v337
    %v1864 = vunpack.c.h.b16 %v337
    %v1865 = vunpack.c.l.b16 %v338
    %v1866 = vunpack.c.h.b16 %v338
    %v1867 = vunpack.c.l.b16 %v339
    %v1868 = vunpack.c.h.b16 %v339
    %v1869 = vunpack.c.l.b16 %v340
    %v1870 = vunpack.c.h.b16 %v340
    %v1871 = vunpack.c.l.b16 %v341
    %v1872 = vunpack.c.h.b16 %v341
    %v1873 = vunpack.c.l.b16 %v342
    %v1874 = vunpack.c.h.b16 %v342
    %v1875 = vunpack.c.l.b16 %v343
    %v1876 = vunpack.c.h.b16 %v343
    %v1877 = vunpack.c.l.b16 %v344
    %v1878 = vunpack.c.h.b16 %v344
    %v1879 = vunpack.c.l.b16 %v345
    %v1880 = vunpack.c.h.b16 %v345
    %v1881 = vunpack.c.l.b16 %v346
    %v1882 = vunpack.c.h.b16 %v346
    %v1883 = vunpack.c.l.b16 %v347
    %v1884 = vunpack.c.h.b16 %v347
    %v1885 = vunpack.c.l.b16 %v348
    %v1886 = vunpack.c.h.b16 %v348
    %v1887 = vunpack.c.l.b16 %v349
    %v1888 = vunpack.c.h.b16 %v349
    %v1889 = vunpack.c.l.b16 %v350
    %v1890 = vunpack.c.h.b16 %v350
    %v1891 = vunpack.c.l.b16 %v351
    %v1892 = vunpack.c.h.b16 %v351
    %v1893 = vunpack.c.l.b16 %v352
    %v1894 = vunpack.c.h.b16 %v352
    %v1895 = vunpack.c.l.b16 %v353
    %v1896 = vunpack.c.h.b16 %v353
    %v1897 = vunpack.c.l.b16 %v354
    %v1898 = vunpack.c.h.b16 %v354
    %v1899 = vunpack.c.l.b16 %v355
    %v1900 = vunpack.c.h.b16 %v355
    %v1901 = vunpack.c.l.b16 %v356
    %v1902 = vunpack.c.h.b16 %v356
    %v1903 = vunpack.c.l.b16 %v357
    %v1904 = vunpack.c.h.b16 %v357
    %v1905 = vunpack.c.l.b16 %v358
    %v1906 = vunpack.c.h.b16 %v358
    %v1907 = vunpack.c.l.b16 %v359
    %v1908 = vunpack.c.h.b16 %v359
    %v1909 = vunpack.c.l.b16 %v360
    %v1910 = vunpack.c.h.b16 %v360
    %v1911 = vunpack.c.l.b16 %v361
    %v1912 = vunpack.c.h.b16 %v361
    %v1913 = vunpack.c.l.b16 %v362
    %v1914 = vunpack.c.h.b16 %v362
    %v1915 = vunpack.c.l.b16 %v363
    %v1916 = vunpack.c.h.b16 %v363
    %v1917 = vunpack.c.l.b16 %v364
    %v1918 = vunpack.c.h.b16 %v364
    %v1919 = vunpack.c.l.b16 %v365
    %v1920 = vunpack.c.h.b16 %v365
    %v1921 = vunpack.c.l.b16 %v366
    %v1922 = vunpack.c.h.b16 %v366
    %v1923 = vunpack.c.l.b16 %v367
    %v1924 = vunpack.c.h.b16 %v367
    %v1925 = vunpack.c.l.b16 %v368
    %v1926 = vunpack.c.h.b16 %v368
    %v1927 = vunpack.c.l.b16 %v369
    %v1928 = vunpack.c.h.b16 %v369
    %v1929 = vunpack.c.l.b16 %v370
    %v1930 = vunpack.c.h.b16 %v370
    %v1931 = vunpack.c.l.b16 %v371
    %v1932 = vunpack.c.h.b16 %v371
    %v1933 = vunpack.c.l.b16 %v372
    %v1934 = vunpack.c.h.b16 %v372
    %v1935 = vunpack.c.l.b16 %v373
    %v1936 = vunpack.c.h.b16 %v373
    %v1937 = vunpack.c.l.b16 %v374
    %v1938 = vunpack.c.h.b16 %v374
    %v1939 = vunpack.c.l.b16 %v375
    %v1940 = vunpack.c.h.b16 %v375
    %v1941 = vunpack.c.l.b16 %v376
    %v1942 = vunpack.c.h.b16 %v376
    %v1943 = vunpack.c.l.b16 %v377
    %v1944 = vunpack.c.h.b16 %v377
    %v1945 = vunpack.c.l.b16 %v378
    %v1946 = vunpack.c.h.b16 %v378
    %v1947 = vunpack.c.l.b16 %v379
    %v1948 = vunpack.c.h.b16 %v379
    %v1949 = vunpack.c.l.b16 %v380
    %v1950 = vunpack.c.h.b16 %v380
    %v1951 = vunpack.c.l.b16 %v381
    %v1952 = vunpack.c.h.b16 %v381
    %v1953 = vunpack.c.l.b16 %v382
    %v1954 = vunpack.c.h.b16 %v382
    %v1955 = vunpack.c.l.b16 %v383
    %v1956 = vunpack.c.h.b16 %v383
    %v1957 = vunpack.c.l.b16 %v384
    %v1958 = vunpack.c.h.b16 %v384
    %v1959 = vunpack.c.l.b16 %v385
    %v1960 = vunpack.c.h.b16 %v385
    %v1961 = vunpack.c.l.b16 %v386
    %v1962 = vunpack.c.h.b16 %v386
    %v1963 = vunpack.c.l.b16 %v387
    %v1964 = vunpack.c.h.b16 %v387
    %v1965 = vunpack.c.l.b16 %v388
    %v1966 = vunpack.c.h.b16 %v388
    %v1967 = vunpack.c.l.b16 %v389
    %v1968 = vunpack.c.h.b16 %v389
    %v1969 = vunpack.c.l.b16 %v390
    %v1970 = vunpack.c.h.b16 %v390
    %v1971 = vunpack.c.l.b16 %v391
    %v1972 = vunpack.c.h.b16 %v391
    %v1973 = vunpack.c.l.b16 %v392
    %v1974 = vunpack.c.h.b16 %v392
    %v1975 = vunpack.c.l.b16 %v393
    %v1976 = vunpack.c.h.b16 %v393
    %v1977 = vunpack.c.l.b16 %v394
    %v1978 = vunpack.c.h.b16 %v394
    %v1979 = vunpack.c.l.b16 %v395
    %v1980 = vunpack.c.h.b16 %v395
    %v1981 = vunpack.c.l.b16 %v396
    %v1982 = vunpack.c.h.b16 %v396
    %v1983 = vunpack.c.l.b16 %v397
    %v1984 = vunpack.c.h.b16 %v397
    %v1985 = vunpack.c.l.b16 %v398
    %v1986 = vunpack.c.h.b16 %v398
    %v1987 = vunpack.c.l.b16 %v399
    %v1988 = vunpack.c.h.b16 %v399
    %v1989 = vunpack.c.l.b16 %v400
    %v1990 = vunpack.c.h.b16 %v400
    %v1991 = vunpack.c.l.b16 %v401
    %v1992 = vunpack.c.h.b16 %v401
    %v1993 = vunpack.c.l.b16 %v402
    %v1994 = vunpack.c.h.b16 %v402
    %v1995 = vunpack.c.l.b16 %v403
    %v1996 = vunpack.c.h.b16 %v403
    %v1997 = vunpack.c.l.b16 %v404
    %v1998 = vunpack.c.h.b16 %v404
    %v1999 = vunpack.c.l.b16 %v405
    %v2000 = vunpack.c.h.b16 %v405
    %v2001 = vunpack.c.l.b16 %v406
    %v2002 = vunpack.c.h.b16 %v406
    %v2003 = vunpack.c.l.b16 %v407
    %v2004 = vunpack.c.h.b16 %v407
    %v2005 = vunpack.c.l.b16 %v408
    %v2006 = vunpack.c.h.b16 %v408
    %v2007 = vunpack.c.l.b16 %v409
    %v2008 = vunpack.c.h.b16 %v409
    %v2009 = vunpack.c.l.b16 %v410
    %v2010 = vunpack.c.h.b16 %v410
    %v2011 = vunpack.c.l.b16 %v411
    %v2012 = vunpack.c.h.b16 %v411
    %v2013 = vunpack.c.l.b16 %v412
    %v2014 = vunpack.c.h.b16 %v412
    %v2015 = vunpack.c.l.b16 %v413
    %v2016 = vunpack.c.h.b16 %v413
    %v2017 = vunpack.c.l.b16 %v414
    %v2018 = vunpack.c.h.b16 %v414
    %v2019 = vunpack.c.l.b16 %v415
    %v2020 = vunpack.c.h.b16 %v415
    %v2021 = vunpack.c.l.b16 %v416
    %v2022 = vunpack.c.h.b16 %v416
    %v2023 = vunpack.c.l.b16 %v417
    %v2024 = vunpack.c.h.b16 %v417
    %v2025 = vunpack.c.l.b16 %v418
    %v2026 = vunpack.c.h.b16 %v418
    %v2027 = vunpack.c.l.b16 %v419
    %v2028 = vunpack.c.h.b16 %v419
    %v2029 = vunpack.c.l.b16 %v420
    %v2030 = vunpack.c.h.b16 %v420
    %v2031 = vunpack.c.l.b16 %v421
    %v2032 = vunpack.c.h.b16 %v421
    %v2033 = vunpack.c.l.b16 %v422
    %v2034 = vunpack.c.h.b16 %v422
    %v2035 = vunpack.c.l.b16 %v423
    %v2036 = vunpack.c.h.b16 %v423
    %v2037 = vunpack.c.l.b16 %v424
    %v2038 = vunpack.c.h.b16 %v424
    %v2039 = vunpack.c.l.b16 %v425
    %v2040 = vunpack.c.h.b16 %v425
    %v2041 = vunpack.c.l.b16 %v426
    %v2042 = vunpack.c.h.b16 %v426
    %v2043 = vunpack.c.l.b16 %v427
    %v2044 = vunpack.c.h.b16 %v427
    %v2045 = vunpack.c.l.b16 %v428
    %v2046 = vunpack.c.h.b16 %v428
    %v2047 = vunpack.c.l.b16 %v429
    %v2048 = vunpack.c.h.b16 %v429
    %v2049 = vunpack.c.l.b16 %v430
    %v2050 = vunpack.c.h.b16 %v430
    %v2051 = vunpack.c.l.b16 %v431
    %v2052 = vunpack.c.h.b16 %v431
    %v2053 = vunpack.c.l.b16 %v432
    %v2054 = vunpack.c.h.b16 %v432
    %v2055 = vunpack.c.l.b16 %v433
    %v2056 = vunpack.c.h.b16 %v433
    %v2057 = vunpack.c.l.b16 %v434
    %v2058 = vunpack.c.h.b16 %v434
    %v2059 = vunpack.c.l.b16 %v435
    %v2060 = vunpack.c.h.b16 %v435
    %v2061 = vunpack.c.l.b16 %v436
    %v2062 = vunpack.c.h.b16 %v436
    %v2063 = vunpack.c.l.b16 %v437
    %v2064 = vunpack.c.h.b16 %v437
    %v2065 = vunpack.c.l.b16 %v438
    %v2066 = vunpack.c.h.b16 %v438
    %v2067 = vunpack.c.l.b16 %v439
    %v2068 = vunpack.c.h.b16 %v439
    %v2069 = vunpack.c.l.b16 %v440
    %v2070 = vunpack.c.h.b16 %v440
    %v2071 = vunpack.c.l.b16 %v441
    %v2072 = vunpack.c.h.b16 %v441
    %v2073 = vunpack.c.l.b16 %v442
    %v2074 = vunpack.c.h.b16 %v442
    %v2075 = vunpack.c.l.b16 %v443
    %v2076 = vunpack.c.h.b16 %v443
    %v2077 = vunpack.c.l.b16 %v444
    %v2078 = vunpack.c.h.b16 %v444
    %v2079 = vunpack.c.l.b16 %v445
    %v2080 = vunpack.c.h.b16 %v445
    %v2081 = vunpack.c.l.b16 %v446
    %v2082 = vunpack.c.h.b16 %v446
    %v2083 = vunpack.c.l.b16 %v447
    %v2084 = vunpack.c.h.b16 %v447
    %v2085 = vunpack.c.l.b16 %v448
    %v2086 = vunpack.c.h.b16 %v448
    %v2087 = vunpack.c.l.b16 %v449
    %v2088 = vunpack.c.h.b16 %v449
    %v2089 = vunpack.c.l.b16 %v450
    %v2090 = vunpack.c.h.b16 %v450
    %v2091 = vunpack.c.l.b16 %v451
    %v2092 = vunpack.c.h.b16 %v451
    %v2093 = vunpack.c.l.b16 %v452
    %v2094 = vunpack.c.h.b16 %v452
    %v2095 = vunpack.c.l.b16 %v453
    %v2096 = vunpack.c.h.b16 %v453
    %v2097 = vunpack.c.l.b16 %v454
    %v2098 = vunpack.c.h.b16 %v454
    %v2099 = vunpack.c.l.b16 %v455
    %v2100 = vunpack.c.h.b16 %v455
    %v2101 = vunpack.c.l.b16 %v456
    %v2102 = vunpack.c.h.b16 %v456
    %v2103 = vunpack.c.l.b16 %v457
    %v2104 = vunpack.c.h.b16 %v457
    %v2105 = vunpack.c.l.b16 %v458
    %v2106 = vunpack.c.h.b16 %v458
    %v2107 = vunpack.c.l.b16 %v459
    %v2108 = vunpack.c.h.b16 %v459
    %v2109 = vunpack.c.l.b16 %v460
    %v2110 = vunpack.c.h.b16 %v460
    %v2111 = vunpack.c.l.b16 %v461
    %v2112 = vunpack.c.h.b16 %v461
    %v2113 = vunpack.c.l.b16 %v462
    %v2114 = vunpack.c.h.b16 %v462
    %v2115 = vunpack.c.l.b16 %v463
    %v2116 = vunpack.c.h.b16 %v463
    %v2117 = vunpack.c.l.b16 %v464
    %v2118 = vunpack.c.h.b16 %v464
    %v2119 = vunpack.c.l.b16 %v465
    %v2120 = vunpack.c.h.b16 %v465
    %v2121 = vunpack.c.l.b16 %v466
    %v2122 = vunpack.c.h.b16 %v466
    %v2123 = vunpack.c.l.b16 %v467
    %v2124 = vunpack.c.h.b16 %v467
    %v2125 = vunpack.c.l.b16 %v468
    %v2126 = vunpack.c.h.b16 %v468
    %v2127 = vunpack.c.l.b16 %v469
    %v2128 = vunpack.c.h.b16 %v469
    %v2129 = vunpack.c.l.b16 %v470
    %v2130 = vunpack.c.h.b16 %v470
    %v2131 = vunpack.c.l.b16 %v471
    %v2132 = vunpack.c.h.b16 %v471
    %v2133 = vunpack.c.l.b16 %v472
    %v2134 = vunpack.c.h.b16 %v472
    %v2135 = vunpack.c.l.b16 %v473
    %v2136 = vunpack.c.h.b16 %v473
    %v2137 = vunpack.c.l.b16 %v474
    %v2138 = vunpack.c.h.b16 %v474
    %v2139 = vunpack.c.l.b16 %v475
    %v2140 = vunpack.c.h.b16 %v475
    %v2141 = vunpack.c.l.b16 %v476
    %v2142 = vunpack.c.h.b16 %v476
    %v2143 = vunpack.c.l.b16 %v477
    %v2144 = vunpack.c.h.b16 %v477
    %v2145 = vunpack.c.l.b16 %v478
    %v2146 = vunpack.c.h.b16 %v478
    %v2147 = vunpack.c.l.b16 %v479
    %v2148 = vunpack.c.h.b16 %v479
    %v2149 = vunpack.c.l.b16 %v480
    %v2150 = vunpack.c.h.b16 %v480
    %v2151 = vunpack.c.l.b16 %v481
    %v2152 = vunpack.c.h.b16 %v481
    %v2153 = vunpack.c.l.b16 %v482
    %v2154 = vunpack.c.h.b16 %v482
    %v2155 = vunpack.c.l.b16 %v483
    %v2156 = vunpack.c.h.b16 %v483
    %v2157 = vunpack.c.l.b16 %v484
    %v2158 = vunpack.c.h.b16 %v484
    %v2159 = vunpack.c.l.b16 %v485
    %v2160 = vunpack.c.h.b16 %v485
    %v2161 = vunpack.c.l.b16 %v486
    %v2162 = vunpack.c.h.b16 %v486
    %v2163 = vunpack.c.l.b16 %v487
    %v2164 = vunpack.c.h.b16 %v487
    %v2165 = vunpack.c.l.b16 %v488
    %v2166 = vunpack.c.h.b16 %v488
    %v2167 = vunpack.c.l.b16 %v489
    %v2168 = vunpack.c.h.b16 %v489
    %v2169 = vunpack.c.l.b16 %v490
    %v2170 = vunpack.c.h.b16 %v490
    %v2171 = vunpack.c.l.b16 %v491
    %v2172 = vunpack.c.h.b16 %v491
    %v2173 = vunpack.c.l.b16 %v492
    %v2174 = vunpack.c.h.b16 %v492
    %v2175 = vunpack.c.l.b16 %v493
    %v2176 = vunpack.c.h.b16 %v493
    %v2177 = vunpack.c.l.b16 %v494
    %v2178 = vunpack.c.h.b16 %v494
    %v2179 = vunpack.c.l.b16 %v495
    %v2180 = vunpack.c.h.b16 %v495
    %v2181 = vunpack.c.l.b16 %v496
    %v2182 = vunpack.c.h.b16 %v496
    %v2183 = vunpack.c.l.b16 %v497
    %v2184 = vunpack.c.h.b16 %v497
    %v2185 = vunpack.c.l.b16 %v498
    %v2186 = vunpack.c.h.b16 %v498
    %v2187 = vunpack.c.l.b16 %v499
    %v2188 = vunpack.c.h.b16 %v499
    %v2189 = vunpack.c.l.b16 %v500
    %v2190 = vunpack.c.h.b16 %v500
    %v2191 = vunpack.c.l.b16 %v501
    %v2192 = vunpack.c.h.b16 %v501
    %v2193 = vunpack.c.l.b16 %v502
    %v2194 = vunpack.c.h.b16 %v502
    %v2195 = vunpack.c.l.b16 %v503
    %v2196 = vunpack.c.h.b16 %v503
    %v2197 = vunpack.c.l.b16 %v504
    %v2198 = vunpack.c.h.b16 %v504
    %v2199 = vunpack.c.l.b16 %v505
    %v2200 = vunpack.c.h.b16 %v505
    %v2201 = vunpack.c.l.b16 %v506
    %v2202 = vunpack.c.h.b16 %v506
    %v2203 = vunpack.c.l.b16 %v507
    %v2204 = vunpack.c.h.b16 %v507
    %v2205 = vunpack.c.l.b16 %v508
    %v2206 = vunpack.c.h.b16 %v508
    %v2207 = vunpack.c.l.b16 %v509
    %v2208 = vunpack.c.h.b16 %v509
    %v2209 = vunpack.c.l.b16 %v510
    %v2210 = vunpack.c.h.b16 %v510
    %v2211 = vunpack.c.l.b16 %v511
    %v2212 = vunpack.c.h.b16 %v511
    %v2213 = vunpack.c.l.b16 %v512
    %v2214 = vunpack.c.h.b16 %v512
    %v2215 = vunpack.c.l.b16 %v513
    %v2216 = vunpack.c.h.b16 %v513
    %v2217 = vunpack.c.l.b16 %v514
    %v2218 = vunpack.c.h.b16 %v514
    %v2219 = vunpack.c.l.b16 %v515
    %v2220 = vunpack.c.h.b16 %v515
    %v2221 = vunpack.c.l.b16 %v516
    %v2222 = vunpack.c.h.b16 %v516
    %v2223 = vunpack.c.l.b16 %v517
    %v2224 = vunpack.c.h.b16 %v517
    %v2225 = vunpack.c.l.b16 %v518
    %v2226 = vunpack.c.h.b16 %v518
    %v2227 = vunpack.c.l.b16 %v519
    %v2228 = vunpack.c.h.b16 %v519
    %v2229 = vunpack.c.l.b16 %v520
    %v2230 = vunpack.c.h.b16 %v520
    %v2231 = vunpack.c.l.b16 %v521
    %v2232 = vunpack.c.h.b16 %v521
    %v2233 = vpack.c.b16 %v1255, %v1253
    %v2234 = vpack.c.b16 %v1256, %v1254
    %v2235 = vpack.c.b16 %v1259, %v1257
    %v2236 = vpack.c.b16 %v1260, %v1258
    %v2237 = vpack.c.b16 %v1263, %v1261
    %v2238 = vpack.c.b16 %v1264, %v1262
    %v2239 = vpack.c.b16 %v1267, %v1265
    %v2240 = vpack.c.b16 %v1268, %v1266
    %v2241 = vpack.c.b16 %v1271, %v1269
    %v2242 = vpack.c.b16 %v1272, %v1270
    %v2243 = vpack.c.b16 %v1275, %v1273
    %v2244 = vpack.c.b16 %v1276, %v1274
    %v2245 = vpack.c.b16 %v1279, %v1277
    %v2246 = vpack.c.b16 %v1280, %v1278
    %v2247 = vpack.c.b16 %v1283, %v1281
    %v2248 = vpack.c.b16 %v1284, %v1282
    %v2249 = vpack.c.b16 %v1287, %v1285
    %v2250 = vpack.c.b16 %v1288, %v1286
    %v2251 = vpack.c.b16 %v1291, %v1289
    %v2252 = vpack.c.b16 %v1292, %v1290
    %v2253 = vpack.c.b16 %v1295, %v1293
    %v2254 = vpack.c.b16 %v1296, %v1294
    %v2255 = vpack.c.b16 %v1299, %v1297
    %v2256 = vpack.c.b16 %v1300, %v1298
    %v2257 = vpack.c.b16 %v1303, %v1301
    %v2258 = vpack.c.b16 %v1304, %v1302
    %v2259 = vpack.c.b16 %v1307, %v1305
    %v2260 = vpack.c.b16 %v1308, %v1306
    %v2261 = vpack.c.b16 %v1311, %v1309
    %v2262 = vpack.c.b16 %v1312, %v1310
    %v2263 = vpack.c.b16 %v1315, %v1313
    %v2264 = vpack.c.b16 %v1316, %v1314
    %v2265 = vpack.c.b16 %v1319, %v1317
    %v2266 = vpack.c.b16 %v1320, %v1318
    %v2267 = vpack.c.b16 %v1323, %v1321
    %v2268 = vpack.c.b16 %v1324, %v1322
    %v2269 = vpack.c.b16 %v1327, %v1325
    %v2270 = vpack.c.b16 %v1328, %v1326
    %v2271 = vpack.c.b16 %v1331, %v1329
    %v2272 = vpack.c.b16 %v1332, %v1330
    %v2273 = vpack.c.b16 %v1335, %v1333
    %v2274 = vpack.c.b16 %v1336, %v1334
    %v2275 = vpack.c.b16 %v1339, %v1337
    %v2276 = vpack.c.b16 %v1340, %v1338
    %v2277 = vpack.c.b16 %v1343, %v1341
    %v2278 = vpack.c.b16 %v1344, %v1342
    %v2279 = vpack.c.b16 %v1347, %v1345
    %v2280 = vpack.c.b16 %v1348, %v1346
    %v2281 = vpack.c.b16 %v1351, %v1349
    %v2282 = vpack.c.b16 %v1352, %v1350
    %v2283 = vpack.c.b16 %v1355, %v1353
    %v2284 = vpack.c.b16 %v1356, %v1354
    %v2285 = vpack.c.b16 %v1359, %v1357
    %v2286 = vpack.c.b16 %v1360, %v1358
    %v2287 = vpack.c.b16 %v1363, %v1361
    %v2288 = vpack.c.b16 %v1364, %v1362
    %v2289 = vpack.c.b16 %v1367, %v1365
    %v2290 = vpack.c.b16 %v1368, %v1366
    %v2291 = vpack.c.b16 %v1371, %v1369
    %v2292 = vpack.c.b16 %v1372, %v1370
    %v2293 = vpack.c.b16 %v1375, %v1373
    %v2294 = vpack.c.b16 %v1376, %v1374
    %v2295 = vpack.c.b16 %v1379, %v1377
    %v2296 = vpack.c.b16 %v1380, %v1378
    %v2297 = vpack.c.b16 %v1383, %v1381
    %v2298 = vpack.c.b16 %v1384, %v1382
    %v2299 = vpack.c.b16 %v1387, %v1385
    %v2300 = vpack.c.b16 %v1388, %v1386
    %v2301 = vpack.c.b16 %v1391, %v1389
    %v2302 = vpack.c.b16 %v1392, %v1390
    %v2303 = vpack.c.b16 %v1395, %v1393
    %v2304 = vpack.c.b16 %v1396, %v1394
    %v2305 = vpack.c.b16 %v1399, %v1397
    %v2306 = vpack.c.b16 %v1400, %v1398
    %v2307 = vpack.c.b16 %v1403, %v1401
    %v2308 = vpack.c.b16 %v1404, %v1402
    %v2309 = vpack.c.b16 %v1407, %v1405
    %v2310 = vpack.c.b16 %v1408, %v1406
    %v2311 = vpack.c.b16 %v1411, %v1409
    %v2312 = vpack.c.b16 %v1412, %v1410
    %v2313 = vpack.c.b16 %v1415, %v1413
    %v2314 = vpack.c.b16 %v1416, %v1414
    %v2315 = vpack.c.b16 %v1419, %v1417
    %v2316 = vpack.c.b16 %v1420, %v1418
    %v2317 = vpack.c.b16 %v1423, %v1421
    %v2318 = vpack.c.b16 %v1424, %v1422
    %v2319 = vpack.c.b16 %v1427, %v1425
    %v2320 = vpack.c.b16 %v1428, %v1426
    %v2321 = vpack.c.b16 %v1431, %v1429
    %v2322 = vpack.c.b16 %v1432, %v1430
    %v2323 = vpack.c.b16 %v1435, %v1433
    %v2324 = vpack.c.b16 %v1436, %v1434
    %v2325 = vpack.c.b16 %v1439, %v1437
    %v2326 = vpack.c.b16 %v1440, %v1438
    %v2327 = vpack.c.b16 %v1443, %v1441
    %v2328 = vpack.c.b16 %v1444, %v1442
    %v2329 = vpack.c.b16 %v1447, %v1445
    %v2330 = vpack.c.b16 %v1448, %v1446
    %v2331 = vpack.c.b16 %v1451, %v1449
    %v2332 = vpack.c.b16 %v1452, %v1450
    %v2333 = vpack.c.b16 %v1455, %v1453
    %v2334 = vpack.c.b16 %v1456, %v1454
    %v2335 = vpack.c.b16 %v1459, %v1457
    %v2336 = vpack.c.b16 %v1460, %v1458
    %v2337 = vpack.c.b16 %v1463, %v1461
    %v2338 = vpack.c.b16 %v1464, %v1462
    %v2339 = vpack.c.b16 %v1467, %v1465
    %v2340 = vpack.c.b16 %v1468, %v1466
    %v2341 = vpack.c.b16 %v1471, %v1469
    %v2342 = vpack.c.b16 %v1472, %v1470
    %v2343 = vpack.c.b16 %v1475, %v1473
    %v2344 = vpack.c.b16 %v1476, %v1474
    %v2345 = vpack.c.b16 %v1479, %v1477
    %v2346 = vpack.c.b16 %v1480, %v1478
    %v2347 = vpack.c.b16 %v1483, %v1481
    %v2348 = vpack.c.b16 %v1484, %v1482
    %v2349 = vpack.c.b16 %v1487, %v1485
    %v2350 = vpack.c.b16 %v1488, %v1486
    %v2351 = vpack.c.b16 %v1491, %v1489
    %v2352 = vpack.c.b16 %v1492, %v1490
    %v2353 = vpack.c.b16 %v1495, %v1493
    %v2354 = vpack.c.b16 %v1496, %v1494
    %v2355 = vpack.c.b16 %v1499, %v1497
    %v2356 = vpack.c.b16 %v1500, %v1498
    %v2357 = vpack.c.b16 %v1503, %v1501
    %v2358 = vpack.c.b16 %v1504, %v1502
    %v2359 = vpack.c.b16 %v1507, %v1505
    %v2360 = vpack.c.b16 %v1508, %v1506
    %v2361 = vpack.c.b16 %v1511, %v1509
    %v2362 = vpack.c.b16 %v1512, %v1510
    %v2363 = vpack.c.b16 %v1515, %v1513
    %v2364 = vpack.c.b16 %v1516, %v1514
    %v2365 = vpack.c.b16 %v1519, %v1517
    %v2366 = vpack.c.b16 %v1520, %v1518
    %v2367 = vpack.c.b16 %v1523, %v1521
    %v2368 = vpack.c.b16 %v1524, %v1522
    %v2369 = vpack.c.b16 %v1527, %v1525
    %v2370 = vpack.c.b16 %v1528, %v1526
    %v2371 = vpack.c.b16 %v1531, %v1529
    %v2372 = vpack.c.b16 %v1532, %v1530
    %v2373 = vpack.c.b16 %v1535, %v1533
    %v2374 = vpack.c.b16 %v1536, %v1534
    %v2375 = vpack.c.b16 %v1539, %v1537
    %v2376 = vpack.c.b16 %v1540, %v1538
    %v2377 = vpack.c.b16 %v1543, %v1541
    %v2378 = vpack.c.b16 %v1544, %v1542
    %v2379 = vpack.c.b16 %v1547, %v1545
    %v2380 = vpack.c.b16 %v1548, %v1546
    %v2381 = vpack.c.b16 %v1551, %v1549
    %v2382 = vpack.c.b16 %v1552, %v1550
    %v2383 = vpack.c.b16 %v1555, %v1553
    %v2384 = vpack.c.b16 %v1556, %v1554
    %v2385 = vpack.c.b16 %v1559, %v1557
    %v2386 = vpack.c.b16 %v1560, %v1558
    %v2387 = vpack.c.b16 %v1563, %v1561
    %v2388 = vpack.c.b16 %v1564, %v1562
    %v2389 = vpack.c.b16 %v1567, %v1565
    %v2390 = vpack.c.b16 %v1568, %v1566
    %v2391 = vpack.c.b16 %v1571, %v1569
    %v2392 = vpack.c.b16 %v1572, %v1570
    %v2393 = vpack.c.b16 %v1575, %v1573
    %v2394 = vpack.c.b16 %v1576, %v1574
    %v2395 = vpack.c.b16 %v1579, %v1577
    %v2396 = vpack.c.b16 %v1580, %v1578
    %v2397 = vpack.c.b16 %v1583, %v1581
    %v2398 = vpack.c.b16 %v1584, %v1582
    %v2399 = vpack.c.b16 %v1587, %v1585
    %v2400 = vpack.c.b16 %v1588, %v1586
    %v2401 = vpack.c.b16 %v1591, %v1589
    %v2402 = vpack.c.b16 %v1592, %v1590
    %v2403 = vpack.c.b16 %v1595, %v1593
    %v2404 = vpack.c.b16 %v1596, %v1594
    %v2405 = vpack.c.b16 %v1599, %v1597
    %v2406 = vpack.c.b16 %v1600, %v1598
    %v2407 = vpack.c.b16 %v1603, %v1601
    %v2408 = vpack.c.b16 %v1604, %v1602
    %v2409 = vpack.c.b16 %v1607, %v1605
    %v2410 = vpack.c.b16 %v1608, %v1606
    %v2411 = vpack.c.b16 %v1611, %v1609
    %v2412 = vpack.c.b16 %v1612, %v1610
    %v2413 = vpack.c.b16 %v1615, %v1613
    %v2414 = vpack.c.b16 %v1616, %v1614
    %v2415 = vpack.c.b16 %v1619, %v1617
    %v2416 = vpack.c.b16 %v1620, %v1618
    %v2417 = vpack.c.b16 %v1623, %v1621
    %v2418 = vpack.c.b16 %v1624, %v1622
    %v2419 = vpack.c.b16 %v1627, %v1625
    %v2420 = vpack.c.b16 %v1628, %v1626
    %v2421 = vpack.c.b16 %v1631, %v1629
    %v2422 = vpack.c.b16 %v1632, %v1630
    %v2423 = vpack.c.b16 %v1635, %v1633
    %v2424 = vpack.c.b16 %v1636, %v1634
    %v2425 = vpack.c.b16 %v1639, %v1637
    %v2426 = vpack.c.b16 %v1640, %v1638
    %v2427 = vpack.c.b16 %v1643, %v1641
    %v2428 = vpack.c.b16 %v1644, %v1642
    %v2429 = vpack.c.b16 %v1647, %v1645
    %v2430 = vpack.c.b16 %v1648, %v1646
    %v2431 = vpack.c.b16 %v1651, %v1649
    %v2432 = vpack.c.b16 %v1652, %v1650
    %v2433 = vpack.c.b16 %v1655, %v1653
    %v2434 = vpack.c.b16 %v1656, %v1654
    %v2435 = vpack.c.b16 %v1659, %v1657
    %v2436 = vpack.c.b16 %v1660, %v1658
    %v2437 = vpack.c.b16 %v1663, %v1661
    %v2438 = vpack.c.b16 %v1664, %v1662
    %v2439 = vpack.c.b16 %v1667, %v1665
    %v2440 = vpack.c.b16 %v1668, %v1666
    %v2441 = vpack.c.b16 %v1671, %v1669
    %v2442 = vpack.c.b16 %v1672, %v1670
    %v2443 = vpack.c.b16 %v1675, %v1673
    %v2444 = vpack.c.b16 %v1676, %v1674
    %v2445 = vpack.c.b16 %v1679, %v1677
    %v2446 = vpack.c.b16 %v1680, %v1678
    %v2447 = vpack.c.b16 %v1683, %v1681
    %v2448 = vpack.c.b16 %v1684, %v1682
    %v2449 = vpack.c.b16 %v1687, %v1685
    %v2450 = vpack.c.b16 %v1688, %v1686
    %v2451 = vpack.c.b16 %v1691, %v1689
    %v2452 = vpack.c.b16 %v1692, %v1690
    %v2453 = vpack.c.b16 %v1695, %v1693
    %v2454 = vpack.c.b16 %v1696, %v1694
    %v2455 = vpack.c.b16 %v1699, %v1697
    %v2456 = vpack.c.b16 %v1700, %v1698
    %v2457 = vpack.c.b16 %v1703, %v1701
    %v2458 = vpack.c.b16 %v1704, %v1702
    %v2459 = vpack.c.b16 %v1707, %v1705
    %v2460 = vpack.c.b16 %v1708, %v1706
    %v2461 = vpack.c.b16 %v1711, %v1709
    %v2462 = vpack.c.b16 %v1712, %v1710
    %v2463 = vpack.c.b16 %v1715, %v1713
    %v2464 = vpack.c.b16 %v1716, %v1714
    %v2465 = vpack.c.b16 %v1719, %v1717
    %v2466 = vpack.c.b16 %v1720, %v1718
    %v2467 = vpack.c.b16 %v1723, %v1721
    %v2468 = vpack.c.b16 %v1724, %v1722
    %v2469 = vpack.c.b16 %v1727, %v1725
    %v2470 = vpack.c.b16 %v1728, %v1726
    %v2471 = vpack.c.b16 %v1731, %v1729
    %v2472 = vpack.c.b16 %v1732, %v1730
    %v2473 = vpack.c.b16 %v1735, %v1733
    %v2474 = vpack.c.b16 %v1736, %v1734
    %v2475 = vpack.c.b16 %v1739, %v1737
    %v2476 = vpack.c.b16 %v1740, %v1738
    %v2477 = vpack.c.b16 %v1743, %v1741
    %v2478 = vpack.c.b16 %v1744, %v1742
    %v2479 = vpack.c.b16 %v1747, %v1745
    %v2480 = vpack.c.b16 %v1748, %v1746
    %v2481 = vpack.c.b16 %v1751, %v1749
    %v2482 = vpack.c.b16 %v1752, %v1750
    %v2483 = vpack.c.b16 %v1755, %v1753
    %v2484 = vpack.c.b16 %v1756, %v1754
    %v2485 = vpack.c.b16 %v1759, %v1757
    %v2486 = vpack.c.b16 %v1760, %v1758
    %v2487 = vpack.c.b16 %v1763, %v1761
    %v2488 = vpack.c.b16 %v1764, %v1762
    %v2489 = vpack.c.b16 %v1767, %v1765
    %v2490 = vpack.c.b16 %v1768, %v1766
    %v2491 = vpack.c.b16 %v1771, %v1769
    %v2492 = vpack.c.b16 %v1772, %v1770
    %v2493 = vpack.c.b16 %v1775, %v1773
    %v2494 = vpack.c.b16 %v1776, %v1774
    %v2495 = vpack.c.b16 %v1779, %v1777
    %v2496 = vpack.c.b16 %v1780, %v1778
    %v2497 = vpack.c.b16 %v1783, %v1781
    %v2498 = vpack.c.b16 %v1784, %v1782
    %v2499 = vpack.c.b16 %v1787, %v1785
    %v2500 = vpack.c.b16 %v1788, %v1786
    %v2501 = vpack.c.b16 %v1791, %v1789
    %v2502 = vpack.c.b16 %v1792, %v1790
    %v2503 = vpack.c.b16 %v1795, %v1793
    %v2504 = vpack.c.b16 %v1796, %v1794
    %v2505 = vpack.c.b16 %v1799, %v1797
    %v2506 = vpack.c.b16 %v1800, %v1798
    %v2507 = vpack.c.b16 %v1803, %v1801
    %v2508 = vpack.c.b16 %v1804, %v1802
    %v2509 = vpack.c.b16 %v1807, %v1805
    %v2510 = vpack.c.b16 %v1808, %v1806
    %v2511 = vpack.c.b16 %v1811, %v1809
    %v2512 = vpack.c.b16 %v1812, %v1810
    %v2513 = vpack.c.b16 %v1815, %v1813
    %v2514 = vpack.c.b16 %v1816, %v1814
    %v2515 = vpack.c.b16 %v1819, %v1817
    %v2516 = vpack.c.b16 %v1820, %v1818
    %v2517 = vpack.c.b16 %v1823, %v1821
    %v2518 = vpack.c.b16 %v1824, %v1822
    %v2519 = vpack.c.b16 %v1827, %v1825
    %v2520 = vpack.c.b16 %v1828, %v1826
    %v2521 = vpack.c.b16 %v1831, %v1829
    %v2522 = vpack.c.b16 %v1832, %v1830
    %v2523 = vpack.c.b16 %v1835, %v1833
    %v2524 = vpack.c.b16 %v1836, %v1834
    %v2525 = vpack.c.b16 %v1839, %v1837
    %v2526 = vpack.c.b16 %v1840, %v1838
    %v2527 = vpack.c.b16 %v1843, %v1841
    %v2528 = vpack.c.b16 %v1844, %v1842
    %v2529 = vpack.c.b16 %v1847, %v1845
    %v2530 = vpack.c.b16 %v1848, %v1846
    %v2531 = vpack.c.b16 %v1851, %v1849
    %v2532 = vpack.c.b16 %v1852, %v1850
    %v2533 = vpack.c.b16 %v1855, %v1853
    %v2534 = vpack.c.b16 %v1856, %v1854
    %v2535 = vpack.c.b16 %v1859, %v1857
    %v2536 = vpack.c.b16 %v1860, %v1858
    %v2537 = vpack.c.b16 %v1863, %v1861
    %v2538 = vpack.c.b16 %v1864, %v1862
    %v2539 = vpack.c.b16 %v1867, %v1865
    %v2540 = vpack.c.b16 %v1868, %v1866
    %v2541 = vpack.c.b16 %v1871, %v1869
    %v2542 = vpack.c.b16 %v1872, %v1870
    %v2543 = vpack.c.b16 %v1875, %v1873
    %v2544 = vpack.c.b16 %v1876, %v1874
    %v2545 = vpack.c.b16 %v1879, %v1877
    %v2546 = vpack.c.b16 %v1880, %v1878
    %v2547 = vpack.c.b16 %v1883, %v1881
    %v2548 = vpack.c.b16 %v1884, %v1882
    %v2549 = vpack.c.b16 %v1887, %v1885
    %v2550 = vpack.c.b16 %v1888, %v1886
    %v2551 = vpack.c.b16 %v1891, %v1889
    %v2552 = vpack.c.b16 %v1892, %v1890
    %v2553 = vpack.c.b16 %v1895, %v1893
    %v2554 = vpack.c.b16 %v1896, %v1894
    %v2555 = vpack.c.b16 %v1899, %v1897
    %v2556 = vpack.c.b16 %v1900, %v1898
    %v2557 = vpack.c.b16 %v1903, %v1901
    %v2558 = vpack.c.b16 %v1904, %v1902
    %v2559 = vpack.c.b16 %v1907, %v1905
    %v2560 = vpack.c.b16 %v1908, %v1906
    %v2561 = vpack.c.b16 %v1911, %v1909
    %v2562 = vpack.c.b16 %v1912, %v1910
    %v2563 = vpack.c.b16 %v1915, %v1913
    %v2564 = vpack.c.b16 %v1916, %v1914
    %v2565 = vpack.c.b16 %v1919, %v1917
    %v2566 = vpack.c.b16 %v1920, %v1918
    %v2567 = vpack.c.b16 %v1923, %v1921
    %v2568 = vpack.c.b16 %v1924, %v1922
    %v2569 = vpack.c.b16 %v1927, %v1925
    %v2570 = vpack.c.b16 %v1928, %v1926
    %v2571 = vpack.c.b16 %v1931, %v1929
    %v2572 = vpack.c.b16 %v1932, %v1930
    %v2573 = vpack.c.b16 %v1935, %v1933
    %v2574 = vpack.c.b16 %v1936, %v1934
    %v2575 = vpack.c.b16 %v1939, %v1937
    %v2576 = vpack.c.b16 %v1940, %v1938
    %v2577 = vpack.c.b16 %v1943, %v1941
    %v2578 = vpack.c.b16 %v1944, %v1942
    %v2579 = vpack.c.b16 %v1947, %v1945
    %v2580 = vpack.c.b16 %v1948, %v1946
    %v2581 = vpack.c.b16 %v1951, %v1949
    %v2582 = vpack.c.b16 %v1952, %v1950
    %v2583 = vpack.c.b16 %v1955, %v1953
    %v2584 = vpack.c.b16 %v1956, %v1954
    %v2585 = vpack.c.b16 %v1959, %v1957
    %v2586 = vpack.c.b16 %v1960, %v1958
    %v2587 = vpack.c.b16 %v1963, %v1961
    %v2588 = vpack.c.b16 %v1964, %v1962
    %v2589 = vpack.c.b16 %v1967, %v1965
    %v2590 = vpack.c.b16 %v1968, %v1966
    %v2591 = vpack.c.b16 %v1971, %v1969
    %v2592 = vpack.c.b16 %v1972, %v1970
    %v2593 = vpack.c.b16 %v1975, %v1973
    %v2594 = vpack.c.b16 %v1976, %v1974
    %v2595 = vpack.c.b16 %v1979, %v1977
    %v2596 = vpack.c.b16 %v1980, %v1978
    %v2597 = vpack.c.b16 %v1983, %v1981
    %v2598 = vpack.c.b16 %v1984, %v1982
    %v2599 = vpack.c.b16 %v1987, %v1985
    %v2600 = vpack.c.b16 %v1988, %v1986
    %v2601 = vpack.c.b16 %v1991, %v1989
    %v2602 = vpack.c.b16 %v1992, %v1990
    %v2603 = vpack.c.b16 %v1995, %v1993
    %v2604 = vpack.c.b16 %v1996, %v1994
    %v2605 = vpack.c.b16 %v1999, %v1997
    %v2606 = vpack.c.b16 %v2000, %v1998
    %v2607 = vpack.c.b16 %v2003, %v2001
    %v2608 = vpack.c.b16 %v2004, %v2002
    %v2609 = vpack.c.b16 %v2007, %v2005
    %v2610 = vpack.c.b16 %v2008, %v2006
    %v2611 = vpack.c.b16 %v2011, %v2009
    %v2612 = vpack.c.b16 %v2012, %v2010
    %v2613 = vpack.c.b16 %v2015, %v2013
    %v2614 = vpack.c.b16 %v2016, %v2014
    %v2615 = vpack.c.b16 %v2019, %v2017
    %v2616 = vpack.c.b16 %v2020, %v2018
    %v2617 = vpack.c.b16 %v2023, %v2021
    %v2618 = vpack.c.b16 %v2024, %v2022
    %v2619 = vpack.c.b16 %v2027, %v2025
    %v2620 = vpack.c.b16 %v2028, %v2026
    %v2621 = vpack.c.b16 %v2031, %v2029
    %v2622 = vpack.c.b16 %v2032, %v2030
    %v2623 = vpack.c.b16 %v2035, %v2033
    %v2624 = vpack.c.b16 %v2036, %v2034
    %v2625 = vpack.c.b16 %v2039, %v2037
    %v2626 = vpack.c.b16 %v2040, %v2038
    %v2627 = vpack.c.b16 %v2043, %v2041
    %v2628 = vpack.c.b16 %v2044, %v2042
    %v2629 = vpack.c.b16 %v2047, %v2045
    %v2630 = vpack.c.b16 %v2048, %v2046
    %v2631 = vpack.c.b16 %v2051, %v2049
    %v2632 = vpack.c.b16 %v2052, %v2050
    %v2633 = vpack.c.b16 %v2055, %v2053
    %v2634 = vpack.c.b16 %v2056, %v2054
    %v2635 = vpack.c.b16 %v2059, %v2057
    %v2636 = vpack.c.b16 %v2060, %v2058
    %v2637 = vpack.c.b16 %v2063, %v2061
    %v2638 = vpack.c.b16 %v2064, %v2062
    %v2639 = vpack.c.b16 %v2067, %v2065
    %v2640 = vpack.c.b16 %v2068, %v2066
    %v2641 = vpack.c.b16 %v2071, %v2069
    %v2642 = vpack.c.b16 %v2072, %v2070
    %v2643 = vpack.c.b16 %v2075, %v2073
    %v2644 = vpack.c.b16 %v2076, %v2074
    %v2645 = vpack.c.b16 %v2079, %v2077
    %v2646 = vpack.c.b16 %v2080, %v2078
    %v2647 = vpack.c.b16 %v2083, %v2081
    %v2648 = vpack.c.b16 %v2084, %v2082
    %v2649 = vpack.c.b16 %v2087, %v2085
    %v2650 = vpack.c.b16 %v2088, %v2086
    %v2651 = vpack.c.b16 %v2091, %v2089
    %v2652 = vpack.c.b16 %v2092, %v2090
    %v2653 = vpack.c.b16 %v2095, %v2093
    %v2654 = vpack.c.b16 %v2096, %v2094
    %v2655 = vpack.c.b16 %v2099, %v2097
    %v2656 = vpack.c.b16 %v2100, %v2098
    %v2657 = vpack.c.b16 %v2103, %v2101
    %v2658 = vpack.c.b16 %v2104, %v2102
    %v2659 = vpack.c.b16 %v2107, %v2105
    %v2660 = vpack.c.b16 %v2108, %v2106
    %v2661 = vpack.c.b16 %v2111, %v2109
    %v2662 = vpack.c.b16 %v2112, %v2110
    %v2663 = vpack.c.b16 %v2115, %v2113
    %v2664 = vpack.c.b16 %v2116, %v2114
    %v2665 = vpack.c.b16 %v2119, %v2117
    %v2666 = vpack.c.b16 %v2120, %v2118
    %v2667 = vpack.c.b16 %v2123, %v2121
    %v2668 = vpack.c.b16 %v2124, %v2122
    %v2669 = vpack.c.b16 %v2127, %v2125
    %v2670 = vpack.c.b16 %v2128, %v2126
    %v2671 = vpack.c.b16 %v2131, %v2129
    %v2672 = vpack.c.b16 %v2132, %v2130
    %v2673 = vpack.c.b16 %v2135, %v2133
    %v2674 = vpack.c.b16 %v2136, %v2134
    %v2675 = vpack.c.b16 %v2139, %v2137
    %v2676 = vpack.c.b16 %v2140, %v2138
    %v2677 = vpack.c.b16 %v2143, %v2141
    %v2678 = vpack.c.b16 %v2144, %v2142
    %v2679 = vpack.c.b16 %v2147, %v2145
    %v2680 = vpack.c.b16 %v2148, %v2146
    %v2681 = vpack.c.b16 %v2151, %v2149
    %v2682 = vpack.c.b16 %v2152, %v2150
    %v2683 = vpack.c.b16 %v2155, %v2153
    %v2684 = vpack.c.b16 %v2156, %v2154
    %v2685 = vpack.c.b16 %v2159, %v2157
    %v2686 = vpack.c.b16 %v2160, %v2158
    %v2687 = vpack.c.b16 %v2163, %v2161
    %v2688 = vpack.c.b16 %v2164, %v2162
    %v2689 = vpack.c.b16 %v2167, %v2165
    %v2690 = vpack.c.b16 %v2168, %v2166
    %v2691 = vpack.c.b16 %v2171, %v2169
    %v2692 = vpack.c.b16 %v2172, %v2170
    %v2693 = vpack.c.b16 %v2175, %v2173
    %v2694 = vpack.c.b16 %v2176, %v2174
    %v2695 = vpack.c.b16 %v2179, %v2177
    %v2696 = vpack.c.b16 %v2180, %v2178
    %v2697 = vpack.c.b16 %v2183, %v2181
    %v2698 = vpack.c.b16 %v2184, %v2182
    %v2699 = vpack.c.b16 %v2187, %v2185
    %v2700 = vpack.c.b16 %v2188, %v2186
    %v2701 = vpack.c.b16 %v2191, %v2189
    %v2702 = vpack.c.b16 %v2192, %v2190
    %v2703 = vpack.c.b16 %v2195, %v2193
    %v2704 = vpack.c.b16 %v2196, %v2194
    %v2705 = vpack.c.b16 %v2199, %v2197
    %v2706 = vpack.c.b16 %v2200, %v2198
    %v2707 = vpack.c.b16 %v2203, %v2201
    %v2708 = vpack.c.b16 %v2204, %v2202
    %v2709 = vpack.c.b16 %v2207, %v2205
    %v2710 = vpack.c.b16 %v2208, %v2206
    %v2711 = vpack.c.b16 %v2211, %v2209
    %v2712 = vpack.c.b16 %v2212, %v2210
    %v2713 = vpack.c.b16 %v2215, %v2213
    %v2714 = vpack.c.b16 %v2216, %v2214
    %v2715 = vpack.c.b16 %v2219, %v2217
    %v2716 = vpack.c.b16 %v2220, %v2218
    %v2717 = vpack.c.b16 %v2223, %v2221
    %v2718 = vpack.c.b16 %v2224, %v2222
    %v2719 = vpack.c.b16 %v2227, %v2225
    %v2720 = vpack.c.b16 %v2228, %v2226
    %v2721 = vpack.c.b16 %v2231, %v2229
    %v2722 = vpack.c.b16 %v2232, %v2230
    %vm3213 = vcmask 654336
    %v3215 = vsel %vm3213, %v731, 0
    %3217 = vmatprep.subr.bf16.mxu0 %v2248
    %3218 = vmatpush1.bf16.msra.mxu0 %v2247
    %3219 = vmatprep.subr.bf16.mxu0 %v2246
    %3220 = vmatpush1.bf16.msra.mxu0 %v2245
    %3221 = vmatprep.subr.bf16.mxu0 %v2244
    %3222 = vmatpush1.bf16.msra.mxu0 %v2243
    %3223 = vmatprep.subr.bf16.mxu0 %v2242
    %3224 = vmatpush1.bf16.msra.mxu0 %v2241
    %3225 = vmatprep.subr.bf16.mxu0 %v2240
    %3226 = vmatpush1.bf16.msra.mxu0 %v2239
    %3227 = vmatprep.subr.bf16.mxu0 %v2238
    %3228 = vmatpush1.bf16.msra.mxu0 %v2237
    %3229 = vmatprep.subr.bf16.mxu0 %v2236
    %3230 = vmatpush1.bf16.msra.mxu0 %v2235
    %3231 = vmatprep.subr.bf16.mxu0 %v2234
    %3232 = vmatpush1.bf16.msra.mxu0 %v2233
    %3233 = vmatprep.subr.bf16.mxu0 %v2264
    %3234 = vmatpush2.bf16.msra.mxu0 %v2263
    %3235 = vmatprep.subr.bf16.mxu0 %v2262
    %3236 = vmatpush2.bf16.msra.mxu0 %v2261
    %3237 = vmatprep.subr.bf16.mxu0 %v2260
    %3238 = vmatpush2.bf16.msra.mxu0 %v2259
    %3239 = vmatprep.subr.bf16.mxu0 %v2258
    %3240 = vmatpush2.bf16.msra.mxu0 %v2257
    %3241 = vmatprep.subr.bf16.mxu0 %v2256
    %3242 = vmatpush2.bf16.msra.mxu0 %v2255
    %3243 = vmatprep.subr.bf16.mxu0 %v2254
    %3244 = vmatpush2.bf16.msra.mxu0 %v2253
    %3245 = vmatprep.subr.bf16.mxu0 %v2252
    %3246 = vmatpush2.bf16.msra.mxu0 %v2251
    %3247 = vmatprep.subr.bf16.mxu0 %v2250
    %3248 = vmatpush2.bf16.msra.mxu0 %v2249
    %3249 = vmatprep.mubr.bf16.mxu0 %v575
    %3250 = vmatmul.mubr.bf16.gmra.mxu0 %v561
    %v3251 = vpop.f32.mrf.mxu0
    %v3252 = vadd.f32 %v527, %v3251
    %v3253 = vpop.f32.mrf.mxu0
    %v3254 = vadd.f32 %v531, %v3253
    %v3255 = vpop.f32.mrf.mxu0
    %v3256 = vpop.f32.mrf.mxu0
    %3257 = vdwg.mxu0
    %3258 = vmatprep.subr.bf16.mxu0 %v2280
    %3259 = vmatpush1.bf16.msra.mxu0 %v2279
    %3260 = vmatprep.subr.bf16.mxu0 %v2278
    %3261 = vmatpush1.bf16.msra.mxu0 %v2277
    %3262 = vmatprep.subr.bf16.mxu0 %v2276
    %3263 = vmatpush1.bf16.msra.mxu0 %v2275
    %3264 = vmatprep.subr.bf16.mxu0 %v2274
    %3265 = vmatpush1.bf16.msra.mxu0 %v2273
    %3266 = vmatprep.subr.bf16.mxu0 %v2272
    %3267 = vmatpush1.bf16.msra.mxu0 %v2271
    %3268 = vmatprep.subr.bf16.mxu0 %v2270
    %3269 = vmatpush1.bf16.msra.mxu0 %v2269
    %3270 = vmatprep.subr.bf16.mxu0 %v2268
    %3271 = vmatpush1.bf16.msra.mxu0 %v2267
    %3272 = vmatprep.subr.bf16.mxu0 %v2266
    %3273 = vmatpush1.bf16.msra.mxu0 %v2265
    %3274 = vmatprep.subr.bf16.mxu0 %v2296
    %3275 = vmatpush2.bf16.msra.mxu0 %v2295
    %3276 = vmatprep.subr.bf16.mxu0 %v2294
    %3277 = vmatpush2.bf16.msra.mxu0 %v2293
    %3278 = vmatprep.subr.bf16.mxu0 %v2292
    %3279 = vmatpush2.bf16.msra.mxu0 %v2291
    %3280 = vmatprep.subr.bf16.mxu0 %v2290
    %3281 = vmatpush2.bf16.msra.mxu0 %v2289
    %3282 = vmatprep.subr.bf16.mxu0 %v2288
    %3283 = vmatpush2.bf16.msra.mxu0 %v2287
    %3284 = vmatprep.subr.bf16.mxu0 %v2286
    %3285 = vmatpush2.bf16.msra.mxu0 %v2285
    %3286 = vmatprep.subr.bf16.mxu0 %v2284
    %3287 = vmatpush2.bf16.msra.mxu0 %v2283
    %3288 = vmatprep.subr.bf16.mxu0 %v2282
    %3289 = vmatpush2.bf16.msra.mxu0 %v2281
    %3290 = vmatprep.mubr.bf16.mxu0 %v585
    %3291 = vmatmul.mubr.bf16.gmra.mxu0 %v583
    %v3292 = vpop.f32.mrf.mxu0
    %v3293 = vadd.f32 %v3252, %v3292
    %v3294 = vpop.f32.mrf.mxu0
    %v3295 = vadd.f32 %v3254, %v3294
    %v3296 = vpop.f32.mrf.mxu0
    %v3297 = vpop.f32.mrf.mxu0
    %3298 = vdwg.mxu0
    %3299 = vmatprep.subr.bf16.mxu0 %v2312
    %3300 = vmatpush1.bf16.msra.mxu0 %v2311
    %3301 = vmatprep.subr.bf16.mxu0 %v2310
    %3302 = vmatpush1.bf16.msra.mxu0 %v2309
    %3303 = vmatprep.subr.bf16.mxu0 %v2308
    %3304 = vmatpush1.bf16.msra.mxu0 %v2307
    %3305 = vmatprep.subr.bf16.mxu0 %v2306
    %3306 = vmatpush1.bf16.msra.mxu0 %v2305
    %3307 = vmatprep.subr.bf16.mxu0 %v2304
    %3308 = vmatpush1.bf16.msra.mxu0 %v2303
    %3309 = vmatprep.subr.bf16.mxu0 %v2302
    %3310 = vmatpush1.bf16.msra.mxu0 %v2301
    %3311 = vmatprep.subr.bf16.mxu0 %v2300
    %3312 = vmatpush1.bf16.msra.mxu0 %v2299
    %3313 = vmatprep.subr.bf16.mxu0 %v2298
    %3314 = vmatpush1.bf16.msra.mxu0 %v2297
    %3315 = vmatprep.subr.bf16.mxu0 %v2328
    %3316 = vmatpush2.bf16.msra.mxu0 %v2327
    %3317 = vmatprep.subr.bf16.mxu0 %v2326
    %3318 = vmatpush2.bf16.msra.mxu0 %v2325
    %3319 = vmatprep.subr.bf16.mxu0 %v2324
    %3320 = vmatpush2.bf16.msra.mxu0 %v2323
    %3321 = vmatprep.subr.bf16.mxu0 %v2322
    %3322 = vmatpush2.bf16.msra.mxu0 %v2321
    %3323 = vmatprep.subr.bf16.mxu0 %v2320
    %3324 = vmatpush2.bf16.msra.mxu0 %v2319
    %3325 = vmatprep.subr.bf16.mxu0 %v2318
    %3326 = vmatpush2.bf16.msra.mxu0 %v2317
    %3327 = vmatprep.subr.bf16.mxu0 %v2316
    %3328 = vmatpush2.bf16.msra.mxu0 %v2315
    %3329 = vmatprep.subr.bf16.mxu0 %v2314
    %3330 = vmatpush2.bf16.msra.mxu0 %v2313
    %3331 = vmatprep.mubr.bf16.mxu0 %v582
    %3332 = vmatmul.mubr.bf16.gmra.mxu0 %v568
    %v3333 = vpop.f32.mrf.mxu0
    %v3334 = vadd.f32 %v3293, %v3333
    %v3335 = vpop.f32.mrf.mxu0
    %v3336 = vadd.f32 %v3295, %v3335
    %v3337 = vpop.f32.mrf.mxu0
    %v3338 = vpop.f32.mrf.mxu0
    %3339 = vdwg.mxu0
    %3340 = vmatprep.subr.bf16.mxu0 %v2344
    %3341 = vmatpush1.bf16.msra.mxu0 %v2343
    %3342 = vmatprep.subr.bf16.mxu0 %v2342
    %3343 = vmatpush1.bf16.msra.mxu0 %v2341
    %3344 = vmatprep.subr.bf16.mxu0 %v2340
    %3345 = vmatpush1.bf16.msra.mxu0 %v2339
    %3346 = vmatprep.subr.bf16.mxu0 %v2338
    %3347 = vmatpush1.bf16.msra.mxu0 %v2337
    %3348 = vmatprep.subr.bf16.mxu0 %v2336
    %3349 = vmatpush1.bf16.msra.mxu0 %v2335
    %3350 = vmatprep.subr.bf16.mxu0 %v2334
    %3351 = vmatpush1.bf16.msra.mxu0 %v2333
    %3352 = vmatprep.subr.bf16.mxu0 %v2332
    %3353 = vmatpush1.bf16.msra.mxu0 %v2331
    %3354 = vmatprep.subr.bf16.mxu0 %v2330
    %3355 = vmatpush1.bf16.msra.mxu0 %v2329
    %3356 = vmatprep.subr.bf16.mxu0 %v2360
    %3357 = vmatpush2.bf16.msra.mxu0 %v2359
    %3358 = vmatprep.subr.bf16.mxu0 %v2358
    %3359 = vmatpush2.bf16.msra.mxu0 %v2357
    %3360 = vmatprep.subr.bf16.mxu0 %v2356
    %3361 = vmatpush2.bf16.msra.mxu0 %v2355
    %3362 = vmatprep.subr.bf16.mxu0 %v2354
    %3363 = vmatpush2.bf16.msra.mxu0 %v2353
    %3364 = vmatprep.subr.bf16.mxu0 %v2352
    %3365 = vmatpush2.bf16.msra.mxu0 %v2351
    %3366 = vmatprep.subr.bf16.mxu0 %v2350
    %3367 = vmatpush2.bf16.msra.mxu0 %v2349
    %3368 = vmatprep.subr.bf16.mxu0 %v2348
    %3369 = vmatpush2.bf16.msra.mxu0 %v2347
    %3370 = vmatprep.subr.bf16.mxu0 %v2346
    %3371 = vmatpush2.bf16.msra.mxu0 %v2345
    %3372 = vmatprep.mubr.bf16.mxu0 %v586
    %3373 = vmatmul.mubr.bf16.gmra.mxu0 %v584
    %v3374 = vpop.f32.mrf.mxu0
    %v3375 = vadd.f32 %v3334, %v3374
    %v3376 = vpop.f32.mrf.mxu0
    %v3377 = vadd.f32 %v3336, %v3376
    %v3378 = vpop.f32.mrf.mxu0
    %v3379 = vpop.f32.mrf.mxu0
    %3380 = vdwg.mxu0
    %3381 = vmatprep.subr.bf16.mxu0 %v2376
    %3382 = vmatpush1.bf16.msra.mxu0 %v2375
    %3383 = vmatprep.subr.bf16.mxu0 %v2374
    %3384 = vmatpush1.bf16.msra.mxu0 %v2373
    %3385 = vmatprep.subr.bf16.mxu0 %v2372
    %3386 = vmatpush1.bf16.msra.mxu0 %v2371
    %3387 = vmatprep.subr.bf16.mxu0 %v2370
    %3388 = vmatpush1.bf16.msra.mxu0 %v2369
    %3389 = vmatprep.subr.bf16.mxu0 %v2368
    %3390 = vmatpush1.bf16.msra.mxu0 %v2367
    %3391 = vmatprep.subr.bf16.mxu0 %v2366
    %3392 = vmatpush1.bf16.msra.mxu0 %v2365
    %3393 = vmatprep.subr.bf16.mxu0 %v2364
    %3394 = vmatpush1.bf16.msra.mxu0 %v2363
    %3395 = vmatprep.subr.bf16.mxu0 %v2362
    %3396 = vmatpush1.bf16.msra.mxu0 %v2361
    %3397 = vmatprep.subr.bf16.mxu0 %v2392
    %3398 = vmatpush2.bf16.msra.mxu0 %v2391
    %3399 = vmatprep.subr.bf16.mxu0 %v2390
    %3400 = vmatpush2.bf16.msra.mxu0 %v2389
    %3401 = vmatprep.subr.bf16.mxu0 %v2388
    %3402 = vmatpush2.bf16.msra.mxu0 %v2387
    %3403 = vmatprep.subr.bf16.mxu0 %v2386
    %3404 = vmatpush2.bf16.msra.mxu0 %v2385
    %3405 = vmatprep.subr.bf16.mxu0 %v2384
    %3406 = vmatpush2.bf16.msra.mxu0 %v2383
    %3407 = vmatprep.subr.bf16.mxu0 %v2382
    %3408 = vmatpush2.bf16.msra.mxu0 %v2381
    %3409 = vmatprep.subr.bf16.mxu0 %v2380
    %3410 = vmatpush2.bf16.msra.mxu0 %v2379
    %3411 = vmatprep.subr.bf16.mxu0 %v2378
    %3412 = vmatpush2.bf16.msra.mxu0 %v2377
    %3413 = vmatprep.mubr.bf16.mxu0 %v624
    %3414 = vmatmul.mubr.bf16.gmra.mxu0 %v610
    %v3415 = vpop.f32.mrf.mxu0
    %v3416 = vadd.f32 %v3375, %v3415
    %v3417 = vpop.f32.mrf.mxu0
    %v3418 = vadd.f32 %v3377, %v3417
    %v3419 = vpop.f32.mrf.mxu0
    %v3420 = vpop.f32.mrf.mxu0
    %3421 = vdwg.mxu0
    %3422 = vmatprep.subr.bf16.mxu0 %v2408
    %3423 = vmatpush1.bf16.msra.mxu0 %v2407
    %3424 = vmatprep.subr.bf16.mxu0 %v2406
    %3425 = vmatpush1.bf16.msra.mxu0 %v2405
    %3426 = vmatprep.subr.bf16.mxu0 %v2404
    %3427 = vmatpush1.bf16.msra.mxu0 %v2403
    %3428 = vmatprep.subr.bf16.mxu0 %v2402
    %3429 = vmatpush1.bf16.msra.mxu0 %v2401
    %3430 = vmatprep.subr.bf16.mxu0 %v2400
    %3431 = vmatpush1.bf16.msra.mxu0 %v2399
    %3432 = vmatprep.subr.bf16.mxu0 %v2398
    %3433 = vmatpush1.bf16.msra.mxu0 %v2397
    %3434 = vmatprep.subr.bf16.mxu0 %v2396
    %3435 = vmatpush1.bf16.msra.mxu0 %v2395
    %3436 = vmatprep.subr.bf16.mxu0 %v2394
    %3437 = vmatpush1.bf16.msra.mxu0 %v2393
    %3438 = vmatprep.subr.bf16.mxu0 %v2424
    %3439 = vmatpush2.bf16.msra.mxu0 %v2423
    %3440 = vmatprep.subr.bf16.mxu0 %v2422
    %3441 = vmatpush2.bf16.msra.mxu0 %v2421
    %3442 = vmatprep.subr.bf16.mxu0 %v2420
    %3443 = vmatpush2.bf16.msra.mxu0 %v2419
    %3444 = vmatprep.subr.bf16.mxu0 %v2418
    %3445 = vmatpush2.bf16.msra.mxu0 %v2417
    %3446 = vmatprep.subr.bf16.mxu0 %v2416
    %3447 = vmatpush2.bf16.msra.mxu0 %v2415
    %3448 = vmatprep.subr.bf16.mxu0 %v2414
    %3449 = vmatpush2.bf16.msra.mxu0 %v2413
    %3450 = vmatprep.subr.bf16.mxu0 %v2412
    %3451 = vmatpush2.bf16.msra.mxu0 %v2411
    %3452 = vmatprep.subr.bf16.mxu0 %v2410
    %3453 = vmatpush2.bf16.msra.mxu0 %v2409
    %3454 = vmatprep.mubr.bf16.mxu0 %v634
    %3455 = vmatmul.mubr.bf16.gmra.mxu0 %v632
    %v3456 = vpop.f32.mrf.mxu0
    %v3457 = vadd.f32 %v3416, %v3456
    %v3458 = vpop.f32.mrf.mxu0
    %v3459 = vadd.f32 %v3418, %v3458
    %v3460 = vpop.f32.mrf.mxu0
    %v3461 = vpop.f32.mrf.mxu0
    %3462 = vdwg.mxu0
    %3463 = vmatprep.subr.bf16.mxu0 %v2440
    %3464 = vmatpush1.bf16.msra.mxu0 %v2439
    %3465 = vmatprep.subr.bf16.mxu0 %v2438
    %3466 = vmatpush1.bf16.msra.mxu0 %v2437
    %3467 = vmatprep.subr.bf16.mxu0 %v2436
    %3468 = vmatpush1.bf16.msra.mxu0 %v2435
    %3469 = vmatprep.subr.bf16.mxu0 %v2434
    %3470 = vmatpush1.bf16.msra.mxu0 %v2433
    %3471 = vmatprep.subr.bf16.mxu0 %v2432
    %3472 = vmatpush1.bf16.msra.mxu0 %v2431
    %3473 = vmatprep.subr.bf16.mxu0 %v2430
    %3474 = vmatpush1.bf16.msra.mxu0 %v2429
    %3475 = vmatprep.subr.bf16.mxu0 %v2428
    %3476 = vmatpush1.bf16.msra.mxu0 %v2427
    %3477 = vmatprep.subr.bf16.mxu0 %v2426
    %3478 = vmatpush1.bf16.msra.mxu0 %v2425
    %3479 = vmatprep.subr.bf16.mxu0 %v2456
    %3480 = vmatpush2.bf16.msra.mxu0 %v2455
    %3481 = vmatprep.subr.bf16.mxu0 %v2454
    %3482 = vmatpush2.bf16.msra.mxu0 %v2453
    %3483 = vmatprep.subr.bf16.mxu0 %v2452
    %3484 = vmatpush2.bf16.msra.mxu0 %v2451
    %3485 = vmatprep.subr.bf16.mxu0 %v2450
    %3486 = vmatpush2.bf16.msra.mxu0 %v2449
    %3487 = vmatprep.subr.bf16.mxu0 %v2448
    %3488 = vmatpush2.bf16.msra.mxu0 %v2447
    %3489 = vmatprep.subr.bf16.mxu0 %v2446
    %3490 = vmatpush2.bf16.msra.mxu0 %v2445
    %3491 = vmatprep.subr.bf16.mxu0 %v2444
    %3492 = vmatpush2.bf16.msra.mxu0 %v2443
    %3493 = vmatprep.subr.bf16.mxu0 %v2442
    %3494 = vmatpush2.bf16.msra.mxu0 %v2441
    %3495 = vmatprep.mubr.bf16.mxu0 %v631
    %3496 = vmatmul.mubr.bf16.gmra.mxu0 %v617
    %v3497 = vpop.f32.mrf.mxu0
    %v3498 = vadd.f32 %v3457, %v3497
    %v3499 = vpop.f32.mrf.mxu0
    %v3500 = vadd.f32 %v3459, %v3499
    %v3501 = vpop.f32.mrf.mxu0
    %v3502 = vpop.f32.mrf.mxu0
    %3503 = vdwg.mxu0
    %3504 = vmatprep.subr.bf16.mxu0 %v2472
    %3505 = vmatpush1.bf16.msra.mxu0 %v2471
    %3506 = vmatprep.subr.bf16.mxu0 %v2470
    %3507 = vmatpush1.bf16.msra.mxu0 %v2469
    %3508 = vmatprep.subr.bf16.mxu0 %v2468
    %3509 = vmatpush1.bf16.msra.mxu0 %v2467
    %3510 = vmatprep.subr.bf16.mxu0 %v2466
    %3511 = vmatpush1.bf16.msra.mxu0 %v2465
    %3512 = vmatprep.subr.bf16.mxu0 %v2464
    %3513 = vmatpush1.bf16.msra.mxu0 %v2463
    %3514 = vmatprep.subr.bf16.mxu0 %v2462
    %3515 = vmatpush1.bf16.msra.mxu0 %v2461
    %3516 = vmatprep.subr.bf16.mxu0 %v2460
    %3517 = vmatpush1.bf16.msra.mxu0 %v2459
    %3518 = vmatprep.subr.bf16.mxu0 %v2458
    %3519 = vmatpush1.bf16.msra.mxu0 %v2457
    %3520 = vmatprep.subr.bf16.mxu0 %v2488
    %3521 = vmatpush2.bf16.msra.mxu0 %v2487
    %3522 = vmatprep.subr.bf16.mxu0 %v2486
    %3523 = vmatpush2.bf16.msra.mxu0 %v2485
    %3524 = vmatprep.subr.bf16.mxu0 %v2484
    %3525 = vmatpush2.bf16.msra.mxu0 %v2483
    %3526 = vmatprep.subr.bf16.mxu0 %v2482
    %3527 = vmatpush2.bf16.msra.mxu0 %v2481
    %3528 = vmatprep.subr.bf16.mxu0 %v2480
    %3529 = vmatpush2.bf16.msra.mxu0 %v2479
    %3530 = vmatprep.subr.bf16.mxu0 %v2478
    %3531 = vmatpush2.bf16.msra.mxu0 %v2477
    %3532 = vmatprep.subr.bf16.mxu0 %v2476
    %3533 = vmatpush2.bf16.msra.mxu0 %v2475
    %3534 = vmatprep.subr.bf16.mxu0 %v2474
    %3535 = vmatpush2.bf16.msra.mxu0 %v2473
    %3536 = vmatprep.mubr.bf16.mxu0 %v635
    %3537 = vmatmul.mubr.bf16.gmra.mxu0 %v633
    %v3538 = vpop.f32.mrf.mxu0
    %v3539 = vadd.f32 %v3498, %v3538
    %v3540 = vpop.f32.mrf.mxu0
    %v3541 = vadd.f32 %v3500, %v3540
    %v3542 = vpop.f32.mrf.mxu0
    %v3543 = vpop.f32.mrf.mxu0
    %3544 = vdwg.mxu0
    %3545 = vmatprep.subr.bf16.mxu0 %v2504
    %3546 = vmatpush1.bf16.msra.mxu0 %v2503
    %3547 = vmatprep.subr.bf16.mxu0 %v2502
    %3548 = vmatpush1.bf16.msra.mxu0 %v2501
    %3549 = vmatprep.subr.bf16.mxu0 %v2500
    %3550 = vmatpush1.bf16.msra.mxu0 %v2499
    %3551 = vmatprep.subr.bf16.mxu0 %v2498
    %3552 = vmatpush1.bf16.msra.mxu0 %v2497
    %3553 = vmatprep.subr.bf16.mxu0 %v2496
    %3554 = vmatpush1.bf16.msra.mxu0 %v2495
    %3555 = vmatprep.subr.bf16.mxu0 %v2494
    %3556 = vmatpush1.bf16.msra.mxu0 %v2493
    %3557 = vmatprep.subr.bf16.mxu0 %v2492
    %3558 = vmatpush1.bf16.msra.mxu0 %v2491
    %3559 = vmatprep.subr.bf16.mxu0 %v2490
    %3560 = vmatpush1.bf16.msra.mxu0 %v2489
    %3561 = vmatprep.subr.bf16.mxu0 %v2520
    %3562 = vmatpush2.bf16.msra.mxu0 %v2519
    %3563 = vmatprep.subr.bf16.mxu0 %v2518
    %3564 = vmatpush2.bf16.msra.mxu0 %v2517
    %3565 = vmatprep.subr.bf16.mxu0 %v2516
    %3566 = vmatpush2.bf16.msra.mxu0 %v2515
    %3567 = vmatprep.subr.bf16.mxu0 %v2514
    %3568 = vmatpush2.bf16.msra.mxu0 %v2513
    %3569 = vmatprep.subr.bf16.mxu0 %v2512
    %3570 = vmatpush2.bf16.msra.mxu0 %v2511
    %3571 = vmatprep.subr.bf16.mxu0 %v2510
    %3572 = vmatpush2.bf16.msra.mxu0 %v2509
    %3573 = vmatprep.subr.bf16.mxu0 %v2508
    %3574 = vmatpush2.bf16.msra.mxu0 %v2507
    %3575 = vmatprep.subr.bf16.mxu0 %v2506
    %3576 = vmatpush2.bf16.msra.mxu0 %v2505
    %3577 = vmatprep.mubr.bf16.mxu0 %v673
    %3578 = vmatmul.mubr.bf16.gmra.mxu0 %v659
    %v3579 = vpop.f32.mrf.mxu0
    %v3580 = vadd.f32 %v3539, %v3579
    %v3581 = vpop.f32.mrf.mxu0
    %v3582 = vadd.f32 %v3541, %v3581
    %v3583 = vpop.f32.mrf.mxu0
    %v3584 = vpop.f32.mrf.mxu0
    %3585 = vdwg.mxu0
    %3586 = vmatprep.subr.bf16.mxu0 %v2536
    %3587 = vmatpush1.bf16.msra.mxu0 %v2535
    %3588 = vmatprep.subr.bf16.mxu0 %v2534
    %3589 = vmatpush1.bf16.msra.mxu0 %v2533
    %3590 = vmatprep.subr.bf16.mxu0 %v2532
    %3591 = vmatpush1.bf16.msra.mxu0 %v2531
    %3592 = vmatprep.subr.bf16.mxu0 %v2530
    %3593 = vmatpush1.bf16.msra.mxu0 %v2529
    %3594 = vmatprep.subr.bf16.mxu0 %v2528
    %3595 = vmatpush1.bf16.msra.mxu0 %v2527
    %3596 = vmatprep.subr.bf16.mxu0 %v2526
    %3597 = vmatpush1.bf16.msra.mxu0 %v2525
    %3598 = vmatprep.subr.bf16.mxu0 %v2524
    %3599 = vmatpush1.bf16.msra.mxu0 %v2523
    %3600 = vmatprep.subr.bf16.mxu0 %v2522
    %3601 = vmatpush1.bf16.msra.mxu0 %v2521
    %3602 = vmatprep.subr.bf16.mxu0 %v2552
    %3603 = vmatpush2.bf16.msra.mxu0 %v2551
    %3604 = vmatprep.subr.bf16.mxu0 %v2550
    %3605 = vmatpush2.bf16.msra.mxu0 %v2549
    %3606 = vmatprep.subr.bf16.mxu0 %v2548
    %3607 = vmatpush2.bf16.msra.mxu0 %v2547
    %3608 = vmatprep.subr.bf16.mxu0 %v2546
    %3609 = vmatpush2.bf16.msra.mxu0 %v2545
    %3610 = vmatprep.subr.bf16.mxu0 %v2544
    %3611 = vmatpush2.bf16.msra.mxu0 %v2543
    %3612 = vmatprep.subr.bf16.mxu0 %v2542
    %3613 = vmatpush2.bf16.msra.mxu0 %v2541
    %3614 = vmatprep.subr.bf16.mxu0 %v2540
    %3615 = vmatpush2.bf16.msra.mxu0 %v2539
    %3616 = vmatprep.subr.bf16.mxu0 %v2538
    %3617 = vmatpush2.bf16.msra.mxu0 %v2537
    %3618 = vmatprep.mubr.bf16.mxu0 %v683
    %3619 = vmatmul.mubr.bf16.gmra.mxu0 %v681
    %v3620 = vpop.f32.mrf.mxu0
    %v3621 = vadd.f32 %v3580, %v3620
    %v3622 = vpop.f32.mrf.mxu0
    %v3623 = vadd.f32 %v3582, %v3622
    %v3624 = vpop.f32.mrf.mxu0
    %v3625 = vpop.f32.mrf.mxu0
    %3626 = vdwg.mxu0
    %3627 = vmatprep.subr.bf16.mxu0 %v2568
    %3628 = vmatpush1.bf16.msra.mxu0 %v2567
    %3629 = vmatprep.subr.bf16.mxu0 %v2566
    %3630 = vmatpush1.bf16.msra.mxu0 %v2565
    %3631 = vmatprep.subr.bf16.mxu0 %v2564
    %3632 = vmatpush1.bf16.msra.mxu0 %v2563
    %3633 = vmatprep.subr.bf16.mxu0 %v2562
    %3634 = vmatpush1.bf16.msra.mxu0 %v2561
    %3635 = vmatprep.subr.bf16.mxu0 %v2560
    %3636 = vmatpush1.bf16.msra.mxu0 %v2559
    %3637 = vmatprep.subr.bf16.mxu0 %v2558
    %3638 = vmatpush1.bf16.msra.mxu0 %v2557
    %3639 = vmatprep.subr.bf16.mxu0 %v2556
    %3640 = vmatpush1.bf16.msra.mxu0 %v2555
    %3641 = vmatprep.subr.bf16.mxu0 %v2554
    %3642 = vmatpush1.bf16.msra.mxu0 %v2553
    %3643 = vmatprep.subr.bf16.mxu0 %v2584
    %3644 = vmatpush2.bf16.msra.mxu0 %v2583
    %3645 = vmatprep.subr.bf16.mxu0 %v2582
    %3646 = vmatpush2.bf16.msra.mxu0 %v2581
    %3647 = vmatprep.subr.bf16.mxu0 %v2580
    %3648 = vmatpush2.bf16.msra.mxu0 %v2579
    %3649 = vmatprep.subr.bf16.mxu0 %v2578
    %3650 = vmatpush2.bf16.msra.mxu0 %v2577
    %3651 = vmatprep.subr.bf16.mxu0 %v2576
    %3652 = vmatpush2.bf16.msra.mxu0 %v2575
    %3653 = vmatprep.subr.bf16.mxu0 %v2574
    %3654 = vmatpush2.bf16.msra.mxu0 %v2573
    %3655 = vmatprep.subr.bf16.mxu0 %v2572
    %3656 = vmatpush2.bf16.msra.mxu0 %v2571
    %3657 = vmatprep.subr.bf16.mxu0 %v2570
    %3658 = vmatpush2.bf16.msra.mxu0 %v2569
    %3659 = vmatprep.mubr.bf16.mxu0 %v680
    %3660 = vmatmul.mubr.bf16.gmra.mxu0 %v666
    %v3661 = vpop.f32.mrf.mxu0
    %v3662 = vadd.f32 %v3621, %v3661
    %v3663 = vpop.f32.mrf.mxu0
    %v3664 = vadd.f32 %v3623, %v3663
    %v3665 = vpop.f32.mrf.mxu0
    %v3666 = vpop.f32.mrf.mxu0
    %3667 = vdwg.mxu0
    %3668 = vmatprep.subr.bf16.mxu0 %v2600
    %3669 = vmatpush1.bf16.msra.mxu0 %v2599
    %3670 = vmatprep.subr.bf16.mxu0 %v2598
    %3671 = vmatpush1.bf16.msra.mxu0 %v2597
    %3672 = vmatprep.subr.bf16.mxu0 %v2596
    %3673 = vmatpush1.bf16.msra.mxu0 %v2595
    %3674 = vmatprep.subr.bf16.mxu0 %v2594
    %3675 = vmatpush1.bf16.msra.mxu0 %v2593
    %3676 = vmatprep.subr.bf16.mxu0 %v2592
    %3677 = vmatpush1.bf16.msra.mxu0 %v2591
    %3678 = vmatprep.subr.bf16.mxu0 %v2590
    %3679 = vmatpush1.bf16.msra.mxu0 %v2589
    %3680 = vmatprep.subr.bf16.mxu0 %v2588
    %3681 = vmatpush1.bf16.msra.mxu0 %v2587
    %3682 = vmatprep.subr.bf16.mxu0 %v2586
    %3683 = vmatpush1.bf16.msra.mxu0 %v2585
    %3684 = vmatprep.subr.bf16.mxu0 %v2616
    %3685 = vmatpush2.bf16.msra.mxu0 %v2615
    %3686 = vmatprep.subr.bf16.mxu0 %v2614
    %3687 = vmatpush2.bf16.msra.mxu0 %v2613
    %3688 = vmatprep.subr.bf16.mxu0 %v2612
    %3689 = vmatpush2.bf16.msra.mxu0 %v2611
    %3690 = vmatprep.subr.bf16.mxu0 %v2610
    %3691 = vmatpush2.bf16.msra.mxu0 %v2609
    %3692 = vmatprep.subr.bf16.mxu0 %v2608
    %3693 = vmatpush2.bf16.msra.mxu0 %v2607
    %3694 = vmatprep.subr.bf16.mxu0 %v2606
    %3695 = vmatpush2.bf16.msra.mxu0 %v2605
    %3696 = vmatprep.subr.bf16.mxu0 %v2604
    %3697 = vmatpush2.bf16.msra.mxu0 %v2603
    %3698 = vmatprep.subr.bf16.mxu0 %v2602
    %3699 = vmatpush2.bf16.msra.mxu0 %v2601
    %3700 = vmatprep.mubr.bf16.mxu0 %v684
    %3701 = vmatmul.mubr.bf16.gmra.mxu0 %v682
    %v3702 = vpop.f32.mrf.mxu0
    %v3703 = vadd.f32 %v3662, %v3702
    %v3704 = vpop.f32.mrf.mxu0
    %v3705 = vadd.f32 %v3664, %v3704
    %v3706 = vpop.f32.mrf.mxu0
    %v3707 = vpop.f32.mrf.mxu0
    %3708 = vdwg.mxu0
    %3709 = vmatprep.subr.bf16.mxu0 %v2632
    %3710 = vmatpush1.bf16.msra.mxu0 %v2631
    %3711 = vmatprep.subr.bf16.mxu0 %v2630
    %3712 = vmatpush1.bf16.msra.mxu0 %v2629
    %3713 = vmatprep.subr.bf16.mxu0 %v2628
    %3714 = vmatpush1.bf16.msra.mxu0 %v2627
    %3715 = vmatprep.subr.bf16.mxu0 %v2626
    %3716 = vmatpush1.bf16.msra.mxu0 %v2625
    %3717 = vmatprep.subr.bf16.mxu0 %v2624
    %3718 = vmatpush1.bf16.msra.mxu0 %v2623
    %3719 = vmatprep.subr.bf16.mxu0 %v2622
    %3720 = vmatpush1.bf16.msra.mxu0 %v2621
    %3721 = vmatprep.subr.bf16.mxu0 %v2620
    %3722 = vmatpush1.bf16.msra.mxu0 %v2619
    %3723 = vmatprep.subr.bf16.mxu0 %v2618
    %3724 = vmatpush1.bf16.msra.mxu0 %v2617
    %3725 = vmatprep.subr.bf16.mxu0 %v2648
    %3726 = vmatpush2.bf16.msra.mxu0 %v2647
    %3727 = vmatprep.subr.bf16.mxu0 %v2646
    %3728 = vmatpush2.bf16.msra.mxu0 %v2645
    %3729 = vmatprep.subr.bf16.mxu0 %v2644
    %3730 = vmatpush2.bf16.msra.mxu0 %v2643
    %3731 = vmatprep.subr.bf16.mxu0 %v2642
    %3732 = vmatpush2.bf16.msra.mxu0 %v2641
    %3733 = vmatprep.subr.bf16.mxu0 %v2640
    %3734 = vmatpush2.bf16.msra.mxu0 %v2639
    %3735 = vmatprep.subr.bf16.mxu0 %v2638
    %3736 = vmatpush2.bf16.msra.mxu0 %v2637
    %3737 = vmatprep.subr.bf16.mxu0 %v2636
    %3738 = vmatpush2.bf16.msra.mxu0 %v2635
    %3739 = vmatprep.subr.bf16.mxu0 %v2634
    %3740 = vmatpush2.bf16.msra.mxu0 %v2633
    %3741 = vmatprep.mubr.bf16.mxu0 %v722
    %3742 = vmatmul.mubr.bf16.gmra.mxu0 %v708
    %v3743 = vpop.f32.mrf.mxu0
    %v3744 = vadd.f32 %v3703, %v3743
    %v3745 = vpop.f32.mrf.mxu0
    %v3746 = vadd.f32 %v3705, %v3745
    %v3747 = vpop.f32.mrf.mxu0
    %v3748 = vpop.f32.mrf.mxu0
    %3749 = vdwg.mxu0
    %3750 = vmatprep.subr.bf16.mxu0 %v2664
    %3751 = vmatpush1.bf16.msra.mxu0 %v2663
    %3752 = vmatprep.subr.bf16.mxu0 %v2662
    %3753 = vmatpush1.bf16.msra.mxu0 %v2661
    %3754 = vmatprep.subr.bf16.mxu0 %v2660
    %3755 = vmatpush1.bf16.msra.mxu0 %v2659
    %3756 = vmatprep.subr.bf16.mxu0 %v2658
    %3757 = vmatpush1.bf16.msra.mxu0 %v2657
    %3758 = vmatprep.subr.bf16.mxu0 %v2656
    %3759 = vmatpush1.bf16.msra.mxu0 %v2655
    %3760 = vmatprep.subr.bf16.mxu0 %v2654
    %3761 = vmatpush1.bf16.msra.mxu0 %v2653
    %3762 = vmatprep.subr.bf16.mxu0 %v2652
    %3763 = vmatpush1.bf16.msra.mxu0 %v2651
    %3764 = vmatprep.subr.bf16.mxu0 %v2650
    %3765 = vmatpush1.bf16.msra.mxu0 %v2649
    %3766 = vmatprep.subr.bf16.mxu0 %v2680
    %3767 = vmatpush2.bf16.msra.mxu0 %v2679
    %3768 = vmatprep.subr.bf16.mxu0 %v2678
    %3769 = vmatpush2.bf16.msra.mxu0 %v2677
    %3770 = vmatprep.subr.bf16.mxu0 %v2676
    %3771 = vmatpush2.bf16.msra.mxu0 %v2675
    %3772 = vmatprep.subr.bf16.mxu0 %v2674
    %3773 = vmatpush2.bf16.msra.mxu0 %v2673
    %3774 = vmatprep.subr.bf16.mxu0 %v2672
    %3775 = vmatpush2.bf16.msra.mxu0 %v2671
    %3776 = vmatprep.subr.bf16.mxu0 %v2670
    %3777 = vmatpush2.bf16.msra.mxu0 %v2669
    %3778 = vmatprep.subr.bf16.mxu0 %v2668
    %3779 = vmatpush2.bf16.msra.mxu0 %v2667
    %3780 = vmatprep.subr.bf16.mxu0 %v2666
    %3781 = vmatpush2.bf16.msra.mxu0 %v2665
    %3782 = vmatprep.mubr.bf16.mxu0 %v732
    %3783 = vmatmul.mubr.bf16.gmra.mxu0 %v730
    %v3784 = vpop.f32.mrf.mxu0
    %v3785 = vadd.f32 %v3744, %v3784
    %v3786 = vpop.f32.mrf.mxu0
    %v3787 = vadd.f32 %v3746, %v3786
    %v3788 = vpop.f32.mrf.mxu0
    %v3789 = vpop.f32.mrf.mxu0
    %3790 = vdwg.mxu0
    %3791 = vmatprep.subr.bf16.mxu0 %v2696
    %3792 = vmatpush1.bf16.msra.mxu0 %v2695
    %3793 = vmatprep.subr.bf16.mxu0 %v2694
    %3794 = vmatpush1.bf16.msra.mxu0 %v2693
    %3795 = vmatprep.subr.bf16.mxu0 %v2692
    %3796 = vmatpush1.bf16.msra.mxu0 %v2691
    %3797 = vmatprep.subr.bf16.mxu0 %v2690
    %3798 = vmatpush1.bf16.msra.mxu0 %v2689
    %3799 = vmatprep.subr.bf16.mxu0 %v2688
    %3800 = vmatpush1.bf16.msra.mxu0 %v2687
    %3801 = vmatprep.subr.bf16.mxu0 %v2686
    %3802 = vmatpush1.bf16.msra.mxu0 %v2685
    %3803 = vmatprep.subr.bf16.mxu0 %v2684
    %3804 = vmatpush1.bf16.msra.mxu0 %v2683
    %3805 = vmatprep.subr.bf16.mxu0 %v2682
    %3806 = vmatpush1.bf16.msra.mxu0 %v2681
    %3807 = vmatprep.subr.bf16.mxu0 %v2712
    %3808 = vmatpush2.bf16.msra.mxu0 %v2711
    %3809 = vmatprep.subr.bf16.mxu0 %v2710
    %3810 = vmatpush2.bf16.msra.mxu0 %v2709
    %3811 = vmatprep.subr.bf16.mxu0 %v2708
    %3812 = vmatpush2.bf16.msra.mxu0 %v2707
    %3813 = vmatprep.subr.bf16.mxu0 %v2706
    %3814 = vmatpush2.bf16.msra.mxu0 %v2705
    %3815 = vmatprep.subr.bf16.mxu0 %v2704
    %3816 = vmatpush2.bf16.msra.mxu0 %v2703
    %3817 = vmatprep.subr.bf16.mxu0 %v2702
    %3818 = vmatpush2.bf16.msra.mxu0 %v2701
    %3819 = vmatprep.subr.bf16.mxu0 %v2700
    %3820 = vmatpush2.bf16.msra.mxu0 %v2699
    %3821 = vmatprep.subr.bf16.mxu0 %v2698
    %3822 = vmatpush2.bf16.msra.mxu0 %v2697
    %3823 = vmatprep.mubr.bf16.mxu0 %v729
    %3824 = vmatmul.mubr.bf16.gmra.mxu0 %v715
    %v3825 = vpop.f32.mrf.mxu0
    %v3826 = vadd.f32 %v3785, %v3825
    %v3827 = vpop.f32.mrf.mxu0
    %v3828 = vadd.f32 %v3787, %v3827
    %v3829 = vpop.f32.mrf.mxu0
    %v3830 = vpop.f32.mrf.mxu0
    %3831 = vdwg.mxu0
    %3832 = vmatprep.subr.bf16.mxu0 0
    %3833 = vmatpush1.bf16.msra.mxu0 0
    %3834 = vmatprep.subr.bf16.mxu0 0
    %3835 = vmatpush1.bf16.msra.mxu0 0
    %3836 = vmatprep.subr.bf16.mxu0 0
    %3837 = vmatpush1.bf16.msra.mxu0 0
    %3838 = vmatprep.subr.bf16.mxu0 %v2722
    %3839 = vmatpush1.bf16.msra.mxu0 %v2721
    %3840 = vmatprep.subr.bf16.mxu0 %v2720
    %3841 = vmatpush1.bf16.msra.mxu0 %v2719
    %3842 = vmatprep.subr.bf16.mxu0 %v2718
    %3843 = vmatpush1.bf16.msra.mxu0 %v2717
    %3844 = vmatprep.subr.bf16.mxu0 %v2716
    %3845 = vmatpush1.bf16.msra.mxu0 %v2715
    %3846 = vmatprep.subr.bf16.mxu0 %v2714
    %3847 = vmatpush1.bf16.msra.mxu0 %v2713
    %3848 = vmatprep.subr.bf16.mxu0 0
    %3849 = vmatpush2.bf16.msra.mxu0 0
    %3850 = vmatprep.subr.bf16.mxu0 0
    %3851 = vmatpush2.bf16.msra.mxu0 0
    %3852 = vmatprep.subr.bf16.mxu0 0
    %3853 = vmatpush2.bf16.msra.mxu0 0
    %3854 = vmatprep.subr.bf16.mxu0 0
    %3855 = vmatpush2.bf16.msra.mxu0 0
    %3856 = vmatprep.subr.bf16.mxu0 0
    %3857 = vmatpush2.bf16.msra.mxu0 0
    %3858 = vmatprep.subr.bf16.mxu0 0
    %3859 = vmatpush2.bf16.msra.mxu0 0
    %3860 = vmatprep.subr.bf16.mxu0 0
    %3861 = vmatpush2.bf16.msra.mxu0 0
    %3862 = vmatprep.subr.bf16.mxu0 0
    %3863 = vmatpush2.bf16.msra.mxu0 0
    %3864 = vmatprep.mubr.bf16.mxu0 0
    %3865 = vmatmul.mubr.bf16.gmra.mxu0 %v3215
    %v3866 = vpop.f32.mrf.mxu0
    %v3867 = vadd.f32 %v3826, %v3866
    %v3868 = vpop.f32.mrf.mxu0
    %v3869 = vadd.f32 %v3828, %v3868
    %v3870 = vpop.f32.mrf.mxu0
    %v3871 = vpop.f32.mrf.mxu0
    %3872 = vdwg.mxu0
    %v3873 = vmax.f32 %v3867, 0.0
    %v3874 = vmax.f32 %v3869, 0.0
    %v3875 = vpack.c.bf16 %v3873, %v3873
    %v3876 = vpack.c.bf16 %v3874, %v3874
    %v3877 = vld [vmem:[%s3] sm:$0xf]
    %v3878 = vld [vmem:[%s3 + $0x4] sm:$0xf]
    %v3879 = vld [vmem:[%s3 + $0x8] sm:$0xf]
    %v3880 = vld [vmem:[%s3 + $0xc] sm:$0xf]
    %v3881 = vld [vmem:[%s3 + $0x10] sm:$0xf]
    %v3882 = vld [vmem:[%s3 + $0x14] sm:$0xf]
    %v3883 = vld [vmem:[%s3 + $0x18] sm:$0xf]
    %v3884 = vld [vmem:[%s3 + $0x1c] sm:$0xf]
    %v3885 = vld [vmem:[%s3 + $0x20] sm:$0xf]
    %v3886 = vld [vmem:[%s3 + $0x24] sm:$0xf]
    %v3887 = vld [vmem:[%s3 + $0x28] sm:$0xf]
    %v3888 = vld [vmem:[%s3 + $0x2c] sm:$0xf]
    %v3889 = vld [vmem:[%s3 + $0x30] sm:$0xf]
    %v3890 = vld [vmem:[%s3 + $0x34] sm:$0xf]
    %v3891 = vld [vmem:[%s3 + $0x38] sm:$0xf]
    %v3892 = vld [vmem:[%s3 + $0x3c] sm:$0xf]
    %v3893 = vld [vmem:[%s3 + $0x40] sm:$0xf]
    %v3894 = vld [vmem:[%s3 + $0x44] sm:$0xf]
    %v3895 = vld [vmem:[%s3 + $0x48] sm:$0xf]
    %v3896 = vld [vmem:[%s3 + $0x4c] sm:$0xf]
    %v3897 = vld [vmem:[%s3 + $0x50] sm:$0xf]
    %v3898 = vld [vmem:[%s3 + $0x54] sm:$0xf]
    %v3899 = vld [vmem:[%s3 + $0x58] sm:$0xf]
    %v3900 = vld [vmem:[%s3 + $0x5c] sm:$0xf]
    %v3901 = vld [vmem:[%s3 + $0x60] sm:$0xf]
    %v3902 = vld [vmem:[%s4] sm:$0x1]
    %v3904 = vlaneseq
    %v3905 = vshrl.u32 %v3904, 7
    %v3906 = vsub.s32 0, %v3905
    %v3907 = vrot.slane %v3902, %v3906
    %v3934 = vunpack.c.l.b16 %v3877
    %v3935 = vunpack.c.l.b16 %v3878
    %v3936 = vunpack.c.l.b16 %v3879
    %v3937 = vunpack.c.l.b16 %v3880
    %v3938 = vunpack.c.l.b16 %v3881
    %v3939 = vunpack.c.l.b16 %v3882
    %v3940 = vunpack.c.l.b16 %v3883
    %v3941 = vunpack.c.l.b16 %v3884
    %v3942 = vunpack.c.l.b16 %v3885
    %v3943 = vunpack.c.l.b16 %v3886
    %v3944 = vunpack.c.l.b16 %v3887
    %v3945 = vunpack.c.l.b16 %v3888
    %v3946 = vunpack.c.l.b16 %v3889
    %v3947 = vunpack.c.l.b16 %v3890
    %v3948 = vunpack.c.l.b16 %v3891
    %v3949 = vunpack.c.l.b16 %v3892
    %v3950 = vunpack.c.l.b16 %v3893
    %v3951 = vunpack.c.l.b16 %v3894
    %v3952 = vunpack.c.l.b16 %v3895
    %v3953 = vunpack.c.l.b16 %v3896
    %v3954 = vunpack.c.l.b16 %v3897
    %v3955 = vunpack.c.l.b16 %v3898
    %v3956 = vunpack.c.l.b16 %v3899
    %v3957 = vunpack.c.l.b16 %v3900
    %v3958 = vunpack.c.l.b16 %v3901
    %v3959 = vpack.c.b16 %v3935, %v3934
    %v3960 = vpack.c.b16 %v3937, %v3936
    %v3961 = vpack.c.b16 %v3939, %v3938
    %v3962 = vpack.c.b16 %v3941, %v3940
    %v3963 = vpack.c.b16 %v3943, %v3942
    %v3964 = vpack.c.b16 %v3945, %v3944
    %v3965 = vpack.c.b16 %v3947, %v3946
    %v3966 = vpack.c.b16 %v3949, %v3948
    %v3967 = vpack.c.b16 %v3951, %v3950
    %v3968 = vpack.c.b16 %v3953, %v3952
    %v3969 = vpack.c.b16 %v3955, %v3954
    %v3970 = vpack.c.b16 %v3957, %v3956
    %v3971 = vpack.c.b16 %v3958, %v3958
    %vm3984 = vcmask 588800
    %v3986 = vsel %vm3984, %v3876, 0
    %vm3988 = vcmask 1043456
    %v3990 = vsel %vm3988, %v3971, 0
    %3992 = vmatprep.subr.bf16.mxu0 0
    %3993 = vmatpush1.bf16.msra.mxu0 %v3966
    %3994 = vmatprep.subr.bf16.mxu0 0
    %3995 = vmatpush1.bf16.msra.mxu0 %v3965
    %3996 = vmatprep.subr.bf16.mxu0 0
    %3997 = vmatpush1.bf16.msra.mxu0 %v3964
    %3998 = vmatprep.subr.bf16.mxu0 0
    %3999 = vmatpush1.bf16.msra.mxu0 %v3963
    %4000 = vmatprep.subr.bf16.mxu0 0
    %4001 = vmatpush1.bf16.msra.mxu0 %v3962
    %4002 = vmatprep.subr.bf16.mxu0 0
    %4003 = vmatpush1.bf16.msra.mxu0 %v3961
    %4004 = vmatprep.subr.bf16.mxu0 0
    %4005 = vmatpush1.bf16.msra.mxu0 %v3960
    %4006 = vmatprep.subr.bf16.mxu0 0
    %4007 = vmatpush1.bf16.msra.mxu0 %v3959
    %4008 = vmatprep.subr.bf16.mxu0 0
    %4009 = vmatpush2.bf16.msra.mxu0 0
    %4010 = vmatprep.subr.bf16.mxu0 0
    %4011 = vmatpush2.bf16.msra.mxu0 0
    %4012 = vmatprep.subr.bf16.mxu0 0
    %4013 = vmatpush2.bf16.msra.mxu0 0
    %4014 = vmatprep.subr.bf16.mxu0 0
    %4015 = vmatpush2.bf16.msra.mxu0 %v3990
    %4016 = vmatprep.subr.bf16.mxu0 0
    %4017 = vmatpush2.bf16.msra.mxu0 %v3970
    %4018 = vmatprep.subr.bf16.mxu0 0
    %4019 = vmatpush2.bf16.msra.mxu0 %v3969
    %4020 = vmatprep.subr.bf16.mxu0 0
    %4021 = vmatpush2.bf16.msra.mxu0 %v3968
    %4022 = vmatprep.subr.bf16.mxu0 0
    %4023 = vmatpush2.bf16.msra.mxu0 %v3967
    %4024 = vmatprep.mubr.bf16.mxu0 %v3986
    %4025 = vmatmul.mubr.bf16.gmra.mxu0 %v3875
    %v4026 = vpop.f32.mrf.mxu0
    %v4027 = vadd.f32 %v3907, %v4026
    %v4028 = vpop.f32.mrf.mxu0
    %v4029 = vpop.f32.mrf.mxu0
    %v4030 = vpop.f32.mrf.mxu0
    %4031 = vdwg.mxu0
    %v4032 = vmax.f32 %v4027, 0.0
    %v4033 = vpack.c.bf16 %v4032, %v4032
    %v4034 = vld [vmem:[%s5] sm:$0xf]
    %v4035 = vld [vmem:[%s5 + $0x4] sm:$0xf]
    %v4036 = vld [vmem:[%s5 + $0x8] sm:$0xf]
    %v4037 = vld [vmem:[%s5 + $0xc] sm:$0xf]
    %v4038 = vld [vmem:[%s5 + $0x10] sm:$0xf]
    %v4039 = vld [vmem:[%s5 + $0x14] sm:$0xf]
    %v4040 = vld [vmem:[%s5 + $0x18] sm:$0xf]
    %v4041 = vld [vmem:[%s5 + $0x1c] sm:$0xf]
    %v4042 = vld [vmem:[%s5 + $0x20] sm:$0xf]
    %v4043 = vld [vmem:[%s5 + $0x24] sm:$0xf]
    %v4044 = vld [vmem:[%s6] sm:$0x1]
    %v4046 = vlaneseq
    %v4047 = vshrl.u32 %v4046, 7
    %v4048 = vsub.s32 0, %v4047
    %v4049 = vrot.slane %v4044, %v4048
    %v4061 = vunpack.c.l.b16 %v4034
    %v4062 = vunpack.c.l.b16 %v4035
    %v4063 = vunpack.c.l.b16 %v4036
    %v4064 = vunpack.c.l.b16 %v4037
    %v4065 = vunpack.c.l.b16 %v4038
    %v4066 = vunpack.c.l.b16 %v4039
    %v4067 = vunpack.c.l.b16 %v4040
    %v4068 = vunpack.c.l.b16 %v4041
    %v4069 = vunpack.c.l.b16 %v4042
    %v4070 = vunpack.c.l.b16 %v4043
    %v4071 = vpack.c.b16 %v4062, %v4061
    %v4072 = vpack.c.b16 %v4064, %v4063
    %v4073 = vpack.c.b16 %v4066, %v4065
    %v4074 = vpack.c.b16 %v4068, %v4067
    %v4075 = vpack.c.b16 %v4070, %v4069
    %v4082 = vsel %vm3213, %v4033, 0
    %4084 = vmatprep.subr.bf16.mxu0 0
    %4085 = vmatpush1.bf16.msra.mxu0 0
    %4086 = vmatprep.subr.bf16.mxu0 0
    %4087 = vmatpush1.bf16.msra.mxu0 0
    %4088 = vmatprep.subr.bf16.mxu0 0
    %4089 = vmatpush1.bf16.msra.mxu0 0
    %4090 = vmatprep.subr.bf16.mxu0 0
    %4091 = vmatpush1.bf16.msra.mxu0 %v4075
    %4092 = vmatprep.subr.bf16.mxu0 0
    %4093 = vmatpush1.bf16.msra.mxu0 %v4074
    %4094 = vmatprep.subr.bf16.mxu0 0
    %4095 = vmatpush1.bf16.msra.mxu0 %v4073
    %4096 = vmatprep.subr.bf16.mxu0 0
    %4097 = vmatpush1.bf16.msra.mxu0 %v4072
    %4098 = vmatprep.subr.bf16.mxu0 0
    %4099 = vmatpush1.bf16.msra.mxu0 %v4071
    %4100 = vmatprep.subr.bf16.mxu0 0
    %4101 = vmatpush2.bf16.msra.mxu0 0
    %4102 = vmatprep.subr.bf16.mxu0 0
    %4103 = vmatpush2.bf16.msra.mxu0 0
    %4104 = vmatprep.subr.bf16.mxu0 0
    %4105 = vmatpush2.bf16.msra.mxu0 0
    %4106 = vmatprep.subr.bf16.mxu0 0
    %4107 = vmatpush2.bf16.msra.mxu0 0
    %4108 = vmatprep.subr.bf16.mxu0 0
    %4109 = vmatpush2.bf16.msra.mxu0 0
    %4110 = vmatprep.subr.bf16.mxu0 0
    %4111 = vmatpush2.bf16.msra.mxu0 0
    %4112 = vmatprep.subr.bf16.mxu0 0
    %4113 = vmatpush2.bf16.msra.mxu0 0
    %4114 = vmatprep.subr.bf16.mxu0 0
    %4115 = vmatpush2.bf16.msra.mxu0 0
    %4116 = vmatprep.mubr.bf16.mxu0 0
    %4117 = vmatmul.mubr.bf16.gmra.mxu0 %v4082
    %v4118 = vpop.f32.mrf.mxu0
    %v4119 = vadd.f32 %v4049, %v4118
    %v4120 = vpop.f32.mrf.mxu0
    %v4121 = vpop.f32.mrf.mxu0
    %v4122 = vpop.f32.mrf.mxu0
    %4123 = vdwg.mxu0
    %vm4124 = vcmask 58368
    %4125 = vst.msk [vmem:[#allocation2] sm:$0x3] %vm4124, %v4119
    // Predicated region
    $region30: #{net6_forward.5} parent=1 // pred_check
      _
    $region31: #{net6_forward.5} parent=1 // pred_check_branch
      %4127 = sbr.rel (0) target = $region33
    $region32: #{net6_forward.5} parent=1 // pred_region
      %s4129 = ssub.s32 32, 32
      %4130 = vsyncadd [#allocation3], %s4129
      %s4132 = sshll.u32 [#allocation2], 4
      %s4133 = int_to_ptr.vmem [resolvable:$true] %s4132
      %4135 = dma.vmem_to_hbm [thread:$0]  %s4133, 32, %s7, [#allocation3]
    $region33: #{net6_forward.5} parent=1 // pred_fallthru
      _
    // Predicated region
    $region34: #{net6_forward.5} parent=1 // pred_check
      _
    $region35: #{net6_forward.5} parent=1 // pred_check_branch
      %4137 = sbr.rel (0) target = $region37
    $region36: #{net6_forward.5} parent=1 // pred_region
      %4138 = dma.done [#allocation3], 32
    $region37: #{net6_forward.5} parent=1 // pred_fallthru
      _
    %4139 = vsyncpa [#allocation3], 1

</llo_original>
